<compile_context>
chip_gen: v7x
topology: tpu7x:2x2x1
jax: 0.10.0
libtpu: 0.0.40
codegen_flags: <defaults>
</compile_context>

<pallas_src>
import functools

import jax
import jax.numpy as jnp
from jax import lax
from jax.experimental import pallas as pl
from jax.experimental.pallas import tpu as pltpu

EPS = 1e-5      # nn.BatchNorm2d default
LANE = 128      # TPU lane width


def _round_up(x, m):
    return ((x + m - 1) // m) * m


def _pick_tile_h(H, W, target_rows=1024):
    """Largest divisor of H whose row tile (tile_h * W pixels) stays near target."""
    best = 1
    for t in range(1, H + 1):
        if H % t == 0 and t * W <= max(target_rows, W):
            best = t
    return best


# ----------------------------------------------------------------------------
# Pallas kernels
# ----------------------------------------------------------------------------
def _conv_stats_kernel(x_ref, w_ref, m_ref, y_ref, s_ref, *, wp):
    """3x3 'same' conv (9 shifted matmuls) + per-tile BN partial sums.

    x_ref: (1, Rin, Cin)   flattened haloed row tile, Rin = (th+2)*wp + 2
    w_ref: (9, Cin, Cpad)  conv taps, k = 3*dy + dx (lane-padded Cout)
    m_ref: (Rf, 1)         1.0 for valid (non-pad) columns, 0.0 otherwise
    y_ref: (1, Rf, Cpad)   f32 pre-BN conv output, Rf = th*wp (junk cols kept)
    s_ref: (1, 2, Cpad)    per-tile [sum, sum of squares] over valid pixels
    """
    rf = y_ref.shape[1]
    # Conv bias omitted on purpose: BatchNorm's mean subtraction cancels a
    # per-channel bias exactly.
    y_ref[0] = jnp.dot(x_ref[0, 0:rf, :], w_ref[0],
                       preferred_element_type=jnp.float32)
    for k in range(1, 9):
        dy, dx = divmod(k, 3)
        s = dy * wp + dx
        y_ref[0] += jnp.dot(x_ref[0, s:s + rf, :], w_ref[k],
                            preferred_element_type=jnp.float32)

    acc = y_ref[0]
    masked = acc * m_ref[...]              # zero out the wp-W junk columns
    ssum = jnp.sum(masked, axis=0, keepdims=True)
    ssq = jnp.sum(masked * acc, axis=0, keepdims=True)
    s_ref[0, 0:1, :] = ssum
    s_ref[0, 1:2, :] = ssq


def _bn_relu_kernel(y_ref, sb_ref, o_ref):
    """Apply folded BatchNorm (scale/shift) + ReLU to one row tile."""
    y = y_ref[0]
    o_ref[0] = jnp.maximum(y * sb_ref[0:1, :] + sb_ref[1:2, :], 0.0
                           ).astype(o_ref.dtype)


# ----------------------------------------------------------------------------
# conv3x3 + BatchNorm2d(batch stats, biased var) + ReLU
# ----------------------------------------------------------------------------
def conv3x3_bn_relu(x_nhwc, w_hwio, gamma, beta, *,
                    compute_dtype=jnp.float32, out_dtype=jnp.float32):
    N, H, W, Cin = x_nhwc.shape
    Cout = w_hwio.shape[-1]
    Cpad = _round_up(Cout, LANE)            # lane-dense output (vst, not vst.msk)

    tile_h = _pick_tile_h(H, W)
    num_ht = H // tile_h
    T = N * num_ht
    Wp = W + 2
    Rin = (tile_h + 2) * Wp + 2             # +2: last (dy=2,dx>0) taps of junk cols
    Rf = tile_h * Wp

    # Haloed row tiles, flattened to (rows, Cin) per tile.  This is a
    # ~(1 + 2/tile_h)x copy of the input vs the 9x im2col slab it replaces.
    xp = jnp.pad(x_nhwc.astype(compute_dtype), ((0, 0), (1, 1), (1, 1), (0, 0)))
    xt = jnp.stack(
        [xp[:, t * tile_h:t * tile_h + tile_h + 2] for t in range(num_ht)],
        axis=1)                                        # (N, num_ht, th+2, Wp, Cin)
    xt = xt.reshape(T, (tile_h + 2) * Wp, Cin)
    xt = jnp.pad(xt, ((0, 0), (0, 2), (0, 0)))         # (T, Rin, Cin)

    # Weights: (3,3,Cin,Cout) -> (9, Cin, Cpad), zero-padded along lanes.
    wk = jnp.pad(w_hwio.reshape(9, Cin, Cout),
                 ((0, 0), (0, 0), (0, Cpad - Cout))).astype(compute_dtype)

    # Valid-column mask for the BN statistics (columns >= W of each padded
    # row are over-computed junk, sliced off after pass 2).
    col = jnp.arange(Rf, dtype=jnp.int32) % Wp
    mask = (col < W).astype(jnp.float32).reshape(Rf, 1)

    cparams = pltpu.CompilerParams(
        dimension_semantics=("parallel",),              # row tiles are independent
        vmem_limit_bytes=48 * 1024 * 1024)              # explicit, fits v7x's 64 MiB

    # --- pass 1: conv + per-tile partial statistics ---------------------------
    y, stats = pl.pallas_call(
        functools.partial(_conv_stats_kernel, wp=Wp),
        out_shape=(jax.ShapeDtypeStruct((T, Rf, Cpad), jnp.float32),
                   jax.ShapeDtypeStruct((T, 2, Cpad), jnp.float32)),
        grid=(T,),
        in_specs=[
            pl.BlockSpec((1, Rin, Cin), lambda t: (t, 0, 0)),
            pl.BlockSpec((9, Cin, Cpad), lambda t: (0, 0, 0)),
            pl.BlockSpec((Rf, 1), lambda t: (0, 0)),
        ],
        out_specs=(
            pl.BlockSpec((1, Rf, Cpad), lambda t: (t, 0, 0)),
            pl.BlockSpec((1, 2, Cpad), lambda t: (t, 0, 0)),
        ),
        compiler_params=cparams,
    )(xt, wk, mask)

    # --- global batch statistics (tiny cross-tile reduction, plain JAX) -------
    # var = E[x^2] - E[x]^2 in f32; post-BN scale is O(1) so cancellation is
    # benign at these magnitudes.
    tot = jnp.sum(stats, axis=0)                        # (2, Cpad)
    count = jnp.float32(N * H * W)
    mean = tot[0] / count
    var = jnp.maximum(tot[1] / count - mean * mean, 0.0)
    g = jnp.pad(gamma.astype(jnp.float32), (0, Cpad - Cout))
    b = jnp.pad(beta.astype(jnp.float32), (0, Cpad - Cout))
    scale = g * lax.rsqrt(var + EPS)
    shift = b - mean * scale
    sb = jnp.stack([scale, shift], axis=0)              # (2, Cpad) packed operand

    # --- pass 2: normalize + affine + ReLU -------------------------------------
    out = pl.pallas_call(
        _bn_relu_kernel,
        out_shape=jax.ShapeDtypeStruct((T, Rf, Cpad), out_dtype),
        grid=(T,),
        in_specs=[
            pl.BlockSpec((1, Rf, Cpad), lambda t: (t, 0, 0)),
            pl.BlockSpec((2, Cpad), lambda t: (0, 0)),
        ],
        out_specs=pl.BlockSpec((1, Rf, Cpad), lambda t: (t, 0, 0)),
        compiler_params=cparams,
    )(y, sb)

    out = out.reshape(N, num_ht, tile_h, Wp, Cpad)[:, :, :, :W, :Cout]
    return out.reshape(N, H, W, Cout)


# ----------------------------------------------------------------------------
# Bilinear upsample x2, align_corners=True (matches nn.Upsample) — JAX glue.
# ----------------------------------------------------------------------------
def bilinear_upsample_x2_align_corners(x_nhwc):
    N, H, W, C = x_nhwc.shape
    Ho, Wo = 2 * H, 2 * W

    def src_coords(n_in, n_out):
        if n_in == 1:
            z = jnp.zeros((n_out,), jnp.int32)
            return z, z, jnp.zeros((n_out,), jnp.float32)
        s = jnp.arange(n_out, dtype=jnp.float32) * (n_in - 1) / (n_out - 1)
        i0 = jnp.floor(s).astype(jnp.int32)
        i1 = jnp.minimum(i0 + 1, n_in - 1)
        return i0, i1, s - i0.astype(jnp.float32)

    y0, y1, fy = src_coords(H, Ho)
    x0, x1, fx = src_coords(W, Wo)

    top = x_nhwc[:, y0, :, :]
    bot = x_nhwc[:, y1, :, :]
    rows = top * (1.0 - fy)[None, :, None, None] + bot * fy[None, :, None, None]
    left = rows[:, :, x0, :]
    right = rows[:, :, x1, :]
    return left * (1.0 - fx)[None, None, :, None] + right * fx[None, None, :, None]


# ----------------------------------------------------------------------------
# Up.forward
# ----------------------------------------------------------------------------
def up_forward(params, x1_nchw, x2_nchw, *, compute_dtype=jnp.float32):
    # NCHW -> NHWC
    x1 = jnp.transpose(x1_nchw, (0, 2, 3, 1)).astype(jnp.float32)
    x2 = jnp.transpose(x2_nchw, (0, 2, 3, 1)).astype(jnp.float32)

    x1 = bilinear_upsample_x2_align_corners(x1)

    diffY = x2.shape[1] - x1.shape[1]
    diffX = x2.shape[2] - x1.shape[2]
    x1 = jnp.pad(x1, ((0, 0),
                      (diffY // 2, diffY - diffY // 2),
                      (diffX // 2, diffX - diffX // 2),
                      (0, 0)))

    # TODO(synk): fuse upsample+pad+concat into the first conv (split W1's K dim
    # into x1/x2 halves and accumulate two matmul streams in-kernel) so the
    # concatenated tensor never round-trips through HBM.
    x = jnp.concatenate([x1, x2], axis=-1)      # torch.cat([x1, x2], dim=1)

    # Conv biases (params["b1"]/["b2"]) are intentionally unused: BatchNorm's
    # mean subtraction cancels them exactly.
    h = conv3x3_bn_relu(x, params["w1"], params["g1"], params["bn_b1"],
                        compute_dtype=compute_dtype, out_dtype=compute_dtype)
    h = conv3x3_bn_relu(h, params["w2"], params["g2"], params["bn_b2"],
                        compute_dtype=compute_dtype, out_dtype=jnp.float32)

    return jnp.transpose(h, (0, 3, 1, 2))       # NHWC -> NCHW


# ----------------------------------------------------------------------------
# Deterministic parameter init (Up(in_channels, out_channels, bilinear=True))
# ----------------------------------------------------------------------------
def init_params(key, in_channels, out_channels):
    mid = in_channels // 2  # DuoCon(in, out, in // 2)
    k1, k2, k3, k4 = jax.random.split(key, 4)
    return {
        # HWIO layout (PyTorch OIHW weights transposed (2, 3, 1, 0))
        "w1": jax.random.normal(k1, (3, 3, in_channels, mid), jnp.float32) * 0.1,
        "b1": jax.random.normal(k2, (mid,), jnp.float32) * 0.1,
        "g1": jnp.ones((mid,), jnp.float32),
        "bn_b1": jnp.zeros((mid,), jnp.float32),
        "w2": jax.random.normal(k3, (3, 3, mid, out_channels), jnp.float32) * 0.1,
        "b2": jax.random.normal(k4, (out_channels,), jnp.float32) * 0.1,
        "g2": jnp.ones((out_channels,), jnp.float32),
        "bn_b2": jnp.zeros((out_channels,), jnp.float32),
    }


# ----------------------------------------------------------------------------
# Pure-JAX reference (no Pallas, includes the conv bias) for correctness check
# ----------------------------------------------------------------------------
def _ref_conv_bn_relu(x, w, b, g, beta):
    y = lax.conv_general_dilated(
        x, w, window_strides=(1, 1), padding="SAME",
        dimension_numbers=("NHWC", "HWIO", "NHWC")) + b
    mean = jnp.mean(y, axis=(0, 1, 2), keepdims=True)
    var = jnp.mean((y - mean) ** 2, axis=(0, 1, 2), keepdims=True)
    y = (y - mean) * lax.rsqrt(var + EPS) * g + beta
    return jnp.maximum(y, 0.0)


def up_forward_ref(params, x1_nchw, x2_nchw):
    x1 = jnp.transpose(x1_nchw, (0, 2, 3, 1)).astype(jnp.float32)
    x2 = jnp.transpose(x2_nchw, (0, 2, 3, 1)).astype(jnp.float32)
    x1 = bilinear_upsample_x2_align_corners(x1)
    diffY = x2.shape[1] - x1.shape[1]
    diffX = x2.shape[2] - x1.shape[2]
    x1 = jnp.pad(x1, ((0, 0), (diffY // 2, diffY - diffY // 2),
                      (diffX // 2, diffX - diffX // 2), (0, 0)))
    x = jnp.concatenate([x1, x2], axis=-1)
    h = _ref_conv_bn_relu(x, params["w1"], params["b1"], params["g1"], params["bn_b1"])
    h = _ref_conv_bn_relu(h, params["w2"], params["b2"], params["g2"], params["bn_b2"])
    return jnp.transpose(h, (0, 3, 1, 2))


if __name__ == "__main__":
    in_channels, out_channels = 8, 4  # concatenated input has in_channels total
    key = jax.random.PRNGKey(0)
    kp, kx1, kx2 = jax.random.split(key, 3)

    params = init_params(kp, in_channels, out_channels)

    # x1: low-res decoder feature (in_channels // 2 channels, half spatial)
    # x2: skip connection        (in_channels // 2 channels, full spatial)
    x1 = jax.random.normal(kx1, (2, in_channels // 2, 8, 8), jnp.float32)
    x2 = jax.random.normal(kx2, (2, in_channels // 2, 16, 16), jnp.float32)

    ref = jax.block_until_ready(up_forward_ref(params, x1, x2))

    # f32 path — matches the PyTorch (f32) module semantics.
    fwd_f32 = jax.jit(functools.partial(up_forward, compute_dtype=jnp.float32))
    out = jax.block_until_ready(fwd_f32(params, x1, x2))
    assert out.shape == (2, out_channels, 16, 16), out.shape
    assert jnp.all(jnp.isfinite(out))
    assert jnp.allclose(out, ref, rtol=1e-3, atol=1e-3), (
        float(jnp.max(jnp.abs(out - ref))))

    # bf16-into-MXU path (v6e/v7x optimization knob); loose tolerance vs f32 ref.
    fwd_bf16 = jax.jit(functools.partial(up_forward, compute_dtype=jnp.bfloat16))
    out_bf = jax.block_until_ready(fwd_bf16(params, x1, x2))
    assert out_bf.shape == (2, out_channels, 16, 16), out_bf.shape
    assert jnp.all(jnp.isfinite(out_bf))
    assert float(jnp.max(jnp.abs(out_bf - ref))) < 0.25

    print("KERNEL_OK")
</pallas_src>

<mosaic_0001>
module attributes {stable_mosaic.version = 11 : i64} {
  func.func @_conv_stats_kernel(%arg0: i32, %arg1: memref<1x326x8xf32, #tpu.memory_space<vmem>>, %arg2: memref<9x8x128xf32, #tpu.memory_space<vmem>>, %arg3: memref<288x1xf32, #tpu.memory_space<vmem>>, %arg4: memref<1x288x128xf32, #tpu.memory_space<vmem>>, %arg5: memref<1x2x128xf32, #tpu.memory_space<vmem>>) attributes {dimension_semantics = [#tpu.dimension_semantics<parallel>], iteration_bounds = array<i64: 2>, scalar_prefetch = 0 : i64, scratch_operands = 0 : i64, tpu.core_type = #tpu.core_type<tc>, window_params = [{transform_indices = @transform_0, window_bounds = array<i64: 1, 326, 8>}, {pipeline_mode = #tpu.pipeline_mode<synchronous>, transform_indices = @transform_1, window_bounds = array<i64: 9, 8, 128>}, {pipeline_mode = #tpu.pipeline_mode<synchronous>, transform_indices = @transform_2, window_bounds = array<i64: 288, 1>}, {transform_indices = @transform_3, window_bounds = array<i64: 1, 288, 128>}, {transform_indices = @transform_4, window_bounds = array<i64: 1, 2, 128>}]} {
    %c0 = arith.constant 0 : index
    %c0_0 = arith.constant 0 : index
    %c0_1 = arith.constant 0 : index
    %0 = vector.load %arg1[%c0, %c0_0, %c0_1] : memref<1x326x8xf32, #tpu.memory_space<vmem>>, vector<1x288x8xf32>
    %1 = vector.shape_cast %0 : vector<1x288x8xf32> to vector<288x8xf32>
    %c0_2 = arith.constant 0 : index
    %c0_3 = arith.constant 0 : index
    %c0_4 = arith.constant 0 : index
    %2 = vector.load %arg2[%c0_2, %c0_3, %c0_4] : memref<9x8x128xf32, #tpu.memory_space<vmem>>, vector<1x8x128xf32>
    %3 = vector.shape_cast %2 : vector<1x8x128xf32> to vector<8x128xf32>
    %cst = arith.constant dense<0.000000e+00> : vector<288x128xf32>
    %4 = tpu.matmul %1, %3, %cst {dimension_numbers = #tpu.dot_dimension_numbers<[1], [0], [0], [1], [0, 0, 1, 1], [], []>} : vector<288x8xf32>, vector<8x128xf32>, vector<288x128xf32> -> vector<288x128xf32>
    %c0_5 = arith.constant 0 : index
    %c0_6 = arith.constant 0 : index
    %c0_7 = arith.constant 0 : index
    %5 = vector.load %arg4[%c0_5, %c0_6, %c0_7] : memref<1x288x128xf32, #tpu.memory_space<vmem>>, vector<1x288x128xf32>
    %6 = vector.shape_cast %5 : vector<1x288x128xf32> to vector<288x128xf32>
    %7 = vector.shape_cast %4 : vector<288x128xf32> to vector<1x288x128xf32>
    tpu.vector_store %arg4[%c0_5, %c0_6, %c0_7], %7 {strides = array<i32>} : memref<1x288x128xf32, #tpu.memory_space<vmem>>, vector<1x288x128xf32>,
    %c0_8 = arith.constant 0 : index
    %c0_9 = arith.constant 0 : index
    %c0_10 = arith.constant 0 : index
    %8 = vector.load %arg4[%c0_8, %c0_9, %c0_10] : memref<1x288x128xf32, #tpu.memory_space<vmem>>, vector<1x288x128xf32>
    %9 = vector.shape_cast %8 : vector<1x288x128xf32> to vector<288x128xf32>
    %c0_11 = arith.constant 0 : index
    %c1 = arith.constant 1 : index
    %c0_12 = arith.constant 0 : index
    %10 = vector.load %arg1[%c0_11, %c1, %c0_12] : memref<1x326x8xf32, #tpu.memory_space<vmem>>, vector<1x288x8xf32>
    %11 = vector.shape_cast %10 : vector<1x288x8xf32> to vector<288x8xf32>
    %c1_13 = arith.constant 1 : index
    %c0_14 = arith.constant 0 : index
    %c0_15 = arith.constant 0 : index
    %12 = vector.load %arg2[%c1_13, %c0_14, %c0_15] : memref<9x8x128xf32, #tpu.memory_space<vmem>>, vector<1x8x128xf32>
    %13 = vector.shape_cast %12 : vector<1x8x128xf32> to vector<8x128xf32>
    %cst_16 = arith.constant dense<0.000000e+00> : vector<288x128xf32>
    %14 = tpu.matmul %11, %13, %cst_16 {dimension_numbers = #tpu.dot_dimension_numbers<[1], [0], [0], [1], [0, 0, 1, 1], [], []>} : vector<288x8xf32>, vector<8x128xf32>, vector<288x128xf32> -> vector<288x128xf32>
    %15 = arith.addf %9, %14 : vector<288x128xf32>
    %c0_17 = arith.constant 0 : index
    %c0_18 = arith.constant 0 : index
    %c0_19 = arith.constant 0 : index
    %16 = vector.load %arg4[%c0_17, %c0_18, %c0_19] : memref<1x288x128xf32, #tpu.memory_space<vmem>>, vector<1x288x128xf32>
    %17 = vector.shape_cast %16 : vector<1x288x128xf32> to vector<288x128xf32>
    %18 = vector.shape_cast %15 : vector<288x128xf32> to vector<1x288x128xf32>
    tpu.vector_store %arg4[%c0_17, %c0_18, %c0_19], %18 {strides = array<i32>} : memref<1x288x128xf32, #tpu.memory_space<vmem>>, vector<1x288x128xf32>,
    %c0_20 = arith.constant 0 : index
    %c0_21 = arith.constant 0 : index
    %c0_22 = arith.constant 0 : index
    %19 = vector.load %arg4[%c0_20, %c0_21, %c0_22] : memref<1x288x128xf32, #tpu.memory_space<vmem>>, vector<1x288x128xf32>
    %20 = vector.shape_cast %19 : vector<1x288x128xf32> to vector<288x128xf32>
    %c0_23 = arith.constant 0 : index
    %c2 = arith.constant 2 : index
    %c0_24 = arith.constant 0 : index
    %21 = vector.load %arg1[%c0_23, %c2, %c0_24] : memref<1x326x8xf32, #tpu.memory_space<vmem>>, vector<1x288x8xf32>
    %22 = vector.shape_cast %21 : vector<1x288x8xf32> to vector<288x8xf32>
    %c2_25 = arith.constant 2 : index
    %c0_26 = arith.constant 0 : index
    %c0_27 = arith.constant 0 : index
    %23 = vector.load %arg2[%c2_25, %c0_26, %c0_27] : memref<9x8x128xf32, #tpu.memory_space<vmem>>, vector<1x8x128xf32>
    %24 = vector.shape_cast %23 : vector<1x8x128xf32> to vector<8x128xf32>
    %cst_28 = arith.constant dense<0.000000e+00> : vector<288x128xf32>
    %25 = tpu.matmul %22, %24, %cst_28 {dimension_numbers = #tpu.dot_dimension_numbers<[1], [0], [0], [1], [0, 0, 1, 1], [], []>} : vector<288x8xf32>, vector<8x128xf32>, vector<288x128xf32> -> vector<288x128xf32>
    %26 = arith.addf %20, %25 : vector<288x128xf32>
    %c0_29 = arith.constant 0 : index
    %c0_30 = arith.constant 0 : index
    %c0_31 = arith.constant 0 : index
    %27 = vector.load %arg4[%c0_29, %c0_30, %c0_31] : memref<1x288x128xf32, #tpu.memory_space<vmem>>, vector<1x288x128xf32>
    %28 = vector.shape_cast %27 : vector<1x288x128xf32> to vector<288x128xf32>
    %29 = vector.shape_cast %26 : vector<288x128xf32> to vector<1x288x128xf32>
    tpu.vector_store %arg4[%c0_29, %c0_30, %c0_31], %29 {strides = array<i32>} : memref<1x288x128xf32, #tpu.memory_space<vmem>>, vector<1x288x128xf32>,
    %c0_32 = arith.constant 0 : index
    %c0_33 = arith.constant 0 : index
    %c0_34 = arith.constant 0 : index
    %30 = vector.load %arg4[%c0_32, %c0_33, %c0_34] : memref<1x288x128xf32, #tpu.memory_space<vmem>>, vector<1x288x128xf32>
    %31 = vector.shape_cast %30 : vector<1x288x128xf32> to vector<288x128xf32>
    %c0_35 = arith.constant 0 : index
    %c18 = arith.constant 18 : index
    %c0_36 = arith.constant 0 : index
    %32 = vector.load %arg1[%c0_35, %c18, %c0_36] : memref<1x326x8xf32, #tpu.memory_space<vmem>>, vector<1x288x8xf32>
    %33 = vector.shape_cast %32 : vector<1x288x8xf32> to vector<288x8xf32>
    %c3 = arith.constant 3 : index
    %c0_37 = arith.constant 0 : index
    %c0_38 = arith.constant 0 : index
    %34 = vector.load %arg2[%c3, %c0_37, %c0_38] : memref<9x8x128xf32, #tpu.memory_space<vmem>>, vector<1x8x128xf32>
    %35 = vector.shape_cast %34 : vector<1x8x128xf32> to vector<8x128xf32>
    %cst_39 = arith.constant dense<0.000000e+00> : vector<288x128xf32>
    %36 = tpu.matmul %33, %35, %cst_39 {dimension_numbers = #tpu.dot_dimension_numbers<[1], [0], [0], [1], [0, 0, 1, 1], [], []>} : vector<288x8xf32>, vector<8x128xf32>, vector<288x128xf32> -> vector<288x128xf32>
    %37 = arith.addf %31, %36 : vector<288x128xf32>
    %c0_40 = arith.constant 0 : index
    %c0_41 = arith.constant 0 : index
    %c0_42 = arith.constant 0 : index
    %38 = vector.load %arg4[%c0_40, %c0_41, %c0_42] : memref<1x288x128xf32, #tpu.memory_space<vmem>>, vector<1x288x128xf32>
    %39 = vector.shape_cast %38 : vector<1x288x128xf32> to vector<288x128xf32>
    %40 = vector.shape_cast %37 : vector<288x128xf32> to vector<1x288x128xf32>
    tpu.vector_store %arg4[%c0_40, %c0_41, %c0_42], %40 {strides = array<i32>} : memref<1x288x128xf32, #tpu.memory_space<vmem>>, vector<1x288x128xf32>,
    %c0_43 = arith.constant 0 : index
    %c0_44 = arith.constant 0 : index
    %c0_45 = arith.constant 0 : index
    %41 = vector.load %arg4[%c0_43, %c0_44, %c0_45] : memref<1x288x128xf32, #tpu.memory_space<vmem>>, vector<1x288x128xf32>
    %42 = vector.shape_cast %41 : vector<1x288x128xf32> to vector<288x128xf32>
    %c0_46 = arith.constant 0 : index
    %c19 = arith.constant 19 : index
    %c0_47 = arith.constant 0 : index
    %43 = vector.load %arg1[%c0_46, %c19, %c0_47] : memref<1x326x8xf32, #tpu.memory_space<vmem>>, vector<1x288x8xf32>
    %44 = vector.shape_cast %43 : vector<1x288x8xf32> to vector<288x8xf32>
    %c4 = arith.constant 4 : index
    %c0_48 = arith.constant 0 : index
    %c0_49 = arith.constant 0 : index
    %45 = vector.load %arg2[%c4, %c0_48, %c0_49] : memref<9x8x128xf32, #tpu.memory_space<vmem>>, vector<1x8x128xf32>
    %46 = vector.shape_cast %45 : vector<1x8x128xf32> to vector<8x128xf32>
    %cst_50 = arith.constant dense<0.000000e+00> : vector<288x128xf32>
    %47 = tpu.matmul %44, %46, %cst_50 {dimension_numbers = #tpu.dot_dimension_numbers<[1], [0], [0], [1], [0, 0, 1, 1], [], []>} : vector<288x8xf32>, vector<8x128xf32>, vector<288x128xf32> -> vector<288x128xf32>
    %48 = arith.addf %42, %47 : vector<288x128xf32>
    %c0_51 = arith.constant 0 : index
    %c0_52 = arith.constant 0 : index
    %c0_53 = arith.constant 0 : index
    %49 = vector.load %arg4[%c0_51, %c0_52, %c0_53] : memref<1x288x128xf32, #tpu.memory_space<vmem>>, vector<1x288x128xf32>
    %50 = vector.shape_cast %49 : vector<1x288x128xf32> to vector<288x128xf32>
    %51 = vector.shape_cast %48 : vector<288x128xf32> to vector<1x288x128xf32>
    tpu.vector_store %arg4[%c0_51, %c0_52, %c0_53], %51 {strides = array<i32>} : memref<1x288x128xf32, #tpu.memory_space<vmem>>, vector<1x288x128xf32>,
    %c0_54 = arith.constant 0 : index
    %c0_55 = arith.constant 0 : index
    %c0_56 = arith.constant 0 : index
    %52 = vector.load %arg4[%c0_54, %c0_55, %c0_56] : memref<1x288x128xf32, #tpu.memory_space<vmem>>, vector<1x288x128xf32>
    %53 = vector.shape_cast %52 : vector<1x288x128xf32> to vector<288x128xf32>
    %c0_57 = arith.constant 0 : index
    %c20 = arith.constant 20 : index
    %c0_58 = arith.constant 0 : index
    %54 = vector.load %arg1[%c0_57, %c20, %c0_58] : memref<1x326x8xf32, #tpu.memory_space<vmem>>, vector<1x288x8xf32>
    %55 = vector.shape_cast %54 : vector<1x288x8xf32> to vector<288x8xf32>
    %c5 = arith.constant 5 : index
    %c0_59 = arith.constant 0 : index
    %c0_60 = arith.constant 0 : index
    %56 = vector.load %arg2[%c5, %c0_59, %c0_60] : memref<9x8x128xf32, #tpu.memory_space<vmem>>, vector<1x8x128xf32>
    %57 = vector.shape_cast %56 : vector<1x8x128xf32> to vector<8x128xf32>
    %cst_61 = arith.constant dense<0.000000e+00> : vector<288x128xf32>
    %58 = tpu.matmul %55, %57, %cst_61 {dimension_numbers = #tpu.dot_dimension_numbers<[1], [0], [0], [1], [0, 0, 1, 1], [], []>} : vector<288x8xf32>, vector<8x128xf32>, vector<288x128xf32> -> vector<288x128xf32>
    %59 = arith.addf %53, %58 : vector<288x128xf32>
    %c0_62 = arith.constant 0 : index
    %c0_63 = arith.constant 0 : index
    %c0_64 = arith.constant 0 : index
    %60 = vector.load %arg4[%c0_62, %c0_63, %c0_64] : memref<1x288x128xf32, #tpu.memory_space<vmem>>, vector<1x288x128xf32>
    %61 = vector.shape_cast %60 : vector<1x288x128xf32> to vector<288x128xf32>
    %62 = vector.shape_cast %59 : vector<288x128xf32> to vector<1x288x128xf32>
    tpu.vector_store %arg4[%c0_62, %c0_63, %c0_64], %62 {strides = array<i32>} : memref<1x288x128xf32, #tpu.memory_space<vmem>>, vector<1x288x128xf32>,
    %c0_65 = arith.constant 0 : index
    %c0_66 = arith.constant 0 : index
    %c0_67 = arith.constant 0 : index
    %63 = vector.load %arg4[%c0_65, %c0_66, %c0_67] : memref<1x288x128xf32, #tpu.memory_space<vmem>>, vector<1x288x128xf32>
    %64 = vector.shape_cast %63 : vector<1x288x128xf32> to vector<288x128xf32>
    %c0_68 = arith.constant 0 : index
    %c36 = arith.constant 36 : index
    %c0_69 = arith.constant 0 : index
    %65 = vector.load %arg1[%c0_68, %c36, %c0_69] : memref<1x326x8xf32, #tpu.memory_space<vmem>>, vector<1x288x8xf32>
    %66 = vector.shape_cast %65 : vector<1x288x8xf32> to vector<288x8xf32>
    %c6 = arith.constant 6 : index
    %c0_70 = arith.constant 0 : index
    %c0_71 = arith.constant 0 : index
    %67 = vector.load %arg2[%c6, %c0_70, %c0_71] : memref<9x8x128xf32, #tpu.memory_space<vmem>>, vector<1x8x128xf32>
    %68 = vector.shape_cast %67 : vector<1x8x128xf32> to vector<8x128xf32>
    %cst_72 = arith.constant dense<0.000000e+00> : vector<288x128xf32>
    %69 = tpu.matmul %66, %68, %cst_72 {dimension_numbers = #tpu.dot_dimension_numbers<[1], [0], [0], [1], [0, 0, 1, 1], [], []>} : vector<288x8xf32>, vector<8x128xf32>, vector<288x128xf32> -> vector<288x128xf32>
    %70 = arith.addf %64, %69 : vector<288x128xf32>
    %c0_73 = arith.constant 0 : index
    %c0_74 = arith.constant 0 : index
    %c0_75 = arith.constant 0 : index
    %71 = vector.load %arg4[%c0_73, %c0_74, %c0_75] : memref<1x288x128xf32, #tpu.memory_space<vmem>>, vector<1x288x128xf32>
    %72 = vector.shape_cast %71 : vector<1x288x128xf32> to vector<288x128xf32>
    %73 = vector.shape_cast %70 : vector<288x128xf32> to vector<1x288x128xf32>
    tpu.vector_store %arg4[%c0_73, %c0_74, %c0_75], %73 {strides = array<i32>} : memref<1x288x128xf32, #tpu.memory_space<vmem>>, vector<1x288x128xf32>,
    %c0_76 = arith.constant 0 : index
    %c0_77 = arith.constant 0 : index
    %c0_78 = arith.constant 0 : index
    %74 = vector.load %arg4[%c0_76, %c0_77, %c0_78] : memref<1x288x128xf32, #tpu.memory_space<vmem>>, vector<1x288x128xf32>
    %75 = vector.shape_cast %74 : vector<1x288x128xf32> to vector<288x128xf32>
    %c0_79 = arith.constant 0 : index
    %c37 = arith.constant 37 : index
    %c0_80 = arith.constant 0 : index
    %76 = vector.load %arg1[%c0_79, %c37, %c0_80] : memref<1x326x8xf32, #tpu.memory_space<vmem>>, vector<1x288x8xf32>
    %77 = vector.shape_cast %76 : vector<1x288x8xf32> to vector<288x8xf32>
    %c7 = arith.constant 7 : index
    %c0_81 = arith.constant 0 : index
    %c0_82 = arith.constant 0 : index
    %78 = vector.load %arg2[%c7, %c0_81, %c0_82] : memref<9x8x128xf32, #tpu.memory_space<vmem>>, vector<1x8x128xf32>
    %79 = vector.shape_cast %78 : vector<1x8x128xf32> to vector<8x128xf32>
    %cst_83 = arith.constant dense<0.000000e+00> : vector<288x128xf32>
    %80 = tpu.matmul %77, %79, %cst_83 {dimension_numbers = #tpu.dot_dimension_numbers<[1], [0], [0], [1], [0, 0, 1, 1], [], []>} : vector<288x8xf32>, vector<8x128xf32>, vector<288x128xf32> -> vector<288x128xf32>
    %81 = arith.addf %75, %80 : vector<288x128xf32>
    %c0_84 = arith.constant 0 : index
    %c0_85 = arith.constant 0 : index
    %c0_86 = arith.constant 0 : index
    %82 = vector.load %arg4[%c0_84, %c0_85, %c0_86] : memref<1x288x128xf32, #tpu.memory_space<vmem>>, vector<1x288x128xf32>
    %83 = vector.shape_cast %82 : vector<1x288x128xf32> to vector<288x128xf32>
    %84 = vector.shape_cast %81 : vector<288x128xf32> to vector<1x288x128xf32>
    tpu.vector_store %arg4[%c0_84, %c0_85, %c0_86], %84 {strides = array<i32>} : memref<1x288x128xf32, #tpu.memory_space<vmem>>, vector<1x288x128xf32>,
    %c0_87 = arith.constant 0 : index
    %c0_88 = arith.constant 0 : index
    %c0_89 = arith.constant 0 : index
    %85 = vector.load %arg4[%c0_87, %c0_88, %c0_89] : memref<1x288x128xf32, #tpu.memory_space<vmem>>, vector<1x288x128xf32>
    %86 = vector.shape_cast %85 : vector<1x288x128xf32> to vector<288x128xf32>
    %c0_90 = arith.constant 0 : index
    %c38 = arith.constant 38 : index
    %c0_91 = arith.constant 0 : index
    %87 = vector.load %arg1[%c0_90, %c38, %c0_91] : memref<1x326x8xf32, #tpu.memory_space<vmem>>, vector<1x288x8xf32>
    %88 = vector.shape_cast %87 : vector<1x288x8xf32> to vector<288x8xf32>
    %c8 = arith.constant 8 : index
    %c0_92 = arith.constant 0 : index
    %c0_93 = arith.constant 0 : index
    %89 = vector.load %arg2[%c8, %c0_92, %c0_93] : memref<9x8x128xf32, #tpu.memory_space<vmem>>, vector<1x8x128xf32>
    %90 = vector.shape_cast %89 : vector<1x8x128xf32> to vector<8x128xf32>
    %cst_94 = arith.constant dense<0.000000e+00> : vector<288x128xf32>
    %91 = tpu.matmul %88, %90, %cst_94 {dimension_numbers = #tpu.dot_dimension_numbers<[1], [0], [0], [1], [0, 0, 1, 1], [], []>} : vector<288x8xf32>, vector<8x128xf32>, vector<288x128xf32> -> vector<288x128xf32>
    %92 = arith.addf %86, %91 : vector<288x128xf32>
    %c0_95 = arith.constant 0 : index
    %c0_96 = arith.constant 0 : index
    %c0_97 = arith.constant 0 : index
    %93 = vector.load %arg4[%c0_95, %c0_96, %c0_97] : memref<1x288x128xf32, #tpu.memory_space<vmem>>, vector<1x288x128xf32>
    %94 = vector.shape_cast %93 : vector<1x288x128xf32> to vector<288x128xf32>
    %95 = vector.shape_cast %92 : vector<288x128xf32> to vector<1x288x128xf32>
    tpu.vector_store %arg4[%c0_95, %c0_96, %c0_97], %95 {strides = array<i32>} : memref<1x288x128xf32, #tpu.memory_space<vmem>>, vector<1x288x128xf32>,
    %c0_98 = arith.constant 0 : index
    %c0_99 = arith.constant 0 : index
    %c0_100 = arith.constant 0 : index
    %96 = vector.load %arg4[%c0_98, %c0_99, %c0_100] : memref<1x288x128xf32, #tpu.memory_space<vmem>>, vector<1x288x128xf32>
    %97 = vector.shape_cast %96 : vector<1x288x128xf32> to vector<288x128xf32>
    %c0_101 = arith.constant 0 : index
    %c0_102 = arith.constant 0 : index
    %98 = vector.load %arg3[%c0_101, %c0_102] : memref<288x1xf32, #tpu.memory_space<vmem>>, vector<288x1xf32>
    %99 = vector.broadcast %98 : vector<288x1xf32> to vector<288x128xf32>
    %100 = arith.mulf %97, %99 : vector<288x128xf32>
    %cst_103 = arith.constant dense<0.000000e+00> : vector<128xf32>
    %101 = vector.multi_reduction <add>, %100, %cst_103 [0] : vector<288x128xf32> to vector<128xf32>
    %102 = vector.shape_cast %101 : vector<128xf32> to vector<1x128xf32>
    %103 = arith.mulf %100, %97 : vector<288x128xf32>
    %cst_104 = arith.constant dense<0.000000e+00> : vector<128xf32>
    %104 = vector.multi_reduction <add>, %103, %cst_104 [0] : vector<288x128xf32> to vector<128xf32>
    %105 = vector.shape_cast %104 : vector<128xf32> to vector<1x128xf32>
    %c0_105 = arith.constant 0 : index
    %c0_106 = arith.constant 0 : index
    %c0_107 = arith.constant 0 : index
    %106 = vector.load %arg5[%c0_105, %c0_106, %c0_107] : memref<1x2x128xf32, #tpu.memory_space<vmem>>, vector<1x1x128xf32>
    %107 = vector.shape_cast %106 : vector<1x1x128xf32> to vector<1x128xf32>
    %108 = vector.shape_cast %102 : vector<1x128xf32> to vector<1x1x128xf32>
    tpu.vector_store %arg5[%c0_105, %c0_106, %c0_107], %108 {strides = array<i32>} : memref<1x2x128xf32, #tpu.memory_space<vmem>>, vector<1x1x128xf32>,
    %c0_108 = arith.constant 0 : index
    %c1_109 = arith.constant 1 : index
    %c0_110 = arith.constant 0 : index
    %109 = vector.load %arg5[%c0_108, %c1_109, %c0_110] : memref<1x2x128xf32, #tpu.memory_space<vmem>>, vector<1x1x128xf32>
    %110 = vector.shape_cast %109 : vector<1x1x128xf32> to vector<1x128xf32>
    %111 = vector.shape_cast %105 : vector<1x128xf32> to vector<1x1x128xf32>
    tpu.vector_store %arg5[%c0_108, %c1_109, %c0_110], %111 {strides = array<i32>} : memref<1x2x128xf32, #tpu.memory_space<vmem>>, vector<1x1x128xf32>,
    return
  }
  func.func @transform_0(%arg0: i32) -> (i32, i32, i32) {
    %c0_i32 = arith.constant 0 : i32
    %c0_i32_0 = arith.constant 0 : i32
    %c0_i32_1 = arith.constant 0 : i32
    return %arg0, %c0_i32, %c0_i32_0 : i32, i32, i32
  }
  func.func @transform_1(%arg0: i32) -> (i32, i32, i32) {
    %c0_i32 = arith.constant 0 : i32
    %c0_i32_0 = arith.constant 0 : i32
    %c0_i32_1 = arith.constant 0 : i32
    %c0_i32_2 = arith.constant 0 : i32
    return %c0_i32, %c0_i32_0, %c0_i32_1 : i32, i32, i32
  }
  func.func @transform_2(%arg0: i32) -> (i32, i32) {
    %c0_i32 = arith.constant 0 : i32
    %c0_i32_0 = arith.constant 0 : i32
    %c0_i32_1 = arith.constant 0 : i32
    return %c0_i32, %c0_i32_0 : i32, i32
  }
  func.func @transform_3(%arg0: i32) -> (i32, i32, i32) {
    %c0_i32 = arith.constant 0 : i32
    %c0_i32_0 = arith.constant 0 : i32
    %c0_i32_1 = arith.constant 0 : i32
    return %arg0, %c0_i32, %c0_i32_0 : i32, i32, i32
  }
  func.func @transform_4(%arg0: i32) -> (i32, i32, i32) {
    %c0_i32 = arith.constant 0 : i32
    %c0_i32_0 = arith.constant 0 : i32
    %c0_i32_1 = arith.constant 0 : i32
    return %arg0, %c0_i32, %c0_i32_0 : i32, i32, i32
  }
}

module attributes {stable_mosaic.version = 11 : i64} {
  func.func @_bn_relu_kernel(%arg0: i32, %arg1: memref<1x288x128xf32, #tpu.memory_space<vmem>>, %arg2: memref<2x128xf32, #tpu.memory_space<vmem>>, %arg3: memref<1x288x128xf32, #tpu.memory_space<vmem>>) attributes {dimension_semantics = [#tpu.dimension_semantics<parallel>], iteration_bounds = array<i64: 2>, scalar_prefetch = 0 : i64, scratch_operands = 0 : i64, tpu.core_type = #tpu.core_type<tc>, window_params = [{transform_indices = @transform_0, window_bounds = array<i64: 1, 288, 128>}, {pipeline_mode = #tpu.pipeline_mode<synchronous>, transform_indices = @transform_1, window_bounds = array<i64: 2, 128>}, {transform_indices = @transform_2, window_bounds = array<i64: 1, 288, 128>}]} {
    %c0 = arith.constant 0 : index
    %c0_0 = arith.constant 0 : index
    %c0_1 = arith.constant 0 : index
    %0 = vector.load %arg1[%c0, %c0_0, %c0_1] : memref<1x288x128xf32, #tpu.memory_space<vmem>>, vector<1x288x128xf32>
    %1 = vector.shape_cast %0 : vector<1x288x128xf32> to vector<288x128xf32>
    %c0_2 = arith.constant 0 : index
    %c0_3 = arith.constant 0 : index
    %2 = vector.load %arg2[%c0_2, %c0_3] : memref<2x128xf32, #tpu.memory_space<vmem>>, vector<1x128xf32>
    %3 = vector.broadcast %2 : vector<1x128xf32> to vector<288x128xf32>
    %4 = arith.mulf %1, %3 : vector<288x128xf32>
    %c1 = arith.constant 1 : index
    %c0_4 = arith.constant 0 : index
    %5 = vector.load %arg2[%c1, %c0_4] : memref<2x128xf32, #tpu.memory_space<vmem>>, vector<1x128xf32>
    %6 = vector.broadcast %5 : vector<1x128xf32> to vector<288x128xf32>
    %7 = arith.addf %4, %6 : vector<288x128xf32>
    %cst = arith.constant 0.000000e+00 : f32
    %8 = vector.broadcast %cst : f32 to vector<288x128xf32>
    %9 = arith.maximumf %7, %8 : vector<288x128xf32>
    %c0_5 = arith.constant 0 : index
    %c0_6 = arith.constant 0 : index
    %c0_7 = arith.constant 0 : index
    %10 = vector.load %arg3[%c0_5, %c0_6, %c0_7] : memref<1x288x128xf32, #tpu.memory_space<vmem>>, vector<1x288x128xf32>
    %11 = vector.shape_cast %10 : vector<1x288x128xf32> to vector<288x128xf32>
    %12 = vector.shape_cast %9 : vector<288x128xf32> to vector<1x288x128xf32>
    tpu.vector_store %arg3[%c0_5, %c0_6, %c0_7], %12 {strides = array<i32>} : memref<1x288x128xf32, #tpu.memory_space<vmem>>, vector<1x288x128xf32>,
    return
  }
  func.func @transform_0(%arg0: i32) -> (i32, i32, i32) {
    %c0_i32 = arith.constant 0 : i32
    %c0_i32_0 = arith.constant 0 : i32
    %c0_i32_1 = arith.constant 0 : i32
    return %arg0, %c0_i32, %c0_i32_0 : i32, i32, i32
  }
  func.func @transform_1(%arg0: i32) -> (i32, i32) {
    %c0_i32 = arith.constant 0 : i32
    %c0_i32_0 = arith.constant 0 : i32
    %c0_i32_1 = arith.constant 0 : i32
    return %c0_i32, %c0_i32_0 : i32, i32
  }
  func.func @transform_2(%arg0: i32) -> (i32, i32, i32) {
    %c0_i32 = arith.constant 0 : i32
    %c0_i32_0 = arith.constant 0 : i32
    %c0_i32_1 = arith.constant 0 : i32
    return %arg0, %c0_i32, %c0_i32_0 : i32, i32, i32
  }
}

module attributes {stable_mosaic.version = 11 : i64} {
  func.func @_conv_stats_kernel(%arg0: i32, %arg1: memref<1x326x4xf32, #tpu.memory_space<vmem>>, %arg2: memref<9x4x128xf32, #tpu.memory_space<vmem>>, %arg3: memref<288x1xf32, #tpu.memory_space<vmem>>, %arg4: memref<1x288x128xf32, #tpu.memory_space<vmem>>, %arg5: memref<1x2x128xf32, #tpu.memory_space<vmem>>) attributes {dimension_semantics = [#tpu.dimension_semantics<parallel>], iteration_bounds = array<i64: 2>, scalar_prefetch = 0 : i64, scratch_operands = 0 : i64, tpu.core_type = #tpu.core_type<tc>, window_params = [{transform_indices = @transform_0, window_bounds = array<i64: 1, 326, 4>}, {pipeline_mode = #tpu.pipeline_mode<synchronous>, transform_indices = @transform_1, window_bounds = array<i64: 9, 4, 128>}, {pipeline_mode = #tpu.pipeline_mode<synchronous>, transform_indices = @transform_2, window_bounds = array<i64: 288, 1>}, {transform_indices = @transform_3, window_bounds = array<i64: 1, 288, 128>}, {transform_indices = @transform_4, window_bounds = array<i64: 1, 2, 128>}]} {
    %c0 = arith.constant 0 : index
    %c0_0 = arith.constant 0 : index
    %c0_1 = arith.constant 0 : index
    %0 = vector.load %arg1[%c0, %c0_0, %c0_1] : memref<1x326x4xf32, #tpu.memory_space<vmem>>, vector<1x288x4xf32>
    %1 = vector.shape_cast %0 : vector<1x288x4xf32> to vector<288x4xf32>
    %c0_2 = arith.constant 0 : index
    %c0_3 = arith.constant 0 : index
    %c0_4 = arith.constant 0 : index
    %2 = vector.load %arg2[%c0_2, %c0_3, %c0_4] : memref<9x4x128xf32, #tpu.memory_space<vmem>>, vector<1x4x128xf32>
    %3 = vector.shape_cast %2 : vector<1x4x128xf32> to vector<4x128xf32>
    %cst = arith.constant dense<0.000000e+00> : vector<288x128xf32>
    %4 = tpu.matmul %1, %3, %cst {dimension_numbers = #tpu.dot_dimension_numbers<[1], [0], [0], [1], [0, 0, 1, 1], [], []>} : vector<288x4xf32>, vector<4x128xf32>, vector<288x128xf32> -> vector<288x128xf32>
    %c0_5 = arith.constant 0 : index
    %c0_6 = arith.constant 0 : index
    %c0_7 = arith.constant 0 : index
    %5 = vector.load %arg4[%c0_5, %c0_6, %c0_7] : memref<1x288x128xf32, #tpu.memory_space<vmem>>, vector<1x288x128xf32>
    %6 = vector.shape_cast %5 : vector<1x288x128xf32> to vector<288x128xf32>
    %7 = vector.shape_cast %4 : vector<288x128xf32> to vector<1x288x128xf32>
    tpu.vector_store %arg4[%c0_5, %c0_6, %c0_7], %7 {strides = array<i32>} : memref<1x288x128xf32, #tpu.memory_space<vmem>>, vector<1x288x128xf32>,
    %c0_8 = arith.constant 0 : index
    %c0_9 = arith.constant 0 : index
    %c0_10 = arith.constant 0 : index
    %8 = vector.load %arg4[%c0_8, %c0_9, %c0_10] : memref<1x288x128xf32, #tpu.memory_space<vmem>>, vector<1x288x128xf32>
    %9 = vector.shape_cast %8 : vector<1x288x128xf32> to vector<288x128xf32>
    %c0_11 = arith.constant 0 : index
    %c1 = arith.constant 1 : index
    %c0_12 = arith.constant 0 : index
    %10 = vector.load %arg1[%c0_11, %c1, %c0_12] : memref<1x326x4xf32, #tpu.memory_space<vmem>>, vector<1x288x4xf32>
    %11 = vector.shape_cast %10 : vector<1x288x4xf32> to vector<288x4xf32>
    %c1_13 = arith.constant 1 : index
    %c0_14 = arith.constant 0 : index
    %c0_15 = arith.constant 0 : index
    %12 = vector.load %arg2[%c1_13, %c0_14, %c0_15] : memref<9x4x128xf32, #tpu.memory_space<vmem>>, vector<1x4x128xf32>
    %13 = vector.shape_cast %12 : vector<1x4x128xf32> to vector<4x128xf32>
    %cst_16 = arith.constant dense<0.000000e+00> : vector<288x128xf32>
    %14 = tpu.matmul %11, %13, %cst_16 {dimension_numbers = #tpu.dot_dimension_numbers<[1], [0], [0], [1], [0, 0, 1, 1], [], []>} : vector<288x4xf32>, vector<4x128xf32>, vector<288x128xf32> -> vector<288x128xf32>
    %15 = arith.addf %9, %14 : vector<288x128xf32>
    %c0_17 = arith.constant 0 : index
    %c0_18 = arith.constant 0 : index
    %c0_19 = arith.constant 0 : index
    %16 = vector.load %arg4[%c0_17, %c0_18, %c0_19] : memref<1x288x128xf32, #tpu.memory_space<vmem>>, vector<1x288x128xf32>
    %17 = vector.shape_cast %16 : vector<1x288x128xf32> to vector<288x128xf32>
    %18 = vector.shape_cast %15 : vector<288x128xf32> to vector<1x288x128xf32>
    tpu.vector_store %arg4[%c0_17, %c0_18, %c0_19], %18 {strides = array<i32>} : memref<1x288x128xf32, #tpu.memory_space<vmem>>, vector<1x288x128xf32>,
    %c0_20 = arith.constant 0 : index
    %c0_21 = arith.constant 0 : index
    %c0_22 = arith.constant 0 : index
    %19 = vector.load %arg4[%c0_20, %c0_21, %c0_22] : memref<1x288x128xf32, #tpu.memory_space<vmem>>, vector<1x288x128xf32>
    %20 = vector.shape_cast %19 : vector<1x288x128xf32> to vector<288x128xf32>
    %c0_23 = arith.constant 0 : index
    %c2 = arith.constant 2 : index
    %c0_24 = arith.constant 0 : index
    %21 = vector.load %arg1[%c0_23, %c2, %c0_24] : memref<1x326x4xf32, #tpu.memory_space<vmem>>, vector<1x288x4xf32>
    %22 = vector.shape_cast %21 : vector<1x288x4xf32> to vector<288x4xf32>
    %c2_25 = arith.constant 2 : index
    %c0_26 = arith.constant 0 : index
    %c0_27 = arith.constant 0 : index
    %23 = vector.load %arg2[%c2_25, %c0_26, %c0_27] : memref<9x4x128xf32, #tpu.memory_space<vmem>>, vector<1x4x128xf32>
    %24 = vector.shape_cast %23 : vector<1x4x128xf32> to vector<4x128xf32>
    %cst_28 = arith.constant dense<0.000000e+00> : vector<288x128xf32>
    %25 = tpu.matmul %22, %24, %cst_28 {dimension_numbers = #tpu.dot_dimension_numbers<[1], [0], [0], [1], [0, 0, 1, 1], [], []>} : vector<288x4xf32>, vector<4x128xf32>, vector<288x128xf32> -> vector<288x128xf32>
    %26 = arith.addf %20, %25 : vector<288x128xf32>
    %c0_29 = arith.constant 0 : index
    %c0_30 = arith.constant 0 : index
    %c0_31 = arith.constant 0 : index
    %27 = vector.load %arg4[%c0_29, %c0_30, %c0_31] : memref<1x288x128xf32, #tpu.memory_space<vmem>>, vector<1x288x128xf32>
    %28 = vector.shape_cast %27 : vector<1x288x128xf32> to vector<288x128xf32>
    %29 = vector.shape_cast %26 : vector<288x128xf32> to vector<1x288x128xf32>
    tpu.vector_store %arg4[%c0_29, %c0_30, %c0_31], %29 {strides = array<i32>} : memref<1x288x128xf32, #tpu.memory_space<vmem>>, vector<1x288x128xf32>,
    %c0_32 = arith.constant 0 : index
    %c0_33 = arith.constant 0 : index
    %c0_34 = arith.constant 0 : index
    %30 = vector.load %arg4[%c0_32, %c0_33, %c0_34] : memref<1x288x128xf32, #tpu.memory_space<vmem>>, vector<1x288x128xf32>
    %31 = vector.shape_cast %30 : vector<1x288x128xf32> to vector<288x128xf32>
    %c0_35 = arith.constant 0 : index
    %c18 = arith.constant 18 : index
    %c0_36 = arith.constant 0 : index
    %32 = vector.load %arg1[%c0_35, %c18, %c0_36] : memref<1x326x4xf32, #tpu.memory_space<vmem>>, vector<1x288x4xf32>
    %33 = vector.shape_cast %32 : vector<1x288x4xf32> to vector<288x4xf32>
    %c3 = arith.constant 3 : index
    %c0_37 = arith.constant 0 : index
    %c0_38 = arith.constant 0 : index
    %34 = vector.load %arg2[%c3, %c0_37, %c0_38] : memref<9x4x128xf32, #tpu.memory_space<vmem>>, vector<1x4x128xf32>
    %35 = vector.shape_cast %34 : vector<1x4x128xf32> to vector<4x128xf32>
    %cst_39 = arith.constant dense<0.000000e+00> : vector<288x128xf32>
    %36 = tpu.matmul %33, %35, %cst_39 {dimension_numbers = #tpu.dot_dimension_numbers<[1], [0], [0], [1], [0, 0, 1, 1], [], []>} : vector<288x4xf32>, vector<4x128xf32>, vector<288x128xf32> -> vector<288x128xf32>
    %37 = arith.addf %31, %36 : vector<288x128xf32>
    %c0_40 = arith.constant 0 : index
    %c0_41 = arith.constant 0 : index
    %c0_42 = arith.constant 0 : index
    %38 = vector.load %arg4[%c0_40, %c0_41, %c0_42] : memref<1x288x128xf32, #tpu.memory_space<vmem>>, vector<1x288x128xf32>
    %39 = vector.shape_cast %38 : vector<1x288x128xf32> to vector<288x128xf32>
    %40 = vector.shape_cast %37 : vector<288x128xf32> to vector<1x288x128xf32>
    tpu.vector_store %arg4[%c0_40, %c0_41, %c0_42], %40 {strides = array<i32>} : memref<1x288x128xf32, #tpu.memory_space<vmem>>, vector<1x288x128xf32>,
    %c0_43 = arith.constant 0 : index
    %c0_44 = arith.constant 0 : index
    %c0_45 = arith.constant 0 : index
    %41 = vector.load %arg4[%c0_43, %c0_44, %c0_45] : memref<1x288x128xf32, #tpu.memory_space<vmem>>, vector<1x288x128xf32>
    %42 = vector.shape_cast %41 : vector<1x288x128xf32> to vector<288x128xf32>
    %c0_46 = arith.constant 0 : index
    %c19 = arith.constant 19 : index
    %c0_47 = arith.constant 0 : index
    %43 = vector.load %arg1[%c0_46, %c19, %c0_47] : memref<1x326x4xf32, #tpu.memory_space<vmem>>, vector<1x288x4xf32>
    %44 = vector.shape_cast %43 : vector<1x288x4xf32> to vector<288x4xf32>
    %c4 = arith.constant 4 : index
    %c0_48 = arith.constant 0 : index
    %c0_49 = arith.constant 0 : index
    %45 = vector.load %arg2[%c4, %c0_48, %c0_49] : memref<9x4x128xf32, #tpu.memory_space<vmem>>, vector<1x4x128xf32>
    %46 = vector.shape_cast %45 : vector<1x4x128xf32> to vector<4x128xf32>
    %cst_50 = arith.constant dense<0.000000e+00> : vector<288x128xf32>
    %47 = tpu.matmul %44, %46, %cst_50 {dimension_numbers = #tpu.dot_dimension_numbers<[1], [0], [0], [1], [0, 0, 1, 1], [], []>} : vector<288x4xf32>, vector<4x128xf32>, vector<288x128xf32> -> vector<288x128xf32>
    %48 = arith.addf %42, %47 : vector<288x128xf32>
    %c0_51 = arith.constant 0 : index
    %c0_52 = arith.constant 0 : index
    %c0_53 = arith.constant 0 : index
    %49 = vector.load %arg4[%c0_51, %c0_52, %c0_53] : memref<1x288x128xf32, #tpu.memory_space<vmem>>, vector<1x288x128xf32>
    %50 = vector.shape_cast %49 : vector<1x288x128xf32> to vector<288x128xf32>
    %51 = vector.shape_cast %48 : vector<288x128xf32> to vector<1x288x128xf32>
    tpu.vector_store %arg4[%c0_51, %c0_52, %c0_53], %51 {strides = array<i32>} : memref<1x288x128xf32, #tpu.memory_space<vmem>>, vector<1x288x128xf32>,
    %c0_54 = arith.constant 0 : index
    %c0_55 = arith.constant 0 : index
    %c0_56 = arith.constant 0 : index
    %52 = vector.load %arg4[%c0_54, %c0_55, %c0_56] : memref<1x288x128xf32, #tpu.memory_space<vmem>>, vector<1x288x128xf32>
    %53 = vector.shape_cast %52 : vector<1x288x128xf32> to vector<288x128xf32>
    %c0_57 = arith.constant 0 : index
    %c20 = arith.constant 20 : index
    %c0_58 = arith.constant 0 : index
    %54 = vector.load %arg1[%c0_57, %c20, %c0_58] : memref<1x326x4xf32, #tpu.memory_space<vmem>>, vector<1x288x4xf32>
    %55 = vector.shape_cast %54 : vector<1x288x4xf32> to vector<288x4xf32>
    %c5 = arith.constant 5 : index
    %c0_59 = arith.constant 0 : index
    %c0_60 = arith.constant 0 : index
    %56 = vector.load %arg2[%c5, %c0_59, %c0_60] : memref<9x4x128xf32, #tpu.memory_space<vmem>>, vector<1x4x128xf32>
    %57 = vector.shape_cast %56 : vector<1x4x128xf32> to vector<4x128xf32>
    %cst_61 = arith.constant dense<0.000000e+00> : vector<288x128xf32>
    %58 = tpu.matmul %55, %57, %cst_61 {dimension_numbers = #tpu.dot_dimension_numbers<[1], [0], [0], [1], [0, 0, 1, 1], [], []>} : vector<288x4xf32>, vector<4x128xf32>, vector<288x128xf32> -> vector<288x128xf32>
    %59 = arith.addf %53, %58 : vector<288x128xf32>
    %c0_62 = arith.constant 0 : index
    %c0_63 = arith.constant 0 : index
    %c0_64 = arith.constant 0 : index
    %60 = vector.load %arg4[%c0_62, %c0_63, %c0_64] : memref<1x288x128xf32, #tpu.memory_space<vmem>>, vector<1x288x128xf32>
    %61 = vector.shape_cast %60 : vector<1x288x128xf32> to vector<288x128xf32>
    %62 = vector.shape_cast %59 : vector<288x128xf32> to vector<1x288x128xf32>
    tpu.vector_store %arg4[%c0_62, %c0_63, %c0_64], %62 {strides = array<i32>} : memref<1x288x128xf32, #tpu.memory_space<vmem>>, vector<1x288x128xf32>,
    %c0_65 = arith.constant 0 : index
    %c0_66 = arith.constant 0 : index
    %c0_67 = arith.constant 0 : index
    %63 = vector.load %arg4[%c0_65, %c0_66, %c0_67] : memref<1x288x128xf32, #tpu.memory_space<vmem>>, vector<1x288x128xf32>
    %64 = vector.shape_cast %63 : vector<1x288x128xf32> to vector<288x128xf32>
    %c0_68 = arith.constant 0 : index
    %c36 = arith.constant 36 : index
    %c0_69 = arith.constant 0 : index
    %65 = vector.load %arg1[%c0_68, %c36, %c0_69] : memref<1x326x4xf32, #tpu.memory_space<vmem>>, vector<1x288x4xf32>
    %66 = vector.shape_cast %65 : vector<1x288x4xf32> to vector<288x4xf32>
    %c6 = arith.constant 6 : index
    %c0_70 = arith.constant 0 : index
    %c0_71 = arith.constant 0 : index
    %67 = vector.load %arg2[%c6, %c0_70, %c0_71] : memref<9x4x128xf32, #tpu.memory_space<vmem>>, vector<1x4x128xf32>
    %68 = vector.shape_cast %67 : vector<1x4x128xf32> to vector<4x128xf32>
    %cst_72 = arith.constant dense<0.000000e+00> : vector<288x128xf32>
    %69 = tpu.matmul %66, %68, %cst_72 {dimension_numbers = #tpu.dot_dimension_numbers<[1], [0], [0], [1], [0, 0, 1, 1], [], []>} : vector<288x4xf32>, vector<4x128xf32>, vector<288x128xf32> -> vector<288x128xf32>
    %70 = arith.addf %64, %69 : vector<288x128xf32>
    %c0_73 = arith.constant 0 : index
    %c0_74 = arith.constant 0 : index
    %c0_75 = arith.constant 0 : index
    %71 = vector.load %arg4[%c0_73, %c0_74, %c0_75] : memref<1x288x128xf32, #tpu.memory_space<vmem>>, vector<1x288x128xf32>
    %72 = vector.shape_cast %71 : vector<1x288x128xf32> to vector<288x128xf32>
    %73 = vector.shape_cast %70 : vector<288x128xf32> to vector<1x288x128xf32>
    tpu.vector_store %arg4[%c0_73, %c0_74, %c0_75], %73 {strides = array<i32>} : memref<1x288x128xf32, #tpu.memory_space<vmem>>, vector<1x288x128xf32>,
    %c0_76 = arith.constant 0 : index
    %c0_77 = arith.constant 0 : index
    %c0_78 = arith.constant 0 : index
    %74 = vector.load %arg4[%c0_76, %c0_77, %c0_78] : memref<1x288x128xf32, #tpu.memory_space<vmem>>, vector<1x288x128xf32>
    %75 = vector.shape_cast %74 : vector<1x288x128xf32> to vector<288x128xf32>
    %c0_79 = arith.constant 0 : index
    %c37 = arith.constant 37 : index
    %c0_80 = arith.constant 0 : index
    %76 = vector.load %arg1[%c0_79, %c37, %c0_80] : memref<1x326x4xf32, #tpu.memory_space<vmem>>, vector<1x288x4xf32>
    %77 = vector.shape_cast %76 : vector<1x288x4xf32> to vector<288x4xf32>
    %c7 = arith.constant 7 : index
    %c0_81 = arith.constant 0 : index
    %c0_82 = arith.constant 0 : index
    %78 = vector.load %arg2[%c7, %c0_81, %c0_82] : memref<9x4x128xf32, #tpu.memory_space<vmem>>, vector<1x4x128xf32>
    %79 = vector.shape_cast %78 : vector<1x4x128xf32> to vector<4x128xf32>
    %cst_83 = arith.constant dense<0.000000e+00> : vector<288x128xf32>
    %80 = tpu.matmul %77, %79, %cst_83 {dimension_numbers = #tpu.dot_dimension_numbers<[1], [0], [0], [1], [0, 0, 1, 1], [], []>} : vector<288x4xf32>, vector<4x128xf32>, vector<288x128xf32> -> vector<288x128xf32>
    %81 = arith.addf %75, %80 : vector<288x128xf32>
    %c0_84 = arith.constant 0 : index
    %c0_85 = arith.constant 0 : index
    %c0_86 = arith.constant 0 : index
    %82 = vector.load %arg4[%c0_84, %c0_85, %c0_86] : memref<1x288x128xf32, #tpu.memory_space<vmem>>, vector<1x288x128xf32>
    %83 = vector.shape_cast %82 : vector<1x288x128xf32> to vector<288x128xf32>
    %84 = vector.shape_cast %81 : vector<288x128xf32> to vector<1x288x128xf32>
    tpu.vector_store %arg4[%c0_84, %c0_85, %c0_86], %84 {strides = array<i32>} : memref<1x288x128xf32, #tpu.memory_space<vmem>>, vector<1x288x128xf32>,
    %c0_87 = arith.constant 0 : index
    %c0_88 = arith.constant 0 : index
    %c0_89 = arith.constant 0 : index
    %85 = vector.load %arg4[%c0_87, %c0_88, %c0_89] : memref<1x288x128xf32, #tpu.memory_space<vmem>>, vector<1x288x128xf32>
    %86 = vector.shape_cast %85 : vector<1x288x128xf32> to vector<288x128xf32>
    %c0_90 = arith.constant 0 : index
    %c38 = arith.constant 38 : index
    %c0_91 = arith.constant 0 : index
    %87 = vector.load %arg1[%c0_90, %c38, %c0_91] : memref<1x326x4xf32, #tpu.memory_space<vmem>>, vector<1x288x4xf32>
    %88 = vector.shape_cast %87 : vector<1x288x4xf32> to vector<288x4xf32>
    %c8 = arith.constant 8 : index
    %c0_92 = arith.constant 0 : index
    %c0_93 = arith.constant 0 : index
    %89 = vector.load %arg2[%c8, %c0_92, %c0_93] : memref<9x4x128xf32, #tpu.memory_space<vmem>>, vector<1x4x128xf32>
    %90 = vector.shape_cast %89 : vector<1x4x128xf32> to vector<4x128xf32>
    %cst_94 = arith.constant dense<0.000000e+00> : vector<288x128xf32>
    %91 = tpu.matmul %88, %90, %cst_94 {dimension_numbers = #tpu.dot_dimension_numbers<[1], [0], [0], [1], [0, 0, 1, 1], [], []>} : vector<288x4xf32>, vector<4x128xf32>, vector<288x128xf32> -> vector<288x128xf32>
    %92 = arith.addf %86, %91 : vector<288x128xf32>
    %c0_95 = arith.constant 0 : index
    %c0_96 = arith.constant 0 : index
    %c0_97 = arith.constant 0 : index
    %93 = vector.load %arg4[%c0_95, %c0_96, %c0_97] : memref<1x288x128xf32, #tpu.memory_space<vmem>>, vector<1x288x128xf32>
    %94 = vector.shape_cast %93 : vector<1x288x128xf32> to vector<288x128xf32>
    %95 = vector.shape_cast %92 : vector<288x128xf32> to vector<1x288x128xf32>
    tpu.vector_store %arg4[%c0_95, %c0_96, %c0_97], %95 {strides = array<i32>} : memref<1x288x128xf32, #tpu.memory_space<vmem>>, vector<1x288x128xf32>,
    %c0_98 = arith.constant 0 : index
    %c0_99 = arith.constant 0 : index
    %c0_100 = arith.constant 0 : index
    %96 = vector.load %arg4[%c0_98, %c0_99, %c0_100] : memref<1x288x128xf32, #tpu.memory_space<vmem>>, vector<1x288x128xf32>
    %97 = vector.shape_cast %96 : vector<1x288x128xf32> to vector<288x128xf32>
    %c0_101 = arith.constant 0 : index
    %c0_102 = arith.constant 0 : index
    %98 = vector.load %arg3[%c0_101, %c0_102] : memref<288x1xf32, #tpu.memory_space<vmem>>, vector<288x1xf32>
    %99 = vector.broadcast %98 : vector<288x1xf32> to vector<288x128xf32>
    %100 = arith.mulf %97, %99 : vector<288x128xf32>
    %cst_103 = arith.constant dense<0.000000e+00> : vector<128xf32>
    %101 = vector.multi_reduction <add>, %100, %cst_103 [0] : vector<288x128xf32> to vector<128xf32>
    %102 = vector.shape_cast %101 : vector<128xf32> to vector<1x128xf32>
    %103 = arith.mulf %100, %97 : vector<288x128xf32>
    %cst_104 = arith.constant dense<0.000000e+00> : vector<128xf32>
    %104 = vector.multi_reduction <add>, %103, %cst_104 [0] : vector<288x128xf32> to vector<128xf32>
    %105 = vector.shape_cast %104 : vector<128xf32> to vector<1x128xf32>
    %c0_105 = arith.constant 0 : index
    %c0_106 = arith.constant 0 : index
    %c0_107 = arith.constant 0 : index
    %106 = vector.load %arg5[%c0_105, %c0_106, %c0_107] : memref<1x2x128xf32, #tpu.memory_space<vmem>>, vector<1x1x128xf32>
    %107 = vector.shape_cast %106 : vector<1x1x128xf32> to vector<1x128xf32>
    %108 = vector.shape_cast %102 : vector<1x128xf32> to vector<1x1x128xf32>
    tpu.vector_store %arg5[%c0_105, %c0_106, %c0_107], %108 {strides = array<i32>} : memref<1x2x128xf32, #tpu.memory_space<vmem>>, vector<1x1x128xf32>,
    %c0_108 = arith.constant 0 : index
    %c1_109 = arith.constant 1 : index
    %c0_110 = arith.constant 0 : index
    %109 = vector.load %arg5[%c0_108, %c1_109, %c0_110] : memref<1x2x128xf32, #tpu.memory_space<vmem>>, vector<1x1x128xf32>
    %110 = vector.shape_cast %109 : vector<1x1x128xf32> to vector<1x128xf32>
    %111 = vector.shape_cast %105 : vector<1x128xf32> to vector<1x1x128xf32>
    tpu.vector_store %arg5[%c0_108, %c1_109, %c0_110], %111 {strides = array<i32>} : memref<1x2x128xf32, #tpu.memory_space<vmem>>, vector<1x1x128xf32>,
    return
  }
  func.func @transform_0(%arg0: i32) -> (i32, i32, i32) {
    %c0_i32 = arith.constant 0 : i32
    %c0_i32_0 = arith.constant 0 : i32
    %c0_i32_1 = arith.constant 0 : i32
    return %arg0, %c0_i32, %c0_i32_0 : i32, i32, i32
  }
  func.func @transform_1(%arg0: i32) -> (i32, i32, i32) {
    %c0_i32 = arith.constant 0 : i32
    %c0_i32_0 = arith.constant 0 : i32
    %c0_i32_1 = arith.constant 0 : i32
    %c0_i32_2 = arith.constant 0 : i32
    return %c0_i32, %c0_i32_0, %c0_i32_1 : i32, i32, i32
  }
  func.func @transform_2(%arg0: i32) -> (i32, i32) {
    %c0_i32 = arith.constant 0 : i32
    %c0_i32_0 = arith.constant 0 : i32
    %c0_i32_1 = arith.constant 0 : i32
    return %c0_i32, %c0_i32_0 : i32, i32
  }
  func.func @transform_3(%arg0: i32) -> (i32, i32, i32) {
    %c0_i32 = arith.constant 0 : i32
    %c0_i32_0 = arith.constant 0 : i32
    %c0_i32_1 = arith.constant 0 : i32
    return %arg0, %c0_i32, %c0_i32_0 : i32, i32, i32
  }
  func.func @transform_4(%arg0: i32) -> (i32, i32, i32) {
    %c0_i32 = arith.constant 0 : i32
    %c0_i32_0 = arith.constant 0 : i32
    %c0_i32_1 = arith.constant 0 : i32
    return %arg0, %c0_i32, %c0_i32_0 : i32, i32, i32
  }
}

</mosaic_0001>

<llo_original>
// kernel: up_forward.5
$region0: #{up_forward.5}
  #allocation0 [shape = 'u32[]', space=smem, size = 0x4, offset = 0x4, fixed_abs, tag = 'smem constant byte address 0x4 - core index']
  #allocation1 [shape = 'u32[144,128]{1,0:T(1,128)}', space=vmem, size = 0x12000, scoped, tag = 'internal scratch']
  %s0 = inlined_call_operand.vmem [shape: f32[2,288,128], index: 0, kind: input, shape index: {}]
  %s1 = inlined_call_operand.vmem [shape: f32[2,128], index: 1, kind: input, shape index: {}]
  %s2 = inlined_call_operand.vmem [shape: f32[2,288,128], index: 2, kind: output, shape index: {}]
  %s3 = sld [smem:[#allocation0]]
  $region41: #{up_forward.5} parent=0
    _
  %s5 = ssub.s32 1, %s3
  %s6 = scalar_select 0, %s5, %s3
  loop: start=0, step=1, limit=4
  $region2: #{up_forward.5} parent=0 // loop_pre_header
    _
  $region3: #{up_forward.5} parent=0 // loop_header
    %s8 = sphi 0, %s12
    %p9 = scmp.ge.s32.totalorder %s8, 4
    %s18 = sphi 0, %s20
    %s21 = sphi 0, %s18
    %s22 = sphi 0, %s21
    %s38 = sphi 0, %s22
    %s42 = sphi 0, %s42
    %s44 = sphi 0, %s42
    %s45 = sphi 0, %s44
    %s59 = sphi 0, %s45
    %s65 = sphi 0, %s67
    %s68 = sphi 0, %s65
    %s69 = sphi 0, %s68
    %s85 = sphi 0, %s69
  $region4: #{up_forward.5} parent=0 // loop_header_branch
    %11 = sbr.rel (%p9) target = $region8
  $region5: #{up_forward.5} parent=0 // loop_body
    %s13 = ssub.s32 %s8, 1
    %s14 = ssub.s32 %s8, 2
    %s15 = sadd.s32 %s8, 1
    %s16 = ssub.s32 %s8, %s15
    %p17 = scmp.eq.s32.totalorder %s16, 0
    %s19 = sadd.s32 %s18, 1
    %s20 = scalar_select %p17, %s18, %s19
    %p23 = pneg %p17
    %p24 = scmp.eq.s32.totalorder %s8, 1
    %p25 = por %p23, %p24
    %p26 = scmp.ne.s32.totalorder %s18, %s21
    %p27 = scmp.eq.s32.totalorder %s8, 0
    %p28 = por %p26, %p27
    %p29 = scmp.ne.s32.totalorder %s18, %s21
    %p30 = scmp.eq.s32.totalorder %s13, 1
    %p31 = por %p29, %p30
    %p32 = scmp.ne.s32.totalorder %s21, %s22
    %p33 = scmp.eq.s32.totalorder %s13, 0
    %p34 = por %p32, %p33
    %p35 = scmp.ne.s32.totalorder %s21, %s22
    %p36 = scmp.eq.s32.totalorder %s14, 1
    %p37 = por %p35, %p36
    %p39 = scmp.ne.s32.totalorder %s22, %s38
    %p40 = scmp.eq.s32.totalorder %s14, 0
    %p41 = por %p39, %p40
    %s43 = sadd.s32 %s42, 1
    %p46 = scmp.eq.s32.totalorder %s8, 1
    %p47 = scmp.ne.s32.totalorder %s42, %s44
    %p48 = scmp.eq.s32.totalorder %s8, 0
    %p49 = por %p47, %p48
    %p50 = scmp.ne.s32.totalorder %s42, %s44
    %p51 = scmp.eq.s32.totalorder %s13, 1
    %p52 = por %p50, %p51
    %p53 = scmp.ne.s32.totalorder %s44, %s45
    %p54 = scmp.eq.s32.totalorder %s13, 0
    %p55 = por %p53, %p54
    %p56 = scmp.ne.s32.totalorder %s44, %s45
    %p57 = scmp.eq.s32.totalorder %s14, 1
    %p58 = por %p56, %p57
    %p60 = scmp.ne.s32.totalorder %s45, %s59
    %p61 = scmp.eq.s32.totalorder %s14, 0
    %p62 = por %p60, %p61
    %s63 = ssub.s32 %s8, %s15
    %p64 = scmp.eq.s32.totalorder %s63, 0
    %s66 = sadd.s32 %s65, 1
    %s67 = scalar_select %p64, %s65, %s66
    %p70 = pneg %p64
    %p71 = scmp.eq.s32.totalorder %s8, 1
    %p72 = por %p70, %p71
    %p73 = scmp.ne.s32.totalorder %s65, %s68
    %p74 = scmp.eq.s32.totalorder %s8, 0
    %p75 = por %p73, %p74
    %p76 = scmp.ne.s32.totalorder %s65, %s68
    %p77 = scmp.eq.s32.totalorder %s13, 1
    %p78 = por %p76, %p77
    %p79 = scmp.ne.s32.totalorder %s68, %s69
    %p80 = scmp.eq.s32.totalorder %s13, 0
    %p81 = por %p79, %p80
    %p82 = scmp.ne.s32.totalorder %s68, %s69
    %p83 = scmp.eq.s32.totalorder %s14, 1
    %p84 = por %p82, %p83
    %p86 = scmp.ne.s32.totalorder %s69, %s85
    %p87 = scmp.eq.s32.totalorder %s14, 0
    %p88 = por %p86, %p87
    %p89 = scmp.le.s32.totalorder 1, %s8
    %p90 = scmp.lt.s32.totalorder %s8, 3
    %p91 = pnand %p89, %p90
    %p92 = pneg %p91
    // Predicated region
    $region9: #{up_forward.5} parent=5 // pred_check
      _
    $region10: #{up_forward.5} parent=5 // pred_check_branch
      %94 = sbr.rel (%p91) target = $region12
    $region11: #{up_forward.5} parent=5 // pred_region
      %s95 = ssub.s32 %s8, 1
      // Predicated region
      $region13: #{up_forward.5} parent=11 // pred_check
        %p96 = pneg %p55
      $region14: #{up_forward.5} parent=11 // pred_check_branch
        %98 = sbr.rel (%p96) target = $region16
      $region15: #{up_forward.5} parent=11 // pred_region
        _
      $region16: #{up_forward.5} parent=11 // pred_fallthru
        _
    $region12: #{up_forward.5} parent=5 // pred_fallthru
      _
    %p99 = scmp.lt.s32.totalorder %s8, 2
    // Predicated region
    $region17: #{up_forward.5} parent=5 // pred_check
      %p100 = pneg %p99
    $region18: #{up_forward.5} parent=5 // pred_check_branch
      %102 = sbr.rel (%p100) target = $region20
    $region19: #{up_forward.5} parent=5 // pred_region
      // Predicated region
      $region21: #{up_forward.5} parent=19 // pred_check
        %p103 = pneg %p28
      $region22: #{up_forward.5} parent=19 // pred_check_branch
        %105 = sbr.rel (%p103) target = $region24
      $region23: #{up_forward.5} parent=19 // pred_region
        %p106 = scmp.lt.s32.totalorder %s8, 1
        %s107 = scalar_select %p106, %s8, 1
        %s108 = smul.addr %s107, 36
        %s109 = smul.addr %s108, 8
        %s110 = scalar_lea.vmem %s0, %s109
      $region24: #{up_forward.5} parent=19 // pred_fallthru
        _
    $region20: #{up_forward.5} parent=5 // pred_fallthru
      _
    %p111 = scmp.le.s32.totalorder 1, %s8
    %p112 = scmp.lt.s32.totalorder %s8, 3
    %p113 = pnand %p111, %p112
    %p114 = pneg %p113
    // Predicated region
    $region25: #{up_forward.5} parent=5 // pred_check
      _
    $region26: #{up_forward.5} parent=5 // pred_check_branch
      %116 = sbr.rel (%p113) target = $region28
    $region27: #{up_forward.5} parent=5 // pred_region
      %s117 = ssub.s32 %s8, 1
      %p118 = scmp.lt.s32.totalorder %s13, 1
      %s119 = scalar_select %p118, %s13, 1
      %s120 = smul.addr %s119, 36
      %s121 = smul.addr %s120, 8
      %s122 = scalar_lea.vmem %s0, %s121
      %p123 = pneg %p34
      %p124 = pneg %p31
      %p125 = pneg %p55
      %p126 = pneg %p52
      %p127 = pneg %p81
      %p128 = pneg %p78
      %p129 = scmp.lt.s32.totalorder %s13, 1
      %s130 = scalar_select %p129, %s13, 1
      %s131 = smul.addr %s130, 36
      %s132 = smul.addr %s131, 8
      %s133 = scalar_lea.vmem %s2, %s132
      %p134 = scmp.lt.s32.totalorder %s13, 1
      %s135 = scalar_select %p134, %s13, 1
      %s136 = smul.addr %s135, 36
      %s137 = smul.addr %s136, 8
      %s138 = scalar_lea.vmem %s0, %s137
      %p139 = scmp.lt.s32.totalorder %s13, 1
      %s140 = scalar_select %p139, %s13, 1
      %s141 = smul.addr %s140, 36
      %s142 = smul.addr %s141, 8
      %s143 = scalar_lea.vmem %s2, %s142
      %v144 = vld [vmem:[%s138] sm:$0xff]
      %v145 = vld [vmem:[%s138 + $0x8] sm:$0xff]
      %v146 = vld [vmem:[%s138 + $0x10] sm:$0xff]
      %v147 = vld [vmem:[%s138 + $0x18] sm:$0xff]
      %v148 = vld [vmem:[%s138 + $0x20] sm:$0xff]
      %v149 = vld [vmem:[%s138 + $0x28] sm:$0xff]
      %v150 = vld [vmem:[%s138 + $0x30] sm:$0xff]
      %v151 = vld [vmem:[%s138 + $0x38] sm:$0xff]
      %v152 = vld [vmem:[%s138 + $0x40] sm:$0xff]
      %v153 = vld [vmem:[%s138 + $0x48] sm:$0xff]
      %v154 = vld [vmem:[%s138 + $0x50] sm:$0xff]
      %v155 = vld [vmem:[%s138 + $0x58] sm:$0xff]
      %v156 = vld [vmem:[%s138 + $0x60] sm:$0xff]
      %v157 = vld [vmem:[%s138 + $0x68] sm:$0xff]
      %v158 = vld [vmem:[%s138 + $0x70] sm:$0xff]
      %v159 = vld [vmem:[%s138 + $0x78] sm:$0xff]
      %v160 = vld [vmem:[%s138 + $0x80] sm:$0xff]
      %v161 = vld [vmem:[%s138 + $0x88] sm:$0xff]
      %v162 = vld [vmem:[%s138 + $0x90] sm:$0xff]
      %v163 = vld [vmem:[%s138 + $0x98] sm:$0xff]
      %v164 = vld [vmem:[%s138 + $0xa0] sm:$0xff]
      %v165 = vld [vmem:[%s138 + $0xa8] sm:$0xff]
      %v166 = vld [vmem:[%s138 + $0xb0] sm:$0xff]
      %v167 = vld [vmem:[%s138 + $0xb8] sm:$0xff]
      %v168 = vld [vmem:[%s138 + $0xc0] sm:$0xff]
      %v169 = vld [vmem:[%s138 + $0xc8] sm:$0xff]
      %v170 = vld [vmem:[%s138 + $0xd0] sm:$0xff]
      %v171 = vld [vmem:[%s138 + $0xd8] sm:$0xff]
      %v172 = vld [vmem:[%s138 + $0xe0] sm:$0xff]
      %v173 = vld [vmem:[%s138 + $0xe8] sm:$0xff]
      %v174 = vld [vmem:[%s138 + $0xf0] sm:$0xff]
      %v175 = vld [vmem:[%s138 + $0xf8] sm:$0xff]
      %v176 = vld [vmem:[%s138 + $0x100] sm:$0xff]
      %v177 = vld [vmem:[%s138 + $0x108] sm:$0xff]
      %v178 = vld [vmem:[%s138 + $0x110] sm:$0xff]
      %v179 = vld [vmem:[%s138 + $0x118] sm:$0xff]
      %v180 = vld [vmem:[%s1] sm:$0x1]
      %v181 = vlaneseq
      %v182 = vshrl.u32 %v181, 7
      %v183 = vsub.s32 0, %v182
      %v184 = vrot.slane %v180, %v183
      %v185 = vmul.f32 %v144, %v184
      %v186 = vmul.f32 %v145, %v184
      %v187 = vmul.f32 %v146, %v184
      %v188 = vmul.f32 %v147, %v184
      %v189 = vmul.f32 %v148, %v184
      %v190 = vmul.f32 %v149, %v184
      %v191 = vmul.f32 %v150, %v184
      %v192 = vmul.f32 %v151, %v184
      %v193 = vmul.f32 %v152, %v184
      %v194 = vmul.f32 %v153, %v184
      %v195 = vmul.f32 %v154, %v184
      %v196 = vmul.f32 %v155, %v184
      %v197 = vmul.f32 %v156, %v184
      %v198 = vmul.f32 %v157, %v184
      %v199 = vmul.f32 %v158, %v184
      %v200 = vmul.f32 %v159, %v184
      %v201 = vmul.f32 %v160, %v184
      %v202 = vmul.f32 %v161, %v184
      %v203 = vmul.f32 %v162, %v184
      %v204 = vmul.f32 %v163, %v184
      %v205 = vmul.f32 %v164, %v184
      %v206 = vmul.f32 %v165, %v184
      %v207 = vmul.f32 %v166, %v184
      %v208 = vmul.f32 %v167, %v184
      %v209 = vmul.f32 %v168, %v184
      %v210 = vmul.f32 %v169, %v184
      %v211 = vmul.f32 %v170, %v184
      %v212 = vmul.f32 %v171, %v184
      %v213 = vmul.f32 %v172, %v184
      %v214 = vmul.f32 %v173, %v184
      %v215 = vmul.f32 %v174, %v184
      %v216 = vmul.f32 %v175, %v184
      %v217 = vmul.f32 %v176, %v184
      %v218 = vmul.f32 %v177, %v184
      %v219 = vmul.f32 %v178, %v184
      %v220 = vmul.f32 %v179, %v184
      %v221 = vld [vmem:[%s1 + $0x1] sm:$0x1]
      %v222 = vlaneseq
      %v223 = vshrl.u32 %v222, 7
      %v224 = vsub.s32 0, %v223
      %v225 = vrot.slane %v221, %v224
      %v226 = vadd.f32 %v185, %v225
      %v227 = vadd.f32 %v186, %v225
      %v228 = vadd.f32 %v187, %v225
      %v229 = vadd.f32 %v188, %v225
      %v230 = vadd.f32 %v189, %v225
      %v231 = vadd.f32 %v190, %v225
      %v232 = vadd.f32 %v191, %v225
      %v233 = vadd.f32 %v192, %v225
      %v234 = vadd.f32 %v193, %v225
      %v235 = vadd.f32 %v194, %v225
      %v236 = vadd.f32 %v195, %v225
      %v237 = vadd.f32 %v196, %v225
      %v238 = vadd.f32 %v197, %v225
      %v239 = vadd.f32 %v198, %v225
      %v240 = vadd.f32 %v199, %v225
      %v241 = vadd.f32 %v200, %v225
      %v242 = vadd.f32 %v201, %v225
      %v243 = vadd.f32 %v202, %v225
      %v244 = vadd.f32 %v203, %v225
      %v245 = vadd.f32 %v204, %v225
      %v246 = vadd.f32 %v205, %v225
      %v247 = vadd.f32 %v206, %v225
      %v248 = vadd.f32 %v207, %v225
      %v249 = vadd.f32 %v208, %v225
      %v250 = vadd.f32 %v209, %v225
      %v251 = vadd.f32 %v210, %v225
      %v252 = vadd.f32 %v211, %v225
      %v253 = vadd.f32 %v212, %v225
      %v254 = vadd.f32 %v213, %v225
      %v255 = vadd.f32 %v214, %v225
      %v256 = vadd.f32 %v215, %v225
      %v257 = vadd.f32 %v216, %v225
      %v258 = vadd.f32 %v217, %v225
      %v259 = vadd.f32 %v218, %v225
      %v260 = vadd.f32 %v219, %v225
      %v261 = vadd.f32 %v220, %v225
      %v262 = vmax.f32 %v226, 0.0
      %v263 = vmax.f32 %v227, 0.0
      %v264 = vmax.f32 %v228, 0.0
      %v265 = vmax.f32 %v229, 0.0
      %v266 = vmax.f32 %v230, 0.0
      %v267 = vmax.f32 %v231, 0.0
      %v268 = vmax.f32 %v232, 0.0
      %v269 = vmax.f32 %v233, 0.0
      %v270 = vmax.f32 %v234, 0.0
      %v271 = vmax.f32 %v235, 0.0
      %v272 = vmax.f32 %v236, 0.0
      %v273 = vmax.f32 %v237, 0.0
      %v274 = vmax.f32 %v238, 0.0
      %v275 = vmax.f32 %v239, 0.0
      %v276 = vmax.f32 %v240, 0.0
      %v277 = vmax.f32 %v241, 0.0
      %v278 = vmax.f32 %v242, 0.0
      %v279 = vmax.f32 %v243, 0.0
      %v280 = vmax.f32 %v244, 0.0
      %v281 = vmax.f32 %v245, 0.0
      %v282 = vmax.f32 %v246, 0.0
      %v283 = vmax.f32 %v247, 0.0
      %v284 = vmax.f32 %v248, 0.0
      %v285 = vmax.f32 %v249, 0.0
      %v286 = vmax.f32 %v250, 0.0
      %v287 = vmax.f32 %v251, 0.0
      %v288 = vmax.f32 %v252, 0.0
      %v289 = vmax.f32 %v253, 0.0
      %v290 = vmax.f32 %v254, 0.0
      %v291 = vmax.f32 %v255, 0.0
      %v292 = vmax.f32 %v256, 0.0
      %v293 = vmax.f32 %v257, 0.0
      %v294 = vmax.f32 %v258, 0.0
      %v295 = vmax.f32 %v259, 0.0
      %v296 = vmax.f32 %v260, 0.0
      %v297 = vmax.f32 %v261, 0.0
      %298 = vst [vmem:[%s143] sm:$0xff] %v262
      %299 = vst [vmem:[%s143 + $0x8] sm:$0xff] %v263
      %300 = vst [vmem:[%s143 + $0x10] sm:$0xff] %v264
      %301 = vst [vmem:[%s143 + $0x18] sm:$0xff] %v265
      %302 = vst [vmem:[%s143 + $0x20] sm:$0xff] %v266
      %303 = vst [vmem:[%s143 + $0x28] sm:$0xff] %v267
      %304 = vst [vmem:[%s143 + $0x30] sm:$0xff] %v268
      %305 = vst [vmem:[%s143 + $0x38] sm:$0xff] %v269
      %306 = vst [vmem:[%s143 + $0x40] sm:$0xff] %v270
      %307 = vst [vmem:[%s143 + $0x48] sm:$0xff] %v271
      %308 = vst [vmem:[%s143 + $0x50] sm:$0xff] %v272
      %309 = vst [vmem:[%s143 + $0x58] sm:$0xff] %v273
      %310 = vst [vmem:[%s143 + $0x60] sm:$0xff] %v274
      %311 = vst [vmem:[%s143 + $0x68] sm:$0xff] %v275
      %312 = vst [vmem:[%s143 + $0x70] sm:$0xff] %v276
      %313 = vst [vmem:[%s143 + $0x78] sm:$0xff] %v277
      %314 = vst [vmem:[%s143 + $0x80] sm:$0xff] %v278
      %315 = vst [vmem:[%s143 + $0x88] sm:$0xff] %v279
      %316 = vst [vmem:[%s143 + $0x90] sm:$0xff] %v280
      %317 = vst [vmem:[%s143 + $0x98] sm:$0xff] %v281
      %318 = vst [vmem:[%s143 + $0xa0] sm:$0xff] %v282
      %319 = vst [vmem:[%s143 + $0xa8] sm:$0xff] %v283
      %320 = vst [vmem:[%s143 + $0xb0] sm:$0xff] %v284
      %321 = vst [vmem:[%s143 + $0xb8] sm:$0xff] %v285
      %322 = vst [vmem:[%s143 + $0xc0] sm:$0xff] %v286
      %323 = vst [vmem:[%s143 + $0xc8] sm:$0xff] %v287
      %324 = vst [vmem:[%s143 + $0xd0] sm:$0xff] %v288
      %325 = vst [vmem:[%s143 + $0xd8] sm:$0xff] %v289
      %326 = vst [vmem:[%s143 + $0xe0] sm:$0xff] %v290
      %327 = vst [vmem:[%s143 + $0xe8] sm:$0xff] %v291
      %328 = vst [vmem:[%s143 + $0xf0] sm:$0xff] %v292
      %329 = vst [vmem:[%s143 + $0xf8] sm:$0xff] %v293
      %330 = vst [vmem:[%s143 + $0x100] sm:$0xff] %v294
      %331 = vst [vmem:[%s143 + $0x108] sm:$0xff] %v295
      %332 = vst [vmem:[%s143 + $0x110] sm:$0xff] %v296
      %333 = vst [vmem:[%s143 + $0x118] sm:$0xff] %v297
      %p334 = scmp.lt.s32.totalorder %s13, 1
      %s335 = scalar_select %p334, %s13, 1
      %s336 = smul.addr %s335, 36
      %s337 = smul.addr %s336, 8
      %s338 = scalar_lea.vmem %s2, %s337
      // Predicated region
      $region29: #{up_forward.5} parent=27 // pred_check
        %p339 = pneg %p78
      $region30: #{up_forward.5} parent=27 // pred_check_branch
        %341 = sbr.rel (%p339) target = $region32
      $region31: #{up_forward.5} parent=27 // pred_region
        _
      $region32: #{up_forward.5} parent=27 // pred_fallthru
        _
    $region28: #{up_forward.5} parent=5 // pred_fallthru
      _
    %p342 = scmp.le.s32.totalorder 2, %s8
    // Predicated region
    $region33: #{up_forward.5} parent=5 // pred_check
      %p343 = pneg %p342
    $region34: #{up_forward.5} parent=5 // pred_check_branch
      %345 = sbr.rel (%p343) target = $region36
    $region35: #{up_forward.5} parent=5 // pred_region
      %s346 = ssub.s32 %s8, 2
      // Predicated region
      $region37: #{up_forward.5} parent=35 // pred_check
        %p347 = pneg %p84
      $region38: #{up_forward.5} parent=35 // pred_check_branch
        %349 = sbr.rel (%p347) target = $region40
      $region39: #{up_forward.5} parent=35 // pred_region
        %p350 = scmp.lt.s32.totalorder %s14, 1
        %s351 = scalar_select %p350, %s14, 1
        %s352 = smul.addr %s351, 36
        %s353 = smul.addr %s352, 8
        %s354 = scalar_lea.vmem %s2, %s353
      $region40: #{up_forward.5} parent=35 // pred_fallthru
        _
    $region36: #{up_forward.5} parent=5 // pred_fallthru
      _
  $region6: #{up_forward.5} parent=0 // loop_footer
    %s12 = sadd.s32 1, %s8
  $region7: #{up_forward.5} parent=0 // loop_footer_branch
    %7 = sbr.rel target = $region3
  $region8: #{up_forward.5} parent=0 // loop_exit
    _

// kernel: up_forward.4
$region0: #{up_forward.4}
  #allocation0 [shape = 'u32[]', space=smem, size = 0x4, offset = 0x4, fixed_abs, tag = 'smem constant byte address 0x4 - core index']
  #allocation1 [shape = 'u32[144,128]{1,0:T(1,128)}', space=vmem, size = 0x12000, scoped, tag = 'internal scratch']
  %s0 = inlined_call_operand.vmem [shape: f32[2,326,8], index: 0, kind: input, shape index: {}]
  %s1 = inlined_call_operand.vmem [shape: f32[9,8,128], index: 1, kind: input, shape index: {}]
  %s2 = inlined_call_operand.vmem [shape: f32[288,1], index: 2, kind: input, shape index: {}]
  %s3 = inlined_call_operand.vmem [shape: f32[2,288,128], index: 3, kind: output, shape index: {0}]
  %s4 = inlined_call_operand.vmem [shape: f32[2,2,128], index: 4, kind: output, shape index: {1}]
  %5 = xla_tuple %s3, %s4
  %s6 = sld [smem:[#allocation0]]
  $region53: #{up_forward.4} parent=0
    _
  %s8 = ssub.s32 1, %s6
  %s9 = scalar_select 0, %s8, %s6
  loop: start=0, step=1, limit=4
  $region2: #{up_forward.4} parent=0 // loop_pre_header
    _
  $region3: #{up_forward.4} parent=0 // loop_header
    %s11 = sphi 0, %s15
    %p12 = scmp.ge.s32.totalorder %s11, 4
    %s21 = sphi 0, %s23
    %s24 = sphi 0, %s21
    %s25 = sphi 0, %s24
    %s41 = sphi 0, %s25
    %s45 = sphi 0, %s45
    %s47 = sphi 0, %s45
    %s48 = sphi 0, %s47
    %s62 = sphi 0, %s48
    %s66 = sphi 0, %s66
    %s68 = sphi 0, %s66
    %s69 = sphi 0, %s68
    %s83 = sphi 0, %s69
    %s89 = sphi 0, %s91
    %s92 = sphi 0, %s89
    %s93 = sphi 0, %s92
    %s109 = sphi 0, %s93
    %s115 = sphi 0, %s117
    %s118 = sphi 0, %s115
    %s119 = sphi 0, %s118
    %s135 = sphi 0, %s119
  $region4: #{up_forward.4} parent=0 // loop_header_branch
    %14 = sbr.rel (%p12) target = $region8
  $region5: #{up_forward.4} parent=0 // loop_body
    %s16 = ssub.s32 %s11, 1
    %s17 = ssub.s32 %s11, 2
    %s18 = sadd.s32 %s11, 1
    %s19 = ssub.s32 %s11, %s18
    %p20 = scmp.eq.s32.totalorder %s19, 0
    %s22 = sadd.s32 %s21, 1
    %s23 = scalar_select %p20, %s21, %s22
    %p26 = pneg %p20
    %p27 = scmp.eq.s32.totalorder %s11, 1
    %p28 = por %p26, %p27
    %p29 = scmp.ne.s32.totalorder %s21, %s24
    %p30 = scmp.eq.s32.totalorder %s11, 0
    %p31 = por %p29, %p30
    %p32 = scmp.ne.s32.totalorder %s21, %s24
    %p33 = scmp.eq.s32.totalorder %s16, 1
    %p34 = por %p32, %p33
    %p35 = scmp.ne.s32.totalorder %s24, %s25
    %p36 = scmp.eq.s32.totalorder %s16, 0
    %p37 = por %p35, %p36
    %p38 = scmp.ne.s32.totalorder %s24, %s25
    %p39 = scmp.eq.s32.totalorder %s17, 1
    %p40 = por %p38, %p39
    %p42 = scmp.ne.s32.totalorder %s25, %s41
    %p43 = scmp.eq.s32.totalorder %s17, 0
    %p44 = por %p42, %p43
    %s46 = sadd.s32 %s45, 1
    %p49 = scmp.eq.s32.totalorder %s11, 1
    %p50 = scmp.ne.s32.totalorder %s45, %s47
    %p51 = scmp.eq.s32.totalorder %s11, 0
    %p52 = por %p50, %p51
    %p53 = scmp.ne.s32.totalorder %s45, %s47
    %p54 = scmp.eq.s32.totalorder %s16, 1
    %p55 = por %p53, %p54
    %p56 = scmp.ne.s32.totalorder %s47, %s48
    %p57 = scmp.eq.s32.totalorder %s16, 0
    %p58 = por %p56, %p57
    %p59 = scmp.ne.s32.totalorder %s47, %s48
    %p60 = scmp.eq.s32.totalorder %s17, 1
    %p61 = por %p59, %p60
    %p63 = scmp.ne.s32.totalorder %s48, %s62
    %p64 = scmp.eq.s32.totalorder %s17, 0
    %p65 = por %p63, %p64
    %s67 = sadd.s32 %s66, 1
    %p70 = scmp.eq.s32.totalorder %s11, 1
    %p71 = scmp.ne.s32.totalorder %s66, %s68
    %p72 = scmp.eq.s32.totalorder %s11, 0
    %p73 = por %p71, %p72
    %p74 = scmp.ne.s32.totalorder %s66, %s68
    %p75 = scmp.eq.s32.totalorder %s16, 1
    %p76 = por %p74, %p75
    %p77 = scmp.ne.s32.totalorder %s68, %s69
    %p78 = scmp.eq.s32.totalorder %s16, 0
    %p79 = por %p77, %p78
    %p80 = scmp.ne.s32.totalorder %s68, %s69
    %p81 = scmp.eq.s32.totalorder %s17, 1
    %p82 = por %p80, %p81
    %p84 = scmp.ne.s32.totalorder %s69, %s83
    %p85 = scmp.eq.s32.totalorder %s17, 0
    %p86 = por %p84, %p85
    %s87 = ssub.s32 %s11, %s18
    %p88 = scmp.eq.s32.totalorder %s87, 0
    %s90 = sadd.s32 %s89, 1
    %s91 = scalar_select %p88, %s89, %s90
    %p94 = pneg %p88
    %p95 = scmp.eq.s32.totalorder %s11, 1
    %p96 = por %p94, %p95
    %p97 = scmp.ne.s32.totalorder %s89, %s92
    %p98 = scmp.eq.s32.totalorder %s11, 0
    %p99 = por %p97, %p98
    %p100 = scmp.ne.s32.totalorder %s89, %s92
    %p101 = scmp.eq.s32.totalorder %s16, 1
    %p102 = por %p100, %p101
    %p103 = scmp.ne.s32.totalorder %s92, %s93
    %p104 = scmp.eq.s32.totalorder %s16, 0
    %p105 = por %p103, %p104
    %p106 = scmp.ne.s32.totalorder %s92, %s93
    %p107 = scmp.eq.s32.totalorder %s17, 1
    %p108 = por %p106, %p107
    %p110 = scmp.ne.s32.totalorder %s93, %s109
    %p111 = scmp.eq.s32.totalorder %s17, 0
    %p112 = por %p110, %p111
    %s113 = ssub.s32 %s11, %s18
    %p114 = scmp.eq.s32.totalorder %s113, 0
    %s116 = sadd.s32 %s115, 1
    %s117 = scalar_select %p114, %s115, %s116
    %p120 = pneg %p114
    %p121 = scmp.eq.s32.totalorder %s11, 1
    %p122 = por %p120, %p121
    %p123 = scmp.ne.s32.totalorder %s115, %s118
    %p124 = scmp.eq.s32.totalorder %s11, 0
    %p125 = por %p123, %p124
    %p126 = scmp.ne.s32.totalorder %s115, %s118
    %p127 = scmp.eq.s32.totalorder %s16, 1
    %p128 = por %p126, %p127
    %p129 = scmp.ne.s32.totalorder %s118, %s119
    %p130 = scmp.eq.s32.totalorder %s16, 0
    %p131 = por %p129, %p130
    %p132 = scmp.ne.s32.totalorder %s118, %s119
    %p133 = scmp.eq.s32.totalorder %s17, 1
    %p134 = por %p132, %p133
    %p136 = scmp.ne.s32.totalorder %s119, %s135
    %p137 = scmp.eq.s32.totalorder %s17, 0
    %p138 = por %p136, %p137
    %p139 = scmp.le.s32.totalorder 1, %s11
    %p140 = scmp.lt.s32.totalorder %s11, 3
    %p141 = pnand %p139, %p140
    %p142 = pneg %p141
    // Predicated region
    $region9: #{up_forward.4} parent=5 // pred_check
      _
    $region10: #{up_forward.4} parent=5 // pred_check_branch
      %144 = sbr.rel (%p141) target = $region12
    $region11: #{up_forward.4} parent=5 // pred_region
      %s145 = ssub.s32 %s11, 1
      // Predicated region
      $region13: #{up_forward.4} parent=11 // pred_check
        %p146 = pneg %p58
      $region14: #{up_forward.4} parent=11 // pred_check_branch
        %148 = sbr.rel (%p146) target = $region16
      $region15: #{up_forward.4} parent=11 // pred_region
        _
      $region16: #{up_forward.4} parent=11 // pred_fallthru
        _
      // Predicated region
      $region17: #{up_forward.4} parent=11 // pred_check
        %p149 = pneg %p79
      $region18: #{up_forward.4} parent=11 // pred_check_branch
        %151 = sbr.rel (%p149) target = $region20
      $region19: #{up_forward.4} parent=11 // pred_region
        _
      $region20: #{up_forward.4} parent=11 // pred_fallthru
        _
    $region12: #{up_forward.4} parent=5 // pred_fallthru
      _
    %p152 = scmp.lt.s32.totalorder %s11, 2
    // Predicated region
    $region21: #{up_forward.4} parent=5 // pred_check
      %p153 = pneg %p152
    $region22: #{up_forward.4} parent=5 // pred_check_branch
      %155 = sbr.rel (%p153) target = $region24
    $region23: #{up_forward.4} parent=5 // pred_region
      // Predicated region
      $region25: #{up_forward.4} parent=23 // pred_check
        %p156 = pneg %p31
      $region26: #{up_forward.4} parent=23 // pred_check_branch
        %158 = sbr.rel (%p156) target = $region28
      $region27: #{up_forward.4} parent=23 // pred_region
        %p159 = scmp.lt.s32.totalorder %s11, 1
        %s160 = scalar_select %p159, %s11, 1
        %s161 = smul.addr %s160, 41
        %s162 = smul.addr %s161, 8
        %s163 = scalar_lea.vmem %s0, %s162
      $region28: #{up_forward.4} parent=23 // pred_fallthru
        _
    $region24: #{up_forward.4} parent=5 // pred_fallthru
      _
    %p164 = scmp.le.s32.totalorder 1, %s11
    %p165 = scmp.lt.s32.totalorder %s11, 3
    %p166 = pnand %p164, %p165
    %p167 = pneg %p166
    // Predicated region
    $region29: #{up_forward.4} parent=5 // pred_check
      _
    $region30: #{up_forward.4} parent=5 // pred_check_branch
      %169 = sbr.rel (%p166) target = $region32
    $region31: #{up_forward.4} parent=5 // pred_region
      %s170 = ssub.s32 %s11, 1
      %p171 = scmp.lt.s32.totalorder %s16, 1
      %s172 = scalar_select %p171, %s16, 1
      %s173 = smul.addr %s172, 41
      %s174 = smul.addr %s173, 8
      %s175 = scalar_lea.vmem %s0, %s174
      %p176 = pneg %p37
      %p177 = pneg %p34
      %p178 = pneg %p58
      %p179 = pneg %p55
      %p180 = pneg %p79
      %p181 = pneg %p76
      %p182 = pneg %p105
      %p183 = pneg %p102
      %p184 = scmp.lt.s32.totalorder %s16, 1
      %s185 = scalar_select %p184, %s16, 1
      %s186 = smul.addr %s185, 36
      %s187 = smul.addr %s186, 8
      %s188 = scalar_lea.vmem %s3, %s187
      %p189 = pneg %p131
      %p190 = pneg %p128
      %p191 = scmp.lt.s32.totalorder %s16, 1
      %s192 = scalar_select %p191, %s16, 1
      %s193 = smul.addr %s192, 2
      %s194 = scalar_lea.vmem %s4, %s193
      %p195 = scmp.lt.s32.totalorder %s16, 1
      %s196 = scalar_select %p195, %s16, 1
      %s197 = smul.addr %s196, 41
      %s198 = smul.addr %s197, 8
      %s199 = scalar_lea.vmem %s0, %s198
      %p200 = scmp.lt.s32.totalorder %s16, 1
      %s201 = scalar_select %p200, %s16, 1
      %s202 = smul.addr %s201, 36
      %s203 = smul.addr %s202, 8
      %s204 = scalar_lea.vmem %s3, %s203
      %p205 = scmp.lt.s32.totalorder %s16, 1
      %s206 = scalar_select %p205, %s16, 1
      %s207 = smul.addr %s206, 2
      %s208 = scalar_lea.vmem %s4, %s207
      %v209 = vld [vmem:[%s199] sm:$0xff]
      %v210 = vld [vmem:[%s199 + $0x8] sm:$0xff]
      %v211 = vld [vmem:[%s199 + $0x10] sm:$0xff]
      %v212 = vld [vmem:[%s199 + $0x18] sm:$0xff]
      %v213 = vld [vmem:[%s199 + $0x20] sm:$0xff]
      %v214 = vld [vmem:[%s199 + $0x28] sm:$0xff]
      %v215 = vld [vmem:[%s199 + $0x30] sm:$0xff]
      %v216 = vld [vmem:[%s199 + $0x38] sm:$0xff]
      %v217 = vld [vmem:[%s199 + $0x40] sm:$0xff]
      %v218 = vld [vmem:[%s199 + $0x48] sm:$0xff]
      %v219 = vld [vmem:[%s199 + $0x50] sm:$0xff]
      %v220 = vld [vmem:[%s199 + $0x58] sm:$0xff]
      %v221 = vld [vmem:[%s199 + $0x60] sm:$0xff]
      %v222 = vld [vmem:[%s199 + $0x68] sm:$0xff]
      %v223 = vld [vmem:[%s199 + $0x70] sm:$0xff]
      %v224 = vld [vmem:[%s199 + $0x78] sm:$0xff]
      %v225 = vld [vmem:[%s199 + $0x80] sm:$0xff]
      %v226 = vld [vmem:[%s199 + $0x88] sm:$0xff]
      %v227 = vld [vmem:[%s199 + $0x90] sm:$0xff]
      %v228 = vld [vmem:[%s199 + $0x98] sm:$0xff]
      %v229 = vld [vmem:[%s199 + $0xa0] sm:$0xff]
      %v230 = vld [vmem:[%s199 + $0xa8] sm:$0xff]
      %v231 = vld [vmem:[%s199 + $0xb0] sm:$0xff]
      %v232 = vld [vmem:[%s199 + $0xb8] sm:$0xff]
      %v233 = vld [vmem:[%s199 + $0xc0] sm:$0xff]
      %v234 = vld [vmem:[%s199 + $0xc8] sm:$0xff]
      %v235 = vld [vmem:[%s199 + $0xd0] sm:$0xff]
      %v236 = vld [vmem:[%s199 + $0xd8] sm:$0xff]
      %v237 = vld [vmem:[%s199 + $0xe0] sm:$0xff]
      %v238 = vld [vmem:[%s199 + $0xe8] sm:$0xff]
      %v239 = vld [vmem:[%s199 + $0xf0] sm:$0xff]
      %v240 = vld [vmem:[%s199 + $0xf8] sm:$0xff]
      %v241 = vld [vmem:[%s199 + $0x100] sm:$0xff]
      %v242 = vld [vmem:[%s199 + $0x108] sm:$0xff]
      %v243 = vld [vmem:[%s199 + $0x110] sm:$0xff]
      %v244 = vld [vmem:[%s199 + $0x118] sm:$0xff]
      %v245 = vld [vmem:[%s1] sm:$0xff]
      %vm246 = vcmask 64512
      %v248 = vsel %vm246, %v209, 0
      %v251 = vsel %vm246, %v210, 0
      %v254 = vsel %vm246, %v211, 0
      %v257 = vsel %vm246, %v212, 0
      %v260 = vsel %vm246, %v213, 0
      %v263 = vsel %vm246, %v214, 0
      %v266 = vsel %vm246, %v215, 0
      %v269 = vsel %vm246, %v216, 0
      %v272 = vsel %vm246, %v217, 0
      %v275 = vsel %vm246, %v218, 0
      %v278 = vsel %vm246, %v219, 0
      %v281 = vsel %vm246, %v220, 0
      %v284 = vsel %vm246, %v221, 0
      %v287 = vsel %vm246, %v222, 0
      %v290 = vsel %vm246, %v223, 0
      %v293 = vsel %vm246, %v224, 0
      %v296 = vsel %vm246, %v225, 0
      %v299 = vsel %vm246, %v226, 0
      %v302 = vsel %vm246, %v227, 0
      %v305 = vsel %vm246, %v228, 0
      %v308 = vsel %vm246, %v229, 0
      %v311 = vsel %vm246, %v230, 0
      %v314 = vsel %vm246, %v231, 0
      %v317 = vsel %vm246, %v232, 0
      %v320 = vsel %vm246, %v233, 0
      %v323 = vsel %vm246, %v234, 0
      %v326 = vsel %vm246, %v235, 0
      %v329 = vsel %vm246, %v236, 0
      %v332 = vsel %vm246, %v237, 0
      %v335 = vsel %vm246, %v238, 0
      %v338 = vsel %vm246, %v239, 0
      %v341 = vsel %vm246, %v240, 0
      %v344 = vsel %vm246, %v241, 0
      %v347 = vsel %vm246, %v242, 0
      %v350 = vsel %vm246, %v243, 0
      %v353 = vsel %vm246, %v244, 0
      %355 = vmatprep.subr.mxu0 0.0
      %356 = vmatpush1.msra.mxu0 %v245
      %357 = vmatprep.subr.mxu0 0.0
      %358 = vmatpush1.msra.mxu0 0.0
      %359 = vmatprep.subr.mxu0 0.0
      %360 = vmatpush1.msra.mxu0 0.0
      %361 = vmatprep.subr.mxu0 0.0
      %362 = vmatpush1.msra.mxu0 0.0
      %363 = vmatprep.subr.mxu0 0.0
      %364 = vmatpush1.msra.mxu0 0.0
      %365 = vmatprep.subr.mxu0 0.0
      %366 = vmatpush1.msra.mxu0 0.0
      %367 = vmatprep.subr.mxu0 0.0
      %368 = vmatpush1.msra.mxu0 0.0
      %369 = vmatprep.subr.mxu0 0.0
      %370 = vmatpush1.msra.mxu0 0.0
      %371 = vmatprep.subr.mxu0 0.0
      %372 = vmatpush1.msra.mxu0 0.0
      %373 = vmatprep.subr.mxu0 0.0
      %374 = vmatpush1.msra.mxu0 0.0
      %375 = vmatprep.subr.mxu0 0.0
      %376 = vmatpush1.msra.mxu0 0.0
      %377 = vmatprep.subr.mxu0 0.0
      %378 = vmatpush1.msra.mxu0 0.0
      %379 = vmatprep.subr.mxu0 0.0
      %380 = vmatpush1.msra.mxu0 0.0
      %381 = vmatprep.subr.mxu0 0.0
      %382 = vmatpush1.msra.mxu0 0.0
      %383 = vmatprep.subr.mxu0 0.0
      %384 = vmatpush1.msra.mxu0 0.0
      %385 = vmatprep.subr.mxu0 0.0
      %386 = vmatpush1.msra.mxu0 0.0
      %387 = vmatprep.subr.mxu0 0.0
      %388 = vmatpush1.msra.mxu0 0.0
      %389 = vmatprep.subr.mxu0 0.0
      %390 = vmatpush1.msra.mxu0 0.0
      %391 = vmatprep.subr.mxu0 0.0
      %392 = vmatpush1.msra.mxu0 0.0
      %393 = vmatprep.subr.mxu0 0.0
      %394 = vmatpush1.msra.mxu0 0.0
      %395 = vmatprep.subr.mxu0 0.0
      %396 = vmatpush1.msra.mxu0 0.0
      %397 = vmatprep.subr.mxu0 0.0
      %398 = vmatpush1.msra.mxu0 0.0
      %399 = vmatprep.subr.mxu0 0.0
      %400 = vmatpush1.msra.mxu0 0.0
      %401 = vmatprep.subr.mxu0 0.0
      %402 = vmatpush1.msra.mxu0 0.0
      %403 = vmatprep.subr.mxu0 0.0
      %404 = vmatpush1.msra.mxu0 0.0
      %405 = vmatprep.subr.mxu0 0.0
      %406 = vmatpush1.msra.mxu0 0.0
      %407 = vmatprep.subr.mxu0 0.0
      %408 = vmatpush1.msra.mxu0 0.0
      %409 = vmatprep.subr.mxu0 0.0
      %410 = vmatpush1.msra.mxu0 0.0
      %411 = vmatprep.subr.mxu0 0.0
      %412 = vmatpush1.msra.mxu0 0.0
      %413 = vmatprep.subr.mxu0 0.0
      %414 = vmatpush1.msra.mxu0 0.0
      %415 = vmatprep.subr.mxu0 0.0
      %416 = vmatpush1.msra.mxu0 0.0
      %417 = vmatprep.subr.mxu0 0.0
      %418 = vmatpush1.msra.mxu0 0.0
      %419 = vmatprep.mubr.f32.mxu0 0.0
      %420 = vmatmul.mubr.f32.gmra.mrb[0].mxu0 %v248
      %v421 = vpop.f32.mrb[0].mxu0
      %v422 = vadd.f32 0.0, %v421
      %v423 = vpop.f32.mrb[0].mxu0
      %424 = vmatprep.mubr.f32.mxu0 0.0
      %425 = vmatmul.mubr.f32.gmra.mrb[0].mxu0 %v251
      %v426 = vpop.f32.mrb[0].mxu0
      %v427 = vadd.f32 0.0, %v426
      %v428 = vpop.f32.mrb[0].mxu0
      %429 = vmatprep.mubr.f32.mxu0 0.0
      %430 = vmatmul.mubr.f32.gmra.mrb[0].mxu0 %v254
      %v431 = vpop.f32.mrb[0].mxu0
      %v432 = vadd.f32 0.0, %v431
      %v433 = vpop.f32.mrb[0].mxu0
      %434 = vmatprep.mubr.f32.mxu0 0.0
      %435 = vmatmul.mubr.f32.gmra.mrb[0].mxu0 %v257
      %v436 = vpop.f32.mrb[0].mxu0
      %v437 = vadd.f32 0.0, %v436
      %v438 = vpop.f32.mrb[0].mxu0
      %439 = vmatprep.mubr.f32.mxu0 0.0
      %440 = vmatmul.mubr.f32.gmra.mrb[0].mxu0 %v260
      %v441 = vpop.f32.mrb[0].mxu0
      %v442 = vadd.f32 0.0, %v441
      %v443 = vpop.f32.mrb[0].mxu0
      %444 = vmatprep.mubr.f32.mxu0 0.0
      %445 = vmatmul.mubr.f32.gmra.mrb[0].mxu0 %v263
      %v446 = vpop.f32.mrb[0].mxu0
      %v447 = vadd.f32 0.0, %v446
      %v448 = vpop.f32.mrb[0].mxu0
      %449 = vmatprep.mubr.f32.mxu0 0.0
      %450 = vmatmul.mubr.f32.gmra.mrb[0].mxu0 %v266
      %v451 = vpop.f32.mrb[0].mxu0
      %v452 = vadd.f32 0.0, %v451
      %v453 = vpop.f32.mrb[0].mxu0
      %454 = vmatprep.mubr.f32.mxu0 0.0
      %455 = vmatmul.mubr.f32.gmra.mrb[0].mxu0 %v269
      %v456 = vpop.f32.mrb[0].mxu0
      %v457 = vadd.f32 0.0, %v456
      %v458 = vpop.f32.mrb[0].mxu0
      %459 = vmatprep.mubr.f32.mxu0 0.0
      %460 = vmatmul.mubr.f32.gmra.mrb[0].mxu0 %v272
      %v461 = vpop.f32.mrb[0].mxu0
      %v462 = vadd.f32 0.0, %v461
      %v463 = vpop.f32.mrb[0].mxu0
      %464 = vmatprep.mubr.f32.mxu0 0.0
      %465 = vmatmul.mubr.f32.gmra.mrb[0].mxu0 %v275
      %v466 = vpop.f32.mrb[0].mxu0
      %v467 = vadd.f32 0.0, %v466
      %v468 = vpop.f32.mrb[0].mxu0
      %469 = vmatprep.mubr.f32.mxu0 0.0
      %470 = vmatmul.mubr.f32.gmra.mrb[0].mxu0 %v278
      %v471 = vpop.f32.mrb[0].mxu0
      %v472 = vadd.f32 0.0, %v471
      %v473 = vpop.f32.mrb[0].mxu0
      %474 = vmatprep.mubr.f32.mxu0 0.0
      %475 = vmatmul.mubr.f32.gmra.mrb[0].mxu0 %v281
      %v476 = vpop.f32.mrb[0].mxu0
      %v477 = vadd.f32 0.0, %v476
      %v478 = vpop.f32.mrb[0].mxu0
      %479 = vmatprep.mubr.f32.mxu0 0.0
      %480 = vmatmul.mubr.f32.gmra.mrb[0].mxu0 %v284
      %v481 = vpop.f32.mrb[0].mxu0
      %v482 = vadd.f32 0.0, %v481
      %v483 = vpop.f32.mrb[0].mxu0
      %484 = vmatprep.mubr.f32.mxu0 0.0
      %485 = vmatmul.mubr.f32.gmra.mrb[0].mxu0 %v287
      %v486 = vpop.f32.mrb[0].mxu0
      %v487 = vadd.f32 0.0, %v486
      %v488 = vpop.f32.mrb[0].mxu0
      %489 = vmatprep.mubr.f32.mxu0 0.0
      %490 = vmatmul.mubr.f32.gmra.mrb[0].mxu0 %v290
      %v491 = vpop.f32.mrb[0].mxu0
      %v492 = vadd.f32 0.0, %v491
      %v493 = vpop.f32.mrb[0].mxu0
      %494 = vmatprep.mubr.f32.mxu0 0.0
      %495 = vmatmul.mubr.f32.gmra.mrb[0].mxu0 %v293
      %v496 = vpop.f32.mrb[0].mxu0
      %v497 = vadd.f32 0.0, %v496
      %v498 = vpop.f32.mrb[0].mxu0
      %499 = vmatprep.mubr.f32.mxu0 0.0
      %500 = vmatmul.mubr.f32.gmra.mrb[0].mxu0 %v296
      %v501 = vpop.f32.mrb[0].mxu0
      %v502 = vadd.f32 0.0, %v501
      %v503 = vpop.f32.mrb[0].mxu0
      %504 = vmatprep.mubr.f32.mxu0 0.0
      %505 = vmatmul.mubr.f32.gmra.mrb[0].mxu0 %v299
      %v506 = vpop.f32.mrb[0].mxu0
      %v507 = vadd.f32 0.0, %v506
      %v508 = vpop.f32.mrb[0].mxu0
      %509 = vmatprep.mubr.f32.mxu0 0.0
      %510 = vmatmul.mubr.f32.gmra.mrb[0].mxu0 %v302
      %v511 = vpop.f32.mrb[0].mxu0
      %v512 = vadd.f32 0.0, %v511
      %v513 = vpop.f32.mrb[0].mxu0
      %514 = vmatprep.mubr.f32.mxu0 0.0
      %515 = vmatmul.mubr.f32.gmra.mrb[0].mxu0 %v305
      %v516 = vpop.f32.mrb[0].mxu0
      %v517 = vadd.f32 0.0, %v516
      %v518 = vpop.f32.mrb[0].mxu0
      %519 = vmatprep.mubr.f32.mxu0 0.0
      %520 = vmatmul.mubr.f32.gmra.mrb[0].mxu0 %v308
      %v521 = vpop.f32.mrb[0].mxu0
      %v522 = vadd.f32 0.0, %v521
      %v523 = vpop.f32.mrb[0].mxu0
      %524 = vmatprep.mubr.f32.mxu0 0.0
      %525 = vmatmul.mubr.f32.gmra.mrb[0].mxu0 %v311
      %v526 = vpop.f32.mrb[0].mxu0
      %v527 = vadd.f32 0.0, %v526
      %v528 = vpop.f32.mrb[0].mxu0
      %529 = vmatprep.mubr.f32.mxu0 0.0
      %530 = vmatmul.mubr.f32.gmra.mrb[0].mxu0 %v314
      %v531 = vpop.f32.mrb[0].mxu0
      %v532 = vadd.f32 0.0, %v531
      %v533 = vpop.f32.mrb[0].mxu0
      %534 = vmatprep.mubr.f32.mxu0 0.0
      %535 = vmatmul.mubr.f32.gmra.mrb[0].mxu0 %v317
      %v536 = vpop.f32.mrb[0].mxu0
      %v537 = vadd.f32 0.0, %v536
      %v538 = vpop.f32.mrb[0].mxu0
      %539 = vmatprep.mubr.f32.mxu0 0.0
      %540 = vmatmul.mubr.f32.gmra.mrb[0].mxu0 %v320
      %v541 = vpop.f32.mrb[0].mxu0
      %v542 = vadd.f32 0.0, %v541
      %v543 = vpop.f32.mrb[0].mxu0
      %544 = vmatprep.mubr.f32.mxu0 0.0
      %545 = vmatmul.mubr.f32.gmra.mrb[0].mxu0 %v323
      %v546 = vpop.f32.mrb[0].mxu0
      %v547 = vadd.f32 0.0, %v546
      %v548 = vpop.f32.mrb[0].mxu0
      %549 = vmatprep.mubr.f32.mxu0 0.0
      %550 = vmatmul.mubr.f32.gmra.mrb[0].mxu0 %v326
      %v551 = vpop.f32.mrb[0].mxu0
      %v552 = vadd.f32 0.0, %v551
      %v553 = vpop.f32.mrb[0].mxu0
      %554 = vmatprep.mubr.f32.mxu0 0.0
      %555 = vmatmul.mubr.f32.gmra.mrb[0].mxu0 %v329
      %v556 = vpop.f32.mrb[0].mxu0
      %v557 = vadd.f32 0.0, %v556
      %v558 = vpop.f32.mrb[0].mxu0
      %559 = vmatprep.mubr.f32.mxu0 0.0
      %560 = vmatmul.mubr.f32.gmra.mrb[0].mxu0 %v332
      %v561 = vpop.f32.mrb[0].mxu0
      %v562 = vadd.f32 0.0, %v561
      %v563 = vpop.f32.mrb[0].mxu0
      %564 = vmatprep.mubr.f32.mxu0 0.0
      %565 = vmatmul.mubr.f32.gmra.mrb[0].mxu0 %v335
      %v566 = vpop.f32.mrb[0].mxu0
      %v567 = vadd.f32 0.0, %v566
      %v568 = vpop.f32.mrb[0].mxu0
      %569 = vmatprep.mubr.f32.mxu0 0.0
      %570 = vmatmul.mubr.f32.gmra.mrb[0].mxu0 %v338
      %v571 = vpop.f32.mrb[0].mxu0
      %v572 = vadd.f32 0.0, %v571
      %v573 = vpop.f32.mrb[0].mxu0
      %574 = vmatprep.mubr.f32.mxu0 0.0
      %575 = vmatmul.mubr.f32.gmra.mrb[0].mxu0 %v341
      %v576 = vpop.f32.mrb[0].mxu0
      %v577 = vadd.f32 0.0, %v576
      %v578 = vpop.f32.mrb[0].mxu0
      %579 = vmatprep.mubr.f32.mxu0 0.0
      %580 = vmatmul.mubr.f32.gmra.mrb[0].mxu0 %v344
      %v581 = vpop.f32.mrb[0].mxu0
      %v582 = vadd.f32 0.0, %v581
      %v583 = vpop.f32.mrb[0].mxu0
      %584 = vmatprep.mubr.f32.mxu0 0.0
      %585 = vmatmul.mubr.f32.gmra.mrb[0].mxu0 %v347
      %v586 = vpop.f32.mrb[0].mxu0
      %v587 = vadd.f32 0.0, %v586
      %v588 = vpop.f32.mrb[0].mxu0
      %589 = vmatprep.mubr.f32.mxu0 0.0
      %590 = vmatmul.mubr.f32.gmra.mrb[0].mxu0 %v350
      %v591 = vpop.f32.mrb[0].mxu0
      %v592 = vadd.f32 0.0, %v591
      %v593 = vpop.f32.mrb[0].mxu0
      %594 = vmatprep.mubr.f32.mxu0 0.0
      %595 = vmatmul.mubr.f32.gmra.mrb[0].mxu0 %v353
      %v596 = vpop.f32.mrb[0].mxu0
      %v597 = vadd.f32 0.0, %v596
      %v598 = vpop.f32.mrb[0].mxu0
      %599 = vdwg.mxu0
      %600 = vst [vmem:[%s204] sm:$0xff] %v422
      %601 = vst [vmem:[%s204 + $0x8] sm:$0xff] %v427
      %602 = vst [vmem:[%s204 + $0x10] sm:$0xff] %v432
      %603 = vst [vmem:[%s204 + $0x18] sm:$0xff] %v437
      %604 = vst [vmem:[%s204 + $0x20] sm:$0xff] %v442
      %605 = vst [vmem:[%s204 + $0x28] sm:$0xff] %v447
      %606 = vst [vmem:[%s204 + $0x30] sm:$0xff] %v452
      %607 = vst [vmem:[%s204 + $0x38] sm:$0xff] %v457
      %608 = vst [vmem:[%s204 + $0x40] sm:$0xff] %v462
      %609 = vst [vmem:[%s204 + $0x48] sm:$0xff] %v467
      %610 = vst [vmem:[%s204 + $0x50] sm:$0xff] %v472
      %611 = vst [vmem:[%s204 + $0x58] sm:$0xff] %v477
      %612 = vst [vmem:[%s204 + $0x60] sm:$0xff] %v482
      %613 = vst [vmem:[%s204 + $0x68] sm:$0xff] %v487
      %614 = vst [vmem:[%s204 + $0x70] sm:$0xff] %v492
      %615 = vst [vmem:[%s204 + $0x78] sm:$0xff] %v497
      %616 = vst [vmem:[%s204 + $0x80] sm:$0xff] %v502
      %617 = vst [vmem:[%s204 + $0x88] sm:$0xff] %v507
      %618 = vst [vmem:[%s204 + $0x90] sm:$0xff] %v512
      %619 = vst [vmem:[%s204 + $0x98] sm:$0xff] %v517
      %620 = vst [vmem:[%s204 + $0xa0] sm:$0xff] %v522
      %621 = vst [vmem:[%s204 + $0xa8] sm:$0xff] %v527
      %622 = vst [vmem:[%s204 + $0xb0] sm:$0xff] %v532
      %623 = vst [vmem:[%s204 + $0xb8] sm:$0xff] %v537
      %624 = vst [vmem:[%s204 + $0xc0] sm:$0xff] %v542
      %625 = vst [vmem:[%s204 + $0xc8] sm:$0xff] %v547
      %626 = vst [vmem:[%s204 + $0xd0] sm:$0xff] %v552
      %627 = vst [vmem:[%s204 + $0xd8] sm:$0xff] %v557
      %628 = vst [vmem:[%s204 + $0xe0] sm:$0xff] %v562
      %629 = vst [vmem:[%s204 + $0xe8] sm:$0xff] %v567
      %630 = vst [vmem:[%s204 + $0xf0] sm:$0xff] %v572
      %631 = vst [vmem:[%s204 + $0xf8] sm:$0xff] %v577
      %632 = vst [vmem:[%s204 + $0x100] sm:$0xff] %v582
      %633 = vst [vmem:[%s204 + $0x108] sm:$0xff] %v587
      %634 = vst [vmem:[%s204 + $0x110] sm:$0xff] %v592
      %635 = vst [vmem:[%s204 + $0x118] sm:$0xff] %v597
      %v636 = vld [vmem:[%s204] sm:$0xff]
      %v637 = vld [vmem:[%s204 + $0x8] sm:$0xff]
      %v638 = vld [vmem:[%s204 + $0x10] sm:$0xff]
      %v639 = vld [vmem:[%s204 + $0x18] sm:$0xff]
      %v640 = vld [vmem:[%s204 + $0x20] sm:$0xff]
      %v641 = vld [vmem:[%s204 + $0x28] sm:$0xff]
      %v642 = vld [vmem:[%s204 + $0x30] sm:$0xff]
      %v643 = vld [vmem:[%s204 + $0x38] sm:$0xff]
      %v644 = vld [vmem:[%s204 + $0x40] sm:$0xff]
      %v645 = vld [vmem:[%s204 + $0x48] sm:$0xff]
      %v646 = vld [vmem:[%s204 + $0x50] sm:$0xff]
      %v647 = vld [vmem:[%s204 + $0x58] sm:$0xff]
      %v648 = vld [vmem:[%s204 + $0x60] sm:$0xff]
      %v649 = vld [vmem:[%s204 + $0x68] sm:$0xff]
      %v650 = vld [vmem:[%s204 + $0x70] sm:$0xff]
      %v651 = vld [vmem:[%s204 + $0x78] sm:$0xff]
      %v652 = vld [vmem:[%s204 + $0x80] sm:$0xff]
      %v653 = vld [vmem:[%s204 + $0x88] sm:$0xff]
      %v654 = vld [vmem:[%s204 + $0x90] sm:$0xff]
      %v655 = vld [vmem:[%s204 + $0x98] sm:$0xff]
      %v656 = vld [vmem:[%s204 + $0xa0] sm:$0xff]
      %v657 = vld [vmem:[%s204 + $0xa8] sm:$0xff]
      %v658 = vld [vmem:[%s204 + $0xb0] sm:$0xff]
      %v659 = vld [vmem:[%s204 + $0xb8] sm:$0xff]
      %v660 = vld [vmem:[%s204 + $0xc0] sm:$0xff]
      %v661 = vld [vmem:[%s204 + $0xc8] sm:$0xff]
      %v662 = vld [vmem:[%s204 + $0xd0] sm:$0xff]
      %v663 = vld [vmem:[%s204 + $0xd8] sm:$0xff]
      %v664 = vld [vmem:[%s204 + $0xe0] sm:$0xff]
      %v665 = vld [vmem:[%s204 + $0xe8] sm:$0xff]
      %v666 = vld [vmem:[%s204 + $0xf0] sm:$0xff]
      %v667 = vld [vmem:[%s204 + $0xf8] sm:$0xff]
      %v668 = vld [vmem:[%s204 + $0x100] sm:$0xff]
      %v669 = vld [vmem:[%s204 + $0x108] sm:$0xff]
      %v670 = vld [vmem:[%s204 + $0x110] sm:$0xff]
      %v671 = vld [vmem:[%s204 + $0x118] sm:$0xff]
      %v672 = vld [vmem:[%s199 + $0x1] sm:$0xff]
      %v673 = vld [vmem:[%s199 + $0x9] sm:$0xff]
      %v674 = vld [vmem:[%s199 + $0x11] sm:$0xff]
      %v675 = vld [vmem:[%s199 + $0x19] sm:$0xff]
      %v676 = vld [vmem:[%s199 + $0x21] sm:$0xff]
      %v677 = vld [vmem:[%s199 + $0x29] sm:$0xff]
      %v678 = vld [vmem:[%s199 + $0x31] sm:$0xff]
      %v679 = vld [vmem:[%s199 + $0x39] sm:$0xff]
      %v680 = vld [vmem:[%s199 + $0x41] sm:$0xff]
      %v681 = vld [vmem:[%s199 + $0x49] sm:$0xff]
      %v682 = vld [vmem:[%s199 + $0x51] sm:$0xff]
      %v683 = vld [vmem:[%s199 + $0x59] sm:$0xff]
      %v684 = vld [vmem:[%s199 + $0x61] sm:$0xff]
      %v685 = vld [vmem:[%s199 + $0x69] sm:$0xff]
      %v686 = vld [vmem:[%s199 + $0x71] sm:$0xff]
      %v687 = vld [vmem:[%s199 + $0x79] sm:$0xff]
      %v688 = vld [vmem:[%s199 + $0x81] sm:$0xff]
      %v689 = vld [vmem:[%s199 + $0x89] sm:$0xff]
      %v690 = vld [vmem:[%s199 + $0x91] sm:$0xff]
      %v691 = vld [vmem:[%s199 + $0x99] sm:$0xff]
      %v692 = vld [vmem:[%s199 + $0xa1] sm:$0xff]
      %v693 = vld [vmem:[%s199 + $0xa9] sm:$0xff]
      %v694 = vld [vmem:[%s199 + $0xb1] sm:$0xff]
      %v695 = vld [vmem:[%s199 + $0xb9] sm:$0xff]
      %v696 = vld [vmem:[%s199 + $0xc1] sm:$0xff]
      %v697 = vld [vmem:[%s199 + $0xc9] sm:$0xff]
      %v698 = vld [vmem:[%s199 + $0xd1] sm:$0xff]
      %v699 = vld [vmem:[%s199 + $0xd9] sm:$0xff]
      %v700 = vld [vmem:[%s199 + $0xe1] sm:$0xff]
      %v701 = vld [vmem:[%s199 + $0xe9] sm:$0xff]
      %v702 = vld [vmem:[%s199 + $0xf1] sm:$0xff]
      %v703 = vld [vmem:[%s199 + $0xf9] sm:$0xff]
      %v704 = vld [vmem:[%s199 + $0x101] sm:$0xff]
      %v705 = vld [vmem:[%s199 + $0x109] sm:$0xff]
      %v706 = vld [vmem:[%s199 + $0x111] sm:$0xff]
      %v707 = vld [vmem:[%s199 + $0x119] sm:$0xff]
      %s708 = scalar_lea.vmem %s1, 8
      %v709 = vld [vmem:[%s708] sm:$0xff]
      %v711 = vsel %vm246, %v672, 0
      %v714 = vsel %vm246, %v673, 0
      %v717 = vsel %vm246, %v674, 0
      %v720 = vsel %vm246, %v675, 0
      %v723 = vsel %vm246, %v676, 0
      %v726 = vsel %vm246, %v677, 0
      %v729 = vsel %vm246, %v678, 0
      %v732 = vsel %vm246, %v679, 0
      %v735 = vsel %vm246, %v680, 0
      %v738 = vsel %vm246, %v681, 0
      %v741 = vsel %vm246, %v682, 0
      %v744 = vsel %vm246, %v683, 0
      %v747 = vsel %vm246, %v684, 0
      %v750 = vsel %vm246, %v685, 0
      %v753 = vsel %vm246, %v686, 0
      %v756 = vsel %vm246, %v687, 0
      %v759 = vsel %vm246, %v688, 0
      %v762 = vsel %vm246, %v689, 0
      %v765 = vsel %vm246, %v690, 0
      %v768 = vsel %vm246, %v691, 0
      %v771 = vsel %vm246, %v692, 0
      %v774 = vsel %vm246, %v693, 0
      %v777 = vsel %vm246, %v694, 0
      %v780 = vsel %vm246, %v695, 0
      %v783 = vsel %vm246, %v696, 0
      %v786 = vsel %vm246, %v697, 0
      %v789 = vsel %vm246, %v698, 0
      %v792 = vsel %vm246, %v699, 0
      %v795 = vsel %vm246, %v700, 0
      %v798 = vsel %vm246, %v701, 0
      %v801 = vsel %vm246, %v702, 0
      %v804 = vsel %vm246, %v703, 0
      %v807 = vsel %vm246, %v704, 0
      %v810 = vsel %vm246, %v705, 0
      %v813 = vsel %vm246, %v706, 0
      %v816 = vsel %vm246, %v707, 0
      %818 = vmatprep.subr.mxu0 0.0
      %819 = vmatpush1.msra.mxu0 %v709
      %820 = vmatprep.subr.mxu0 0.0
      %821 = vmatpush1.msra.mxu0 0.0
      %822 = vmatprep.subr.mxu0 0.0
      %823 = vmatpush1.msra.mxu0 0.0
      %824 = vmatprep.subr.mxu0 0.0
      %825 = vmatpush1.msra.mxu0 0.0
      %826 = vmatprep.subr.mxu0 0.0
      %827 = vmatpush1.msra.mxu0 0.0
      %828 = vmatprep.subr.mxu0 0.0
      %829 = vmatpush1.msra.mxu0 0.0
      %830 = vmatprep.subr.mxu0 0.0
      %831 = vmatpush1.msra.mxu0 0.0
      %832 = vmatprep.subr.mxu0 0.0
      %833 = vmatpush1.msra.mxu0 0.0
      %834 = vmatprep.subr.mxu0 0.0
      %835 = vmatpush1.msra.mxu0 0.0
      %836 = vmatprep.subr.mxu0 0.0
      %837 = vmatpush1.msra.mxu0 0.0
      %838 = vmatprep.subr.mxu0 0.0
      %839 = vmatpush1.msra.mxu0 0.0
      %840 = vmatprep.subr.mxu0 0.0
      %841 = vmatpush1.msra.mxu0 0.0
      %842 = vmatprep.subr.mxu0 0.0
      %843 = vmatpush1.msra.mxu0 0.0
      %844 = vmatprep.subr.mxu0 0.0
      %845 = vmatpush1.msra.mxu0 0.0
      %846 = vmatprep.subr.mxu0 0.0
      %847 = vmatpush1.msra.mxu0 0.0
      %848 = vmatprep.subr.mxu0 0.0
      %849 = vmatpush1.msra.mxu0 0.0
      %850 = vmatprep.subr.mxu0 0.0
      %851 = vmatpush1.msra.mxu0 0.0
      %852 = vmatprep.subr.mxu0 0.0
      %853 = vmatpush1.msra.mxu0 0.0
      %854 = vmatprep.subr.mxu0 0.0
      %855 = vmatpush1.msra.mxu0 0.0
      %856 = vmatprep.subr.mxu0 0.0
      %857 = vmatpush1.msra.mxu0 0.0
      %858 = vmatprep.subr.mxu0 0.0
      %859 = vmatpush1.msra.mxu0 0.0
      %860 = vmatprep.subr.mxu0 0.0
      %861 = vmatpush1.msra.mxu0 0.0
      %862 = vmatprep.subr.mxu0 0.0
      %863 = vmatpush1.msra.mxu0 0.0
      %864 = vmatprep.subr.mxu0 0.0
      %865 = vmatpush1.msra.mxu0 0.0
      %866 = vmatprep.subr.mxu0 0.0
      %867 = vmatpush1.msra.mxu0 0.0
      %868 = vmatprep.subr.mxu0 0.0
      %869 = vmatpush1.msra.mxu0 0.0
      %870 = vmatprep.subr.mxu0 0.0
      %871 = vmatpush1.msra.mxu0 0.0
      %872 = vmatprep.subr.mxu0 0.0
      %873 = vmatpush1.msra.mxu0 0.0
      %874 = vmatprep.subr.mxu0 0.0
      %875 = vmatpush1.msra.mxu0 0.0
      %876 = vmatprep.subr.mxu0 0.0
      %877 = vmatpush1.msra.mxu0 0.0
      %878 = vmatprep.subr.mxu0 0.0
      %879 = vmatpush1.msra.mxu0 0.0
      %880 = vmatprep.subr.mxu0 0.0
      %881 = vmatpush1.msra.mxu0 0.0
      %882 = vmatprep.mubr.f32.mxu0 0.0
      %883 = vmatmul.mubr.f32.gmra.mrb[0].mxu0 %v711
      %v884 = vpop.f32.mrb[0].mxu0
      %v885 = vadd.f32 0.0, %v884
      %v886 = vpop.f32.mrb[0].mxu0
      %887 = vmatprep.mubr.f32.mxu0 0.0
      %888 = vmatmul.mubr.f32.gmra.mrb[0].mxu0 %v714
      %v889 = vpop.f32.mrb[0].mxu0
      %v890 = vadd.f32 0.0, %v889
      %v891 = vpop.f32.mrb[0].mxu0
      %892 = vmatprep.mubr.f32.mxu0 0.0
      %893 = vmatmul.mubr.f32.gmra.mrb[0].mxu0 %v717
      %v894 = vpop.f32.mrb[0].mxu0
      %v895 = vadd.f32 0.0, %v894
      %v896 = vpop.f32.mrb[0].mxu0
      %897 = vmatprep.mubr.f32.mxu0 0.0
      %898 = vmatmul.mubr.f32.gmra.mrb[0].mxu0 %v720
      %v899 = vpop.f32.mrb[0].mxu0
      %v900 = vadd.f32 0.0, %v899
      %v901 = vpop.f32.mrb[0].mxu0
      %902 = vmatprep.mubr.f32.mxu0 0.0
      %903 = vmatmul.mubr.f32.gmra.mrb[0].mxu0 %v723
      %v904 = vpop.f32.mrb[0].mxu0
      %v905 = vadd.f32 0.0, %v904
      %v906 = vpop.f32.mrb[0].mxu0
      %907 = vmatprep.mubr.f32.mxu0 0.0
      %908 = vmatmul.mubr.f32.gmra.mrb[0].mxu0 %v726
      %v909 = vpop.f32.mrb[0].mxu0
      %v910 = vadd.f32 0.0, %v909
      %v911 = vpop.f32.mrb[0].mxu0
      %912 = vmatprep.mubr.f32.mxu0 0.0
      %913 = vmatmul.mubr.f32.gmra.mrb[0].mxu0 %v729
      %v914 = vpop.f32.mrb[0].mxu0
      %v915 = vadd.f32 0.0, %v914
      %v916 = vpop.f32.mrb[0].mxu0
      %917 = vmatprep.mubr.f32.mxu0 0.0
      %918 = vmatmul.mubr.f32.gmra.mrb[0].mxu0 %v732
      %v919 = vpop.f32.mrb[0].mxu0
      %v920 = vadd.f32 0.0, %v919
      %v921 = vpop.f32.mrb[0].mxu0
      %922 = vmatprep.mubr.f32.mxu0 0.0
      %923 = vmatmul.mubr.f32.gmra.mrb[0].mxu0 %v735
      %v924 = vpop.f32.mrb[0].mxu0
      %v925 = vadd.f32 0.0, %v924
      %v926 = vpop.f32.mrb[0].mxu0
      %927 = vmatprep.mubr.f32.mxu0 0.0
      %928 = vmatmul.mubr.f32.gmra.mrb[0].mxu0 %v738
      %v929 = vpop.f32.mrb[0].mxu0
      %v930 = vadd.f32 0.0, %v929
      %v931 = vpop.f32.mrb[0].mxu0
      %932 = vmatprep.mubr.f32.mxu0 0.0
      %933 = vmatmul.mubr.f32.gmra.mrb[0].mxu0 %v741
      %v934 = vpop.f32.mrb[0].mxu0
      %v935 = vadd.f32 0.0, %v934
      %v936 = vpop.f32.mrb[0].mxu0
      %937 = vmatprep.mubr.f32.mxu0 0.0
      %938 = vmatmul.mubr.f32.gmra.mrb[0].mxu0 %v744
      %v939 = vpop.f32.mrb[0].mxu0
      %v940 = vadd.f32 0.0, %v939
      %v941 = vpop.f32.mrb[0].mxu0
      %942 = vmatprep.mubr.f32.mxu0 0.0
      %943 = vmatmul.mubr.f32.gmra.mrb[0].mxu0 %v747
      %v944 = vpop.f32.mrb[0].mxu0
      %v945 = vadd.f32 0.0, %v944
      %v946 = vpop.f32.mrb[0].mxu0
      %947 = vmatprep.mubr.f32.mxu0 0.0
      %948 = vmatmul.mubr.f32.gmra.mrb[0].mxu0 %v750
      %v949 = vpop.f32.mrb[0].mxu0
      %v950 = vadd.f32 0.0, %v949
      %v951 = vpop.f32.mrb[0].mxu0
      %952 = vmatprep.mubr.f32.mxu0 0.0
      %953 = vmatmul.mubr.f32.gmra.mrb[0].mxu0 %v753
      %v954 = vpop.f32.mrb[0].mxu0
      %v955 = vadd.f32 0.0, %v954
      %v956 = vpop.f32.mrb[0].mxu0
      %957 = vmatprep.mubr.f32.mxu0 0.0
      %958 = vmatmul.mubr.f32.gmra.mrb[0].mxu0 %v756
      %v959 = vpop.f32.mrb[0].mxu0
      %v960 = vadd.f32 0.0, %v959
      %v961 = vpop.f32.mrb[0].mxu0
      %962 = vmatprep.mubr.f32.mxu0 0.0
      %963 = vmatmul.mubr.f32.gmra.mrb[0].mxu0 %v759
      %v964 = vpop.f32.mrb[0].mxu0
      %v965 = vadd.f32 0.0, %v964
      %v966 = vpop.f32.mrb[0].mxu0
      %967 = vmatprep.mubr.f32.mxu0 0.0
      %968 = vmatmul.mubr.f32.gmra.mrb[0].mxu0 %v762
      %v969 = vpop.f32.mrb[0].mxu0
      %v970 = vadd.f32 0.0, %v969
      %v971 = vpop.f32.mrb[0].mxu0
      %972 = vmatprep.mubr.f32.mxu0 0.0
      %973 = vmatmul.mubr.f32.gmra.mrb[0].mxu0 %v765
      %v974 = vpop.f32.mrb[0].mxu0
      %v975 = vadd.f32 0.0, %v974
      %v976 = vpop.f32.mrb[0].mxu0
      %977 = vmatprep.mubr.f32.mxu0 0.0
      %978 = vmatmul.mubr.f32.gmra.mrb[0].mxu0 %v768
      %v979 = vpop.f32.mrb[0].mxu0
      %v980 = vadd.f32 0.0, %v979
      %v981 = vpop.f32.mrb[0].mxu0
      %982 = vmatprep.mubr.f32.mxu0 0.0
      %983 = vmatmul.mubr.f32.gmra.mrb[0].mxu0 %v771
      %v984 = vpop.f32.mrb[0].mxu0
      %v985 = vadd.f32 0.0, %v984
      %v986 = vpop.f32.mrb[0].mxu0
      %987 = vmatprep.mubr.f32.mxu0 0.0
      %988 = vmatmul.mubr.f32.gmra.mrb[0].mxu0 %v774
      %v989 = vpop.f32.mrb[0].mxu0
      %v990 = vadd.f32 0.0, %v989
      %v991 = vpop.f32.mrb[0].mxu0
      %992 = vmatprep.mubr.f32.mxu0 0.0
      %993 = vmatmul.mubr.f32.gmra.mrb[0].mxu0 %v777
      %v994 = vpop.f32.mrb[0].mxu0
      %v995 = vadd.f32 0.0, %v994
      %v996 = vpop.f32.mrb[0].mxu0
      %997 = vmatprep.mubr.f32.mxu0 0.0
      %998 = vmatmul.mubr.f32.gmra.mrb[0].mxu0 %v780
      %v999 = vpop.f32.mrb[0].mxu0
      %v1000 = vadd.f32 0.0, %v999
      %v1001 = vpop.f32.mrb[0].mxu0
      %1002 = vmatprep.mubr.f32.mxu0 0.0
      %1003 = vmatmul.mubr.f32.gmra.mrb[0].mxu0 %v783
      %v1004 = vpop.f32.mrb[0].mxu0
      %v1005 = vadd.f32 0.0, %v1004
      %v1006 = vpop.f32.mrb[0].mxu0
      %1007 = vmatprep.mubr.f32.mxu0 0.0
      %1008 = vmatmul.mubr.f32.gmra.mrb[0].mxu0 %v786
      %v1009 = vpop.f32.mrb[0].mxu0
      %v1010 = vadd.f32 0.0, %v1009
      %v1011 = vpop.f32.mrb[0].mxu0
      %1012 = vmatprep.mubr.f32.mxu0 0.0
      %1013 = vmatmul.mubr.f32.gmra.mrb[0].mxu0 %v789
      %v1014 = vpop.f32.mrb[0].mxu0
      %v1015 = vadd.f32 0.0, %v1014
      %v1016 = vpop.f32.mrb[0].mxu0
      %1017 = vmatprep.mubr.f32.mxu0 0.0
      %1018 = vmatmul.mubr.f32.gmra.mrb[0].mxu0 %v792
      %v1019 = vpop.f32.mrb[0].mxu0
      %v1020 = vadd.f32 0.0, %v1019
      %v1021 = vpop.f32.mrb[0].mxu0
      %1022 = vmatprep.mubr.f32.mxu0 0.0
      %1023 = vmatmul.mubr.f32.gmra.mrb[0].mxu0 %v795
      %v1024 = vpop.f32.mrb[0].mxu0
      %v1025 = vadd.f32 0.0, %v1024
      %v1026 = vpop.f32.mrb[0].mxu0
      %1027 = vmatprep.mubr.f32.mxu0 0.0
      %1028 = vmatmul.mubr.f32.gmra.mrb[0].mxu0 %v798
      %v1029 = vpop.f32.mrb[0].mxu0
      %v1030 = vadd.f32 0.0, %v1029
      %v1031 = vpop.f32.mrb[0].mxu0
      %1032 = vmatprep.mubr.f32.mxu0 0.0
      %1033 = vmatmul.mubr.f32.gmra.mrb[0].mxu0 %v801
      %v1034 = vpop.f32.mrb[0].mxu0
      %v1035 = vadd.f32 0.0, %v1034
      %v1036 = vpop.f32.mrb[0].mxu0
      %1037 = vmatprep.mubr.f32.mxu0 0.0
      %1038 = vmatmul.mubr.f32.gmra.mrb[0].mxu0 %v804
      %v1039 = vpop.f32.mrb[0].mxu0
      %v1040 = vadd.f32 0.0, %v1039
      %v1041 = vpop.f32.mrb[0].mxu0
      %1042 = vmatprep.mubr.f32.mxu0 0.0
      %1043 = vmatmul.mubr.f32.gmra.mrb[0].mxu0 %v807
      %v1044 = vpop.f32.mrb[0].mxu0
      %v1045 = vadd.f32 0.0, %v1044
      %v1046 = vpop.f32.mrb[0].mxu0
      %1047 = vmatprep.mubr.f32.mxu0 0.0
      %1048 = vmatmul.mubr.f32.gmra.mrb[0].mxu0 %v810
      %v1049 = vpop.f32.mrb[0].mxu0
      %v1050 = vadd.f32 0.0, %v1049
      %v1051 = vpop.f32.mrb[0].mxu0
      %1052 = vmatprep.mubr.f32.mxu0 0.0
      %1053 = vmatmul.mubr.f32.gmra.mrb[0].mxu0 %v813
      %v1054 = vpop.f32.mrb[0].mxu0
      %v1055 = vadd.f32 0.0, %v1054
      %v1056 = vpop.f32.mrb[0].mxu0
      %1057 = vmatprep.mubr.f32.mxu0 0.0
      %1058 = vmatmul.mubr.f32.gmra.mrb[0].mxu0 %v816
      %v1059 = vpop.f32.mrb[0].mxu0
      %v1060 = vadd.f32 0.0, %v1059
      %v1061 = vpop.f32.mrb[0].mxu0
      %1062 = vdwg.mxu0
      %v1063 = vadd.f32 %v636, %v885
      %v1064 = vadd.f32 %v637, %v890
      %v1065 = vadd.f32 %v638, %v895
      %v1066 = vadd.f32 %v639, %v900
      %v1067 = vadd.f32 %v640, %v905
      %v1068 = vadd.f32 %v641, %v910
      %v1069 = vadd.f32 %v642, %v915
      %v1070 = vadd.f32 %v643, %v920
      %v1071 = vadd.f32 %v644, %v925
      %v1072 = vadd.f32 %v645, %v930
      %v1073 = vadd.f32 %v646, %v935
      %v1074 = vadd.f32 %v647, %v940
      %v1075 = vadd.f32 %v648, %v945
      %v1076 = vadd.f32 %v649, %v950
      %v1077 = vadd.f32 %v650, %v955
      %v1078 = vadd.f32 %v651, %v960
      %v1079 = vadd.f32 %v652, %v965
      %v1080 = vadd.f32 %v653, %v970
      %v1081 = vadd.f32 %v654, %v975
      %v1082 = vadd.f32 %v655, %v980
      %v1083 = vadd.f32 %v656, %v985
      %v1084 = vadd.f32 %v657, %v990
      %v1085 = vadd.f32 %v658, %v995
      %v1086 = vadd.f32 %v659, %v1000
      %v1087 = vadd.f32 %v660, %v1005
      %v1088 = vadd.f32 %v661, %v1010
      %v1089 = vadd.f32 %v662, %v1015
      %v1090 = vadd.f32 %v663, %v1020
      %v1091 = vadd.f32 %v664, %v1025
      %v1092 = vadd.f32 %v665, %v1030
      %v1093 = vadd.f32 %v666, %v1035
      %v1094 = vadd.f32 %v667, %v1040
      %v1095 = vadd.f32 %v668, %v1045
      %v1096 = vadd.f32 %v669, %v1050
      %v1097 = vadd.f32 %v670, %v1055
      %v1098 = vadd.f32 %v671, %v1060
      %1099 = vst [vmem:[%s204] sm:$0xff] %v1063
      %1100 = vst [vmem:[%s204 + $0x8] sm:$0xff] %v1064
      %1101 = vst [vmem:[%s204 + $0x10] sm:$0xff] %v1065
      %1102 = vst [vmem:[%s204 + $0x18] sm:$0xff] %v1066
      %1103 = vst [vmem:[%s204 + $0x20] sm:$0xff] %v1067
      %1104 = vst [vmem:[%s204 + $0x28] sm:$0xff] %v1068
      %1105 = vst [vmem:[%s204 + $0x30] sm:$0xff] %v1069
      %1106 = vst [vmem:[%s204 + $0x38] sm:$0xff] %v1070
      %1107 = vst [vmem:[%s204 + $0x40] sm:$0xff] %v1071
      %1108 = vst [vmem:[%s204 + $0x48] sm:$0xff] %v1072
      %1109 = vst [vmem:[%s204 + $0x50] sm:$0xff] %v1073
      %1110 = vst [vmem:[%s204 + $0x58] sm:$0xff] %v1074
      %1111 = vst [vmem:[%s204 + $0x60] sm:$0xff] %v1075
      %1112 = vst [vmem:[%s204 + $0x68] sm:$0xff] %v1076
      %1113 = vst [vmem:[%s204 + $0x70] sm:$0xff] %v1077
      %1114 = vst [vmem:[%s204 + $0x78] sm:$0xff] %v1078
      %1115 = vst [vmem:[%s204 + $0x80] sm:$0xff] %v1079
      %1116 = vst [vmem:[%s204 + $0x88] sm:$0xff] %v1080
      %1117 = vst [vmem:[%s204 + $0x90] sm:$0xff] %v1081
      %1118 = vst [vmem:[%s204 + $0x98] sm:$0xff] %v1082
      %1119 = vst [vmem:[%s204 + $0xa0] sm:$0xff] %v1083
      %1120 = vst [vmem:[%s204 + $0xa8] sm:$0xff] %v1084
      %1121 = vst [vmem:[%s204 + $0xb0] sm:$0xff] %v1085
      %1122 = vst [vmem:[%s204 + $0xb8] sm:$0xff] %v1086
      %1123 = vst [vmem:[%s204 + $0xc0] sm:$0xff] %v1087
      %1124 = vst [vmem:[%s204 + $0xc8] sm:$0xff] %v1088
      %1125 = vst [vmem:[%s204 + $0xd0] sm:$0xff] %v1089
      %1126 = vst [vmem:[%s204 + $0xd8] sm:$0xff] %v1090
      %1127 = vst [vmem:[%s204 + $0xe0] sm:$0xff] %v1091
      %1128 = vst [vmem:[%s204 + $0xe8] sm:$0xff] %v1092
      %1129 = vst [vmem:[%s204 + $0xf0] sm:$0xff] %v1093
      %1130 = vst [vmem:[%s204 + $0xf8] sm:$0xff] %v1094
      %1131 = vst [vmem:[%s204 + $0x100] sm:$0xff] %v1095
      %1132 = vst [vmem:[%s204 + $0x108] sm:$0xff] %v1096
      %1133 = vst [vmem:[%s204 + $0x110] sm:$0xff] %v1097
      %1134 = vst [vmem:[%s204 + $0x118] sm:$0xff] %v1098
      %v1135 = vld [vmem:[%s204] sm:$0xff]
      %v1136 = vld [vmem:[%s204 + $0x8] sm:$0xff]
      %v1137 = vld [vmem:[%s204 + $0x10] sm:$0xff]
      %v1138 = vld [vmem:[%s204 + $0x18] sm:$0xff]
      %v1139 = vld [vmem:[%s204 + $0x20] sm:$0xff]
      %v1140 = vld [vmem:[%s204 + $0x28] sm:$0xff]
      %v1141 = vld [vmem:[%s204 + $0x30] sm:$0xff]
      %v1142 = vld [vmem:[%s204 + $0x38] sm:$0xff]
      %v1143 = vld [vmem:[%s204 + $0x40] sm:$0xff]
      %v1144 = vld [vmem:[%s204 + $0x48] sm:$0xff]
      %v1145 = vld [vmem:[%s204 + $0x50] sm:$0xff]
      %v1146 = vld [vmem:[%s204 + $0x58] sm:$0xff]
      %v1147 = vld [vmem:[%s204 + $0x60] sm:$0xff]
      %v1148 = vld [vmem:[%s204 + $0x68] sm:$0xff]
      %v1149 = vld [vmem:[%s204 + $0x70] sm:$0xff]
      %v1150 = vld [vmem:[%s204 + $0x78] sm:$0xff]
      %v1151 = vld [vmem:[%s204 + $0x80] sm:$0xff]
      %v1152 = vld [vmem:[%s204 + $0x88] sm:$0xff]
      %v1153 = vld [vmem:[%s204 + $0x90] sm:$0xff]
      %v1154 = vld [vmem:[%s204 + $0x98] sm:$0xff]
      %v1155 = vld [vmem:[%s204 + $0xa0] sm:$0xff]
      %v1156 = vld [vmem:[%s204 + $0xa8] sm:$0xff]
      %v1157 = vld [vmem:[%s204 + $0xb0] sm:$0xff]
      %v1158 = vld [vmem:[%s204 + $0xb8] sm:$0xff]
      %v1159 = vld [vmem:[%s204 + $0xc0] sm:$0xff]
      %v1160 = vld [vmem:[%s204 + $0xc8] sm:$0xff]
      %v1161 = vld [vmem:[%s204 + $0xd0] sm:$0xff]
      %v1162 = vld [vmem:[%s204 + $0xd8] sm:$0xff]
      %v1163 = vld [vmem:[%s204 + $0xe0] sm:$0xff]
      %v1164 = vld [vmem:[%s204 + $0xe8] sm:$0xff]
      %v1165 = vld [vmem:[%s204 + $0xf0] sm:$0xff]
      %v1166 = vld [vmem:[%s204 + $0xf8] sm:$0xff]
      %v1167 = vld [vmem:[%s204 + $0x100] sm:$0xff]
      %v1168 = vld [vmem:[%s204 + $0x108] sm:$0xff]
      %v1169 = vld [vmem:[%s204 + $0x110] sm:$0xff]
      %v1170 = vld [vmem:[%s204 + $0x118] sm:$0xff]
      %v1171 = vld [vmem:[%s199 + $0x2] sm:$0xff]
      %v1172 = vld [vmem:[%s199 + $0xa] sm:$0xff]
      %v1173 = vld [vmem:[%s199 + $0x12] sm:$0xff]
      %v1174 = vld [vmem:[%s199 + $0x1a] sm:$0xff]
      %v1175 = vld [vmem:[%s199 + $0x22] sm:$0xff]
      %v1176 = vld [vmem:[%s199 + $0x2a] sm:$0xff]
      %v1177 = vld [vmem:[%s199 + $0x32] sm:$0xff]
      %v1178 = vld [vmem:[%s199 + $0x3a] sm:$0xff]
      %v1179 = vld [vmem:[%s199 + $0x42] sm:$0xff]
      %v1180 = vld [vmem:[%s199 + $0x4a] sm:$0xff]
      %v1181 = vld [vmem:[%s199 + $0x52] sm:$0xff]
      %v1182 = vld [vmem:[%s199 + $0x5a] sm:$0xff]
      %v1183 = vld [vmem:[%s199 + $0x62] sm:$0xff]
      %v1184 = vld [vmem:[%s199 + $0x6a] sm:$0xff]
      %v1185 = vld [vmem:[%s199 + $0x72] sm:$0xff]
      %v1186 = vld [vmem:[%s199 + $0x7a] sm:$0xff]
      %v1187 = vld [vmem:[%s199 + $0x82] sm:$0xff]
      %v1188 = vld [vmem:[%s199 + $0x8a] sm:$0xff]
      %v1189 = vld [vmem:[%s199 + $0x92] sm:$0xff]
      %v1190 = vld [vmem:[%s199 + $0x9a] sm:$0xff]
      %v1191 = vld [vmem:[%s199 + $0xa2] sm:$0xff]
      %v1192 = vld [vmem:[%s199 + $0xaa] sm:$0xff]
      %v1193 = vld [vmem:[%s199 + $0xb2] sm:$0xff]
      %v1194 = vld [vmem:[%s199 + $0xba] sm:$0xff]
      %v1195 = vld [vmem:[%s199 + $0xc2] sm:$0xff]
      %v1196 = vld [vmem:[%s199 + $0xca] sm:$0xff]
      %v1197 = vld [vmem:[%s199 + $0xd2] sm:$0xff]
      %v1198 = vld [vmem:[%s199 + $0xda] sm:$0xff]
      %v1199 = vld [vmem:[%s199 + $0xe2] sm:$0xff]
      %v1200 = vld [vmem:[%s199 + $0xea] sm:$0xff]
      %v1201 = vld [vmem:[%s199 + $0xf2] sm:$0xff]
      %v1202 = vld [vmem:[%s199 + $0xfa] sm:$0xff]
      %v1203 = vld [vmem:[%s199 + $0x102] sm:$0xff]
      %v1204 = vld [vmem:[%s199 + $0x10a] sm:$0xff]
      %v1205 = vld [vmem:[%s199 + $0x112] sm:$0xff]
      %v1206 = vld [vmem:[%s199 + $0x11a] sm:$0xff]
      %s1207 = scalar_lea.vmem %s1, 16
      %v1208 = vld [vmem:[%s1207] sm:$0xff]
      %v1210 = vsel %vm246, %v1171, 0
      %v1213 = vsel %vm246, %v1172, 0
      %v1216 = vsel %vm246, %v1173, 0
      %v1219 = vsel %vm246, %v1174, 0
      %v1222 = vsel %vm246, %v1175, 0
      %v1225 = vsel %vm246, %v1176, 0
      %v1228 = vsel %vm246, %v1177, 0
      %v1231 = vsel %vm246, %v1178, 0
      %v1234 = vsel %vm246, %v1179, 0
      %v1237 = vsel %vm246, %v1180, 0
      %v1240 = vsel %vm246, %v1181, 0
      %v1243 = vsel %vm246, %v1182, 0
      %v1246 = vsel %vm246, %v1183, 0
      %v1249 = vsel %vm246, %v1184, 0
      %v1252 = vsel %vm246, %v1185, 0
      %v1255 = vsel %vm246, %v1186, 0
      %v1258 = vsel %vm246, %v1187, 0
      %v1261 = vsel %vm246, %v1188, 0
      %v1264 = vsel %vm246, %v1189, 0
      %v1267 = vsel %vm246, %v1190, 0
      %v1270 = vsel %vm246, %v1191, 0
      %v1273 = vsel %vm246, %v1192, 0
      %v1276 = vsel %vm246, %v1193, 0
      %v1279 = vsel %vm246, %v1194, 0
      %v1282 = vsel %vm246, %v1195, 0
      %v1285 = vsel %vm246, %v1196, 0
      %v1288 = vsel %vm246, %v1197, 0
      %v1291 = vsel %vm246, %v1198, 0
      %v1294 = vsel %vm246, %v1199, 0
      %v1297 = vsel %vm246, %v1200, 0
      %v1300 = vsel %vm246, %v1201, 0
      %v1303 = vsel %vm246, %v1202, 0
      %v1306 = vsel %vm246, %v1203, 0
      %v1309 = vsel %vm246, %v1204, 0
      %v1312 = vsel %vm246, %v1205, 0
      %v1315 = vsel %vm246, %v1206, 0
      %1317 = vmatprep.subr.mxu0 0.0
      %1318 = vmatpush1.msra.mxu0 %v1208
      %1319 = vmatprep.subr.mxu0 0.0
      %1320 = vmatpush1.msra.mxu0 0.0
      %1321 = vmatprep.subr.mxu0 0.0
      %1322 = vmatpush1.msra.mxu0 0.0
      %1323 = vmatprep.subr.mxu0 0.0
      %1324 = vmatpush1.msra.mxu0 0.0
      %1325 = vmatprep.subr.mxu0 0.0
      %1326 = vmatpush1.msra.mxu0 0.0
      %1327 = vmatprep.subr.mxu0 0.0
      %1328 = vmatpush1.msra.mxu0 0.0
      %1329 = vmatprep.subr.mxu0 0.0
      %1330 = vmatpush1.msra.mxu0 0.0
      %1331 = vmatprep.subr.mxu0 0.0
      %1332 = vmatpush1.msra.mxu0 0.0
      %1333 = vmatprep.subr.mxu0 0.0
      %1334 = vmatpush1.msra.mxu0 0.0
      %1335 = vmatprep.subr.mxu0 0.0
      %1336 = vmatpush1.msra.mxu0 0.0
      %1337 = vmatprep.subr.mxu0 0.0
      %1338 = vmatpush1.msra.mxu0 0.0
      %1339 = vmatprep.subr.mxu0 0.0
      %1340 = vmatpush1.msra.mxu0 0.0
      %1341 = vmatprep.subr.mxu0 0.0
      %1342 = vmatpush1.msra.mxu0 0.0
      %1343 = vmatprep.subr.mxu0 0.0
      %1344 = vmatpush1.msra.mxu0 0.0
      %1345 = vmatprep.subr.mxu0 0.0
      %1346 = vmatpush1.msra.mxu0 0.0
      %1347 = vmatprep.subr.mxu0 0.0
      %1348 = vmatpush1.msra.mxu0 0.0
      %1349 = vmatprep.subr.mxu0 0.0
      %1350 = vmatpush1.msra.mxu0 0.0
      %1351 = vmatprep.subr.mxu0 0.0
      %1352 = vmatpush1.msra.mxu0 0.0
      %1353 = vmatprep.subr.mxu0 0.0
      %1354 = vmatpush1.msra.mxu0 0.0
      %1355 = vmatprep.subr.mxu0 0.0
      %1356 = vmatpush1.msra.mxu0 0.0
      %1357 = vmatprep.subr.mxu0 0.0
      %1358 = vmatpush1.msra.mxu0 0.0
      %1359 = vmatprep.subr.mxu0 0.0
      %1360 = vmatpush1.msra.mxu0 0.0
      %1361 = vmatprep.subr.mxu0 0.0
      %1362 = vmatpush1.msra.mxu0 0.0
      %1363 = vmatprep.subr.mxu0 0.0
      %1364 = vmatpush1.msra.mxu0 0.0
      %1365 = vmatprep.subr.mxu0 0.0
      %1366 = vmatpush1.msra.mxu0 0.0
      %1367 = vmatprep.subr.mxu0 0.0
      %1368 = vmatpush1.msra.mxu0 0.0
      %1369 = vmatprep.subr.mxu0 0.0
      %1370 = vmatpush1.msra.mxu0 0.0
      %1371 = vmatprep.subr.mxu0 0.0
      %1372 = vmatpush1.msra.mxu0 0.0
      %1373 = vmatprep.subr.mxu0 0.0
      %1374 = vmatpush1.msra.mxu0 0.0
      %1375 = vmatprep.subr.mxu0 0.0
      %1376 = vmatpush1.msra.mxu0 0.0
      %1377 = vmatprep.subr.mxu0 0.0
      %1378 = vmatpush1.msra.mxu0 0.0
      %1379 = vmatprep.subr.mxu0 0.0
      %1380 = vmatpush1.msra.mxu0 0.0
      %1381 = vmatprep.mubr.f32.mxu0 0.0
      %1382 = vmatmul.mubr.f32.gmra.mrb[0].mxu0 %v1210
      %v1383 = vpop.f32.mrb[0].mxu0
      %v1384 = vadd.f32 0.0, %v1383
      %v1385 = vpop.f32.mrb[0].mxu0
      %1386 = vmatprep.mubr.f32.mxu0 0.0
      %1387 = vmatmul.mubr.f32.gmra.mrb[0].mxu0 %v1213
      %v1388 = vpop.f32.mrb[0].mxu0
      %v1389 = vadd.f32 0.0, %v1388
      %v1390 = vpop.f32.mrb[0].mxu0
      %1391 = vmatprep.mubr.f32.mxu0 0.0
      %1392 = vmatmul.mubr.f32.gmra.mrb[0].mxu0 %v1216
      %v1393 = vpop.f32.mrb[0].mxu0
      %v1394 = vadd.f32 0.0, %v1393
      %v1395 = vpop.f32.mrb[0].mxu0
      %1396 = vmatprep.mubr.f32.mxu0 0.0
      %1397 = vmatmul.mubr.f32.gmra.mrb[0].mxu0 %v1219
      %v1398 = vpop.f32.mrb[0].mxu0
      %v1399 = vadd.f32 0.0, %v1398
      %v1400 = vpop.f32.mrb[0].mxu0
      %1401 = vmatprep.mubr.f32.mxu0 0.0
      %1402 = vmatmul.mubr.f32.gmra.mrb[0].mxu0 %v1222
      %v1403 = vpop.f32.mrb[0].mxu0
      %v1404 = vadd.f32 0.0, %v1403
      %v1405 = vpop.f32.mrb[0].mxu0
      %1406 = vmatprep.mubr.f32.mxu0 0.0
      %1407 = vmatmul.mubr.f32.gmra.mrb[0].mxu0 %v1225
      %v1408 = vpop.f32.mrb[0].mxu0
      %v1409 = vadd.f32 0.0, %v1408
      %v1410 = vpop.f32.mrb[0].mxu0
      %1411 = vmatprep.mubr.f32.mxu0 0.0
      %1412 = vmatmul.mubr.f32.gmra.mrb[0].mxu0 %v1228
      %v1413 = vpop.f32.mrb[0].mxu0
      %v1414 = vadd.f32 0.0, %v1413
      %v1415 = vpop.f32.mrb[0].mxu0
      %1416 = vmatprep.mubr.f32.mxu0 0.0
      %1417 = vmatmul.mubr.f32.gmra.mrb[0].mxu0 %v1231
      %v1418 = vpop.f32.mrb[0].mxu0
      %v1419 = vadd.f32 0.0, %v1418
      %v1420 = vpop.f32.mrb[0].mxu0
      %1421 = vmatprep.mubr.f32.mxu0 0.0
      %1422 = vmatmul.mubr.f32.gmra.mrb[0].mxu0 %v1234
      %v1423 = vpop.f32.mrb[0].mxu0
      %v1424 = vadd.f32 0.0, %v1423
      %v1425 = vpop.f32.mrb[0].mxu0
      %1426 = vmatprep.mubr.f32.mxu0 0.0
      %1427 = vmatmul.mubr.f32.gmra.mrb[0].mxu0 %v1237
      %v1428 = vpop.f32.mrb[0].mxu0
      %v1429 = vadd.f32 0.0, %v1428
      %v1430 = vpop.f32.mrb[0].mxu0
      %1431 = vmatprep.mubr.f32.mxu0 0.0
      %1432 = vmatmul.mubr.f32.gmra.mrb[0].mxu0 %v1240
      %v1433 = vpop.f32.mrb[0].mxu0
      %v1434 = vadd.f32 0.0, %v1433
      %v1435 = vpop.f32.mrb[0].mxu0
      %1436 = vmatprep.mubr.f32.mxu0 0.0
      %1437 = vmatmul.mubr.f32.gmra.mrb[0].mxu0 %v1243
      %v1438 = vpop.f32.mrb[0].mxu0
      %v1439 = vadd.f32 0.0, %v1438
      %v1440 = vpop.f32.mrb[0].mxu0
      %1441 = vmatprep.mubr.f32.mxu0 0.0
      %1442 = vmatmul.mubr.f32.gmra.mrb[0].mxu0 %v1246
      %v1443 = vpop.f32.mrb[0].mxu0
      %v1444 = vadd.f32 0.0, %v1443
      %v1445 = vpop.f32.mrb[0].mxu0
      %1446 = vmatprep.mubr.f32.mxu0 0.0
      %1447 = vmatmul.mubr.f32.gmra.mrb[0].mxu0 %v1249
      %v1448 = vpop.f32.mrb[0].mxu0
      %v1449 = vadd.f32 0.0, %v1448
      %v1450 = vpop.f32.mrb[0].mxu0
      %1451 = vmatprep.mubr.f32.mxu0 0.0
      %1452 = vmatmul.mubr.f32.gmra.mrb[0].mxu0 %v1252
      %v1453 = vpop.f32.mrb[0].mxu0
      %v1454 = vadd.f32 0.0, %v1453
      %v1455 = vpop.f32.mrb[0].mxu0
      %1456 = vmatprep.mubr.f32.mxu0 0.0
      %1457 = vmatmul.mubr.f32.gmra.mrb[0].mxu0 %v1255
      %v1458 = vpop.f32.mrb[0].mxu0
      %v1459 = vadd.f32 0.0, %v1458
      %v1460 = vpop.f32.mrb[0].mxu0
      %1461 = vmatprep.mubr.f32.mxu0 0.0
      %1462 = vmatmul.mubr.f32.gmra.mrb[0].mxu0 %v1258
      %v1463 = vpop.f32.mrb[0].mxu0
      %v1464 = vadd.f32 0.0, %v1463
      %v1465 = vpop.f32.mrb[0].mxu0
      %1466 = vmatprep.mubr.f32.mxu0 0.0
      %1467 = vmatmul.mubr.f32.gmra.mrb[0].mxu0 %v1261
      %v1468 = vpop.f32.mrb[0].mxu0
      %v1469 = vadd.f32 0.0, %v1468
      %v1470 = vpop.f32.mrb[0].mxu0
      %1471 = vmatprep.mubr.f32.mxu0 0.0
      %1472 = vmatmul.mubr.f32.gmra.mrb[0].mxu0 %v1264
      %v1473 = vpop.f32.mrb[0].mxu0
      %v1474 = vadd.f32 0.0, %v1473
      %v1475 = vpop.f32.mrb[0].mxu0
      %1476 = vmatprep.mubr.f32.mxu0 0.0
      %1477 = vmatmul.mubr.f32.gmra.mrb[0].mxu0 %v1267
      %v1478 = vpop.f32.mrb[0].mxu0
      %v1479 = vadd.f32 0.0, %v1478
      %v1480 = vpop.f32.mrb[0].mxu0
      %1481 = vmatprep.mubr.f32.mxu0 0.0
      %1482 = vmatmul.mubr.f32.gmra.mrb[0].mxu0 %v1270
      %v1483 = vpop.f32.mrb[0].mxu0
      %v1484 = vadd.f32 0.0, %v1483
      %v1485 = vpop.f32.mrb[0].mxu0
      %1486 = vmatprep.mubr.f32.mxu0 0.0
      %1487 = vmatmul.mubr.f32.gmra.mrb[0].mxu0 %v1273
      %v1488 = vpop.f32.mrb[0].mxu0
      %v1489 = vadd.f32 0.0, %v1488
      %v1490 = vpop.f32.mrb[0].mxu0
      %1491 = vmatprep.mubr.f32.mxu0 0.0
      %1492 = vmatmul.mubr.f32.gmra.mrb[0].mxu0 %v1276
      %v1493 = vpop.f32.mrb[0].mxu0
      %v1494 = vadd.f32 0.0, %v1493
      %v1495 = vpop.f32.mrb[0].mxu0
      %1496 = vmatprep.mubr.f32.mxu0 0.0
      %1497 = vmatmul.mubr.f32.gmra.mrb[0].mxu0 %v1279
      %v1498 = vpop.f32.mrb[0].mxu0
      %v1499 = vadd.f32 0.0, %v1498
      %v1500 = vpop.f32.mrb[0].mxu0
      %1501 = vmatprep.mubr.f32.mxu0 0.0
      %1502 = vmatmul.mubr.f32.gmra.mrb[0].mxu0 %v1282
      %v1503 = vpop.f32.mrb[0].mxu0
      %v1504 = vadd.f32 0.0, %v1503
      %v1505 = vpop.f32.mrb[0].mxu0
      %1506 = vmatprep.mubr.f32.mxu0 0.0
      %1507 = vmatmul.mubr.f32.gmra.mrb[0].mxu0 %v1285
      %v1508 = vpop.f32.mrb[0].mxu0
      %v1509 = vadd.f32 0.0, %v1508
      %v1510 = vpop.f32.mrb[0].mxu0
      %1511 = vmatprep.mubr.f32.mxu0 0.0
      %1512 = vmatmul.mubr.f32.gmra.mrb[0].mxu0 %v1288
      %v1513 = vpop.f32.mrb[0].mxu0
      %v1514 = vadd.f32 0.0, %v1513
      %v1515 = vpop.f32.mrb[0].mxu0
      %1516 = vmatprep.mubr.f32.mxu0 0.0
      %1517 = vmatmul.mubr.f32.gmra.mrb[0].mxu0 %v1291
      %v1518 = vpop.f32.mrb[0].mxu0
      %v1519 = vadd.f32 0.0, %v1518
      %v1520 = vpop.f32.mrb[0].mxu0
      %1521 = vmatprep.mubr.f32.mxu0 0.0
      %1522 = vmatmul.mubr.f32.gmra.mrb[0].mxu0 %v1294
      %v1523 = vpop.f32.mrb[0].mxu0
      %v1524 = vadd.f32 0.0, %v1523
      %v1525 = vpop.f32.mrb[0].mxu0
      %1526 = vmatprep.mubr.f32.mxu0 0.0
      %1527 = vmatmul.mubr.f32.gmra.mrb[0].mxu0 %v1297
      %v1528 = vpop.f32.mrb[0].mxu0
      %v1529 = vadd.f32 0.0, %v1528
      %v1530 = vpop.f32.mrb[0].mxu0
      %1531 = vmatprep.mubr.f32.mxu0 0.0
      %1532 = vmatmul.mubr.f32.gmra.mrb[0].mxu0 %v1300
      %v1533 = vpop.f32.mrb[0].mxu0
      %v1534 = vadd.f32 0.0, %v1533
      %v1535 = vpop.f32.mrb[0].mxu0
      %1536 = vmatprep.mubr.f32.mxu0 0.0
      %1537 = vmatmul.mubr.f32.gmra.mrb[0].mxu0 %v1303
      %v1538 = vpop.f32.mrb[0].mxu0
      %v1539 = vadd.f32 0.0, %v1538
      %v1540 = vpop.f32.mrb[0].mxu0
      %1541 = vmatprep.mubr.f32.mxu0 0.0
      %1542 = vmatmul.mubr.f32.gmra.mrb[0].mxu0 %v1306
      %v1543 = vpop.f32.mrb[0].mxu0
      %v1544 = vadd.f32 0.0, %v1543
      %v1545 = vpop.f32.mrb[0].mxu0
      %1546 = vmatprep.mubr.f32.mxu0 0.0
      %1547 = vmatmul.mubr.f32.gmra.mrb[0].mxu0 %v1309
      %v1548 = vpop.f32.mrb[0].mxu0
      %v1549 = vadd.f32 0.0, %v1548
      %v1550 = vpop.f32.mrb[0].mxu0
      %1551 = vmatprep.mubr.f32.mxu0 0.0
      %1552 = vmatmul.mubr.f32.gmra.mrb[0].mxu0 %v1312
      %v1553 = vpop.f32.mrb[0].mxu0
      %v1554 = vadd.f32 0.0, %v1553
      %v1555 = vpop.f32.mrb[0].mxu0
      %1556 = vmatprep.mubr.f32.mxu0 0.0
      %1557 = vmatmul.mubr.f32.gmra.mrb[0].mxu0 %v1315
      %v1558 = vpop.f32.mrb[0].mxu0
      %v1559 = vadd.f32 0.0, %v1558
      %v1560 = vpop.f32.mrb[0].mxu0
      %1561 = vdwg.mxu0
      %v1562 = vadd.f32 %v1135, %v1384
      %v1563 = vadd.f32 %v1136, %v1389
      %v1564 = vadd.f32 %v1137, %v1394
      %v1565 = vadd.f32 %v1138, %v1399
      %v1566 = vadd.f32 %v1139, %v1404
      %v1567 = vadd.f32 %v1140, %v1409
      %v1568 = vadd.f32 %v1141, %v1414
      %v1569 = vadd.f32 %v1142, %v1419
      %v1570 = vadd.f32 %v1143, %v1424
      %v1571 = vadd.f32 %v1144, %v1429
      %v1572 = vadd.f32 %v1145, %v1434
      %v1573 = vadd.f32 %v1146, %v1439
      %v1574 = vadd.f32 %v1147, %v1444
      %v1575 = vadd.f32 %v1148, %v1449
      %v1576 = vadd.f32 %v1149, %v1454
      %v1577 = vadd.f32 %v1150, %v1459
      %v1578 = vadd.f32 %v1151, %v1464
      %v1579 = vadd.f32 %v1152, %v1469
      %v1580 = vadd.f32 %v1153, %v1474
      %v1581 = vadd.f32 %v1154, %v1479
      %v1582 = vadd.f32 %v1155, %v1484
      %v1583 = vadd.f32 %v1156, %v1489
      %v1584 = vadd.f32 %v1157, %v1494
      %v1585 = vadd.f32 %v1158, %v1499
      %v1586 = vadd.f32 %v1159, %v1504
      %v1587 = vadd.f32 %v1160, %v1509
      %v1588 = vadd.f32 %v1161, %v1514
      %v1589 = vadd.f32 %v1162, %v1519
      %v1590 = vadd.f32 %v1163, %v1524
      %v1591 = vadd.f32 %v1164, %v1529
      %v1592 = vadd.f32 %v1165, %v1534
      %v1593 = vadd.f32 %v1166, %v1539
      %v1594 = vadd.f32 %v1167, %v1544
      %v1595 = vadd.f32 %v1168, %v1549
      %v1596 = vadd.f32 %v1169, %v1554
      %v1597 = vadd.f32 %v1170, %v1559
      %1598 = vst [vmem:[%s204] sm:$0xff] %v1562
      %1599 = vst [vmem:[%s204 + $0x8] sm:$0xff] %v1563
      %1600 = vst [vmem:[%s204 + $0x10] sm:$0xff] %v1564
      %1601 = vst [vmem:[%s204 + $0x18] sm:$0xff] %v1565
      %1602 = vst [vmem:[%s204 + $0x20] sm:$0xff] %v1566
      %1603 = vst [vmem:[%s204 + $0x28] sm:$0xff] %v1567
      %1604 = vst [vmem:[%s204 + $0x30] sm:$0xff] %v1568
      %1605 = vst [vmem:[%s204 + $0x38] sm:$0xff] %v1569
      %1606 = vst [vmem:[%s204 + $0x40] sm:$0xff] %v1570
      %1607 = vst [vmem:[%s204 + $0x48] sm:$0xff] %v1571
      %1608 = vst [vmem:[%s204 + $0x50] sm:$0xff] %v1572
      %1609 = vst [vmem:[%s204 + $0x58] sm:$0xff] %v1573
      %1610 = vst [vmem:[%s204 + $0x60] sm:$0xff] %v1574
      %1611 = vst [vmem:[%s204 + $0x68] sm:$0xff] %v1575
      %1612 = vst [vmem:[%s204 + $0x70] sm:$0xff] %v1576
      %1613 = vst [vmem:[%s204 + $0x78] sm:$0xff] %v1577
      %1614 = vst [vmem:[%s204 + $0x80] sm:$0xff] %v1578
      %1615 = vst [vmem:[%s204 + $0x88] sm:$0xff] %v1579
      %1616 = vst [vmem:[%s204 + $0x90] sm:$0xff] %v1580
      %1617 = vst [vmem:[%s204 + $0x98] sm:$0xff] %v1581
      %1618 = vst [vmem:[%s204 + $0xa0] sm:$0xff] %v1582
      %1619 = vst [vmem:[%s204 + $0xa8] sm:$0xff] %v1583
      %1620 = vst [vmem:[%s204 + $0xb0] sm:$0xff] %v1584
      %1621 = vst [vmem:[%s204 + $0xb8] sm:$0xff] %v1585
      %1622 = vst [vmem:[%s204 + $0xc0] sm:$0xff] %v1586
      %1623 = vst [vmem:[%s204 + $0xc8] sm:$0xff] %v1587
      %1624 = vst [vmem:[%s204 + $0xd0] sm:$0xff] %v1588
      %1625 = vst [vmem:[%s204 + $0xd8] sm:$0xff] %v1589
      %1626 = vst [vmem:[%s204 + $0xe0] sm:$0xff] %v1590
      %1627 = vst [vmem:[%s204 + $0xe8] sm:$0xff] %v1591
      %1628 = vst [vmem:[%s204 + $0xf0] sm:$0xff] %v1592
      %1629 = vst [vmem:[%s204 + $0xf8] sm:$0xff] %v1593
      %1630 = vst [vmem:[%s204 + $0x100] sm:$0xff] %v1594
      %1631 = vst [vmem:[%s204 + $0x108] sm:$0xff] %v1595
      %1632 = vst [vmem:[%s204 + $0x110] sm:$0xff] %v1596
      %1633 = vst [vmem:[%s204 + $0x118] sm:$0xff] %v1597
      %v1634 = vld [vmem:[%s204] sm:$0xff]
      %v1635 = vld [vmem:[%s204 + $0x8] sm:$0xff]
      %v1636 = vld [vmem:[%s204 + $0x10] sm:$0xff]
      %v1637 = vld [vmem:[%s204 + $0x18] sm:$0xff]
      %v1638 = vld [vmem:[%s204 + $0x20] sm:$0xff]
      %v1639 = vld [vmem:[%s204 + $0x28] sm:$0xff]
      %v1640 = vld [vmem:[%s204 + $0x30] sm:$0xff]
      %v1641 = vld [vmem:[%s204 + $0x38] sm:$0xff]
      %v1642 = vld [vmem:[%s204 + $0x40] sm:$0xff]
      %v1643 = vld [vmem:[%s204 + $0x48] sm:$0xff]
      %v1644 = vld [vmem:[%s204 + $0x50] sm:$0xff]
      %v1645 = vld [vmem:[%s204 + $0x58] sm:$0xff]
      %v1646 = vld [vmem:[%s204 + $0x60] sm:$0xff]
      %v1647 = vld [vmem:[%s204 + $0x68] sm:$0xff]
      %v1648 = vld [vmem:[%s204 + $0x70] sm:$0xff]
      %v1649 = vld [vmem:[%s204 + $0x78] sm:$0xff]
      %v1650 = vld [vmem:[%s204 + $0x80] sm:$0xff]
      %v1651 = vld [vmem:[%s204 + $0x88] sm:$0xff]
      %v1652 = vld [vmem:[%s204 + $0x90] sm:$0xff]
      %v1653 = vld [vmem:[%s204 + $0x98] sm:$0xff]
      %v1654 = vld [vmem:[%s204 + $0xa0] sm:$0xff]
      %v1655 = vld [vmem:[%s204 + $0xa8] sm:$0xff]
      %v1656 = vld [vmem:[%s204 + $0xb0] sm:$0xff]
      %v1657 = vld [vmem:[%s204 + $0xb8] sm:$0xff]
      %v1658 = vld [vmem:[%s204 + $0xc0] sm:$0xff]
      %v1659 = vld [vmem:[%s204 + $0xc8] sm:$0xff]
      %v1660 = vld [vmem:[%s204 + $0xd0] sm:$0xff]
      %v1661 = vld [vmem:[%s204 + $0xd8] sm:$0xff]
      %v1662 = vld [vmem:[%s204 + $0xe0] sm:$0xff]
      %v1663 = vld [vmem:[%s204 + $0xe8] sm:$0xff]
      %v1664 = vld [vmem:[%s204 + $0xf0] sm:$0xff]
      %v1665 = vld [vmem:[%s204 + $0xf8] sm:$0xff]
      %v1666 = vld [vmem:[%s204 + $0x100] sm:$0xff]
      %v1667 = vld [vmem:[%s204 + $0x108] sm:$0xff]
      %v1668 = vld [vmem:[%s204 + $0x110] sm:$0xff]
      %v1669 = vld [vmem:[%s204 + $0x118] sm:$0xff]
      %v1670 = vld [vmem:[%s199 + $0x12] sm:$0xff]
      %v1671 = vld [vmem:[%s199 + $0x1a] sm:$0xff]
      %v1672 = vld [vmem:[%s199 + $0x22] sm:$0xff]
      %v1673 = vld [vmem:[%s199 + $0x2a] sm:$0xff]
      %v1674 = vld [vmem:[%s199 + $0x32] sm:$0xff]
      %v1675 = vld [vmem:[%s199 + $0x3a] sm:$0xff]
      %v1676 = vld [vmem:[%s199 + $0x42] sm:$0xff]
      %v1677 = vld [vmem:[%s199 + $0x4a] sm:$0xff]
      %v1678 = vld [vmem:[%s199 + $0x52] sm:$0xff]
      %v1679 = vld [vmem:[%s199 + $0x5a] sm:$0xff]
      %v1680 = vld [vmem:[%s199 + $0x62] sm:$0xff]
      %v1681 = vld [vmem:[%s199 + $0x6a] sm:$0xff]
      %v1682 = vld [vmem:[%s199 + $0x72] sm:$0xff]
      %v1683 = vld [vmem:[%s199 + $0x7a] sm:$0xff]
      %v1684 = vld [vmem:[%s199 + $0x82] sm:$0xff]
      %v1685 = vld [vmem:[%s199 + $0x8a] sm:$0xff]
      %v1686 = vld [vmem:[%s199 + $0x92] sm:$0xff]
      %v1687 = vld [vmem:[%s199 + $0x9a] sm:$0xff]
      %v1688 = vld [vmem:[%s199 + $0xa2] sm:$0xff]
      %v1689 = vld [vmem:[%s199 + $0xaa] sm:$0xff]
      %v1690 = vld [vmem:[%s199 + $0xb2] sm:$0xff]
      %v1691 = vld [vmem:[%s199 + $0xba] sm:$0xff]
      %v1692 = vld [vmem:[%s199 + $0xc2] sm:$0xff]
      %v1693 = vld [vmem:[%s199 + $0xca] sm:$0xff]
      %v1694 = vld [vmem:[%s199 + $0xd2] sm:$0xff]
      %v1695 = vld [vmem:[%s199 + $0xda] sm:$0xff]
      %v1696 = vld [vmem:[%s199 + $0xe2] sm:$0xff]
      %v1697 = vld [vmem:[%s199 + $0xea] sm:$0xff]
      %v1698 = vld [vmem:[%s199 + $0xf2] sm:$0xff]
      %v1699 = vld [vmem:[%s199 + $0xfa] sm:$0xff]
      %v1700 = vld [vmem:[%s199 + $0x102] sm:$0xff]
      %v1701 = vld [vmem:[%s199 + $0x10a] sm:$0xff]
      %v1702 = vld [vmem:[%s199 + $0x112] sm:$0xff]
      %v1703 = vld [vmem:[%s199 + $0x11a] sm:$0xff]
      %v1704 = vld [vmem:[%s199 + $0x122] sm:$0xff]
      %v1705 = vld [vmem:[%s199 + $0x12a] sm:$0xff]
      %s1706 = scalar_lea.vmem %s1, 24
      %v1707 = vld [vmem:[%s1706] sm:$0xff]
      %v1709 = vsel %vm246, %v1670, 0
      %v1712 = vsel %vm246, %v1671, 0
      %v1715 = vsel %vm246, %v1672, 0
      %v1718 = vsel %vm246, %v1673, 0
      %v1721 = vsel %vm246, %v1674, 0
      %v1724 = vsel %vm246, %v1675, 0
      %v1727 = vsel %vm246, %v1676, 0
      %v1730 = vsel %vm246, %v1677, 0
      %v1733 = vsel %vm246, %v1678, 0
      %v1736 = vsel %vm246, %v1679, 0
      %v1739 = vsel %vm246, %v1680, 0
      %v1742 = vsel %vm246, %v1681, 0
      %v1745 = vsel %vm246, %v1682, 0
      %v1748 = vsel %vm246, %v1683, 0
      %v1751 = vsel %vm246, %v1684, 0
      %v1754 = vsel %vm246, %v1685, 0
      %v1757 = vsel %vm246, %v1686, 0
      %v1760 = vsel %vm246, %v1687, 0
      %v1763 = vsel %vm246, %v1688, 0
      %v1766 = vsel %vm246, %v1689, 0
      %v1769 = vsel %vm246, %v1690, 0
      %v1772 = vsel %vm246, %v1691, 0
      %v1775 = vsel %vm246, %v1692, 0
      %v1778 = vsel %vm246, %v1693, 0
      %v1781 = vsel %vm246, %v1694, 0
      %v1784 = vsel %vm246, %v1695, 0
      %v1787 = vsel %vm246, %v1696, 0
      %v1790 = vsel %vm246, %v1697, 0
      %v1793 = vsel %vm246, %v1698, 0
      %v1796 = vsel %vm246, %v1699, 0
      %v1799 = vsel %vm246, %v1700, 0
      %v1802 = vsel %vm246, %v1701, 0
      %v1805 = vsel %vm246, %v1702, 0
      %v1808 = vsel %vm246, %v1703, 0
      %v1811 = vsel %vm246, %v1704, 0
      %v1814 = vsel %vm246, %v1705, 0
      %1816 = vmatprep.subr.mxu0 0.0
      %1817 = vmatpush1.msra.mxu0 %v1707
      %1818 = vmatprep.subr.mxu0 0.0
      %1819 = vmatpush1.msra.mxu0 0.0
      %1820 = vmatprep.subr.mxu0 0.0
      %1821 = vmatpush1.msra.mxu0 0.0
      %1822 = vmatprep.subr.mxu0 0.0
      %1823 = vmatpush1.msra.mxu0 0.0
      %1824 = vmatprep.subr.mxu0 0.0
      %1825 = vmatpush1.msra.mxu0 0.0
      %1826 = vmatprep.subr.mxu0 0.0
      %1827 = vmatpush1.msra.mxu0 0.0
      %1828 = vmatprep.subr.mxu0 0.0
      %1829 = vmatpush1.msra.mxu0 0.0
      %1830 = vmatprep.subr.mxu0 0.0
      %1831 = vmatpush1.msra.mxu0 0.0
      %1832 = vmatprep.subr.mxu0 0.0
      %1833 = vmatpush1.msra.mxu0 0.0
      %1834 = vmatprep.subr.mxu0 0.0
      %1835 = vmatpush1.msra.mxu0 0.0
      %1836 = vmatprep.subr.mxu0 0.0
      %1837 = vmatpush1.msra.mxu0 0.0
      %1838 = vmatprep.subr.mxu0 0.0
      %1839 = vmatpush1.msra.mxu0 0.0
      %1840 = vmatprep.subr.mxu0 0.0
      %1841 = vmatpush1.msra.mxu0 0.0
      %1842 = vmatprep.subr.mxu0 0.0
      %1843 = vmatpush1.msra.mxu0 0.0
      %1844 = vmatprep.subr.mxu0 0.0
      %1845 = vmatpush1.msra.mxu0 0.0
      %1846 = vmatprep.subr.mxu0 0.0
      %1847 = vmatpush1.msra.mxu0 0.0
      %1848 = vmatprep.subr.mxu0 0.0
      %1849 = vmatpush1.msra.mxu0 0.0
      %1850 = vmatprep.subr.mxu0 0.0
      %1851 = vmatpush1.msra.mxu0 0.0
      %1852 = vmatprep.subr.mxu0 0.0
      %1853 = vmatpush1.msra.mxu0 0.0
      %1854 = vmatprep.subr.mxu0 0.0
      %1855 = vmatpush1.msra.mxu0 0.0
      %1856 = vmatprep.subr.mxu0 0.0
      %1857 = vmatpush1.msra.mxu0 0.0
      %1858 = vmatprep.subr.mxu0 0.0
      %1859 = vmatpush1.msra.mxu0 0.0
      %1860 = vmatprep.subr.mxu0 0.0
      %1861 = vmatpush1.msra.mxu0 0.0
      %1862 = vmatprep.subr.mxu0 0.0
      %1863 = vmatpush1.msra.mxu0 0.0
      %1864 = vmatprep.subr.mxu0 0.0
      %1865 = vmatpush1.msra.mxu0 0.0
      %1866 = vmatprep.subr.mxu0 0.0
      %1867 = vmatpush1.msra.mxu0 0.0
      %1868 = vmatprep.subr.mxu0 0.0
      %1869 = vmatpush1.msra.mxu0 0.0
      %1870 = vmatprep.subr.mxu0 0.0
      %1871 = vmatpush1.msra.mxu0 0.0
      %1872 = vmatprep.subr.mxu0 0.0
      %1873 = vmatpush1.msra.mxu0 0.0
      %1874 = vmatprep.subr.mxu0 0.0
      %1875 = vmatpush1.msra.mxu0 0.0
      %1876 = vmatprep.subr.mxu0 0.0
      %1877 = vmatpush1.msra.mxu0 0.0
      %1878 = vmatprep.subr.mxu0 0.0
      %1879 = vmatpush1.msra.mxu0 0.0
      %1880 = vmatprep.mubr.f32.mxu0 0.0
      %1881 = vmatmul.mubr.f32.gmra.mrb[0].mxu0 %v1709
      %v1882 = vpop.f32.mrb[0].mxu0
      %v1883 = vadd.f32 0.0, %v1882
      %v1884 = vpop.f32.mrb[0].mxu0
      %1885 = vmatprep.mubr.f32.mxu0 0.0
      %1886 = vmatmul.mubr.f32.gmra.mrb[0].mxu0 %v1712
      %v1887 = vpop.f32.mrb[0].mxu0
      %v1888 = vadd.f32 0.0, %v1887
      %v1889 = vpop.f32.mrb[0].mxu0
      %1890 = vmatprep.mubr.f32.mxu0 0.0
      %1891 = vmatmul.mubr.f32.gmra.mrb[0].mxu0 %v1715
      %v1892 = vpop.f32.mrb[0].mxu0
      %v1893 = vadd.f32 0.0, %v1892
      %v1894 = vpop.f32.mrb[0].mxu0
      %1895 = vmatprep.mubr.f32.mxu0 0.0
      %1896 = vmatmul.mubr.f32.gmra.mrb[0].mxu0 %v1718
      %v1897 = vpop.f32.mrb[0].mxu0
      %v1898 = vadd.f32 0.0, %v1897
      %v1899 = vpop.f32.mrb[0].mxu0
      %1900 = vmatprep.mubr.f32.mxu0 0.0
      %1901 = vmatmul.mubr.f32.gmra.mrb[0].mxu0 %v1721
      %v1902 = vpop.f32.mrb[0].mxu0
      %v1903 = vadd.f32 0.0, %v1902
      %v1904 = vpop.f32.mrb[0].mxu0
      %1905 = vmatprep.mubr.f32.mxu0 0.0
      %1906 = vmatmul.mubr.f32.gmra.mrb[0].mxu0 %v1724
      %v1907 = vpop.f32.mrb[0].mxu0
      %v1908 = vadd.f32 0.0, %v1907
      %v1909 = vpop.f32.mrb[0].mxu0
      %1910 = vmatprep.mubr.f32.mxu0 0.0
      %1911 = vmatmul.mubr.f32.gmra.mrb[0].mxu0 %v1727
      %v1912 = vpop.f32.mrb[0].mxu0
      %v1913 = vadd.f32 0.0, %v1912
      %v1914 = vpop.f32.mrb[0].mxu0
      %1915 = vmatprep.mubr.f32.mxu0 0.0
      %1916 = vmatmul.mubr.f32.gmra.mrb[0].mxu0 %v1730
      %v1917 = vpop.f32.mrb[0].mxu0
      %v1918 = vadd.f32 0.0, %v1917
      %v1919 = vpop.f32.mrb[0].mxu0
      %1920 = vmatprep.mubr.f32.mxu0 0.0
      %1921 = vmatmul.mubr.f32.gmra.mrb[0].mxu0 %v1733
      %v1922 = vpop.f32.mrb[0].mxu0
      %v1923 = vadd.f32 0.0, %v1922
      %v1924 = vpop.f32.mrb[0].mxu0
      %1925 = vmatprep.mubr.f32.mxu0 0.0
      %1926 = vmatmul.mubr.f32.gmra.mrb[0].mxu0 %v1736
      %v1927 = vpop.f32.mrb[0].mxu0
      %v1928 = vadd.f32 0.0, %v1927
      %v1929 = vpop.f32.mrb[0].mxu0
      %1930 = vmatprep.mubr.f32.mxu0 0.0
      %1931 = vmatmul.mubr.f32.gmra.mrb[0].mxu0 %v1739
      %v1932 = vpop.f32.mrb[0].mxu0
      %v1933 = vadd.f32 0.0, %v1932
      %v1934 = vpop.f32.mrb[0].mxu0
      %1935 = vmatprep.mubr.f32.mxu0 0.0
      %1936 = vmatmul.mubr.f32.gmra.mrb[0].mxu0 %v1742
      %v1937 = vpop.f32.mrb[0].mxu0
      %v1938 = vadd.f32 0.0, %v1937
      %v1939 = vpop.f32.mrb[0].mxu0
      %1940 = vmatprep.mubr.f32.mxu0 0.0
      %1941 = vmatmul.mubr.f32.gmra.mrb[0].mxu0 %v1745
      %v1942 = vpop.f32.mrb[0].mxu0
      %v1943 = vadd.f32 0.0, %v1942
      %v1944 = vpop.f32.mrb[0].mxu0
      %1945 = vmatprep.mubr.f32.mxu0 0.0
      %1946 = vmatmul.mubr.f32.gmra.mrb[0].mxu0 %v1748
      %v1947 = vpop.f32.mrb[0].mxu0
      %v1948 = vadd.f32 0.0, %v1947
      %v1949 = vpop.f32.mrb[0].mxu0
      %1950 = vmatprep.mubr.f32.mxu0 0.0
      %1951 = vmatmul.mubr.f32.gmra.mrb[0].mxu0 %v1751
      %v1952 = vpop.f32.mrb[0].mxu0
      %v1953 = vadd.f32 0.0, %v1952
      %v1954 = vpop.f32.mrb[0].mxu0
      %1955 = vmatprep.mubr.f32.mxu0 0.0
      %1956 = vmatmul.mubr.f32.gmra.mrb[0].mxu0 %v1754
      %v1957 = vpop.f32.mrb[0].mxu0
      %v1958 = vadd.f32 0.0, %v1957
      %v1959 = vpop.f32.mrb[0].mxu0
      %1960 = vmatprep.mubr.f32.mxu0 0.0
      %1961 = vmatmul.mubr.f32.gmra.mrb[0].mxu0 %v1757
      %v1962 = vpop.f32.mrb[0].mxu0
      %v1963 = vadd.f32 0.0, %v1962
      %v1964 = vpop.f32.mrb[0].mxu0
      %1965 = vmatprep.mubr.f32.mxu0 0.0
      %1966 = vmatmul.mubr.f32.gmra.mrb[0].mxu0 %v1760
      %v1967 = vpop.f32.mrb[0].mxu0
      %v1968 = vadd.f32 0.0, %v1967
      %v1969 = vpop.f32.mrb[0].mxu0
      %1970 = vmatprep.mubr.f32.mxu0 0.0
      %1971 = vmatmul.mubr.f32.gmra.mrb[0].mxu0 %v1763
      %v1972 = vpop.f32.mrb[0].mxu0
      %v1973 = vadd.f32 0.0, %v1972
      %v1974 = vpop.f32.mrb[0].mxu0
      %1975 = vmatprep.mubr.f32.mxu0 0.0
      %1976 = vmatmul.mubr.f32.gmra.mrb[0].mxu0 %v1766
      %v1977 = vpop.f32.mrb[0].mxu0
      %v1978 = vadd.f32 0.0, %v1977
      %v1979 = vpop.f32.mrb[0].mxu0
      %1980 = vmatprep.mubr.f32.mxu0 0.0
      %1981 = vmatmul.mubr.f32.gmra.mrb[0].mxu0 %v1769
      %v1982 = vpop.f32.mrb[0].mxu0
      %v1983 = vadd.f32 0.0, %v1982
      %v1984 = vpop.f32.mrb[0].mxu0
      %1985 = vmatprep.mubr.f32.mxu0 0.0
      %1986 = vmatmul.mubr.f32.gmra.mrb[0].mxu0 %v1772
      %v1987 = vpop.f32.mrb[0].mxu0
      %v1988 = vadd.f32 0.0, %v1987
      %v1989 = vpop.f32.mrb[0].mxu0
      %1990 = vmatprep.mubr.f32.mxu0 0.0
      %1991 = vmatmul.mubr.f32.gmra.mrb[0].mxu0 %v1775
      %v1992 = vpop.f32.mrb[0].mxu0
      %v1993 = vadd.f32 0.0, %v1992
      %v1994 = vpop.f32.mrb[0].mxu0
      %1995 = vmatprep.mubr.f32.mxu0 0.0
      %1996 = vmatmul.mubr.f32.gmra.mrb[0].mxu0 %v1778
      %v1997 = vpop.f32.mrb[0].mxu0
      %v1998 = vadd.f32 0.0, %v1997
      %v1999 = vpop.f32.mrb[0].mxu0
      %2000 = vmatprep.mubr.f32.mxu0 0.0
      %2001 = vmatmul.mubr.f32.gmra.mrb[0].mxu0 %v1781
      %v2002 = vpop.f32.mrb[0].mxu0
      %v2003 = vadd.f32 0.0, %v2002
      %v2004 = vpop.f32.mrb[0].mxu0
      %2005 = vmatprep.mubr.f32.mxu0 0.0
      %2006 = vmatmul.mubr.f32.gmra.mrb[0].mxu0 %v1784
      %v2007 = vpop.f32.mrb[0].mxu0
      %v2008 = vadd.f32 0.0, %v2007
      %v2009 = vpop.f32.mrb[0].mxu0
      %2010 = vmatprep.mubr.f32.mxu0 0.0
      %2011 = vmatmul.mubr.f32.gmra.mrb[0].mxu0 %v1787
      %v2012 = vpop.f32.mrb[0].mxu0
      %v2013 = vadd.f32 0.0, %v2012
      %v2014 = vpop.f32.mrb[0].mxu0
      %2015 = vmatprep.mubr.f32.mxu0 0.0
      %2016 = vmatmul.mubr.f32.gmra.mrb[0].mxu0 %v1790
      %v2017 = vpop.f32.mrb[0].mxu0
      %v2018 = vadd.f32 0.0, %v2017
      %v2019 = vpop.f32.mrb[0].mxu0
      %2020 = vmatprep.mubr.f32.mxu0 0.0
      %2021 = vmatmul.mubr.f32.gmra.mrb[0].mxu0 %v1793
      %v2022 = vpop.f32.mrb[0].mxu0
      %v2023 = vadd.f32 0.0, %v2022
      %v2024 = vpop.f32.mrb[0].mxu0
      %2025 = vmatprep.mubr.f32.mxu0 0.0
      %2026 = vmatmul.mubr.f32.gmra.mrb[0].mxu0 %v1796
      %v2027 = vpop.f32.mrb[0].mxu0
      %v2028 = vadd.f32 0.0, %v2027
      %v2029 = vpop.f32.mrb[0].mxu0
      %2030 = vmatprep.mubr.f32.mxu0 0.0
      %2031 = vmatmul.mubr.f32.gmra.mrb[0].mxu0 %v1799
      %v2032 = vpop.f32.mrb[0].mxu0
      %v2033 = vadd.f32 0.0, %v2032
      %v2034 = vpop.f32.mrb[0].mxu0
      %2035 = vmatprep.mubr.f32.mxu0 0.0
      %2036 = vmatmul.mubr.f32.gmra.mrb[0].mxu0 %v1802
      %v2037 = vpop.f32.mrb[0].mxu0
      %v2038 = vadd.f32 0.0, %v2037
      %v2039 = vpop.f32.mrb[0].mxu0
      %2040 = vmatprep.mubr.f32.mxu0 0.0
      %2041 = vmatmul.mubr.f32.gmra.mrb[0].mxu0 %v1805
      %v2042 = vpop.f32.mrb[0].mxu0
      %v2043 = vadd.f32 0.0, %v2042
      %v2044 = vpop.f32.mrb[0].mxu0
      %2045 = vmatprep.mubr.f32.mxu0 0.0
      %2046 = vmatmul.mubr.f32.gmra.mrb[0].mxu0 %v1808
      %v2047 = vpop.f32.mrb[0].mxu0
      %v2048 = vadd.f32 0.0, %v2047
      %v2049 = vpop.f32.mrb[0].mxu0
      %2050 = vmatprep.mubr.f32.mxu0 0.0
      %2051 = vmatmul.mubr.f32.gmra.mrb[0].mxu0 %v1811
      %v2052 = vpop.f32.mrb[0].mxu0
      %v2053 = vadd.f32 0.0, %v2052
      %v2054 = vpop.f32.mrb[0].mxu0
      %2055 = vmatprep.mubr.f32.mxu0 0.0
      %2056 = vmatmul.mubr.f32.gmra.mrb[0].mxu0 %v1814
      %v2057 = vpop.f32.mrb[0].mxu0
      %v2058 = vadd.f32 0.0, %v2057
      %v2059 = vpop.f32.mrb[0].mxu0
      %2060 = vdwg.mxu0
      %v2061 = vadd.f32 %v1634, %v1883
      %v2062 = vadd.f32 %v1635, %v1888
      %v2063 = vadd.f32 %v1636, %v1893
      %v2064 = vadd.f32 %v1637, %v1898
      %v2065 = vadd.f32 %v1638, %v1903
      %v2066 = vadd.f32 %v1639, %v1908
      %v2067 = vadd.f32 %v1640, %v1913
      %v2068 = vadd.f32 %v1641, %v1918
      %v2069 = vadd.f32 %v1642, %v1923
      %v2070 = vadd.f32 %v1643, %v1928
      %v2071 = vadd.f32 %v1644, %v1933
      %v2072 = vadd.f32 %v1645, %v1938
      %v2073 = vadd.f32 %v1646, %v1943
      %v2074 = vadd.f32 %v1647, %v1948
      %v2075 = vadd.f32 %v1648, %v1953
      %v2076 = vadd.f32 %v1649, %v1958
      %v2077 = vadd.f32 %v1650, %v1963
      %v2078 = vadd.f32 %v1651, %v1968
      %v2079 = vadd.f32 %v1652, %v1973
      %v2080 = vadd.f32 %v1653, %v1978
      %v2081 = vadd.f32 %v1654, %v1983
      %v2082 = vadd.f32 %v1655, %v1988
      %v2083 = vadd.f32 %v1656, %v1993
      %v2084 = vadd.f32 %v1657, %v1998
      %v2085 = vadd.f32 %v1658, %v2003
      %v2086 = vadd.f32 %v1659, %v2008
      %v2087 = vadd.f32 %v1660, %v2013
      %v2088 = vadd.f32 %v1661, %v2018
      %v2089 = vadd.f32 %v1662, %v2023
      %v2090 = vadd.f32 %v1663, %v2028
      %v2091 = vadd.f32 %v1664, %v2033
      %v2092 = vadd.f32 %v1665, %v2038
      %v2093 = vadd.f32 %v1666, %v2043
      %v2094 = vadd.f32 %v1667, %v2048
      %v2095 = vadd.f32 %v1668, %v2053
      %v2096 = vadd.f32 %v1669, %v2058
      %2097 = vst [vmem:[%s204] sm:$0xff] %v2061
      %2098 = vst [vmem:[%s204 + $0x8] sm:$0xff] %v2062
      %2099 = vst [vmem:[%s204 + $0x10] sm:$0xff] %v2063
      %2100 = vst [vmem:[%s204 + $0x18] sm:$0xff] %v2064
      %2101 = vst [vmem:[%s204 + $0x20] sm:$0xff] %v2065
      %2102 = vst [vmem:[%s204 + $0x28] sm:$0xff] %v2066
      %2103 = vst [vmem:[%s204 + $0x30] sm:$0xff] %v2067
      %2104 = vst [vmem:[%s204 + $0x38] sm:$0xff] %v2068
      %2105 = vst [vmem:[%s204 + $0x40] sm:$0xff] %v2069
      %2106 = vst [vmem:[%s204 + $0x48] sm:$0xff] %v2070
      %2107 = vst [vmem:[%s204 + $0x50] sm:$0xff] %v2071
      %2108 = vst [vmem:[%s204 + $0x58] sm:$0xff] %v2072
      %2109 = vst [vmem:[%s204 + $0x60] sm:$0xff] %v2073
      %2110 = vst [vmem:[%s204 + $0x68] sm:$0xff] %v2074
      %2111 = vst [vmem:[%s204 + $0x70] sm:$0xff] %v2075
      %2112 = vst [vmem:[%s204 + $0x78] sm:$0xff] %v2076
      %2113 = vst [vmem:[%s204 + $0x80] sm:$0xff] %v2077
      %2114 = vst [vmem:[%s204 + $0x88] sm:$0xff] %v2078
      %2115 = vst [vmem:[%s204 + $0x90] sm:$0xff] %v2079
      %2116 = vst [vmem:[%s204 + $0x98] sm:$0xff] %v2080
      %2117 = vst [vmem:[%s204 + $0xa0] sm:$0xff] %v2081
      %2118 = vst [vmem:[%s204 + $0xa8] sm:$0xff] %v2082
      %2119 = vst [vmem:[%s204 + $0xb0] sm:$0xff] %v2083
      %2120 = vst [vmem:[%s204 + $0xb8] sm:$0xff] %v2084
      %2121 = vst [vmem:[%s204 + $0xc0] sm:$0xff] %v2085
      %2122 = vst [vmem:[%s204 + $0xc8] sm:$0xff] %v2086
      %2123 = vst [vmem:[%s204 + $0xd0] sm:$0xff] %v2087
      %2124 = vst [vmem:[%s204 + $0xd8] sm:$0xff] %v2088
      %2125 = vst [vmem:[%s204 + $0xe0] sm:$0xff] %v2089
      %2126 = vst [vmem:[%s204 + $0xe8] sm:$0xff] %v2090
      %2127 = vst [vmem:[%s204 + $0xf0] sm:$0xff] %v2091
      %2128 = vst [vmem:[%s204 + $0xf8] sm:$0xff] %v2092
      %2129 = vst [vmem:[%s204 + $0x100] sm:$0xff] %v2093
      %2130 = vst [vmem:[%s204 + $0x108] sm:$0xff] %v2094
      %2131 = vst [vmem:[%s204 + $0x110] sm:$0xff] %v2095
      %2132 = vst [vmem:[%s204 + $0x118] sm:$0xff] %v2096
      %v2133 = vld [vmem:[%s204] sm:$0xff]
      %v2134 = vld [vmem:[%s204 + $0x8] sm:$0xff]
      %v2135 = vld [vmem:[%s204 + $0x10] sm:$0xff]
      %v2136 = vld [vmem:[%s204 + $0x18] sm:$0xff]
      %v2137 = vld [vmem:[%s204 + $0x20] sm:$0xff]
      %v2138 = vld [vmem:[%s204 + $0x28] sm:$0xff]
      %v2139 = vld [vmem:[%s204 + $0x30] sm:$0xff]
      %v2140 = vld [vmem:[%s204 + $0x38] sm:$0xff]
      %v2141 = vld [vmem:[%s204 + $0x40] sm:$0xff]
      %v2142 = vld [vmem:[%s204 + $0x48] sm:$0xff]
      %v2143 = vld [vmem:[%s204 + $0x50] sm:$0xff]
      %v2144 = vld [vmem:[%s204 + $0x58] sm:$0xff]
      %v2145 = vld [vmem:[%s204 + $0x60] sm:$0xff]
      %v2146 = vld [vmem:[%s204 + $0x68] sm:$0xff]
      %v2147 = vld [vmem:[%s204 + $0x70] sm:$0xff]
      %v2148 = vld [vmem:[%s204 + $0x78] sm:$0xff]
      %v2149 = vld [vmem:[%s204 + $0x80] sm:$0xff]
      %v2150 = vld [vmem:[%s204 + $0x88] sm:$0xff]
      %v2151 = vld [vmem:[%s204 + $0x90] sm:$0xff]
      %v2152 = vld [vmem:[%s204 + $0x98] sm:$0xff]
      %v2153 = vld [vmem:[%s204 + $0xa0] sm:$0xff]
      %v2154 = vld [vmem:[%s204 + $0xa8] sm:$0xff]
      %v2155 = vld [vmem:[%s204 + $0xb0] sm:$0xff]
      %v2156 = vld [vmem:[%s204 + $0xb8] sm:$0xff]
      %v2157 = vld [vmem:[%s204 + $0xc0] sm:$0xff]
      %v2158 = vld [vmem:[%s204 + $0xc8] sm:$0xff]
      %v2159 = vld [vmem:[%s204 + $0xd0] sm:$0xff]
      %v2160 = vld [vmem:[%s204 + $0xd8] sm:$0xff]
      %v2161 = vld [vmem:[%s204 + $0xe0] sm:$0xff]
      %v2162 = vld [vmem:[%s204 + $0xe8] sm:$0xff]
      %v2163 = vld [vmem:[%s204 + $0xf0] sm:$0xff]
      %v2164 = vld [vmem:[%s204 + $0xf8] sm:$0xff]
      %v2165 = vld [vmem:[%s204 + $0x100] sm:$0xff]
      %v2166 = vld [vmem:[%s204 + $0x108] sm:$0xff]
      %v2167 = vld [vmem:[%s204 + $0x110] sm:$0xff]
      %v2168 = vld [vmem:[%s204 + $0x118] sm:$0xff]
      %v2169 = vld [vmem:[%s199 + $0x13] sm:$0xff]
      %v2170 = vld [vmem:[%s199 + $0x1b] sm:$0xff]
      %v2171 = vld [vmem:[%s199 + $0x23] sm:$0xff]
      %v2172 = vld [vmem:[%s199 + $0x2b] sm:$0xff]
      %v2173 = vld [vmem:[%s199 + $0x33] sm:$0xff]
      %v2174 = vld [vmem:[%s199 + $0x3b] sm:$0xff]
      %v2175 = vld [vmem:[%s199 + $0x43] sm:$0xff]
      %v2176 = vld [vmem:[%s199 + $0x4b] sm:$0xff]
      %v2177 = vld [vmem:[%s199 + $0x53] sm:$0xff]
      %v2178 = vld [vmem:[%s199 + $0x5b] sm:$0xff]
      %v2179 = vld [vmem:[%s199 + $0x63] sm:$0xff]
      %v2180 = vld [vmem:[%s199 + $0x6b] sm:$0xff]
      %v2181 = vld [vmem:[%s199 + $0x73] sm:$0xff]
      %v2182 = vld [vmem:[%s199 + $0x7b] sm:$0xff]
      %v2183 = vld [vmem:[%s199 + $0x83] sm:$0xff]
      %v2184 = vld [vmem:[%s199 + $0x8b] sm:$0xff]
      %v2185 = vld [vmem:[%s199 + $0x93] sm:$0xff]
      %v2186 = vld [vmem:[%s199 + $0x9b] sm:$0xff]
      %v2187 = vld [vmem:[%s199 + $0xa3] sm:$0xff]
      %v2188 = vld [vmem:[%s199 + $0xab] sm:$0xff]
      %v2189 = vld [vmem:[%s199 + $0xb3] sm:$0xff]
      %v2190 = vld [vmem:[%s199 + $0xbb] sm:$0xff]
      %v2191 = vld [vmem:[%s199 + $0xc3] sm:$0xff]
      %v2192 = vld [vmem:[%s199 + $0xcb] sm:$0xff]
      %v2193 = vld [vmem:[%s199 + $0xd3] sm:$0xff]
      %v2194 = vld [vmem:[%s199 + $0xdb] sm:$0xff]
      %v2195 = vld [vmem:[%s199 + $0xe3] sm:$0xff]
      %v2196 = vld [vmem:[%s199 + $0xeb] sm:$0xff]
      %v2197 = vld [vmem:[%s199 + $0xf3] sm:$0xff]
      %v2198 = vld [vmem:[%s199 + $0xfb] sm:$0xff]
      %v2199 = vld [vmem:[%s199 + $0x103] sm:$0xff]
      %v2200 = vld [vmem:[%s199 + $0x10b] sm:$0xff]
      %v2201 = vld [vmem:[%s199 + $0x113] sm:$0xff]
      %v2202 = vld [vmem:[%s199 + $0x11b] sm:$0xff]
      %v2203 = vld [vmem:[%s199 + $0x123] sm:$0xff]
      %v2204 = vld [vmem:[%s199 + $0x12b] sm:$0xff]
      %s2205 = scalar_lea.vmem %s1, 32
      %v2206 = vld [vmem:[%s2205] sm:$0xff]
      %v2208 = vsel %vm246, %v2169, 0
      %v2211 = vsel %vm246, %v2170, 0
      %v2214 = vsel %vm246, %v2171, 0
      %v2217 = vsel %vm246, %v2172, 0
      %v2220 = vsel %vm246, %v2173, 0
      %v2223 = vsel %vm246, %v2174, 0
      %v2226 = vsel %vm246, %v2175, 0
      %v2229 = vsel %vm246, %v2176, 0
      %v2232 = vsel %vm246, %v2177, 0
      %v2235 = vsel %vm246, %v2178, 0
      %v2238 = vsel %vm246, %v2179, 0
      %v2241 = vsel %vm246, %v2180, 0
      %v2244 = vsel %vm246, %v2181, 0
      %v2247 = vsel %vm246, %v2182, 0
      %v2250 = vsel %vm246, %v2183, 0
      %v2253 = vsel %vm246, %v2184, 0
      %v2256 = vsel %vm246, %v2185, 0
      %v2259 = vsel %vm246, %v2186, 0
      %v2262 = vsel %vm246, %v2187, 0
      %v2265 = vsel %vm246, %v2188, 0
      %v2268 = vsel %vm246, %v2189, 0
      %v2271 = vsel %vm246, %v2190, 0
      %v2274 = vsel %vm246, %v2191, 0
      %v2277 = vsel %vm246, %v2192, 0
      %v2280 = vsel %vm246, %v2193, 0
      %v2283 = vsel %vm246, %v2194, 0
      %v2286 = vsel %vm246, %v2195, 0
      %v2289 = vsel %vm246, %v2196, 0
      %v2292 = vsel %vm246, %v2197, 0
      %v2295 = vsel %vm246, %v2198, 0
      %v2298 = vsel %vm246, %v2199, 0
      %v2301 = vsel %vm246, %v2200, 0
      %v2304 = vsel %vm246, %v2201, 0
      %v2307 = vsel %vm246, %v2202, 0
      %v2310 = vsel %vm246, %v2203, 0
      %v2313 = vsel %vm246, %v2204, 0
      %2315 = vmatprep.subr.mxu0 0.0
      %2316 = vmatpush1.msra.mxu0 %v2206
      %2317 = vmatprep.subr.mxu0 0.0
      %2318 = vmatpush1.msra.mxu0 0.0
      %2319 = vmatprep.subr.mxu0 0.0
      %2320 = vmatpush1.msra.mxu0 0.0
      %2321 = vmatprep.subr.mxu0 0.0
      %2322 = vmatpush1.msra.mxu0 0.0
      %2323 = vmatprep.subr.mxu0 0.0
      %2324 = vmatpush1.msra.mxu0 0.0
      %2325 = vmatprep.subr.mxu0 0.0
      %2326 = vmatpush1.msra.mxu0 0.0
      %2327 = vmatprep.subr.mxu0 0.0
      %2328 = vmatpush1.msra.mxu0 0.0
      %2329 = vmatprep.subr.mxu0 0.0
      %2330 = vmatpush1.msra.mxu0 0.0
      %2331 = vmatprep.subr.mxu0 0.0
      %2332 = vmatpush1.msra.mxu0 0.0
      %2333 = vmatprep.subr.mxu0 0.0
      %2334 = vmatpush1.msra.mxu0 0.0
      %2335 = vmatprep.subr.mxu0 0.0
      %2336 = vmatpush1.msra.mxu0 0.0
      %2337 = vmatprep.subr.mxu0 0.0
      %2338 = vmatpush1.msra.mxu0 0.0
      %2339 = vmatprep.subr.mxu0 0.0
      %2340 = vmatpush1.msra.mxu0 0.0
      %2341 = vmatprep.subr.mxu0 0.0
      %2342 = vmatpush1.msra.mxu0 0.0
      %2343 = vmatprep.subr.mxu0 0.0
      %2344 = vmatpush1.msra.mxu0 0.0
      %2345 = vmatprep.subr.mxu0 0.0
      %2346 = vmatpush1.msra.mxu0 0.0
      %2347 = vmatprep.subr.mxu0 0.0
      %2348 = vmatpush1.msra.mxu0 0.0
      %2349 = vmatprep.subr.mxu0 0.0
      %2350 = vmatpush1.msra.mxu0 0.0
      %2351 = vmatprep.subr.mxu0 0.0
      %2352 = vmatpush1.msra.mxu0 0.0
      %2353 = vmatprep.subr.mxu0 0.0
      %2354 = vmatpush1.msra.mxu0 0.0
      %2355 = vmatprep.subr.mxu0 0.0
      %2356 = vmatpush1.msra.mxu0 0.0
      %2357 = vmatprep.subr.mxu0 0.0
      %2358 = vmatpush1.msra.mxu0 0.0
      %2359 = vmatprep.subr.mxu0 0.0
      %2360 = vmatpush1.msra.mxu0 0.0
      %2361 = vmatprep.subr.mxu0 0.0
      %2362 = vmatpush1.msra.mxu0 0.0
      %2363 = vmatprep.subr.mxu0 0.0
      %2364 = vmatpush1.msra.mxu0 0.0
      %2365 = vmatprep.subr.mxu0 0.0
      %2366 = vmatpush1.msra.mxu0 0.0
      %2367 = vmatprep.subr.mxu0 0.0
      %2368 = vmatpush1.msra.mxu0 0.0
      %2369 = vmatprep.subr.mxu0 0.0
      %2370 = vmatpush1.msra.mxu0 0.0
      %2371 = vmatprep.subr.mxu0 0.0
      %2372 = vmatpush1.msra.mxu0 0.0
      %2373 = vmatprep.subr.mxu0 0.0
      %2374 = vmatpush1.msra.mxu0 0.0
      %2375 = vmatprep.subr.mxu0 0.0
      %2376 = vmatpush1.msra.mxu0 0.0
      %2377 = vmatprep.subr.mxu0 0.0
      %2378 = vmatpush1.msra.mxu0 0.0
      %2379 = vmatprep.mubr.f32.mxu0 0.0
      %2380 = vmatmul.mubr.f32.gmra.mrb[0].mxu0 %v2208
      %v2381 = vpop.f32.mrb[0].mxu0
      %v2382 = vadd.f32 0.0, %v2381
      %v2383 = vpop.f32.mrb[0].mxu0
      %2384 = vmatprep.mubr.f32.mxu0 0.0
      %2385 = vmatmul.mubr.f32.gmra.mrb[0].mxu0 %v2211
      %v2386 = vpop.f32.mrb[0].mxu0
      %v2387 = vadd.f32 0.0, %v2386
      %v2388 = vpop.f32.mrb[0].mxu0
      %2389 = vmatprep.mubr.f32.mxu0 0.0
      %2390 = vmatmul.mubr.f32.gmra.mrb[0].mxu0 %v2214
      %v2391 = vpop.f32.mrb[0].mxu0
      %v2392 = vadd.f32 0.0, %v2391
      %v2393 = vpop.f32.mrb[0].mxu0
      %2394 = vmatprep.mubr.f32.mxu0 0.0
      %2395 = vmatmul.mubr.f32.gmra.mrb[0].mxu0 %v2217
      %v2396 = vpop.f32.mrb[0].mxu0
      %v2397 = vadd.f32 0.0, %v2396
      %v2398 = vpop.f32.mrb[0].mxu0
      %2399 = vmatprep.mubr.f32.mxu0 0.0
      %2400 = vmatmul.mubr.f32.gmra.mrb[0].mxu0 %v2220
      %v2401 = vpop.f32.mrb[0].mxu0
      %v2402 = vadd.f32 0.0, %v2401
      %v2403 = vpop.f32.mrb[0].mxu0
      %2404 = vmatprep.mubr.f32.mxu0 0.0
      %2405 = vmatmul.mubr.f32.gmra.mrb[0].mxu0 %v2223
      %v2406 = vpop.f32.mrb[0].mxu0
      %v2407 = vadd.f32 0.0, %v2406
      %v2408 = vpop.f32.mrb[0].mxu0
      %2409 = vmatprep.mubr.f32.mxu0 0.0
      %2410 = vmatmul.mubr.f32.gmra.mrb[0].mxu0 %v2226
      %v2411 = vpop.f32.mrb[0].mxu0
      %v2412 = vadd.f32 0.0, %v2411
      %v2413 = vpop.f32.mrb[0].mxu0
      %2414 = vmatprep.mubr.f32.mxu0 0.0
      %2415 = vmatmul.mubr.f32.gmra.mrb[0].mxu0 %v2229
      %v2416 = vpop.f32.mrb[0].mxu0
      %v2417 = vadd.f32 0.0, %v2416
      %v2418 = vpop.f32.mrb[0].mxu0
      %2419 = vmatprep.mubr.f32.mxu0 0.0
      %2420 = vmatmul.mubr.f32.gmra.mrb[0].mxu0 %v2232
      %v2421 = vpop.f32.mrb[0].mxu0
      %v2422 = vadd.f32 0.0, %v2421
      %v2423 = vpop.f32.mrb[0].mxu0
      %2424 = vmatprep.mubr.f32.mxu0 0.0
      %2425 = vmatmul.mubr.f32.gmra.mrb[0].mxu0 %v2235
      %v2426 = vpop.f32.mrb[0].mxu0
      %v2427 = vadd.f32 0.0, %v2426
      %v2428 = vpop.f32.mrb[0].mxu0
      %2429 = vmatprep.mubr.f32.mxu0 0.0
      %2430 = vmatmul.mubr.f32.gmra.mrb[0].mxu0 %v2238
      %v2431 = vpop.f32.mrb[0].mxu0
      %v2432 = vadd.f32 0.0, %v2431
      %v2433 = vpop.f32.mrb[0].mxu0
      %2434 = vmatprep.mubr.f32.mxu0 0.0
      %2435 = vmatmul.mubr.f32.gmra.mrb[0].mxu0 %v2241
      %v2436 = vpop.f32.mrb[0].mxu0
      %v2437 = vadd.f32 0.0, %v2436
      %v2438 = vpop.f32.mrb[0].mxu0
      %2439 = vmatprep.mubr.f32.mxu0 0.0
      %2440 = vmatmul.mubr.f32.gmra.mrb[0].mxu0 %v2244
      %v2441 = vpop.f32.mrb[0].mxu0
      %v2442 = vadd.f32 0.0, %v2441
      %v2443 = vpop.f32.mrb[0].mxu0
      %2444 = vmatprep.mubr.f32.mxu0 0.0
      %2445 = vmatmul.mubr.f32.gmra.mrb[0].mxu0 %v2247
      %v2446 = vpop.f32.mrb[0].mxu0
      %v2447 = vadd.f32 0.0, %v2446
      %v2448 = vpop.f32.mrb[0].mxu0
      %2449 = vmatprep.mubr.f32.mxu0 0.0
      %2450 = vmatmul.mubr.f32.gmra.mrb[0].mxu0 %v2250
      %v2451 = vpop.f32.mrb[0].mxu0
      %v2452 = vadd.f32 0.0, %v2451
      %v2453 = vpop.f32.mrb[0].mxu0
      %2454 = vmatprep.mubr.f32.mxu0 0.0
      %2455 = vmatmul.mubr.f32.gmra.mrb[0].mxu0 %v2253
      %v2456 = vpop.f32.mrb[0].mxu0
      %v2457 = vadd.f32 0.0, %v2456
      %v2458 = vpop.f32.mrb[0].mxu0
      %2459 = vmatprep.mubr.f32.mxu0 0.0
      %2460 = vmatmul.mubr.f32.gmra.mrb[0].mxu0 %v2256
      %v2461 = vpop.f32.mrb[0].mxu0
      %v2462 = vadd.f32 0.0, %v2461
      %v2463 = vpop.f32.mrb[0].mxu0
      %2464 = vmatprep.mubr.f32.mxu0 0.0
      %2465 = vmatmul.mubr.f32.gmra.mrb[0].mxu0 %v2259
      %v2466 = vpop.f32.mrb[0].mxu0
      %v2467 = vadd.f32 0.0, %v2466
      %v2468 = vpop.f32.mrb[0].mxu0
      %2469 = vmatprep.mubr.f32.mxu0 0.0
      %2470 = vmatmul.mubr.f32.gmra.mrb[0].mxu0 %v2262
      %v2471 = vpop.f32.mrb[0].mxu0
      %v2472 = vadd.f32 0.0, %v2471
      %v2473 = vpop.f32.mrb[0].mxu0
      %2474 = vmatprep.mubr.f32.mxu0 0.0
      %2475 = vmatmul.mubr.f32.gmra.mrb[0].mxu0 %v2265
      %v2476 = vpop.f32.mrb[0].mxu0
      %v2477 = vadd.f32 0.0, %v2476
      %v2478 = vpop.f32.mrb[0].mxu0
      %2479 = vmatprep.mubr.f32.mxu0 0.0
      %2480 = vmatmul.mubr.f32.gmra.mrb[0].mxu0 %v2268
      %v2481 = vpop.f32.mrb[0].mxu0
      %v2482 = vadd.f32 0.0, %v2481
      %v2483 = vpop.f32.mrb[0].mxu0
      %2484 = vmatprep.mubr.f32.mxu0 0.0
      %2485 = vmatmul.mubr.f32.gmra.mrb[0].mxu0 %v2271
      %v2486 = vpop.f32.mrb[0].mxu0
      %v2487 = vadd.f32 0.0, %v2486
      %v2488 = vpop.f32.mrb[0].mxu0
      %2489 = vmatprep.mubr.f32.mxu0 0.0
      %2490 = vmatmul.mubr.f32.gmra.mrb[0].mxu0 %v2274
      %v2491 = vpop.f32.mrb[0].mxu0
      %v2492 = vadd.f32 0.0, %v2491
      %v2493 = vpop.f32.mrb[0].mxu0
      %2494 = vmatprep.mubr.f32.mxu0 0.0
      %2495 = vmatmul.mubr.f32.gmra.mrb[0].mxu0 %v2277
      %v2496 = vpop.f32.mrb[0].mxu0
      %v2497 = vadd.f32 0.0, %v2496
      %v2498 = vpop.f32.mrb[0].mxu0
      %2499 = vmatprep.mubr.f32.mxu0 0.0
      %2500 = vmatmul.mubr.f32.gmra.mrb[0].mxu0 %v2280
      %v2501 = vpop.f32.mrb[0].mxu0
      %v2502 = vadd.f32 0.0, %v2501
      %v2503 = vpop.f32.mrb[0].mxu0
      %2504 = vmatprep.mubr.f32.mxu0 0.0
      %2505 = vmatmul.mubr.f32.gmra.mrb[0].mxu0 %v2283
      %v2506 = vpop.f32.mrb[0].mxu0
      %v2507 = vadd.f32 0.0, %v2506
      %v2508 = vpop.f32.mrb[0].mxu0
      %2509 = vmatprep.mubr.f32.mxu0 0.0
      %2510 = vmatmul.mubr.f32.gmra.mrb[0].mxu0 %v2286
      %v2511 = vpop.f32.mrb[0].mxu0
      %v2512 = vadd.f32 0.0, %v2511
      %v2513 = vpop.f32.mrb[0].mxu0
      %2514 = vmatprep.mubr.f32.mxu0 0.0
      %2515 = vmatmul.mubr.f32.gmra.mrb[0].mxu0 %v2289
      %v2516 = vpop.f32.mrb[0].mxu0
      %v2517 = vadd.f32 0.0, %v2516
      %v2518 = vpop.f32.mrb[0].mxu0
      %2519 = vmatprep.mubr.f32.mxu0 0.0
      %2520 = vmatmul.mubr.f32.gmra.mrb[0].mxu0 %v2292
      %v2521 = vpop.f32.mrb[0].mxu0
      %v2522 = vadd.f32 0.0, %v2521
      %v2523 = vpop.f32.mrb[0].mxu0
      %2524 = vmatprep.mubr.f32.mxu0 0.0
      %2525 = vmatmul.mubr.f32.gmra.mrb[0].mxu0 %v2295
      %v2526 = vpop.f32.mrb[0].mxu0
      %v2527 = vadd.f32 0.0, %v2526
      %v2528 = vpop.f32.mrb[0].mxu0
      %2529 = vmatprep.mubr.f32.mxu0 0.0
      %2530 = vmatmul.mubr.f32.gmra.mrb[0].mxu0 %v2298
      %v2531 = vpop.f32.mrb[0].mxu0
      %v2532 = vadd.f32 0.0, %v2531
      %v2533 = vpop.f32.mrb[0].mxu0
      %2534 = vmatprep.mubr.f32.mxu0 0.0
      %2535 = vmatmul.mubr.f32.gmra.mrb[0].mxu0 %v2301
      %v2536 = vpop.f32.mrb[0].mxu0
      %v2537 = vadd.f32 0.0, %v2536
      %v2538 = vpop.f32.mrb[0].mxu0
      %2539 = vmatprep.mubr.f32.mxu0 0.0
      %2540 = vmatmul.mubr.f32.gmra.mrb[0].mxu0 %v2304
      %v2541 = vpop.f32.mrb[0].mxu0
      %v2542 = vadd.f32 0.0, %v2541
      %v2543 = vpop.f32.mrb[0].mxu0
      %2544 = vmatprep.mubr.f32.mxu0 0.0
      %2545 = vmatmul.mubr.f32.gmra.mrb[0].mxu0 %v2307
      %v2546 = vpop.f32.mrb[0].mxu0
      %v2547 = vadd.f32 0.0, %v2546
      %v2548 = vpop.f32.mrb[0].mxu0
      %2549 = vmatprep.mubr.f32.mxu0 0.0
      %2550 = vmatmul.mubr.f32.gmra.mrb[0].mxu0 %v2310
      %v2551 = vpop.f32.mrb[0].mxu0
      %v2552 = vadd.f32 0.0, %v2551
      %v2553 = vpop.f32.mrb[0].mxu0
      %2554 = vmatprep.mubr.f32.mxu0 0.0
      %2555 = vmatmul.mubr.f32.gmra.mrb[0].mxu0 %v2313
      %v2556 = vpop.f32.mrb[0].mxu0
      %v2557 = vadd.f32 0.0, %v2556
      %v2558 = vpop.f32.mrb[0].mxu0
      %2559 = vdwg.mxu0
      %v2560 = vadd.f32 %v2133, %v2382
      %v2561 = vadd.f32 %v2134, %v2387
      %v2562 = vadd.f32 %v2135, %v2392
      %v2563 = vadd.f32 %v2136, %v2397
      %v2564 = vadd.f32 %v2137, %v2402
      %v2565 = vadd.f32 %v2138, %v2407
      %v2566 = vadd.f32 %v2139, %v2412
      %v2567 = vadd.f32 %v2140, %v2417
      %v2568 = vadd.f32 %v2141, %v2422
      %v2569 = vadd.f32 %v2142, %v2427
      %v2570 = vadd.f32 %v2143, %v2432
      %v2571 = vadd.f32 %v2144, %v2437
      %v2572 = vadd.f32 %v2145, %v2442
      %v2573 = vadd.f32 %v2146, %v2447
      %v2574 = vadd.f32 %v2147, %v2452
      %v2575 = vadd.f32 %v2148, %v2457
      %v2576 = vadd.f32 %v2149, %v2462
      %v2577 = vadd.f32 %v2150, %v2467
      %v2578 = vadd.f32 %v2151, %v2472
      %v2579 = vadd.f32 %v2152, %v2477
      %v2580 = vadd.f32 %v2153, %v2482
      %v2581 = vadd.f32 %v2154, %v2487
      %v2582 = vadd.f32 %v2155, %v2492
      %v2583 = vadd.f32 %v2156, %v2497
      %v2584 = vadd.f32 %v2157, %v2502
      %v2585 = vadd.f32 %v2158, %v2507
      %v2586 = vadd.f32 %v2159, %v2512
      %v2587 = vadd.f32 %v2160, %v2517
      %v2588 = vadd.f32 %v2161, %v2522
      %v2589 = vadd.f32 %v2162, %v2527
      %v2590 = vadd.f32 %v2163, %v2532
      %v2591 = vadd.f32 %v2164, %v2537
      %v2592 = vadd.f32 %v2165, %v2542
      %v2593 = vadd.f32 %v2166, %v2547
      %v2594 = vadd.f32 %v2167, %v2552
      %v2595 = vadd.f32 %v2168, %v2557
      %2596 = vst [vmem:[%s204] sm:$0xff] %v2560
      %2597 = vst [vmem:[%s204 + $0x8] sm:$0xff] %v2561
      %2598 = vst [vmem:[%s204 + $0x10] sm:$0xff] %v2562
      %2599 = vst [vmem:[%s204 + $0x18] sm:$0xff] %v2563
      %2600 = vst [vmem:[%s204 + $0x20] sm:$0xff] %v2564
      %2601 = vst [vmem:[%s204 + $0x28] sm:$0xff] %v2565
      %2602 = vst [vmem:[%s204 + $0x30] sm:$0xff] %v2566
      %2603 = vst [vmem:[%s204 + $0x38] sm:$0xff] %v2567
      %2604 = vst [vmem:[%s204 + $0x40] sm:$0xff] %v2568
      %2605 = vst [vmem:[%s204 + $0x48] sm:$0xff] %v2569
      %2606 = vst [vmem:[%s204 + $0x50] sm:$0xff] %v2570
      %2607 = vst [vmem:[%s204 + $0x58] sm:$0xff] %v2571
      %2608 = vst [vmem:[%s204 + $0x60] sm:$0xff] %v2572
      %2609 = vst [vmem:[%s204 + $0x68] sm:$0xff] %v2573
      %2610 = vst [vmem:[%s204 + $0x70] sm:$0xff] %v2574
      %2611 = vst [vmem:[%s204 + $0x78] sm:$0xff] %v2575
      %2612 = vst [vmem:[%s204 + $0x80] sm:$0xff] %v2576
      %2613 = vst [vmem:[%s204 + $0x88] sm:$0xff] %v2577
      %2614 = vst [vmem:[%s204 + $0x90] sm:$0xff] %v2578
      %2615 = vst [vmem:[%s204 + $0x98] sm:$0xff] %v2579
      %2616 = vst [vmem:[%s204 + $0xa0] sm:$0xff] %v2580
      %2617 = vst [vmem:[%s204 + $0xa8] sm:$0xff] %v2581
      %2618 = vst [vmem:[%s204 + $0xb0] sm:$0xff] %v2582
      %2619 = vst [vmem:[%s204 + $0xb8] sm:$0xff] %v2583
      %2620 = vst [vmem:[%s204 + $0xc0] sm:$0xff] %v2584
      %2621 = vst [vmem:[%s204 + $0xc8] sm:$0xff] %v2585
      %2622 = vst [vmem:[%s204 + $0xd0] sm:$0xff] %v2586
      %2623 = vst [vmem:[%s204 + $0xd8] sm:$0xff] %v2587
      %2624 = vst [vmem:[%s204 + $0xe0] sm:$0xff] %v2588
      %2625 = vst [vmem:[%s204 + $0xe8] sm:$0xff] %v2589
      %2626 = vst [vmem:[%s204 + $0xf0] sm:$0xff] %v2590
      %2627 = vst [vmem:[%s204 + $0xf8] sm:$0xff] %v2591
      %2628 = vst [vmem:[%s204 + $0x100] sm:$0xff] %v2592
      %2629 = vst [vmem:[%s204 + $0x108] sm:$0xff] %v2593
      %2630 = vst [vmem:[%s204 + $0x110] sm:$0xff] %v2594
      %2631 = vst [vmem:[%s204 + $0x118] sm:$0xff] %v2595
      %v2632 = vld [vmem:[%s204] sm:$0xff]
      %v2633 = vld [vmem:[%s204 + $0x8] sm:$0xff]
      %v2634 = vld [vmem:[%s204 + $0x10] sm:$0xff]
      %v2635 = vld [vmem:[%s204 + $0x18] sm:$0xff]
      %v2636 = vld [vmem:[%s204 + $0x20] sm:$0xff]
      %v2637 = vld [vmem:[%s204 + $0x28] sm:$0xff]
      %v2638 = vld [vmem:[%s204 + $0x30] sm:$0xff]
      %v2639 = vld [vmem:[%s204 + $0x38] sm:$0xff]
      %v2640 = vld [vmem:[%s204 + $0x40] sm:$0xff]
      %v2641 = vld [vmem:[%s204 + $0x48] sm:$0xff]
      %v2642 = vld [vmem:[%s204 + $0x50] sm:$0xff]
      %v2643 = vld [vmem:[%s204 + $0x58] sm:$0xff]
      %v2644 = vld [vmem:[%s204 + $0x60] sm:$0xff]
      %v2645 = vld [vmem:[%s204 + $0x68] sm:$0xff]
      %v2646 = vld [vmem:[%s204 + $0x70] sm:$0xff]
      %v2647 = vld [vmem:[%s204 + $0x78] sm:$0xff]
      %v2648 = vld [vmem:[%s204 + $0x80] sm:$0xff]
      %v2649 = vld [vmem:[%s204 + $0x88] sm:$0xff]
      %v2650 = vld [vmem:[%s204 + $0x90] sm:$0xff]
      %v2651 = vld [vmem:[%s204 + $0x98] sm:$0xff]
      %v2652 = vld [vmem:[%s204 + $0xa0] sm:$0xff]
      %v2653 = vld [vmem:[%s204 + $0xa8] sm:$0xff]
      %v2654 = vld [vmem:[%s204 + $0xb0] sm:$0xff]
      %v2655 = vld [vmem:[%s204 + $0xb8] sm:$0xff]
      %v2656 = vld [vmem:[%s204 + $0xc0] sm:$0xff]
      %v2657 = vld [vmem:[%s204 + $0xc8] sm:$0xff]
      %v2658 = vld [vmem:[%s204 + $0xd0] sm:$0xff]
      %v2659 = vld [vmem:[%s204 + $0xd8] sm:$0xff]
      %v2660 = vld [vmem:[%s204 + $0xe0] sm:$0xff]
      %v2661 = vld [vmem:[%s204 + $0xe8] sm:$0xff]
      %v2662 = vld [vmem:[%s204 + $0xf0] sm:$0xff]
      %v2663 = vld [vmem:[%s204 + $0xf8] sm:$0xff]
      %v2664 = vld [vmem:[%s204 + $0x100] sm:$0xff]
      %v2665 = vld [vmem:[%s204 + $0x108] sm:$0xff]
      %v2666 = vld [vmem:[%s204 + $0x110] sm:$0xff]
      %v2667 = vld [vmem:[%s204 + $0x118] sm:$0xff]
      %v2668 = vld [vmem:[%s199 + $0x14] sm:$0xff]
      %v2669 = vld [vmem:[%s199 + $0x1c] sm:$0xff]
      %v2670 = vld [vmem:[%s199 + $0x24] sm:$0xff]
      %v2671 = vld [vmem:[%s199 + $0x2c] sm:$0xff]
      %v2672 = vld [vmem:[%s199 + $0x34] sm:$0xff]
      %v2673 = vld [vmem:[%s199 + $0x3c] sm:$0xff]
      %v2674 = vld [vmem:[%s199 + $0x44] sm:$0xff]
      %v2675 = vld [vmem:[%s199 + $0x4c] sm:$0xff]
      %v2676 = vld [vmem:[%s199 + $0x54] sm:$0xff]
      %v2677 = vld [vmem:[%s199 + $0x5c] sm:$0xff]
      %v2678 = vld [vmem:[%s199 + $0x64] sm:$0xff]
      %v2679 = vld [vmem:[%s199 + $0x6c] sm:$0xff]
      %v2680 = vld [vmem:[%s199 + $0x74] sm:$0xff]
      %v2681 = vld [vmem:[%s199 + $0x7c] sm:$0xff]
      %v2682 = vld [vmem:[%s199 + $0x84] sm:$0xff]
      %v2683 = vld [vmem:[%s199 + $0x8c] sm:$0xff]
      %v2684 = vld [vmem:[%s199 + $0x94] sm:$0xff]
      %v2685 = vld [vmem:[%s199 + $0x9c] sm:$0xff]
      %v2686 = vld [vmem:[%s199 + $0xa4] sm:$0xff]
      %v2687 = vld [vmem:[%s199 + $0xac] sm:$0xff]
      %v2688 = vld [vmem:[%s199 + $0xb4] sm:$0xff]
      %v2689 = vld [vmem:[%s199 + $0xbc] sm:$0xff]
      %v2690 = vld [vmem:[%s199 + $0xc4] sm:$0xff]
      %v2691 = vld [vmem:[%s199 + $0xcc] sm:$0xff]
      %v2692 = vld [vmem:[%s199 + $0xd4] sm:$0xff]
      %v2693 = vld [vmem:[%s199 + $0xdc] sm:$0xff]
      %v2694 = vld [vmem:[%s199 + $0xe4] sm:$0xff]
      %v2695 = vld [vmem:[%s199 + $0xec] sm:$0xff]
      %v2696 = vld [vmem:[%s199 + $0xf4] sm:$0xff]
      %v2697 = vld [vmem:[%s199 + $0xfc] sm:$0xff]
      %v2698 = vld [vmem:[%s199 + $0x104] sm:$0xff]
      %v2699 = vld [vmem:[%s199 + $0x10c] sm:$0xff]
      %v2700 = vld [vmem:[%s199 + $0x114] sm:$0xff]
      %v2701 = vld [vmem:[%s199 + $0x11c] sm:$0xff]
      %v2702 = vld [vmem:[%s199 + $0x124] sm:$0xff]
      %v2703 = vld [vmem:[%s199 + $0x12c] sm:$0xff]
      %s2704 = scalar_lea.vmem %s1, 40
      %v2705 = vld [vmem:[%s2704] sm:$0xff]
      %v2707 = vsel %vm246, %v2668, 0
      %v2710 = vsel %vm246, %v2669, 0
      %v2713 = vsel %vm246, %v2670, 0
      %v2716 = vsel %vm246, %v2671, 0
      %v2719 = vsel %vm246, %v2672, 0
      %v2722 = vsel %vm246, %v2673, 0
      %v2725 = vsel %vm246, %v2674, 0
      %v2728 = vsel %vm246, %v2675, 0
      %v2731 = vsel %vm246, %v2676, 0
      %v2734 = vsel %vm246, %v2677, 0
      %v2737 = vsel %vm246, %v2678, 0
      %v2740 = vsel %vm246, %v2679, 0
      %v2743 = vsel %vm246, %v2680, 0
      %v2746 = vsel %vm246, %v2681, 0
      %v2749 = vsel %vm246, %v2682, 0
      %v2752 = vsel %vm246, %v2683, 0
      %v2755 = vsel %vm246, %v2684, 0
      %v2758 = vsel %vm246, %v2685, 0
      %v2761 = vsel %vm246, %v2686, 0
      %v2764 = vsel %vm246, %v2687, 0
      %v2767 = vsel %vm246, %v2688, 0
      %v2770 = vsel %vm246, %v2689, 0
      %v2773 = vsel %vm246, %v2690, 0
      %v2776 = vsel %vm246, %v2691, 0
      %v2779 = vsel %vm246, %v2692, 0
      %v2782 = vsel %vm246, %v2693, 0
      %v2785 = vsel %vm246, %v2694, 0
      %v2788 = vsel %vm246, %v2695, 0
      %v2791 = vsel %vm246, %v2696, 0
      %v2794 = vsel %vm246, %v2697, 0
      %v2797 = vsel %vm246, %v2698, 0
      %v2800 = vsel %vm246, %v2699, 0
      %v2803 = vsel %vm246, %v2700, 0
      %v2806 = vsel %vm246, %v2701, 0
      %v2809 = vsel %vm246, %v2702, 0
      %v2812 = vsel %vm246, %v2703, 0
      %2814 = vmatprep.subr.mxu0 0.0
      %2815 = vmatpush1.msra.mxu0 %v2705
      %2816 = vmatprep.subr.mxu0 0.0
      %2817 = vmatpush1.msra.mxu0 0.0
      %2818 = vmatprep.subr.mxu0 0.0
      %2819 = vmatpush1.msra.mxu0 0.0
      %2820 = vmatprep.subr.mxu0 0.0
      %2821 = vmatpush1.msra.mxu0 0.0
      %2822 = vmatprep.subr.mxu0 0.0
      %2823 = vmatpush1.msra.mxu0 0.0
      %2824 = vmatprep.subr.mxu0 0.0
      %2825 = vmatpush1.msra.mxu0 0.0
      %2826 = vmatprep.subr.mxu0 0.0
      %2827 = vmatpush1.msra.mxu0 0.0
      %2828 = vmatprep.subr.mxu0 0.0
      %2829 = vmatpush1.msra.mxu0 0.0
      %2830 = vmatprep.subr.mxu0 0.0
      %2831 = vmatpush1.msra.mxu0 0.0
      %2832 = vmatprep.subr.mxu0 0.0
      %2833 = vmatpush1.msra.mxu0 0.0
      %2834 = vmatprep.subr.mxu0 0.0
      %2835 = vmatpush1.msra.mxu0 0.0
      %2836 = vmatprep.subr.mxu0 0.0
      %2837 = vmatpush1.msra.mxu0 0.0
      %2838 = vmatprep.subr.mxu0 0.0
      %2839 = vmatpush1.msra.mxu0 0.0
      %2840 = vmatprep.subr.mxu0 0.0
      %2841 = vmatpush1.msra.mxu0 0.0
      %2842 = vmatprep.subr.mxu0 0.0
      %2843 = vmatpush1.msra.mxu0 0.0
      %2844 = vmatprep.subr.mxu0 0.0
      %2845 = vmatpush1.msra.mxu0 0.0
      %2846 = vmatprep.subr.mxu0 0.0
      %2847 = vmatpush1.msra.mxu0 0.0
      %2848 = vmatprep.subr.mxu0 0.0
      %2849 = vmatpush1.msra.mxu0 0.0
      %2850 = vmatprep.subr.mxu0 0.0
      %2851 = vmatpush1.msra.mxu0 0.0
      %2852 = vmatprep.subr.mxu0 0.0
      %2853 = vmatpush1.msra.mxu0 0.0
      %2854 = vmatprep.subr.mxu0 0.0
      %2855 = vmatpush1.msra.mxu0 0.0
      %2856 = vmatprep.subr.mxu0 0.0
      %2857 = vmatpush1.msra.mxu0 0.0
      %2858 = vmatprep.subr.mxu0 0.0
      %2859 = vmatpush1.msra.mxu0 0.0
      %2860 = vmatprep.subr.mxu0 0.0
      %2861 = vmatpush1.msra.mxu0 0.0
      %2862 = vmatprep.subr.mxu0 0.0
      %2863 = vmatpush1.msra.mxu0 0.0
      %2864 = vmatprep.subr.mxu0 0.0
      %2865 = vmatpush1.msra.mxu0 0.0
      %2866 = vmatprep.subr.mxu0 0.0
      %2867 = vmatpush1.msra.mxu0 0.0
      %2868 = vmatprep.subr.mxu0 0.0
      %2869 = vmatpush1.msra.mxu0 0.0
      %2870 = vmatprep.subr.mxu0 0.0
      %2871 = vmatpush1.msra.mxu0 0.0
      %2872 = vmatprep.subr.mxu0 0.0
      %2873 = vmatpush1.msra.mxu0 0.0
      %2874 = vmatprep.subr.mxu0 0.0
      %2875 = vmatpush1.msra.mxu0 0.0
      %2876 = vmatprep.subr.mxu0 0.0
      %2877 = vmatpush1.msra.mxu0 0.0
      %2878 = vmatprep.mubr.f32.mxu0 0.0
      %2879 = vmatmul.mubr.f32.gmra.mrb[0].mxu0 %v2707
      %v2880 = vpop.f32.mrb[0].mxu0
      %v2881 = vadd.f32 0.0, %v2880
      %v2882 = vpop.f32.mrb[0].mxu0
      %2883 = vmatprep.mubr.f32.mxu0 0.0
      %2884 = vmatmul.mubr.f32.gmra.mrb[0].mxu0 %v2710
      %v2885 = vpop.f32.mrb[0].mxu0
      %v2886 = vadd.f32 0.0, %v2885
      %v2887 = vpop.f32.mrb[0].mxu0
      %2888 = vmatprep.mubr.f32.mxu0 0.0
      %2889 = vmatmul.mubr.f32.gmra.mrb[0].mxu0 %v2713
      %v2890 = vpop.f32.mrb[0].mxu0
      %v2891 = vadd.f32 0.0, %v2890
      %v2892 = vpop.f32.mrb[0].mxu0
      %2893 = vmatprep.mubr.f32.mxu0 0.0
      %2894 = vmatmul.mubr.f32.gmra.mrb[0].mxu0 %v2716
      %v2895 = vpop.f32.mrb[0].mxu0
      %v2896 = vadd.f32 0.0, %v2895
      %v2897 = vpop.f32.mrb[0].mxu0
      %2898 = vmatprep.mubr.f32.mxu0 0.0
      %2899 = vmatmul.mubr.f32.gmra.mrb[0].mxu0 %v2719
      %v2900 = vpop.f32.mrb[0].mxu0
      %v2901 = vadd.f32 0.0, %v2900
      %v2902 = vpop.f32.mrb[0].mxu0
      %2903 = vmatprep.mubr.f32.mxu0 0.0
      %2904 = vmatmul.mubr.f32.gmra.mrb[0].mxu0 %v2722
      %v2905 = vpop.f32.mrb[0].mxu0
      %v2906 = vadd.f32 0.0, %v2905
      %v2907 = vpop.f32.mrb[0].mxu0
      %2908 = vmatprep.mubr.f32.mxu0 0.0
      %2909 = vmatmul.mubr.f32.gmra.mrb[0].mxu0 %v2725
      %v2910 = vpop.f32.mrb[0].mxu0
      %v2911 = vadd.f32 0.0, %v2910
      %v2912 = vpop.f32.mrb[0].mxu0
      %2913 = vmatprep.mubr.f32.mxu0 0.0
      %2914 = vmatmul.mubr.f32.gmra.mrb[0].mxu0 %v2728
      %v2915 = vpop.f32.mrb[0].mxu0
      %v2916 = vadd.f32 0.0, %v2915
      %v2917 = vpop.f32.mrb[0].mxu0
      %2918 = vmatprep.mubr.f32.mxu0 0.0
      %2919 = vmatmul.mubr.f32.gmra.mrb[0].mxu0 %v2731
      %v2920 = vpop.f32.mrb[0].mxu0
      %v2921 = vadd.f32 0.0, %v2920
      %v2922 = vpop.f32.mrb[0].mxu0
      %2923 = vmatprep.mubr.f32.mxu0 0.0
      %2924 = vmatmul.mubr.f32.gmra.mrb[0].mxu0 %v2734
      %v2925 = vpop.f32.mrb[0].mxu0
      %v2926 = vadd.f32 0.0, %v2925
      %v2927 = vpop.f32.mrb[0].mxu0
      %2928 = vmatprep.mubr.f32.mxu0 0.0
      %2929 = vmatmul.mubr.f32.gmra.mrb[0].mxu0 %v2737
      %v2930 = vpop.f32.mrb[0].mxu0
      %v2931 = vadd.f32 0.0, %v2930
      %v2932 = vpop.f32.mrb[0].mxu0
      %2933 = vmatprep.mubr.f32.mxu0 0.0
      %2934 = vmatmul.mubr.f32.gmra.mrb[0].mxu0 %v2740
      %v2935 = vpop.f32.mrb[0].mxu0
      %v2936 = vadd.f32 0.0, %v2935
      %v2937 = vpop.f32.mrb[0].mxu0
      %2938 = vmatprep.mubr.f32.mxu0 0.0
      %2939 = vmatmul.mubr.f32.gmra.mrb[0].mxu0 %v2743
      %v2940 = vpop.f32.mrb[0].mxu0
      %v2941 = vadd.f32 0.0, %v2940
      %v2942 = vpop.f32.mrb[0].mxu0
      %2943 = vmatprep.mubr.f32.mxu0 0.0
      %2944 = vmatmul.mubr.f32.gmra.mrb[0].mxu0 %v2746
      %v2945 = vpop.f32.mrb[0].mxu0
      %v2946 = vadd.f32 0.0, %v2945
      %v2947 = vpop.f32.mrb[0].mxu0
      %2948 = vmatprep.mubr.f32.mxu0 0.0
      %2949 = vmatmul.mubr.f32.gmra.mrb[0].mxu0 %v2749
      %v2950 = vpop.f32.mrb[0].mxu0
      %v2951 = vadd.f32 0.0, %v2950
      %v2952 = vpop.f32.mrb[0].mxu0
      %2953 = vmatprep.mubr.f32.mxu0 0.0
      %2954 = vmatmul.mubr.f32.gmra.mrb[0].mxu0 %v2752
      %v2955 = vpop.f32.mrb[0].mxu0
      %v2956 = vadd.f32 0.0, %v2955
      %v2957 = vpop.f32.mrb[0].mxu0
      %2958 = vmatprep.mubr.f32.mxu0 0.0
      %2959 = vmatmul.mubr.f32.gmra.mrb[0].mxu0 %v2755
      %v2960 = vpop.f32.mrb[0].mxu0
      %v2961 = vadd.f32 0.0, %v2960
      %v2962 = vpop.f32.mrb[0].mxu0
      %2963 = vmatprep.mubr.f32.mxu0 0.0
      %2964 = vmatmul.mubr.f32.gmra.mrb[0].mxu0 %v2758
      %v2965 = vpop.f32.mrb[0].mxu0
      %v2966 = vadd.f32 0.0, %v2965
      %v2967 = vpop.f32.mrb[0].mxu0
      %2968 = vmatprep.mubr.f32.mxu0 0.0
      %2969 = vmatmul.mubr.f32.gmra.mrb[0].mxu0 %v2761
      %v2970 = vpop.f32.mrb[0].mxu0
      %v2971 = vadd.f32 0.0, %v2970
      %v2972 = vpop.f32.mrb[0].mxu0
      %2973 = vmatprep.mubr.f32.mxu0 0.0
      %2974 = vmatmul.mubr.f32.gmra.mrb[0].mxu0 %v2764
      %v2975 = vpop.f32.mrb[0].mxu0
      %v2976 = vadd.f32 0.0, %v2975
      %v2977 = vpop.f32.mrb[0].mxu0
      %2978 = vmatprep.mubr.f32.mxu0 0.0
      %2979 = vmatmul.mubr.f32.gmra.mrb[0].mxu0 %v2767
      %v2980 = vpop.f32.mrb[0].mxu0
      %v2981 = vadd.f32 0.0, %v2980
      %v2982 = vpop.f32.mrb[0].mxu0
      %2983 = vmatprep.mubr.f32.mxu0 0.0
      %2984 = vmatmul.mubr.f32.gmra.mrb[0].mxu0 %v2770
      %v2985 = vpop.f32.mrb[0].mxu0
      %v2986 = vadd.f32 0.0, %v2985
      %v2987 = vpop.f32.mrb[0].mxu0
      %2988 = vmatprep.mubr.f32.mxu0 0.0
      %2989 = vmatmul.mubr.f32.gmra.mrb[0].mxu0 %v2773
      %v2990 = vpop.f32.mrb[0].mxu0
      %v2991 = vadd.f32 0.0, %v2990
      %v2992 = vpop.f32.mrb[0].mxu0
      %2993 = vmatprep.mubr.f32.mxu0 0.0
      %2994 = vmatmul.mubr.f32.gmra.mrb[0].mxu0 %v2776
      %v2995 = vpop.f32.mrb[0].mxu0
      %v2996 = vadd.f32 0.0, %v2995
      %v2997 = vpop.f32.mrb[0].mxu0
      %2998 = vmatprep.mubr.f32.mxu0 0.0
      %2999 = vmatmul.mubr.f32.gmra.mrb[0].mxu0 %v2779
      %v3000 = vpop.f32.mrb[0].mxu0
      %v3001 = vadd.f32 0.0, %v3000
      %v3002 = vpop.f32.mrb[0].mxu0
      %3003 = vmatprep.mubr.f32.mxu0 0.0
      %3004 = vmatmul.mubr.f32.gmra.mrb[0].mxu0 %v2782
      %v3005 = vpop.f32.mrb[0].mxu0
      %v3006 = vadd.f32 0.0, %v3005
      %v3007 = vpop.f32.mrb[0].mxu0
      %3008 = vmatprep.mubr.f32.mxu0 0.0
      %3009 = vmatmul.mubr.f32.gmra.mrb[0].mxu0 %v2785
      %v3010 = vpop.f32.mrb[0].mxu0
      %v3011 = vadd.f32 0.0, %v3010
      %v3012 = vpop.f32.mrb[0].mxu0
      %3013 = vmatprep.mubr.f32.mxu0 0.0
      %3014 = vmatmul.mubr.f32.gmra.mrb[0].mxu0 %v2788
      %v3015 = vpop.f32.mrb[0].mxu0
      %v3016 = vadd.f32 0.0, %v3015
      %v3017 = vpop.f32.mrb[0].mxu0
      %3018 = vmatprep.mubr.f32.mxu0 0.0
      %3019 = vmatmul.mubr.f32.gmra.mrb[0].mxu0 %v2791
      %v3020 = vpop.f32.mrb[0].mxu0
      %v3021 = vadd.f32 0.0, %v3020
      %v3022 = vpop.f32.mrb[0].mxu0
      %3023 = vmatprep.mubr.f32.mxu0 0.0
      %3024 = vmatmul.mubr.f32.gmra.mrb[0].mxu0 %v2794
      %v3025 = vpop.f32.mrb[0].mxu0
      %v3026 = vadd.f32 0.0, %v3025
      %v3027 = vpop.f32.mrb[0].mxu0
      %3028 = vmatprep.mubr.f32.mxu0 0.0
      %3029 = vmatmul.mubr.f32.gmra.mrb[0].mxu0 %v2797
      %v3030 = vpop.f32.mrb[0].mxu0
      %v3031 = vadd.f32 0.0, %v3030
      %v3032 = vpop.f32.mrb[0].mxu0
      %3033 = vmatprep.mubr.f32.mxu0 0.0
      %3034 = vmatmul.mubr.f32.gmra.mrb[0].mxu0 %v2800
      %v3035 = vpop.f32.mrb[0].mxu0
      %v3036 = vadd.f32 0.0, %v3035
      %v3037 = vpop.f32.mrb[0].mxu0
      %3038 = vmatprep.mubr.f32.mxu0 0.0
      %3039 = vmatmul.mubr.f32.gmra.mrb[0].mxu0 %v2803
      %v3040 = vpop.f32.mrb[0].mxu0
      %v3041 = vadd.f32 0.0, %v3040
      %v3042 = vpop.f32.mrb[0].mxu0
      %3043 = vmatprep.mubr.f32.mxu0 0.0
      %3044 = vmatmul.mubr.f32.gmra.mrb[0].mxu0 %v2806
      %v3045 = vpop.f32.mrb[0].mxu0
      %v3046 = vadd.f32 0.0, %v3045
      %v3047 = vpop.f32.mrb[0].mxu0
      %3048 = vmatprep.mubr.f32.mxu0 0.0
      %3049 = vmatmul.mubr.f32.gmra.mrb[0].mxu0 %v2809
      %v3050 = vpop.f32.mrb[0].mxu0
      %v3051 = vadd.f32 0.0, %v3050
      %v3052 = vpop.f32.mrb[0].mxu0
      %3053 = vmatprep.mubr.f32.mxu0 0.0
      %3054 = vmatmul.mubr.f32.gmra.mrb[0].mxu0 %v2812
      %v3055 = vpop.f32.mrb[0].mxu0
      %v3056 = vadd.f32 0.0, %v3055
      %v3057 = vpop.f32.mrb[0].mxu0
      %3058 = vdwg.mxu0
      %v3059 = vadd.f32 %v2632, %v2881
      %v3060 = vadd.f32 %v2633, %v2886
      %v3061 = vadd.f32 %v2634, %v2891
      %v3062 = vadd.f32 %v2635, %v2896
      %v3063 = vadd.f32 %v2636, %v2901
      %v3064 = vadd.f32 %v2637, %v2906
      %v3065 = vadd.f32 %v2638, %v2911
      %v3066 = vadd.f32 %v2639, %v2916
      %v3067 = vadd.f32 %v2640, %v2921
      %v3068 = vadd.f32 %v2641, %v2926
      %v3069 = vadd.f32 %v2642, %v2931
      %v3070 = vadd.f32 %v2643, %v2936
      %v3071 = vadd.f32 %v2644, %v2941
      %v3072 = vadd.f32 %v2645, %v2946
      %v3073 = vadd.f32 %v2646, %v2951
      %v3074 = vadd.f32 %v2647, %v2956
      %v3075 = vadd.f32 %v2648, %v2961
      %v3076 = vadd.f32 %v2649, %v2966
      %v3077 = vadd.f32 %v2650, %v2971
      %v3078 = vadd.f32 %v2651, %v2976
      %v3079 = vadd.f32 %v2652, %v2981
      %v3080 = vadd.f32 %v2653, %v2986
      %v3081 = vadd.f32 %v2654, %v2991
      %v3082 = vadd.f32 %v2655, %v2996
      %v3083 = vadd.f32 %v2656, %v3001
      %v3084 = vadd.f32 %v2657, %v3006
      %v3085 = vadd.f32 %v2658, %v3011
      %v3086 = vadd.f32 %v2659, %v3016
      %v3087 = vadd.f32 %v2660, %v3021
      %v3088 = vadd.f32 %v2661, %v3026
      %v3089 = vadd.f32 %v2662, %v3031
      %v3090 = vadd.f32 %v2663, %v3036
      %v3091 = vadd.f32 %v2664, %v3041
      %v3092 = vadd.f32 %v2665, %v3046
      %v3093 = vadd.f32 %v2666, %v3051
      %v3094 = vadd.f32 %v2667, %v3056
      %3095 = vst [vmem:[%s204] sm:$0xff] %v3059
      %3096 = vst [vmem:[%s204 + $0x8] sm:$0xff] %v3060
      %3097 = vst [vmem:[%s204 + $0x10] sm:$0xff] %v3061
      %3098 = vst [vmem:[%s204 + $0x18] sm:$0xff] %v3062
      %3099 = vst [vmem:[%s204 + $0x20] sm:$0xff] %v3063
      %3100 = vst [vmem:[%s204 + $0x28] sm:$0xff] %v3064
      %3101 = vst [vmem:[%s204 + $0x30] sm:$0xff] %v3065
      %3102 = vst [vmem:[%s204 + $0x38] sm:$0xff] %v3066
      %3103 = vst [vmem:[%s204 + $0x40] sm:$0xff] %v3067
      %3104 = vst [vmem:[%s204 + $0x48] sm:$0xff] %v3068
      %3105 = vst [vmem:[%s204 + $0x50] sm:$0xff] %v3069
      %3106 = vst [vmem:[%s204 + $0x58] sm:$0xff] %v3070
      %3107 = vst [vmem:[%s204 + $0x60] sm:$0xff] %v3071
      %3108 = vst [vmem:[%s204 + $0x68] sm:$0xff] %v3072
      %3109 = vst [vmem:[%s204 + $0x70] sm:$0xff] %v3073
      %3110 = vst [vmem:[%s204 + $0x78] sm:$0xff] %v3074
      %3111 = vst [vmem:[%s204 + $0x80] sm:$0xff] %v3075
      %3112 = vst [vmem:[%s204 + $0x88] sm:$0xff] %v3076
      %3113 = vst [vmem:[%s204 + $0x90] sm:$0xff] %v3077
      %3114 = vst [vmem:[%s204 + $0x98] sm:$0xff] %v3078
      %3115 = vst [vmem:[%s204 + $0xa0] sm:$0xff] %v3079
      %3116 = vst [vmem:[%s204 + $0xa8] sm:$0xff] %v3080
      %3117 = vst [vmem:[%s204 + $0xb0] sm:$0xff] %v3081
      %3118 = vst [vmem:[%s204 + $0xb8] sm:$0xff] %v3082
      %3119 = vst [vmem:[%s204 + $0xc0] sm:$0xff] %v3083
      %3120 = vst [vmem:[%s204 + $0xc8] sm:$0xff] %v3084
      %3121 = vst [vmem:[%s204 + $0xd0] sm:$0xff] %v3085
      %3122 = vst [vmem:[%s204 + $0xd8] sm:$0xff] %v3086
      %3123 = vst [vmem:[%s204 + $0xe0] sm:$0xff] %v3087
      %3124 = vst [vmem:[%s204 + $0xe8] sm:$0xff] %v3088
      %3125 = vst [vmem:[%s204 + $0xf0] sm:$0xff] %v3089
      %3126 = vst [vmem:[%s204 + $0xf8] sm:$0xff] %v3090
      %3127 = vst [vmem:[%s204 + $0x100] sm:$0xff] %v3091
      %3128 = vst [vmem:[%s204 + $0x108] sm:$0xff] %v3092
      %3129 = vst [vmem:[%s204 + $0x110] sm:$0xff] %v3093
      %3130 = vst [vmem:[%s204 + $0x118] sm:$0xff] %v3094
      %v3131 = vld [vmem:[%s204] sm:$0xff]
      %v3132 = vld [vmem:[%s204 + $0x8] sm:$0xff]
      %v3133 = vld [vmem:[%s204 + $0x10] sm:$0xff]
      %v3134 = vld [vmem:[%s204 + $0x18] sm:$0xff]
      %v3135 = vld [vmem:[%s204 + $0x20] sm:$0xff]
      %v3136 = vld [vmem:[%s204 + $0x28] sm:$0xff]
      %v3137 = vld [vmem:[%s204 + $0x30] sm:$0xff]
      %v3138 = vld [vmem:[%s204 + $0x38] sm:$0xff]
      %v3139 = vld [vmem:[%s204 + $0x40] sm:$0xff]
      %v3140 = vld [vmem:[%s204 + $0x48] sm:$0xff]
      %v3141 = vld [vmem:[%s204 + $0x50] sm:$0xff]
      %v3142 = vld [vmem:[%s204 + $0x58] sm:$0xff]
      %v3143 = vld [vmem:[%s204 + $0x60] sm:$0xff]
      %v3144 = vld [vmem:[%s204 + $0x68] sm:$0xff]
      %v3145 = vld [vmem:[%s204 + $0x70] sm:$0xff]
      %v3146 = vld [vmem:[%s204 + $0x78] sm:$0xff]
      %v3147 = vld [vmem:[%s204 + $0x80] sm:$0xff]
      %v3148 = vld [vmem:[%s204 + $0x88] sm:$0xff]
      %v3149 = vld [vmem:[%s204 + $0x90] sm:$0xff]
      %v3150 = vld [vmem:[%s204 + $0x98] sm:$0xff]
      %v3151 = vld [vmem:[%s204 + $0xa0] sm:$0xff]
      %v3152 = vld [vmem:[%s204 + $0xa8] sm:$0xff]
      %v3153 = vld [vmem:[%s204 + $0xb0] sm:$0xff]
      %v3154 = vld [vmem:[%s204 + $0xb8] sm:$0xff]
      %v3155 = vld [vmem:[%s204 + $0xc0] sm:$0xff]
      %v3156 = vld [vmem:[%s204 + $0xc8] sm:$0xff]
      %v3157 = vld [vmem:[%s204 + $0xd0] sm:$0xff]
      %v3158 = vld [vmem:[%s204 + $0xd8] sm:$0xff]
      %v3159 = vld [vmem:[%s204 + $0xe0] sm:$0xff]
      %v3160 = vld [vmem:[%s204 + $0xe8] sm:$0xff]
      %v3161 = vld [vmem:[%s204 + $0xf0] sm:$0xff]
      %v3162 = vld [vmem:[%s204 + $0xf8] sm:$0xff]
      %v3163 = vld [vmem:[%s204 + $0x100] sm:$0xff]
      %v3164 = vld [vmem:[%s204 + $0x108] sm:$0xff]
      %v3165 = vld [vmem:[%s204 + $0x110] sm:$0xff]
      %v3166 = vld [vmem:[%s204 + $0x118] sm:$0xff]
      %v3167 = vld [vmem:[%s199 + $0x24] sm:$0xff]
      %v3168 = vld [vmem:[%s199 + $0x2c] sm:$0xff]
      %v3169 = vld [vmem:[%s199 + $0x34] sm:$0xff]
      %v3170 = vld [vmem:[%s199 + $0x3c] sm:$0xff]
      %v3171 = vld [vmem:[%s199 + $0x44] sm:$0xff]
      %v3172 = vld [vmem:[%s199 + $0x4c] sm:$0xff]
      %v3173 = vld [vmem:[%s199 + $0x54] sm:$0xff]
      %v3174 = vld [vmem:[%s199 + $0x5c] sm:$0xff]
      %v3175 = vld [vmem:[%s199 + $0x64] sm:$0xff]
      %v3176 = vld [vmem:[%s199 + $0x6c] sm:$0xff]
      %v3177 = vld [vmem:[%s199 + $0x74] sm:$0xff]
      %v3178 = vld [vmem:[%s199 + $0x7c] sm:$0xff]
      %v3179 = vld [vmem:[%s199 + $0x84] sm:$0xff]
      %v3180 = vld [vmem:[%s199 + $0x8c] sm:$0xff]
      %v3181 = vld [vmem:[%s199 + $0x94] sm:$0xff]
      %v3182 = vld [vmem:[%s199 + $0x9c] sm:$0xff]
      %v3183 = vld [vmem:[%s199 + $0xa4] sm:$0xff]
      %v3184 = vld [vmem:[%s199 + $0xac] sm:$0xff]
      %v3185 = vld [vmem:[%s199 + $0xb4] sm:$0xff]
      %v3186 = vld [vmem:[%s199 + $0xbc] sm:$0xff]
      %v3187 = vld [vmem:[%s199 + $0xc4] sm:$0xff]
      %v3188 = vld [vmem:[%s199 + $0xcc] sm:$0xff]
      %v3189 = vld [vmem:[%s199 + $0xd4] sm:$0xff]
      %v3190 = vld [vmem:[%s199 + $0xdc] sm:$0xff]
      %v3191 = vld [vmem:[%s199 + $0xe4] sm:$0xff]
      %v3192 = vld [vmem:[%s199 + $0xec] sm:$0xff]
      %v3193 = vld [vmem:[%s199 + $0xf4] sm:$0xff]
      %v3194 = vld [vmem:[%s199 + $0xfc] sm:$0xff]
      %v3195 = vld [vmem:[%s199 + $0x104] sm:$0xff]
      %v3196 = vld [vmem:[%s199 + $0x10c] sm:$0xff]
      %v3197 = vld [vmem:[%s199 + $0x114] sm:$0xff]
      %v3198 = vld [vmem:[%s199 + $0x11c] sm:$0xff]
      %v3199 = vld [vmem:[%s199 + $0x124] sm:$0xff]
      %v3200 = vld [vmem:[%s199 + $0x12c] sm:$0xff]
      %v3201 = vld [vmem:[%s199 + $0x134] sm:$0xff]
      %v3202 = vld [vmem:[%s199 + $0x13c] sm:$0xff]
      %s3203 = scalar_lea.vmem %s1, 48
      %v3204 = vld [vmem:[%s3203] sm:$0xff]
      %v3206 = vsel %vm246, %v3167, 0
      %v3209 = vsel %vm246, %v3168, 0
      %v3212 = vsel %vm246, %v3169, 0
      %v3215 = vsel %vm246, %v3170, 0
      %v3218 = vsel %vm246, %v3171, 0
      %v3221 = vsel %vm246, %v3172, 0
      %v3224 = vsel %vm246, %v3173, 0
      %v3227 = vsel %vm246, %v3174, 0
      %v3230 = vsel %vm246, %v3175, 0
      %v3233 = vsel %vm246, %v3176, 0
      %v3236 = vsel %vm246, %v3177, 0
      %v3239 = vsel %vm246, %v3178, 0
      %v3242 = vsel %vm246, %v3179, 0
      %v3245 = vsel %vm246, %v3180, 0
      %v3248 = vsel %vm246, %v3181, 0
      %v3251 = vsel %vm246, %v3182, 0
      %v3254 = vsel %vm246, %v3183, 0
      %v3257 = vsel %vm246, %v3184, 0
      %v3260 = vsel %vm246, %v3185, 0
      %v3263 = vsel %vm246, %v3186, 0
      %v3266 = vsel %vm246, %v3187, 0
      %v3269 = vsel %vm246, %v3188, 0
      %v3272 = vsel %vm246, %v3189, 0
      %v3275 = vsel %vm246, %v3190, 0
      %v3278 = vsel %vm246, %v3191, 0
      %v3281 = vsel %vm246, %v3192, 0
      %v3284 = vsel %vm246, %v3193, 0
      %v3287 = vsel %vm246, %v3194, 0
      %v3290 = vsel %vm246, %v3195, 0
      %v3293 = vsel %vm246, %v3196, 0
      %v3296 = vsel %vm246, %v3197, 0
      %v3299 = vsel %vm246, %v3198, 0
      %v3302 = vsel %vm246, %v3199, 0
      %v3305 = vsel %vm246, %v3200, 0
      %v3308 = vsel %vm246, %v3201, 0
      %v3311 = vsel %vm246, %v3202, 0
      %3313 = vmatprep.subr.mxu0 0.0
      %3314 = vmatpush1.msra.mxu0 %v3204
      %3315 = vmatprep.subr.mxu0 0.0
      %3316 = vmatpush1.msra.mxu0 0.0
      %3317 = vmatprep.subr.mxu0 0.0
      %3318 = vmatpush1.msra.mxu0 0.0
      %3319 = vmatprep.subr.mxu0 0.0
      %3320 = vmatpush1.msra.mxu0 0.0
      %3321 = vmatprep.subr.mxu0 0.0
      %3322 = vmatpush1.msra.mxu0 0.0
      %3323 = vmatprep.subr.mxu0 0.0
      %3324 = vmatpush1.msra.mxu0 0.0
      %3325 = vmatprep.subr.mxu0 0.0
      %3326 = vmatpush1.msra.mxu0 0.0
      %3327 = vmatprep.subr.mxu0 0.0
      %3328 = vmatpush1.msra.mxu0 0.0
      %3329 = vmatprep.subr.mxu0 0.0
      %3330 = vmatpush1.msra.mxu0 0.0
      %3331 = vmatprep.subr.mxu0 0.0
      %3332 = vmatpush1.msra.mxu0 0.0
      %3333 = vmatprep.subr.mxu0 0.0
      %3334 = vmatpush1.msra.mxu0 0.0
      %3335 = vmatprep.subr.mxu0 0.0
      %3336 = vmatpush1.msra.mxu0 0.0
      %3337 = vmatprep.subr.mxu0 0.0
      %3338 = vmatpush1.msra.mxu0 0.0
      %3339 = vmatprep.subr.mxu0 0.0
      %3340 = vmatpush1.msra.mxu0 0.0
      %3341 = vmatprep.subr.mxu0 0.0
      %3342 = vmatpush1.msra.mxu0 0.0
      %3343 = vmatprep.subr.mxu0 0.0
      %3344 = vmatpush1.msra.mxu0 0.0
      %3345 = vmatprep.subr.mxu0 0.0
      %3346 = vmatpush1.msra.mxu0 0.0
      %3347 = vmatprep.subr.mxu0 0.0
      %3348 = vmatpush1.msra.mxu0 0.0
      %3349 = vmatprep.subr.mxu0 0.0
      %3350 = vmatpush1.msra.mxu0 0.0
      %3351 = vmatprep.subr.mxu0 0.0
      %3352 = vmatpush1.msra.mxu0 0.0
      %3353 = vmatprep.subr.mxu0 0.0
      %3354 = vmatpush1.msra.mxu0 0.0
      %3355 = vmatprep.subr.mxu0 0.0
      %3356 = vmatpush1.msra.mxu0 0.0
      %3357 = vmatprep.subr.mxu0 0.0
      %3358 = vmatpush1.msra.mxu0 0.0
      %3359 = vmatprep.subr.mxu0 0.0
      %3360 = vmatpush1.msra.mxu0 0.0
      %3361 = vmatprep.subr.mxu0 0.0
      %3362 = vmatpush1.msra.mxu0 0.0
      %3363 = vmatprep.subr.mxu0 0.0
      %3364 = vmatpush1.msra.mxu0 0.0
      %3365 = vmatprep.subr.mxu0 0.0
      %3366 = vmatpush1.msra.mxu0 0.0
      %3367 = vmatprep.subr.mxu0 0.0
      %3368 = vmatpush1.msra.mxu0 0.0
      %3369 = vmatprep.subr.mxu0 0.0
      %3370 = vmatpush1.msra.mxu0 0.0
      %3371 = vmatprep.subr.mxu0 0.0
      %3372 = vmatpush1.msra.mxu0 0.0
      %3373 = vmatprep.subr.mxu0 0.0
      %3374 = vmatpush1.msra.mxu0 0.0
      %3375 = vmatprep.subr.mxu0 0.0
      %3376 = vmatpush1.msra.mxu0 0.0
      %3377 = vmatprep.mubr.f32.mxu0 0.0
      %3378 = vmatmul.mubr.f32.gmra.mrb[0].mxu0 %v3206
      %v3379 = vpop.f32.mrb[0].mxu0
      %v3380 = vadd.f32 0.0, %v3379
      %v3381 = vpop.f32.mrb[0].mxu0
      %3382 = vmatprep.mubr.f32.mxu0 0.0
      %3383 = vmatmul.mubr.f32.gmra.mrb[0].mxu0 %v3209
      %v3384 = vpop.f32.mrb[0].mxu0
      %v3385 = vadd.f32 0.0, %v3384
      %v3386 = vpop.f32.mrb[0].mxu0
      %3387 = vmatprep.mubr.f32.mxu0 0.0
      %3388 = vmatmul.mubr.f32.gmra.mrb[0].mxu0 %v3212
      %v3389 = vpop.f32.mrb[0].mxu0
      %v3390 = vadd.f32 0.0, %v3389
      %v3391 = vpop.f32.mrb[0].mxu0
      %3392 = vmatprep.mubr.f32.mxu0 0.0
      %3393 = vmatmul.mubr.f32.gmra.mrb[0].mxu0 %v3215
      %v3394 = vpop.f32.mrb[0].mxu0
      %v3395 = vadd.f32 0.0, %v3394
      %v3396 = vpop.f32.mrb[0].mxu0
      %3397 = vmatprep.mubr.f32.mxu0 0.0
      %3398 = vmatmul.mubr.f32.gmra.mrb[0].mxu0 %v3218
      %v3399 = vpop.f32.mrb[0].mxu0
      %v3400 = vadd.f32 0.0, %v3399
      %v3401 = vpop.f32.mrb[0].mxu0
      %3402 = vmatprep.mubr.f32.mxu0 0.0
      %3403 = vmatmul.mubr.f32.gmra.mrb[0].mxu0 %v3221
      %v3404 = vpop.f32.mrb[0].mxu0
      %v3405 = vadd.f32 0.0, %v3404
      %v3406 = vpop.f32.mrb[0].mxu0
      %3407 = vmatprep.mubr.f32.mxu0 0.0
      %3408 = vmatmul.mubr.f32.gmra.mrb[0].mxu0 %v3224
      %v3409 = vpop.f32.mrb[0].mxu0
      %v3410 = vadd.f32 0.0, %v3409
      %v3411 = vpop.f32.mrb[0].mxu0
      %3412 = vmatprep.mubr.f32.mxu0 0.0
      %3413 = vmatmul.mubr.f32.gmra.mrb[0].mxu0 %v3227
      %v3414 = vpop.f32.mrb[0].mxu0
      %v3415 = vadd.f32 0.0, %v3414
      %v3416 = vpop.f32.mrb[0].mxu0
      %3417 = vmatprep.mubr.f32.mxu0 0.0
      %3418 = vmatmul.mubr.f32.gmra.mrb[0].mxu0 %v3230
      %v3419 = vpop.f32.mrb[0].mxu0
      %v3420 = vadd.f32 0.0, %v3419
      %v3421 = vpop.f32.mrb[0].mxu0
      %3422 = vmatprep.mubr.f32.mxu0 0.0
      %3423 = vmatmul.mubr.f32.gmra.mrb[0].mxu0 %v3233
      %v3424 = vpop.f32.mrb[0].mxu0
      %v3425 = vadd.f32 0.0, %v3424
      %v3426 = vpop.f32.mrb[0].mxu0
      %3427 = vmatprep.mubr.f32.mxu0 0.0
      %3428 = vmatmul.mubr.f32.gmra.mrb[0].mxu0 %v3236
      %v3429 = vpop.f32.mrb[0].mxu0
      %v3430 = vadd.f32 0.0, %v3429
      %v3431 = vpop.f32.mrb[0].mxu0
      %3432 = vmatprep.mubr.f32.mxu0 0.0
      %3433 = vmatmul.mubr.f32.gmra.mrb[0].mxu0 %v3239
      %v3434 = vpop.f32.mrb[0].mxu0
      %v3435 = vadd.f32 0.0, %v3434
      %v3436 = vpop.f32.mrb[0].mxu0
      %3437 = vmatprep.mubr.f32.mxu0 0.0
      %3438 = vmatmul.mubr.f32.gmra.mrb[0].mxu0 %v3242
      %v3439 = vpop.f32.mrb[0].mxu0
      %v3440 = vadd.f32 0.0, %v3439
      %v3441 = vpop.f32.mrb[0].mxu0
      %3442 = vmatprep.mubr.f32.mxu0 0.0
      %3443 = vmatmul.mubr.f32.gmra.mrb[0].mxu0 %v3245
      %v3444 = vpop.f32.mrb[0].mxu0
      %v3445 = vadd.f32 0.0, %v3444
      %v3446 = vpop.f32.mrb[0].mxu0
      %3447 = vmatprep.mubr.f32.mxu0 0.0
      %3448 = vmatmul.mubr.f32.gmra.mrb[0].mxu0 %v3248
      %v3449 = vpop.f32.mrb[0].mxu0
      %v3450 = vadd.f32 0.0, %v3449
      %v3451 = vpop.f32.mrb[0].mxu0
      %3452 = vmatprep.mubr.f32.mxu0 0.0
      %3453 = vmatmul.mubr.f32.gmra.mrb[0].mxu0 %v3251
      %v3454 = vpop.f32.mrb[0].mxu0
      %v3455 = vadd.f32 0.0, %v3454
      %v3456 = vpop.f32.mrb[0].mxu0
      %3457 = vmatprep.mubr.f32.mxu0 0.0
      %3458 = vmatmul.mubr.f32.gmra.mrb[0].mxu0 %v3254
      %v3459 = vpop.f32.mrb[0].mxu0
      %v3460 = vadd.f32 0.0, %v3459
      %v3461 = vpop.f32.mrb[0].mxu0
      %3462 = vmatprep.mubr.f32.mxu0 0.0
      %3463 = vmatmul.mubr.f32.gmra.mrb[0].mxu0 %v3257
      %v3464 = vpop.f32.mrb[0].mxu0
      %v3465 = vadd.f32 0.0, %v3464
      %v3466 = vpop.f32.mrb[0].mxu0
      %3467 = vmatprep.mubr.f32.mxu0 0.0
      %3468 = vmatmul.mubr.f32.gmra.mrb[0].mxu0 %v3260
      %v3469 = vpop.f32.mrb[0].mxu0
      %v3470 = vadd.f32 0.0, %v3469
      %v3471 = vpop.f32.mrb[0].mxu0
      %3472 = vmatprep.mubr.f32.mxu0 0.0
      %3473 = vmatmul.mubr.f32.gmra.mrb[0].mxu0 %v3263
      %v3474 = vpop.f32.mrb[0].mxu0
      %v3475 = vadd.f32 0.0, %v3474
      %v3476 = vpop.f32.mrb[0].mxu0
      %3477 = vmatprep.mubr.f32.mxu0 0.0
      %3478 = vmatmul.mubr.f32.gmra.mrb[0].mxu0 %v3266
      %v3479 = vpop.f32.mrb[0].mxu0
      %v3480 = vadd.f32 0.0, %v3479
      %v3481 = vpop.f32.mrb[0].mxu0
      %3482 = vmatprep.mubr.f32.mxu0 0.0
      %3483 = vmatmul.mubr.f32.gmra.mrb[0].mxu0 %v3269
      %v3484 = vpop.f32.mrb[0].mxu0
      %v3485 = vadd.f32 0.0, %v3484
      %v3486 = vpop.f32.mrb[0].mxu0
      %3487 = vmatprep.mubr.f32.mxu0 0.0
      %3488 = vmatmul.mubr.f32.gmra.mrb[0].mxu0 %v3272
      %v3489 = vpop.f32.mrb[0].mxu0
      %v3490 = vadd.f32 0.0, %v3489
      %v3491 = vpop.f32.mrb[0].mxu0
      %3492 = vmatprep.mubr.f32.mxu0 0.0
      %3493 = vmatmul.mubr.f32.gmra.mrb[0].mxu0 %v3275
      %v3494 = vpop.f32.mrb[0].mxu0
      %v3495 = vadd.f32 0.0, %v3494
      %v3496 = vpop.f32.mrb[0].mxu0
      %3497 = vmatprep.mubr.f32.mxu0 0.0
      %3498 = vmatmul.mubr.f32.gmra.mrb[0].mxu0 %v3278
      %v3499 = vpop.f32.mrb[0].mxu0
      %v3500 = vadd.f32 0.0, %v3499
      %v3501 = vpop.f32.mrb[0].mxu0
      %3502 = vmatprep.mubr.f32.mxu0 0.0
      %3503 = vmatmul.mubr.f32.gmra.mrb[0].mxu0 %v3281
      %v3504 = vpop.f32.mrb[0].mxu0
      %v3505 = vadd.f32 0.0, %v3504
      %v3506 = vpop.f32.mrb[0].mxu0
      %3507 = vmatprep.mubr.f32.mxu0 0.0
      %3508 = vmatmul.mubr.f32.gmra.mrb[0].mxu0 %v3284
      %v3509 = vpop.f32.mrb[0].mxu0
      %v3510 = vadd.f32 0.0, %v3509
      %v3511 = vpop.f32.mrb[0].mxu0
      %3512 = vmatprep.mubr.f32.mxu0 0.0
      %3513 = vmatmul.mubr.f32.gmra.mrb[0].mxu0 %v3287
      %v3514 = vpop.f32.mrb[0].mxu0
      %v3515 = vadd.f32 0.0, %v3514
      %v3516 = vpop.f32.mrb[0].mxu0
      %3517 = vmatprep.mubr.f32.mxu0 0.0
      %3518 = vmatmul.mubr.f32.gmra.mrb[0].mxu0 %v3290
      %v3519 = vpop.f32.mrb[0].mxu0
      %v3520 = vadd.f32 0.0, %v3519
      %v3521 = vpop.f32.mrb[0].mxu0
      %3522 = vmatprep.mubr.f32.mxu0 0.0
      %3523 = vmatmul.mubr.f32.gmra.mrb[0].mxu0 %v3293
      %v3524 = vpop.f32.mrb[0].mxu0
      %v3525 = vadd.f32 0.0, %v3524
      %v3526 = vpop.f32.mrb[0].mxu0
      %3527 = vmatprep.mubr.f32.mxu0 0.0
      %3528 = vmatmul.mubr.f32.gmra.mrb[0].mxu0 %v3296
      %v3529 = vpop.f32.mrb[0].mxu0
      %v3530 = vadd.f32 0.0, %v3529
      %v3531 = vpop.f32.mrb[0].mxu0
      %3532 = vmatprep.mubr.f32.mxu0 0.0
      %3533 = vmatmul.mubr.f32.gmra.mrb[0].mxu0 %v3299
      %v3534 = vpop.f32.mrb[0].mxu0
      %v3535 = vadd.f32 0.0, %v3534
      %v3536 = vpop.f32.mrb[0].mxu0
      %3537 = vmatprep.mubr.f32.mxu0 0.0
      %3538 = vmatmul.mubr.f32.gmra.mrb[0].mxu0 %v3302
      %v3539 = vpop.f32.mrb[0].mxu0
      %v3540 = vadd.f32 0.0, %v3539
      %v3541 = vpop.f32.mrb[0].mxu0
      %3542 = vmatprep.mubr.f32.mxu0 0.0
      %3543 = vmatmul.mubr.f32.gmra.mrb[0].mxu0 %v3305
      %v3544 = vpop.f32.mrb[0].mxu0
      %v3545 = vadd.f32 0.0, %v3544
      %v3546 = vpop.f32.mrb[0].mxu0
      %3547 = vmatprep.mubr.f32.mxu0 0.0
      %3548 = vmatmul.mubr.f32.gmra.mrb[0].mxu0 %v3308
      %v3549 = vpop.f32.mrb[0].mxu0
      %v3550 = vadd.f32 0.0, %v3549
      %v3551 = vpop.f32.mrb[0].mxu0
      %3552 = vmatprep.mubr.f32.mxu0 0.0
      %3553 = vmatmul.mubr.f32.gmra.mrb[0].mxu0 %v3311
      %v3554 = vpop.f32.mrb[0].mxu0
      %v3555 = vadd.f32 0.0, %v3554
      %v3556 = vpop.f32.mrb[0].mxu0
      %3557 = vdwg.mxu0
      %v3558 = vadd.f32 %v3131, %v3380
      %v3559 = vadd.f32 %v3132, %v3385
      %v3560 = vadd.f32 %v3133, %v3390
      %v3561 = vadd.f32 %v3134, %v3395
      %v3562 = vadd.f32 %v3135, %v3400
      %v3563 = vadd.f32 %v3136, %v3405
      %v3564 = vadd.f32 %v3137, %v3410
      %v3565 = vadd.f32 %v3138, %v3415
      %v3566 = vadd.f32 %v3139, %v3420
      %v3567 = vadd.f32 %v3140, %v3425
      %v3568 = vadd.f32 %v3141, %v3430
      %v3569 = vadd.f32 %v3142, %v3435
      %v3570 = vadd.f32 %v3143, %v3440
      %v3571 = vadd.f32 %v3144, %v3445
      %v3572 = vadd.f32 %v3145, %v3450
      %v3573 = vadd.f32 %v3146, %v3455
      %v3574 = vadd.f32 %v3147, %v3460
      %v3575 = vadd.f32 %v3148, %v3465
      %v3576 = vadd.f32 %v3149, %v3470
      %v3577 = vadd.f32 %v3150, %v3475
      %v3578 = vadd.f32 %v3151, %v3480
      %v3579 = vadd.f32 %v3152, %v3485
      %v3580 = vadd.f32 %v3153, %v3490
      %v3581 = vadd.f32 %v3154, %v3495
      %v3582 = vadd.f32 %v3155, %v3500
      %v3583 = vadd.f32 %v3156, %v3505
      %v3584 = vadd.f32 %v3157, %v3510
      %v3585 = vadd.f32 %v3158, %v3515
      %v3586 = vadd.f32 %v3159, %v3520
      %v3587 = vadd.f32 %v3160, %v3525
      %v3588 = vadd.f32 %v3161, %v3530
      %v3589 = vadd.f32 %v3162, %v3535
      %v3590 = vadd.f32 %v3163, %v3540
      %v3591 = vadd.f32 %v3164, %v3545
      %v3592 = vadd.f32 %v3165, %v3550
      %v3593 = vadd.f32 %v3166, %v3555
      %3594 = vst [vmem:[%s204] sm:$0xff] %v3558
      %3595 = vst [vmem:[%s204 + $0x8] sm:$0xff] %v3559
      %3596 = vst [vmem:[%s204 + $0x10] sm:$0xff] %v3560
      %3597 = vst [vmem:[%s204 + $0x18] sm:$0xff] %v3561
      %3598 = vst [vmem:[%s204 + $0x20] sm:$0xff] %v3562
      %3599 = vst [vmem:[%s204 + $0x28] sm:$0xff] %v3563
      %3600 = vst [vmem:[%s204 + $0x30] sm:$0xff] %v3564
      %3601 = vst [vmem:[%s204 + $0x38] sm:$0xff] %v3565
      %3602 = vst [vmem:[%s204 + $0x40] sm:$0xff] %v3566
      %3603 = vst [vmem:[%s204 + $0x48] sm:$0xff] %v3567
      %3604 = vst [vmem:[%s204 + $0x50] sm:$0xff] %v3568
      %3605 = vst [vmem:[%s204 + $0x58] sm:$0xff] %v3569
      %3606 = vst [vmem:[%s204 + $0x60] sm:$0xff] %v3570
      %3607 = vst [vmem:[%s204 + $0x68] sm:$0xff] %v3571
      %3608 = vst [vmem:[%s204 + $0x70] sm:$0xff] %v3572
      %3609 = vst [vmem:[%s204 + $0x78] sm:$0xff] %v3573
      %3610 = vst [vmem:[%s204 + $0x80] sm:$0xff] %v3574
      %3611 = vst [vmem:[%s204 + $0x88] sm:$0xff] %v3575
      %3612 = vst [vmem:[%s204 + $0x90] sm:$0xff] %v3576
      %3613 = vst [vmem:[%s204 + $0x98] sm:$0xff] %v3577
      %3614 = vst [vmem:[%s204 + $0xa0] sm:$0xff] %v3578
      %3615 = vst [vmem:[%s204 + $0xa8] sm:$0xff] %v3579
      %3616 = vst [vmem:[%s204 + $0xb0] sm:$0xff] %v3580
      %3617 = vst [vmem:[%s204 + $0xb8] sm:$0xff] %v3581
      %3618 = vst [vmem:[%s204 + $0xc0] sm:$0xff] %v3582
      %3619 = vst [vmem:[%s204 + $0xc8] sm:$0xff] %v3583
      %3620 = vst [vmem:[%s204 + $0xd0] sm:$0xff] %v3584
      %3621 = vst [vmem:[%s204 + $0xd8] sm:$0xff] %v3585
      %3622 = vst [vmem:[%s204 + $0xe0] sm:$0xff] %v3586
      %3623 = vst [vmem:[%s204 + $0xe8] sm:$0xff] %v3587
      %3624 = vst [vmem:[%s204 + $0xf0] sm:$0xff] %v3588
      %3625 = vst [vmem:[%s204 + $0xf8] sm:$0xff] %v3589
      %3626 = vst [vmem:[%s204 + $0x100] sm:$0xff] %v3590
      %3627 = vst [vmem:[%s204 + $0x108] sm:$0xff] %v3591
      %3628 = vst [vmem:[%s204 + $0x110] sm:$0xff] %v3592
      %3629 = vst [vmem:[%s204 + $0x118] sm:$0xff] %v3593
      %v3630 = vld [vmem:[%s204] sm:$0xff]
      %v3631 = vld [vmem:[%s204 + $0x8] sm:$0xff]
      %v3632 = vld [vmem:[%s204 + $0x10] sm:$0xff]
      %v3633 = vld [vmem:[%s204 + $0x18] sm:$0xff]
      %v3634 = vld [vmem:[%s204 + $0x20] sm:$0xff]
      %v3635 = vld [vmem:[%s204 + $0x28] sm:$0xff]
      %v3636 = vld [vmem:[%s204 + $0x30] sm:$0xff]
      %v3637 = vld [vmem:[%s204 + $0x38] sm:$0xff]
      %v3638 = vld [vmem:[%s204 + $0x40] sm:$0xff]
      %v3639 = vld [vmem:[%s204 + $0x48] sm:$0xff]
      %v3640 = vld [vmem:[%s204 + $0x50] sm:$0xff]
      %v3641 = vld [vmem:[%s204 + $0x58] sm:$0xff]
      %v3642 = vld [vmem:[%s204 + $0x60] sm:$0xff]
      %v3643 = vld [vmem:[%s204 + $0x68] sm:$0xff]
      %v3644 = vld [vmem:[%s204 + $0x70] sm:$0xff]
      %v3645 = vld [vmem:[%s204 + $0x78] sm:$0xff]
      %v3646 = vld [vmem:[%s204 + $0x80] sm:$0xff]
      %v3647 = vld [vmem:[%s204 + $0x88] sm:$0xff]
      %v3648 = vld [vmem:[%s204 + $0x90] sm:$0xff]
      %v3649 = vld [vmem:[%s204 + $0x98] sm:$0xff]
      %v3650 = vld [vmem:[%s204 + $0xa0] sm:$0xff]
      %v3651 = vld [vmem:[%s204 + $0xa8] sm:$0xff]
      %v3652 = vld [vmem:[%s204 + $0xb0] sm:$0xff]
      %v3653 = vld [vmem:[%s204 + $0xb8] sm:$0xff]
      %v3654 = vld [vmem:[%s204 + $0xc0] sm:$0xff]
      %v3655 = vld [vmem:[%s204 + $0xc8] sm:$0xff]
      %v3656 = vld [vmem:[%s204 + $0xd0] sm:$0xff]
      %v3657 = vld [vmem:[%s204 + $0xd8] sm:$0xff]
      %v3658 = vld [vmem:[%s204 + $0xe0] sm:$0xff]
      %v3659 = vld [vmem:[%s204 + $0xe8] sm:$0xff]
      %v3660 = vld [vmem:[%s204 + $0xf0] sm:$0xff]
      %v3661 = vld [vmem:[%s204 + $0xf8] sm:$0xff]
      %v3662 = vld [vmem:[%s204 + $0x100] sm:$0xff]
      %v3663 = vld [vmem:[%s204 + $0x108] sm:$0xff]
      %v3664 = vld [vmem:[%s204 + $0x110] sm:$0xff]
      %v3665 = vld [vmem:[%s204 + $0x118] sm:$0xff]
      %v3666 = vld [vmem:[%s199 + $0x25] sm:$0xff]
      %v3667 = vld [vmem:[%s199 + $0x2d] sm:$0xff]
      %v3668 = vld [vmem:[%s199 + $0x35] sm:$0xff]
      %v3669 = vld [vmem:[%s199 + $0x3d] sm:$0xff]
      %v3670 = vld [vmem:[%s199 + $0x45] sm:$0xff]
      %v3671 = vld [vmem:[%s199 + $0x4d] sm:$0xff]
      %v3672 = vld [vmem:[%s199 + $0x55] sm:$0xff]
      %v3673 = vld [vmem:[%s199 + $0x5d] sm:$0xff]
      %v3674 = vld [vmem:[%s199 + $0x65] sm:$0xff]
      %v3675 = vld [vmem:[%s199 + $0x6d] sm:$0xff]
      %v3676 = vld [vmem:[%s199 + $0x75] sm:$0xff]
      %v3677 = vld [vmem:[%s199 + $0x7d] sm:$0xff]
      %v3678 = vld [vmem:[%s199 + $0x85] sm:$0xff]
      %v3679 = vld [vmem:[%s199 + $0x8d] sm:$0xff]
      %v3680 = vld [vmem:[%s199 + $0x95] sm:$0xff]
      %v3681 = vld [vmem:[%s199 + $0x9d] sm:$0xff]
      %v3682 = vld [vmem:[%s199 + $0xa5] sm:$0xff]
      %v3683 = vld [vmem:[%s199 + $0xad] sm:$0xff]
      %v3684 = vld [vmem:[%s199 + $0xb5] sm:$0xff]
      %v3685 = vld [vmem:[%s199 + $0xbd] sm:$0xff]
      %v3686 = vld [vmem:[%s199 + $0xc5] sm:$0xff]
      %v3687 = vld [vmem:[%s199 + $0xcd] sm:$0xff]
      %v3688 = vld [vmem:[%s199 + $0xd5] sm:$0xff]
      %v3689 = vld [vmem:[%s199 + $0xdd] sm:$0xff]
      %v3690 = vld [vmem:[%s199 + $0xe5] sm:$0xff]
      %v3691 = vld [vmem:[%s199 + $0xed] sm:$0xff]
      %v3692 = vld [vmem:[%s199 + $0xf5] sm:$0xff]
      %v3693 = vld [vmem:[%s199 + $0xfd] sm:$0xff]
      %v3694 = vld [vmem:[%s199 + $0x105] sm:$0xff]
      %v3695 = vld [vmem:[%s199 + $0x10d] sm:$0xff]
      %v3696 = vld [vmem:[%s199 + $0x115] sm:$0xff]
      %v3697 = vld [vmem:[%s199 + $0x11d] sm:$0xff]
      %v3698 = vld [vmem:[%s199 + $0x125] sm:$0xff]
      %v3699 = vld [vmem:[%s199 + $0x12d] sm:$0xff]
      %v3700 = vld [vmem:[%s199 + $0x135] sm:$0xff]
      %v3701 = vld [vmem:[%s199 + $0x13d] sm:$0xff]
      %s3702 = scalar_lea.vmem %s1, 56
      %v3703 = vld [vmem:[%s3702] sm:$0xff]
      %v3705 = vsel %vm246, %v3666, 0
      %v3708 = vsel %vm246, %v3667, 0
      %v3711 = vsel %vm246, %v3668, 0
      %v3714 = vsel %vm246, %v3669, 0
      %v3717 = vsel %vm246, %v3670, 0
      %v3720 = vsel %vm246, %v3671, 0
      %v3723 = vsel %vm246, %v3672, 0
      %v3726 = vsel %vm246, %v3673, 0
      %v3729 = vsel %vm246, %v3674, 0
      %v3732 = vsel %vm246, %v3675, 0
      %v3735 = vsel %vm246, %v3676, 0
      %v3738 = vsel %vm246, %v3677, 0
      %v3741 = vsel %vm246, %v3678, 0
      %v3744 = vsel %vm246, %v3679, 0
      %v3747 = vsel %vm246, %v3680, 0
      %v3750 = vsel %vm246, %v3681, 0
      %v3753 = vsel %vm246, %v3682, 0
      %v3756 = vsel %vm246, %v3683, 0
      %v3759 = vsel %vm246, %v3684, 0
      %v3762 = vsel %vm246, %v3685, 0
      %v3765 = vsel %vm246, %v3686, 0
      %v3768 = vsel %vm246, %v3687, 0
      %v3771 = vsel %vm246, %v3688, 0
      %v3774 = vsel %vm246, %v3689, 0
      %v3777 = vsel %vm246, %v3690, 0
      %v3780 = vsel %vm246, %v3691, 0
      %v3783 = vsel %vm246, %v3692, 0
      %v3786 = vsel %vm246, %v3693, 0
      %v3789 = vsel %vm246, %v3694, 0
      %v3792 = vsel %vm246, %v3695, 0
      %v3795 = vsel %vm246, %v3696, 0
      %v3798 = vsel %vm246, %v3697, 0
      %v3801 = vsel %vm246, %v3698, 0
      %v3804 = vsel %vm246, %v3699, 0
      %v3807 = vsel %vm246, %v3700, 0
      %v3810 = vsel %vm246, %v3701, 0
      %3812 = vmatprep.subr.mxu0 0.0
      %3813 = vmatpush1.msra.mxu0 %v3703
      %3814 = vmatprep.subr.mxu0 0.0
      %3815 = vmatpush1.msra.mxu0 0.0
      %3816 = vmatprep.subr.mxu0 0.0
      %3817 = vmatpush1.msra.mxu0 0.0
      %3818 = vmatprep.subr.mxu0 0.0
      %3819 = vmatpush1.msra.mxu0 0.0
      %3820 = vmatprep.subr.mxu0 0.0
      %3821 = vmatpush1.msra.mxu0 0.0
      %3822 = vmatprep.subr.mxu0 0.0
      %3823 = vmatpush1.msra.mxu0 0.0
      %3824 = vmatprep.subr.mxu0 0.0
      %3825 = vmatpush1.msra.mxu0 0.0
      %3826 = vmatprep.subr.mxu0 0.0
      %3827 = vmatpush1.msra.mxu0 0.0
      %3828 = vmatprep.subr.mxu0 0.0
      %3829 = vmatpush1.msra.mxu0 0.0
      %3830 = vmatprep.subr.mxu0 0.0
      %3831 = vmatpush1.msra.mxu0 0.0
      %3832 = vmatprep.subr.mxu0 0.0
      %3833 = vmatpush1.msra.mxu0 0.0
      %3834 = vmatprep.subr.mxu0 0.0
      %3835 = vmatpush1.msra.mxu0 0.0
      %3836 = vmatprep.subr.mxu0 0.0
      %3837 = vmatpush1.msra.mxu0 0.0
      %3838 = vmatprep.subr.mxu0 0.0
      %3839 = vmatpush1.msra.mxu0 0.0
      %3840 = vmatprep.subr.mxu0 0.0
      %3841 = vmatpush1.msra.mxu0 0.0
      %3842 = vmatprep.subr.mxu0 0.0
      %3843 = vmatpush1.msra.mxu0 0.0
      %3844 = vmatprep.subr.mxu0 0.0
      %3845 = vmatpush1.msra.mxu0 0.0
      %3846 = vmatprep.subr.mxu0 0.0
      %3847 = vmatpush1.msra.mxu0 0.0
      %3848 = vmatprep.subr.mxu0 0.0
      %3849 = vmatpush1.msra.mxu0 0.0
      %3850 = vmatprep.subr.mxu0 0.0
      %3851 = vmatpush1.msra.mxu0 0.0
      %3852 = vmatprep.subr.mxu0 0.0
      %3853 = vmatpush1.msra.mxu0 0.0
      %3854 = vmatprep.subr.mxu0 0.0
      %3855 = vmatpush1.msra.mxu0 0.0
      %3856 = vmatprep.subr.mxu0 0.0
      %3857 = vmatpush1.msra.mxu0 0.0
      %3858 = vmatprep.subr.mxu0 0.0
      %3859 = vmatpush1.msra.mxu0 0.0
      %3860 = vmatprep.subr.mxu0 0.0
      %3861 = vmatpush1.msra.mxu0 0.0
      %3862 = vmatprep.subr.mxu0 0.0
      %3863 = vmatpush1.msra.mxu0 0.0
      %3864 = vmatprep.subr.mxu0 0.0
      %3865 = vmatpush1.msra.mxu0 0.0
      %3866 = vmatprep.subr.mxu0 0.0
      %3867 = vmatpush1.msra.mxu0 0.0
      %3868 = vmatprep.subr.mxu0 0.0
      %3869 = vmatpush1.msra.mxu0 0.0
      %3870 = vmatprep.subr.mxu0 0.0
      %3871 = vmatpush1.msra.mxu0 0.0
      %3872 = vmatprep.subr.mxu0 0.0
      %3873 = vmatpush1.msra.mxu0 0.0
      %3874 = vmatprep.subr.mxu0 0.0
      %3875 = vmatpush1.msra.mxu0 0.0
      %3876 = vmatprep.mubr.f32.mxu0 0.0
      %3877 = vmatmul.mubr.f32.gmra.mrb[0].mxu0 %v3705
      %v3878 = vpop.f32.mrb[0].mxu0
      %v3879 = vadd.f32 0.0, %v3878
      %v3880 = vpop.f32.mrb[0].mxu0
      %3881 = vmatprep.mubr.f32.mxu0 0.0
      %3882 = vmatmul.mubr.f32.gmra.mrb[0].mxu0 %v3708
      %v3883 = vpop.f32.mrb[0].mxu0
      %v3884 = vadd.f32 0.0, %v3883
      %v3885 = vpop.f32.mrb[0].mxu0
      %3886 = vmatprep.mubr.f32.mxu0 0.0
      %3887 = vmatmul.mubr.f32.gmra.mrb[0].mxu0 %v3711
      %v3888 = vpop.f32.mrb[0].mxu0
      %v3889 = vadd.f32 0.0, %v3888
      %v3890 = vpop.f32.mrb[0].mxu0
      %3891 = vmatprep.mubr.f32.mxu0 0.0
      %3892 = vmatmul.mubr.f32.gmra.mrb[0].mxu0 %v3714
      %v3893 = vpop.f32.mrb[0].mxu0
      %v3894 = vadd.f32 0.0, %v3893
      %v3895 = vpop.f32.mrb[0].mxu0
      %3896 = vmatprep.mubr.f32.mxu0 0.0
      %3897 = vmatmul.mubr.f32.gmra.mrb[0].mxu0 %v3717
      %v3898 = vpop.f32.mrb[0].mxu0
      %v3899 = vadd.f32 0.0, %v3898
      %v3900 = vpop.f32.mrb[0].mxu0
      %3901 = vmatprep.mubr.f32.mxu0 0.0
      %3902 = vmatmul.mubr.f32.gmra.mrb[0].mxu0 %v3720
      %v3903 = vpop.f32.mrb[0].mxu0
      %v3904 = vadd.f32 0.0, %v3903
      %v3905 = vpop.f32.mrb[0].mxu0
      %3906 = vmatprep.mubr.f32.mxu0 0.0
      %3907 = vmatmul.mubr.f32.gmra.mrb[0].mxu0 %v3723
      %v3908 = vpop.f32.mrb[0].mxu0
      %v3909 = vadd.f32 0.0, %v3908
      %v3910 = vpop.f32.mrb[0].mxu0
      %3911 = vmatprep.mubr.f32.mxu0 0.0
      %3912 = vmatmul.mubr.f32.gmra.mrb[0].mxu0 %v3726
      %v3913 = vpop.f32.mrb[0].mxu0
      %v3914 = vadd.f32 0.0, %v3913
      %v3915 = vpop.f32.mrb[0].mxu0
      %3916 = vmatprep.mubr.f32.mxu0 0.0
      %3917 = vmatmul.mubr.f32.gmra.mrb[0].mxu0 %v3729
      %v3918 = vpop.f32.mrb[0].mxu0
      %v3919 = vadd.f32 0.0, %v3918
      %v3920 = vpop.f32.mrb[0].mxu0
      %3921 = vmatprep.mubr.f32.mxu0 0.0
      %3922 = vmatmul.mubr.f32.gmra.mrb[0].mxu0 %v3732
      %v3923 = vpop.f32.mrb[0].mxu0
      %v3924 = vadd.f32 0.0, %v3923
      %v3925 = vpop.f32.mrb[0].mxu0
      %3926 = vmatprep.mubr.f32.mxu0 0.0
      %3927 = vmatmul.mubr.f32.gmra.mrb[0].mxu0 %v3735
      %v3928 = vpop.f32.mrb[0].mxu0
      %v3929 = vadd.f32 0.0, %v3928
      %v3930 = vpop.f32.mrb[0].mxu0
      %3931 = vmatprep.mubr.f32.mxu0 0.0
      %3932 = vmatmul.mubr.f32.gmra.mrb[0].mxu0 %v3738
      %v3933 = vpop.f32.mrb[0].mxu0
      %v3934 = vadd.f32 0.0, %v3933
      %v3935 = vpop.f32.mrb[0].mxu0
      %3936 = vmatprep.mubr.f32.mxu0 0.0
      %3937 = vmatmul.mubr.f32.gmra.mrb[0].mxu0 %v3741
      %v3938 = vpop.f32.mrb[0].mxu0
      %v3939 = vadd.f32 0.0, %v3938
      %v3940 = vpop.f32.mrb[0].mxu0
      %3941 = vmatprep.mubr.f32.mxu0 0.0
      %3942 = vmatmul.mubr.f32.gmra.mrb[0].mxu0 %v3744
      %v3943 = vpop.f32.mrb[0].mxu0
      %v3944 = vadd.f32 0.0, %v3943
      %v3945 = vpop.f32.mrb[0].mxu0
      %3946 = vmatprep.mubr.f32.mxu0 0.0
      %3947 = vmatmul.mubr.f32.gmra.mrb[0].mxu0 %v3747
      %v3948 = vpop.f32.mrb[0].mxu0
      %v3949 = vadd.f32 0.0, %v3948
      %v3950 = vpop.f32.mrb[0].mxu0
      %3951 = vmatprep.mubr.f32.mxu0 0.0
      %3952 = vmatmul.mubr.f32.gmra.mrb[0].mxu0 %v3750
      %v3953 = vpop.f32.mrb[0].mxu0
      %v3954 = vadd.f32 0.0, %v3953
      %v3955 = vpop.f32.mrb[0].mxu0
      %3956 = vmatprep.mubr.f32.mxu0 0.0
      %3957 = vmatmul.mubr.f32.gmra.mrb[0].mxu0 %v3753
      %v3958 = vpop.f32.mrb[0].mxu0
      %v3959 = vadd.f32 0.0, %v3958
      %v3960 = vpop.f32.mrb[0].mxu0
      %3961 = vmatprep.mubr.f32.mxu0 0.0
      %3962 = vmatmul.mubr.f32.gmra.mrb[0].mxu0 %v3756
      %v3963 = vpop.f32.mrb[0].mxu0
      %v3964 = vadd.f32 0.0, %v3963
      %v3965 = vpop.f32.mrb[0].mxu0
      %3966 = vmatprep.mubr.f32.mxu0 0.0
      %3967 = vmatmul.mubr.f32.gmra.mrb[0].mxu0 %v3759
      %v3968 = vpop.f32.mrb[0].mxu0
      %v3969 = vadd.f32 0.0, %v3968
      %v3970 = vpop.f32.mrb[0].mxu0
      %3971 = vmatprep.mubr.f32.mxu0 0.0
      %3972 = vmatmul.mubr.f32.gmra.mrb[0].mxu0 %v3762
      %v3973 = vpop.f32.mrb[0].mxu0
      %v3974 = vadd.f32 0.0, %v3973
      %v3975 = vpop.f32.mrb[0].mxu0
      %3976 = vmatprep.mubr.f32.mxu0 0.0
      %3977 = vmatmul.mubr.f32.gmra.mrb[0].mxu0 %v3765
      %v3978 = vpop.f32.mrb[0].mxu0
      %v3979 = vadd.f32 0.0, %v3978
      %v3980 = vpop.f32.mrb[0].mxu0
      %3981 = vmatprep.mubr.f32.mxu0 0.0
      %3982 = vmatmul.mubr.f32.gmra.mrb[0].mxu0 %v3768
      %v3983 = vpop.f32.mrb[0].mxu0
      %v3984 = vadd.f32 0.0, %v3983
      %v3985 = vpop.f32.mrb[0].mxu0
      %3986 = vmatprep.mubr.f32.mxu0 0.0
      %3987 = vmatmul.mubr.f32.gmra.mrb[0].mxu0 %v3771
      %v3988 = vpop.f32.mrb[0].mxu0
      %v3989 = vadd.f32 0.0, %v3988
      %v3990 = vpop.f32.mrb[0].mxu0
      %3991 = vmatprep.mubr.f32.mxu0 0.0
      %3992 = vmatmul.mubr.f32.gmra.mrb[0].mxu0 %v3774
      %v3993 = vpop.f32.mrb[0].mxu0
      %v3994 = vadd.f32 0.0, %v3993
      %v3995 = vpop.f32.mrb[0].mxu0
      %3996 = vmatprep.mubr.f32.mxu0 0.0
      %3997 = vmatmul.mubr.f32.gmra.mrb[0].mxu0 %v3777
      %v3998 = vpop.f32.mrb[0].mxu0
      %v3999 = vadd.f32 0.0, %v3998
      %v4000 = vpop.f32.mrb[0].mxu0
      %4001 = vmatprep.mubr.f32.mxu0 0.0
      %4002 = vmatmul.mubr.f32.gmra.mrb[0].mxu0 %v3780
      %v4003 = vpop.f32.mrb[0].mxu0
      %v4004 = vadd.f32 0.0, %v4003
      %v4005 = vpop.f32.mrb[0].mxu0
      %4006 = vmatprep.mubr.f32.mxu0 0.0
      %4007 = vmatmul.mubr.f32.gmra.mrb[0].mxu0 %v3783
      %v4008 = vpop.f32.mrb[0].mxu0
      %v4009 = vadd.f32 0.0, %v4008
      %v4010 = vpop.f32.mrb[0].mxu0
      %4011 = vmatprep.mubr.f32.mxu0 0.0
      %4012 = vmatmul.mubr.f32.gmra.mrb[0].mxu0 %v3786
      %v4013 = vpop.f32.mrb[0].mxu0
      %v4014 = vadd.f32 0.0, %v4013
      %v4015 = vpop.f32.mrb[0].mxu0
      %4016 = vmatprep.mubr.f32.mxu0 0.0
      %4017 = vmatmul.mubr.f32.gmra.mrb[0].mxu0 %v3789
      %v4018 = vpop.f32.mrb[0].mxu0
      %v4019 = vadd.f32 0.0, %v4018
      %v4020 = vpop.f32.mrb[0].mxu0
      %4021 = vmatprep.mubr.f32.mxu0 0.0
      %4022 = vmatmul.mubr.f32.gmra.mrb[0].mxu0 %v3792
      %v4023 = vpop.f32.mrb[0].mxu0
      %v4024 = vadd.f32 0.0, %v4023
      %v4025 = vpop.f32.mrb[0].mxu0
      %4026 = vmatprep.mubr.f32.mxu0 0.0
      %4027 = vmatmul.mubr.f32.gmra.mrb[0].mxu0 %v3795
      %v4028 = vpop.f32.mrb[0].mxu0
      %v4029 = vadd.f32 0.0, %v4028
      %v4030 = vpop.f32.mrb[0].mxu0
      %4031 = vmatprep.mubr.f32.mxu0 0.0
      %4032 = vmatmul.mubr.f32.gmra.mrb[0].mxu0 %v3798
      %v4033 = vpop.f32.mrb[0].mxu0
      %v4034 = vadd.f32 0.0, %v4033
      %v4035 = vpop.f32.mrb[0].mxu0
      %4036 = vmatprep.mubr.f32.mxu0 0.0
      %4037 = vmatmul.mubr.f32.gmra.mrb[0].mxu0 %v3801
      %v4038 = vpop.f32.mrb[0].mxu0
      %v4039 = vadd.f32 0.0, %v4038
      %v4040 = vpop.f32.mrb[0].mxu0
      %4041 = vmatprep.mubr.f32.mxu0 0.0
      %4042 = vmatmul.mubr.f32.gmra.mrb[0].mxu0 %v3804
      %v4043 = vpop.f32.mrb[0].mxu0
      %v4044 = vadd.f32 0.0, %v4043
      %v4045 = vpop.f32.mrb[0].mxu0
      %4046 = vmatprep.mubr.f32.mxu0 0.0
      %4047 = vmatmul.mubr.f32.gmra.mrb[0].mxu0 %v3807
      %v4048 = vpop.f32.mrb[0].mxu0
      %v4049 = vadd.f32 0.0, %v4048
      %v4050 = vpop.f32.mrb[0].mxu0
      %4051 = vmatprep.mubr.f32.mxu0 0.0
      %4052 = vmatmul.mubr.f32.gmra.mrb[0].mxu0 %v3810
      %v4053 = vpop.f32.mrb[0].mxu0
      %v4054 = vadd.f32 0.0, %v4053
      %v4055 = vpop.f32.mrb[0].mxu0
      %4056 = vdwg.mxu0
      %v4057 = vadd.f32 %v3630, %v3879
      %v4058 = vadd.f32 %v3631, %v3884
      %v4059 = vadd.f32 %v3632, %v3889
      %v4060 = vadd.f32 %v3633, %v3894
      %v4061 = vadd.f32 %v3634, %v3899
      %v4062 = vadd.f32 %v3635, %v3904
      %v4063 = vadd.f32 %v3636, %v3909
      %v4064 = vadd.f32 %v3637, %v3914
      %v4065 = vadd.f32 %v3638, %v3919
      %v4066 = vadd.f32 %v3639, %v3924
      %v4067 = vadd.f32 %v3640, %v3929
      %v4068 = vadd.f32 %v3641, %v3934
      %v4069 = vadd.f32 %v3642, %v3939
      %v4070 = vadd.f32 %v3643, %v3944
      %v4071 = vadd.f32 %v3644, %v3949
      %v4072 = vadd.f32 %v3645, %v3954
      %v4073 = vadd.f32 %v3646, %v3959
      %v4074 = vadd.f32 %v3647, %v3964
      %v4075 = vadd.f32 %v3648, %v3969
      %v4076 = vadd.f32 %v3649, %v3974
      %v4077 = vadd.f32 %v3650, %v3979
      %v4078 = vadd.f32 %v3651, %v3984
      %v4079 = vadd.f32 %v3652, %v3989
      %v4080 = vadd.f32 %v3653, %v3994
      %v4081 = vadd.f32 %v3654, %v3999
      %v4082 = vadd.f32 %v3655, %v4004
      %v4083 = vadd.f32 %v3656, %v4009
      %v4084 = vadd.f32 %v3657, %v4014
      %v4085 = vadd.f32 %v3658, %v4019
      %v4086 = vadd.f32 %v3659, %v4024
      %v4087 = vadd.f32 %v3660, %v4029
      %v4088 = vadd.f32 %v3661, %v4034
      %v4089 = vadd.f32 %v3662, %v4039
      %v4090 = vadd.f32 %v3663, %v4044
      %v4091 = vadd.f32 %v3664, %v4049
      %v4092 = vadd.f32 %v3665, %v4054
      %4093 = vst [vmem:[%s204] sm:$0xff] %v4057
      %4094 = vst [vmem:[%s204 + $0x8] sm:$0xff] %v4058
      %4095 = vst [vmem:[%s204 + $0x10] sm:$0xff] %v4059
      %4096 = vst [vmem:[%s204 + $0x18] sm:$0xff] %v4060
      %4097 = vst [vmem:[%s204 + $0x20] sm:$0xff] %v4061
      %4098 = vst [vmem:[%s204 + $0x28] sm:$0xff] %v4062
      %4099 = vst [vmem:[%s204 + $0x30] sm:$0xff] %v4063
      %4100 = vst [vmem:[%s204 + $0x38] sm:$0xff] %v4064
      %4101 = vst [vmem:[%s204 + $0x40] sm:$0xff] %v4065
      %4102 = vst [vmem:[%s204 + $0x48] sm:$0xff] %v4066
      %4103 = vst [vmem:[%s204 + $0x50] sm:$0xff] %v4067
      %4104 = vst [vmem:[%s204 + $0x58] sm:$0xff] %v4068
      %4105 = vst [vmem:[%s204 + $0x60] sm:$0xff] %v4069
      %4106 = vst [vmem:[%s204 + $0x68] sm:$0xff] %v4070
      %4107 = vst [vmem:[%s204 + $0x70] sm:$0xff] %v4071
      %4108 = vst [vmem:[%s204 + $0x78] sm:$0xff] %v4072
      %4109 = vst [vmem:[%s204 + $0x80] sm:$0xff] %v4073
      %4110 = vst [vmem:[%s204 + $0x88] sm:$0xff] %v4074
      %4111 = vst [vmem:[%s204 + $0x90] sm:$0xff] %v4075
      %4112 = vst [vmem:[%s204 + $0x98] sm:$0xff] %v4076
      %4113 = vst [vmem:[%s204 + $0xa0] sm:$0xff] %v4077
      %4114 = vst [vmem:[%s204 + $0xa8] sm:$0xff] %v4078
      %4115 = vst [vmem:[%s204 + $0xb0] sm:$0xff] %v4079
      %4116 = vst [vmem:[%s204 + $0xb8] sm:$0xff] %v4080
      %4117 = vst [vmem:[%s204 + $0xc0] sm:$0xff] %v4081
      %4118 = vst [vmem:[%s204 + $0xc8] sm:$0xff] %v4082
      %4119 = vst [vmem:[%s204 + $0xd0] sm:$0xff] %v4083
      %4120 = vst [vmem:[%s204 + $0xd8] sm:$0xff] %v4084
      %4121 = vst [vmem:[%s204 + $0xe0] sm:$0xff] %v4085
      %4122 = vst [vmem:[%s204 + $0xe8] sm:$0xff] %v4086
      %4123 = vst [vmem:[%s204 + $0xf0] sm:$0xff] %v4087
      %4124 = vst [vmem:[%s204 + $0xf8] sm:$0xff] %v4088
      %4125 = vst [vmem:[%s204 + $0x100] sm:$0xff] %v4089
      %4126 = vst [vmem:[%s204 + $0x108] sm:$0xff] %v4090
      %4127 = vst [vmem:[%s204 + $0x110] sm:$0xff] %v4091
      %4128 = vst [vmem:[%s204 + $0x118] sm:$0xff] %v4092
      %v4129 = vld [vmem:[%s204] sm:$0xff]
      %v4130 = vld [vmem:[%s204 + $0x8] sm:$0xff]
      %v4131 = vld [vmem:[%s204 + $0x10] sm:$0xff]
      %v4132 = vld [vmem:[%s204 + $0x18] sm:$0xff]
      %v4133 = vld [vmem:[%s204 + $0x20] sm:$0xff]
      %v4134 = vld [vmem:[%s204 + $0x28] sm:$0xff]
      %v4135 = vld [vmem:[%s204 + $0x30] sm:$0xff]
      %v4136 = vld [vmem:[%s204 + $0x38] sm:$0xff]
      %v4137 = vld [vmem:[%s204 + $0x40] sm:$0xff]
      %v4138 = vld [vmem:[%s204 + $0x48] sm:$0xff]
      %v4139 = vld [vmem:[%s204 + $0x50] sm:$0xff]
      %v4140 = vld [vmem:[%s204 + $0x58] sm:$0xff]
      %v4141 = vld [vmem:[%s204 + $0x60] sm:$0xff]
      %v4142 = vld [vmem:[%s204 + $0x68] sm:$0xff]
      %v4143 = vld [vmem:[%s204 + $0x70] sm:$0xff]
      %v4144 = vld [vmem:[%s204 + $0x78] sm:$0xff]
      %v4145 = vld [vmem:[%s204 + $0x80] sm:$0xff]
      %v4146 = vld [vmem:[%s204 + $0x88] sm:$0xff]
      %v4147 = vld [vmem:[%s204 + $0x90] sm:$0xff]
      %v4148 = vld [vmem:[%s204 + $0x98] sm:$0xff]
      %v4149 = vld [vmem:[%s204 + $0xa0] sm:$0xff]
      %v4150 = vld [vmem:[%s204 + $0xa8] sm:$0xff]
      %v4151 = vld [vmem:[%s204 + $0xb0] sm:$0xff]
      %v4152 = vld [vmem:[%s204 + $0xb8] sm:$0xff]
      %v4153 = vld [vmem:[%s204 + $0xc0] sm:$0xff]
      %v4154 = vld [vmem:[%s204 + $0xc8] sm:$0xff]
      %v4155 = vld [vmem:[%s204 + $0xd0] sm:$0xff]
      %v4156 = vld [vmem:[%s204 + $0xd8] sm:$0xff]
      %v4157 = vld [vmem:[%s204 + $0xe0] sm:$0xff]
      %v4158 = vld [vmem:[%s204 + $0xe8] sm:$0xff]
      %v4159 = vld [vmem:[%s204 + $0xf0] sm:$0xff]
      %v4160 = vld [vmem:[%s204 + $0xf8] sm:$0xff]
      %v4161 = vld [vmem:[%s204 + $0x100] sm:$0xff]
      %v4162 = vld [vmem:[%s204 + $0x108] sm:$0xff]
      %v4163 = vld [vmem:[%s204 + $0x110] sm:$0xff]
      %v4164 = vld [vmem:[%s204 + $0x118] sm:$0xff]
      %v4165 = vld [vmem:[%s199 + $0x26] sm:$0xff]
      %v4166 = vld [vmem:[%s199 + $0x2e] sm:$0xff]
      %v4167 = vld [vmem:[%s199 + $0x36] sm:$0xff]
      %v4168 = vld [vmem:[%s199 + $0x3e] sm:$0xff]
      %v4169 = vld [vmem:[%s199 + $0x46] sm:$0xff]
      %v4170 = vld [vmem:[%s199 + $0x4e] sm:$0xff]
      %v4171 = vld [vmem:[%s199 + $0x56] sm:$0xff]
      %v4172 = vld [vmem:[%s199 + $0x5e] sm:$0xff]
      %v4173 = vld [vmem:[%s199 + $0x66] sm:$0xff]
      %v4174 = vld [vmem:[%s199 + $0x6e] sm:$0xff]
      %v4175 = vld [vmem:[%s199 + $0x76] sm:$0xff]
      %v4176 = vld [vmem:[%s199 + $0x7e] sm:$0xff]
      %v4177 = vld [vmem:[%s199 + $0x86] sm:$0xff]
      %v4178 = vld [vmem:[%s199 + $0x8e] sm:$0xff]
      %v4179 = vld [vmem:[%s199 + $0x96] sm:$0xff]
      %v4180 = vld [vmem:[%s199 + $0x9e] sm:$0xff]
      %v4181 = vld [vmem:[%s199 + $0xa6] sm:$0xff]
      %v4182 = vld [vmem:[%s199 + $0xae] sm:$0xff]
      %v4183 = vld [vmem:[%s199 + $0xb6] sm:$0xff]
      %v4184 = vld [vmem:[%s199 + $0xbe] sm:$0xff]
      %v4185 = vld [vmem:[%s199 + $0xc6] sm:$0xff]
      %v4186 = vld [vmem:[%s199 + $0xce] sm:$0xff]
      %v4187 = vld [vmem:[%s199 + $0xd6] sm:$0xff]
      %v4188 = vld [vmem:[%s199 + $0xde] sm:$0xff]
      %v4189 = vld [vmem:[%s199 + $0xe6] sm:$0xff]
      %v4190 = vld [vmem:[%s199 + $0xee] sm:$0xff]
      %v4191 = vld [vmem:[%s199 + $0xf6] sm:$0xff]
      %v4192 = vld [vmem:[%s199 + $0xfe] sm:$0xff]
      %v4193 = vld [vmem:[%s199 + $0x106] sm:$0xff]
      %v4194 = vld [vmem:[%s199 + $0x10e] sm:$0xff]
      %v4195 = vld [vmem:[%s199 + $0x116] sm:$0xff]
      %v4196 = vld [vmem:[%s199 + $0x11e] sm:$0xff]
      %v4197 = vld [vmem:[%s199 + $0x126] sm:$0xff]
      %v4198 = vld [vmem:[%s199 + $0x12e] sm:$0xff]
      %v4199 = vld [vmem:[%s199 + $0x136] sm:$0xff]
      %v4200 = vld [vmem:[%s199 + $0x13e] sm:$0xff]
      %s4201 = scalar_lea.vmem %s1, 64
      %v4202 = vld [vmem:[%s4201] sm:$0xff]
      %v4204 = vsel %vm246, %v4165, 0
      %v4207 = vsel %vm246, %v4166, 0
      %v4210 = vsel %vm246, %v4167, 0
      %v4213 = vsel %vm246, %v4168, 0
      %v4216 = vsel %vm246, %v4169, 0
      %v4219 = vsel %vm246, %v4170, 0
      %v4222 = vsel %vm246, %v4171, 0
      %v4225 = vsel %vm246, %v4172, 0
      %v4228 = vsel %vm246, %v4173, 0
      %v4231 = vsel %vm246, %v4174, 0
      %v4234 = vsel %vm246, %v4175, 0
      %v4237 = vsel %vm246, %v4176, 0
      %v4240 = vsel %vm246, %v4177, 0
      %v4243 = vsel %vm246, %v4178, 0
      %v4246 = vsel %vm246, %v4179, 0
      %v4249 = vsel %vm246, %v4180, 0
      %v4252 = vsel %vm246, %v4181, 0
      %v4255 = vsel %vm246, %v4182, 0
      %v4258 = vsel %vm246, %v4183, 0
      %v4261 = vsel %vm246, %v4184, 0
      %v4264 = vsel %vm246, %v4185, 0
      %v4267 = vsel %vm246, %v4186, 0
      %v4270 = vsel %vm246, %v4187, 0
      %v4273 = vsel %vm246, %v4188, 0
      %v4276 = vsel %vm246, %v4189, 0
      %v4279 = vsel %vm246, %v4190, 0
      %v4282 = vsel %vm246, %v4191, 0
      %v4285 = vsel %vm246, %v4192, 0
      %v4288 = vsel %vm246, %v4193, 0
      %v4291 = vsel %vm246, %v4194, 0
      %v4294 = vsel %vm246, %v4195, 0
      %v4297 = vsel %vm246, %v4196, 0
      %v4300 = vsel %vm246, %v4197, 0
      %v4303 = vsel %vm246, %v4198, 0
      %v4306 = vsel %vm246, %v4199, 0
      %v4309 = vsel %vm246, %v4200, 0
      %4311 = vmatprep.subr.mxu0 0.0
      %4312 = vmatpush1.msra.mxu0 %v4202
      %4313 = vmatprep.subr.mxu0 0.0
      %4314 = vmatpush1.msra.mxu0 0.0
      %4315 = vmatprep.subr.mxu0 0.0
      %4316 = vmatpush1.msra.mxu0 0.0
      %4317 = vmatprep.subr.mxu0 0.0
      %4318 = vmatpush1.msra.mxu0 0.0
      %4319 = vmatprep.subr.mxu0 0.0
      %4320 = vmatpush1.msra.mxu0 0.0
      %4321 = vmatprep.subr.mxu0 0.0
      %4322 = vmatpush1.msra.mxu0 0.0
      %4323 = vmatprep.subr.mxu0 0.0
      %4324 = vmatpush1.msra.mxu0 0.0
      %4325 = vmatprep.subr.mxu0 0.0
      %4326 = vmatpush1.msra.mxu0 0.0
      %4327 = vmatprep.subr.mxu0 0.0
      %4328 = vmatpush1.msra.mxu0 0.0
      %4329 = vmatprep.subr.mxu0 0.0
      %4330 = vmatpush1.msra.mxu0 0.0
      %4331 = vmatprep.subr.mxu0 0.0
      %4332 = vmatpush1.msra.mxu0 0.0
      %4333 = vmatprep.subr.mxu0 0.0
      %4334 = vmatpush1.msra.mxu0 0.0
      %4335 = vmatprep.subr.mxu0 0.0
      %4336 = vmatpush1.msra.mxu0 0.0
      %4337 = vmatprep.subr.mxu0 0.0
      %4338 = vmatpush1.msra.mxu0 0.0
      %4339 = vmatprep.subr.mxu0 0.0
      %4340 = vmatpush1.msra.mxu0 0.0
      %4341 = vmatprep.subr.mxu0 0.0
      %4342 = vmatpush1.msra.mxu0 0.0
      %4343 = vmatprep.subr.mxu0 0.0
      %4344 = vmatpush1.msra.mxu0 0.0
      %4345 = vmatprep.subr.mxu0 0.0
      %4346 = vmatpush1.msra.mxu0 0.0
      %4347 = vmatprep.subr.mxu0 0.0
      %4348 = vmatpush1.msra.mxu0 0.0
      %4349 = vmatprep.subr.mxu0 0.0
      %4350 = vmatpush1.msra.mxu0 0.0
      %4351 = vmatprep.subr.mxu0 0.0
      %4352 = vmatpush1.msra.mxu0 0.0
      %4353 = vmatprep.subr.mxu0 0.0
      %4354 = vmatpush1.msra.mxu0 0.0
      %4355 = vmatprep.subr.mxu0 0.0
      %4356 = vmatpush1.msra.mxu0 0.0
      %4357 = vmatprep.subr.mxu0 0.0
      %4358 = vmatpush1.msra.mxu0 0.0
      %4359 = vmatprep.subr.mxu0 0.0
      %4360 = vmatpush1.msra.mxu0 0.0
      %4361 = vmatprep.subr.mxu0 0.0
      %4362 = vmatpush1.msra.mxu0 0.0
      %4363 = vmatprep.subr.mxu0 0.0
      %4364 = vmatpush1.msra.mxu0 0.0
      %4365 = vmatprep.subr.mxu0 0.0
      %4366 = vmatpush1.msra.mxu0 0.0
      %4367 = vmatprep.subr.mxu0 0.0
      %4368 = vmatpush1.msra.mxu0 0.0
      %4369 = vmatprep.subr.mxu0 0.0
      %4370 = vmatpush1.msra.mxu0 0.0
      %4371 = vmatprep.subr.mxu0 0.0
      %4372 = vmatpush1.msra.mxu0 0.0
      %4373 = vmatprep.subr.mxu0 0.0
      %4374 = vmatpush1.msra.mxu0 0.0
      %4375 = vmatprep.mubr.f32.mxu0 0.0
      %4376 = vmatmul.mubr.f32.gmra.mrb[0].mxu0 %v4204
      %v4377 = vpop.f32.mrb[0].mxu0
      %v4378 = vadd.f32 0.0, %v4377
      %v4379 = vpop.f32.mrb[0].mxu0
      %4380 = vmatprep.mubr.f32.mxu0 0.0
      %4381 = vmatmul.mubr.f32.gmra.mrb[0].mxu0 %v4207
      %v4382 = vpop.f32.mrb[0].mxu0
      %v4383 = vadd.f32 0.0, %v4382
      %v4384 = vpop.f32.mrb[0].mxu0
      %4385 = vmatprep.mubr.f32.mxu0 0.0
      %4386 = vmatmul.mubr.f32.gmra.mrb[0].mxu0 %v4210
      %v4387 = vpop.f32.mrb[0].mxu0
      %v4388 = vadd.f32 0.0, %v4387
      %v4389 = vpop.f32.mrb[0].mxu0
      %4390 = vmatprep.mubr.f32.mxu0 0.0
      %4391 = vmatmul.mubr.f32.gmra.mrb[0].mxu0 %v4213
      %v4392 = vpop.f32.mrb[0].mxu0
      %v4393 = vadd.f32 0.0, %v4392
      %v4394 = vpop.f32.mrb[0].mxu0
      %4395 = vmatprep.mubr.f32.mxu0 0.0
      %4396 = vmatmul.mubr.f32.gmra.mrb[0].mxu0 %v4216
      %v4397 = vpop.f32.mrb[0].mxu0
      %v4398 = vadd.f32 0.0, %v4397
      %v4399 = vpop.f32.mrb[0].mxu0
      %4400 = vmatprep.mubr.f32.mxu0 0.0
      %4401 = vmatmul.mubr.f32.gmra.mrb[0].mxu0 %v4219
      %v4402 = vpop.f32.mrb[0].mxu0
      %v4403 = vadd.f32 0.0, %v4402
      %v4404 = vpop.f32.mrb[0].mxu0
      %4405 = vmatprep.mubr.f32.mxu0 0.0
      %4406 = vmatmul.mubr.f32.gmra.mrb[0].mxu0 %v4222
      %v4407 = vpop.f32.mrb[0].mxu0
      %v4408 = vadd.f32 0.0, %v4407
      %v4409 = vpop.f32.mrb[0].mxu0
      %4410 = vmatprep.mubr.f32.mxu0 0.0
      %4411 = vmatmul.mubr.f32.gmra.mrb[0].mxu0 %v4225
      %v4412 = vpop.f32.mrb[0].mxu0
      %v4413 = vadd.f32 0.0, %v4412
      %v4414 = vpop.f32.mrb[0].mxu0
      %4415 = vmatprep.mubr.f32.mxu0 0.0
      %4416 = vmatmul.mubr.f32.gmra.mrb[0].mxu0 %v4228
      %v4417 = vpop.f32.mrb[0].mxu0
      %v4418 = vadd.f32 0.0, %v4417
      %v4419 = vpop.f32.mrb[0].mxu0
      %4420 = vmatprep.mubr.f32.mxu0 0.0
      %4421 = vmatmul.mubr.f32.gmra.mrb[0].mxu0 %v4231
      %v4422 = vpop.f32.mrb[0].mxu0
      %v4423 = vadd.f32 0.0, %v4422
      %v4424 = vpop.f32.mrb[0].mxu0
      %4425 = vmatprep.mubr.f32.mxu0 0.0
      %4426 = vmatmul.mubr.f32.gmra.mrb[0].mxu0 %v4234
      %v4427 = vpop.f32.mrb[0].mxu0
      %v4428 = vadd.f32 0.0, %v4427
      %v4429 = vpop.f32.mrb[0].mxu0
      %4430 = vmatprep.mubr.f32.mxu0 0.0
      %4431 = vmatmul.mubr.f32.gmra.mrb[0].mxu0 %v4237
      %v4432 = vpop.f32.mrb[0].mxu0
      %v4433 = vadd.f32 0.0, %v4432
      %v4434 = vpop.f32.mrb[0].mxu0
      %4435 = vmatprep.mubr.f32.mxu0 0.0
      %4436 = vmatmul.mubr.f32.gmra.mrb[0].mxu0 %v4240
      %v4437 = vpop.f32.mrb[0].mxu0
      %v4438 = vadd.f32 0.0, %v4437
      %v4439 = vpop.f32.mrb[0].mxu0
      %4440 = vmatprep.mubr.f32.mxu0 0.0
      %4441 = vmatmul.mubr.f32.gmra.mrb[0].mxu0 %v4243
      %v4442 = vpop.f32.mrb[0].mxu0
      %v4443 = vadd.f32 0.0, %v4442
      %v4444 = vpop.f32.mrb[0].mxu0
      %4445 = vmatprep.mubr.f32.mxu0 0.0
      %4446 = vmatmul.mubr.f32.gmra.mrb[0].mxu0 %v4246
      %v4447 = vpop.f32.mrb[0].mxu0
      %v4448 = vadd.f32 0.0, %v4447
      %v4449 = vpop.f32.mrb[0].mxu0
      %4450 = vmatprep.mubr.f32.mxu0 0.0
      %4451 = vmatmul.mubr.f32.gmra.mrb[0].mxu0 %v4249
      %v4452 = vpop.f32.mrb[0].mxu0
      %v4453 = vadd.f32 0.0, %v4452
      %v4454 = vpop.f32.mrb[0].mxu0
      %4455 = vmatprep.mubr.f32.mxu0 0.0
      %4456 = vmatmul.mubr.f32.gmra.mrb[0].mxu0 %v4252
      %v4457 = vpop.f32.mrb[0].mxu0
      %v4458 = vadd.f32 0.0, %v4457
      %v4459 = vpop.f32.mrb[0].mxu0
      %4460 = vmatprep.mubr.f32.mxu0 0.0
      %4461 = vmatmul.mubr.f32.gmra.mrb[0].mxu0 %v4255
      %v4462 = vpop.f32.mrb[0].mxu0
      %v4463 = vadd.f32 0.0, %v4462
      %v4464 = vpop.f32.mrb[0].mxu0
      %4465 = vmatprep.mubr.f32.mxu0 0.0
      %4466 = vmatmul.mubr.f32.gmra.mrb[0].mxu0 %v4258
      %v4467 = vpop.f32.mrb[0].mxu0
      %v4468 = vadd.f32 0.0, %v4467
      %v4469 = vpop.f32.mrb[0].mxu0
      %4470 = vmatprep.mubr.f32.mxu0 0.0
      %4471 = vmatmul.mubr.f32.gmra.mrb[0].mxu0 %v4261
      %v4472 = vpop.f32.mrb[0].mxu0
      %v4473 = vadd.f32 0.0, %v4472
      %v4474 = vpop.f32.mrb[0].mxu0
      %4475 = vmatprep.mubr.f32.mxu0 0.0
      %4476 = vmatmul.mubr.f32.gmra.mrb[0].mxu0 %v4264
      %v4477 = vpop.f32.mrb[0].mxu0
      %v4478 = vadd.f32 0.0, %v4477
      %v4479 = vpop.f32.mrb[0].mxu0
      %4480 = vmatprep.mubr.f32.mxu0 0.0
      %4481 = vmatmul.mubr.f32.gmra.mrb[0].mxu0 %v4267
      %v4482 = vpop.f32.mrb[0].mxu0
      %v4483 = vadd.f32 0.0, %v4482
      %v4484 = vpop.f32.mrb[0].mxu0
      %4485 = vmatprep.mubr.f32.mxu0 0.0
      %4486 = vmatmul.mubr.f32.gmra.mrb[0].mxu0 %v4270
      %v4487 = vpop.f32.mrb[0].mxu0
      %v4488 = vadd.f32 0.0, %v4487
      %v4489 = vpop.f32.mrb[0].mxu0
      %4490 = vmatprep.mubr.f32.mxu0 0.0
      %4491 = vmatmul.mubr.f32.gmra.mrb[0].mxu0 %v4273
      %v4492 = vpop.f32.mrb[0].mxu0
      %v4493 = vadd.f32 0.0, %v4492
      %v4494 = vpop.f32.mrb[0].mxu0
      %4495 = vmatprep.mubr.f32.mxu0 0.0
      %4496 = vmatmul.mubr.f32.gmra.mrb[0].mxu0 %v4276
      %v4497 = vpop.f32.mrb[0].mxu0
      %v4498 = vadd.f32 0.0, %v4497
      %v4499 = vpop.f32.mrb[0].mxu0
      %4500 = vmatprep.mubr.f32.mxu0 0.0
      %4501 = vmatmul.mubr.f32.gmra.mrb[0].mxu0 %v4279
      %v4502 = vpop.f32.mrb[0].mxu0
      %v4503 = vadd.f32 0.0, %v4502
      %v4504 = vpop.f32.mrb[0].mxu0
      %4505 = vmatprep.mubr.f32.mxu0 0.0
      %4506 = vmatmul.mubr.f32.gmra.mrb[0].mxu0 %v4282
      %v4507 = vpop.f32.mrb[0].mxu0
      %v4508 = vadd.f32 0.0, %v4507
      %v4509 = vpop.f32.mrb[0].mxu0
      %4510 = vmatprep.mubr.f32.mxu0 0.0
      %4511 = vmatmul.mubr.f32.gmra.mrb[0].mxu0 %v4285
      %v4512 = vpop.f32.mrb[0].mxu0
      %v4513 = vadd.f32 0.0, %v4512
      %v4514 = vpop.f32.mrb[0].mxu0
      %4515 = vmatprep.mubr.f32.mxu0 0.0
      %4516 = vmatmul.mubr.f32.gmra.mrb[0].mxu0 %v4288
      %v4517 = vpop.f32.mrb[0].mxu0
      %v4518 = vadd.f32 0.0, %v4517
      %v4519 = vpop.f32.mrb[0].mxu0
      %4520 = vmatprep.mubr.f32.mxu0 0.0
      %4521 = vmatmul.mubr.f32.gmra.mrb[0].mxu0 %v4291
      %v4522 = vpop.f32.mrb[0].mxu0
      %v4523 = vadd.f32 0.0, %v4522
      %v4524 = vpop.f32.mrb[0].mxu0
      %4525 = vmatprep.mubr.f32.mxu0 0.0
      %4526 = vmatmul.mubr.f32.gmra.mrb[0].mxu0 %v4294
      %v4527 = vpop.f32.mrb[0].mxu0
      %v4528 = vadd.f32 0.0, %v4527
      %v4529 = vpop.f32.mrb[0].mxu0
      %4530 = vmatprep.mubr.f32.mxu0 0.0
      %4531 = vmatmul.mubr.f32.gmra.mrb[0].mxu0 %v4297
      %v4532 = vpop.f32.mrb[0].mxu0
      %v4533 = vadd.f32 0.0, %v4532
      %v4534 = vpop.f32.mrb[0].mxu0
      %4535 = vmatprep.mubr.f32.mxu0 0.0
      %4536 = vmatmul.mubr.f32.gmra.mrb[0].mxu0 %v4300
      %v4537 = vpop.f32.mrb[0].mxu0
      %v4538 = vadd.f32 0.0, %v4537
      %v4539 = vpop.f32.mrb[0].mxu0
      %4540 = vmatprep.mubr.f32.mxu0 0.0
      %4541 = vmatmul.mubr.f32.gmra.mrb[0].mxu0 %v4303
      %v4542 = vpop.f32.mrb[0].mxu0
      %v4543 = vadd.f32 0.0, %v4542
      %v4544 = vpop.f32.mrb[0].mxu0
      %4545 = vmatprep.mubr.f32.mxu0 0.0
      %4546 = vmatmul.mubr.f32.gmra.mrb[0].mxu0 %v4306
      %v4547 = vpop.f32.mrb[0].mxu0
      %v4548 = vadd.f32 0.0, %v4547
      %v4549 = vpop.f32.mrb[0].mxu0
      %4550 = vmatprep.mubr.f32.mxu0 0.0
      %4551 = vmatmul.mubr.f32.gmra.mrb[0].mxu0 %v4309
      %v4552 = vpop.f32.mrb[0].mxu0
      %v4553 = vadd.f32 0.0, %v4552
      %v4554 = vpop.f32.mrb[0].mxu0
      %4555 = vdwg.mxu0
      %v4556 = vadd.f32 %v4129, %v4378
      %v4557 = vadd.f32 %v4130, %v4383
      %v4558 = vadd.f32 %v4131, %v4388
      %v4559 = vadd.f32 %v4132, %v4393
      %v4560 = vadd.f32 %v4133, %v4398
      %v4561 = vadd.f32 %v4134, %v4403
      %v4562 = vadd.f32 %v4135, %v4408
      %v4563 = vadd.f32 %v4136, %v4413
      %v4564 = vadd.f32 %v4137, %v4418
      %v4565 = vadd.f32 %v4138, %v4423
      %v4566 = vadd.f32 %v4139, %v4428
      %v4567 = vadd.f32 %v4140, %v4433
      %v4568 = vadd.f32 %v4141, %v4438
      %v4569 = vadd.f32 %v4142, %v4443
      %v4570 = vadd.f32 %v4143, %v4448
      %v4571 = vadd.f32 %v4144, %v4453
      %v4572 = vadd.f32 %v4145, %v4458
      %v4573 = vadd.f32 %v4146, %v4463
      %v4574 = vadd.f32 %v4147, %v4468
      %v4575 = vadd.f32 %v4148, %v4473
      %v4576 = vadd.f32 %v4149, %v4478
      %v4577 = vadd.f32 %v4150, %v4483
      %v4578 = vadd.f32 %v4151, %v4488
      %v4579 = vadd.f32 %v4152, %v4493
      %v4580 = vadd.f32 %v4153, %v4498
      %v4581 = vadd.f32 %v4154, %v4503
      %v4582 = vadd.f32 %v4155, %v4508
      %v4583 = vadd.f32 %v4156, %v4513
      %v4584 = vadd.f32 %v4157, %v4518
      %v4585 = vadd.f32 %v4158, %v4523
      %v4586 = vadd.f32 %v4159, %v4528
      %v4587 = vadd.f32 %v4160, %v4533
      %v4588 = vadd.f32 %v4161, %v4538
      %v4589 = vadd.f32 %v4162, %v4543
      %v4590 = vadd.f32 %v4163, %v4548
      %v4591 = vadd.f32 %v4164, %v4553
      %4592 = vst [vmem:[%s204] sm:$0xff] %v4556
      %4593 = vst [vmem:[%s204 + $0x8] sm:$0xff] %v4557
      %4594 = vst [vmem:[%s204 + $0x10] sm:$0xff] %v4558
      %4595 = vst [vmem:[%s204 + $0x18] sm:$0xff] %v4559
      %4596 = vst [vmem:[%s204 + $0x20] sm:$0xff] %v4560
      %4597 = vst [vmem:[%s204 + $0x28] sm:$0xff] %v4561
      %4598 = vst [vmem:[%s204 + $0x30] sm:$0xff] %v4562
      %4599 = vst [vmem:[%s204 + $0x38] sm:$0xff] %v4563
      %4600 = vst [vmem:[%s204 + $0x40] sm:$0xff] %v4564
      %4601 = vst [vmem:[%s204 + $0x48] sm:$0xff] %v4565
      %4602 = vst [vmem:[%s204 + $0x50] sm:$0xff] %v4566
      %4603 = vst [vmem:[%s204 + $0x58] sm:$0xff] %v4567
      %4604 = vst [vmem:[%s204 + $0x60] sm:$0xff] %v4568
      %4605 = vst [vmem:[%s204 + $0x68] sm:$0xff] %v4569
      %4606 = vst [vmem:[%s204 + $0x70] sm:$0xff] %v4570
      %4607 = vst [vmem:[%s204 + $0x78] sm:$0xff] %v4571
      %4608 = vst [vmem:[%s204 + $0x80] sm:$0xff] %v4572
      %4609 = vst [vmem:[%s204 + $0x88] sm:$0xff] %v4573
      %4610 = vst [vmem:[%s204 + $0x90] sm:$0xff] %v4574
      %4611 = vst [vmem:[%s204 + $0x98] sm:$0xff] %v4575
      %4612 = vst [vmem:[%s204 + $0xa0] sm:$0xff] %v4576
      %4613 = vst [vmem:[%s204 + $0xa8] sm:$0xff] %v4577
      %4614 = vst [vmem:[%s204 + $0xb0] sm:$0xff] %v4578
      %4615 = vst [vmem:[%s204 + $0xb8] sm:$0xff] %v4579
      %4616 = vst [vmem:[%s204 + $0xc0] sm:$0xff] %v4580
      %4617 = vst [vmem:[%s204 + $0xc8] sm:$0xff] %v4581
      %4618 = vst [vmem:[%s204 + $0xd0] sm:$0xff] %v4582
      %4619 = vst [vmem:[%s204 + $0xd8] sm:$0xff] %v4583
      %4620 = vst [vmem:[%s204 + $0xe0] sm:$0xff] %v4584
      %4621 = vst [vmem:[%s204 + $0xe8] sm:$0xff] %v4585
      %4622 = vst [vmem:[%s204 + $0xf0] sm:$0xff] %v4586
      %4623 = vst [vmem:[%s204 + $0xf8] sm:$0xff] %v4587
      %4624 = vst [vmem:[%s204 + $0x100] sm:$0xff] %v4588
      %4625 = vst [vmem:[%s204 + $0x108] sm:$0xff] %v4589
      %4626 = vst [vmem:[%s204 + $0x110] sm:$0xff] %v4590
      %4627 = vst [vmem:[%s204 + $0x118] sm:$0xff] %v4591
      %v4628 = vld [vmem:[%s204] sm:$0xff]
      %v4629 = vld [vmem:[%s204 + $0x8] sm:$0xff]
      %v4630 = vld [vmem:[%s204 + $0x10] sm:$0xff]
      %v4631 = vld [vmem:[%s204 + $0x18] sm:$0xff]
      %v4632 = vld [vmem:[%s204 + $0x20] sm:$0xff]
      %v4633 = vld [vmem:[%s204 + $0x28] sm:$0xff]
      %v4634 = vld [vmem:[%s204 + $0x30] sm:$0xff]
      %v4635 = vld [vmem:[%s204 + $0x38] sm:$0xff]
      %v4636 = vld [vmem:[%s204 + $0x40] sm:$0xff]
      %v4637 = vld [vmem:[%s204 + $0x48] sm:$0xff]
      %v4638 = vld [vmem:[%s204 + $0x50] sm:$0xff]
      %v4639 = vld [vmem:[%s204 + $0x58] sm:$0xff]
      %v4640 = vld [vmem:[%s204 + $0x60] sm:$0xff]
      %v4641 = vld [vmem:[%s204 + $0x68] sm:$0xff]
      %v4642 = vld [vmem:[%s204 + $0x70] sm:$0xff]
      %v4643 = vld [vmem:[%s204 + $0x78] sm:$0xff]
      %v4644 = vld [vmem:[%s204 + $0x80] sm:$0xff]
      %v4645 = vld [vmem:[%s204 + $0x88] sm:$0xff]
      %v4646 = vld [vmem:[%s204 + $0x90] sm:$0xff]
      %v4647 = vld [vmem:[%s204 + $0x98] sm:$0xff]
      %v4648 = vld [vmem:[%s204 + $0xa0] sm:$0xff]
      %v4649 = vld [vmem:[%s204 + $0xa8] sm:$0xff]
      %v4650 = vld [vmem:[%s204 + $0xb0] sm:$0xff]
      %v4651 = vld [vmem:[%s204 + $0xb8] sm:$0xff]
      %v4652 = vld [vmem:[%s204 + $0xc0] sm:$0xff]
      %v4653 = vld [vmem:[%s204 + $0xc8] sm:$0xff]
      %v4654 = vld [vmem:[%s204 + $0xd0] sm:$0xff]
      %v4655 = vld [vmem:[%s204 + $0xd8] sm:$0xff]
      %v4656 = vld [vmem:[%s204 + $0xe0] sm:$0xff]
      %v4657 = vld [vmem:[%s204 + $0xe8] sm:$0xff]
      %v4658 = vld [vmem:[%s204 + $0xf0] sm:$0xff]
      %v4659 = vld [vmem:[%s204 + $0xf8] sm:$0xff]
      %v4660 = vld [vmem:[%s204 + $0x100] sm:$0xff]
      %v4661 = vld [vmem:[%s204 + $0x108] sm:$0xff]
      %v4662 = vld [vmem:[%s204 + $0x110] sm:$0xff]
      %v4663 = vld [vmem:[%s204 + $0x118] sm:$0xff]
      %v4664 = vld [vmem:[%s2] sm:$0xff]
      %v4665 = vld [vmem:[%s2 + $0x8] sm:$0xff]
      %v4666 = vld [vmem:[%s2 + $0x10] sm:$0xff]
      %v4667 = vld [vmem:[%s2 + $0x18] sm:$0xff]
      %v4668 = vld [vmem:[%s2 + $0x20] sm:$0xff]
      %v4669 = vld [vmem:[%s2 + $0x28] sm:$0xff]
      %v4670 = vld [vmem:[%s2 + $0x30] sm:$0xff]
      %v4671 = vld [vmem:[%s2 + $0x38] sm:$0xff]
      %v4672 = vld [vmem:[%s2 + $0x40] sm:$0xff]
      %v4673 = vld [vmem:[%s2 + $0x48] sm:$0xff]
      %v4674 = vld [vmem:[%s2 + $0x50] sm:$0xff]
      %v4675 = vld [vmem:[%s2 + $0x58] sm:$0xff]
      %v4676 = vld [vmem:[%s2 + $0x60] sm:$0xff]
      %v4677 = vld [vmem:[%s2 + $0x68] sm:$0xff]
      %v4678 = vld [vmem:[%s2 + $0x70] sm:$0xff]
      %v4679 = vld [vmem:[%s2 + $0x78] sm:$0xff]
      %v4680 = vld [vmem:[%s2 + $0x80] sm:$0xff]
      %v4681 = vld [vmem:[%s2 + $0x88] sm:$0xff]
      %v4682 = vld [vmem:[%s2 + $0x90] sm:$0xff]
      %v4683 = vld [vmem:[%s2 + $0x98] sm:$0xff]
      %v4684 = vld [vmem:[%s2 + $0xa0] sm:$0xff]
      %v4685 = vld [vmem:[%s2 + $0xa8] sm:$0xff]
      %v4686 = vld [vmem:[%s2 + $0xb0] sm:$0xff]
      %v4687 = vld [vmem:[%s2 + $0xb8] sm:$0xff]
      %v4688 = vld [vmem:[%s2 + $0xc0] sm:$0xff]
      %v4689 = vld [vmem:[%s2 + $0xc8] sm:$0xff]
      %v4690 = vld [vmem:[%s2 + $0xd0] sm:$0xff]
      %v4691 = vld [vmem:[%s2 + $0xd8] sm:$0xff]
      %v4692 = vld [vmem:[%s2 + $0xe0] sm:$0xff]
      %v4693 = vld [vmem:[%s2 + $0xe8] sm:$0xff]
      %v4694 = vld [vmem:[%s2 + $0xf0] sm:$0xff]
      %v4695 = vld [vmem:[%s2 + $0xf8] sm:$0xff]
      %v4696 = vld [vmem:[%s2 + $0x100] sm:$0xff]
      %v4697 = vld [vmem:[%s2 + $0x108] sm:$0xff]
      %v4698 = vld [vmem:[%s2 + $0x110] sm:$0xff]
      %v4699 = vld [vmem:[%s2 + $0x118] sm:$0xff]
      %4701 = vset.pattern.permute.xlu0 0
      %4702 = vperm.xlu0 %4701, %v4664
      %v4703 = vpop.permute.xlu0 %4702
      %4706 = vset.pattern.permute.xlu0 0
      %4707 = vperm.xlu0 %4706, %v4665
      %v4708 = vpop.permute.xlu0 %4707
      %4711 = vset.pattern.permute.xlu0 0
      %4712 = vperm.xlu0 %4711, %v4666
      %v4713 = vpop.permute.xlu0 %4712
      %4716 = vset.pattern.permute.xlu0 0
      %4717 = vperm.xlu0 %4716, %v4667
      %v4718 = vpop.permute.xlu0 %4717
      %4721 = vset.pattern.permute.xlu0 0
      %4722 = vperm.xlu0 %4721, %v4668
      %v4723 = vpop.permute.xlu0 %4722
      %4726 = vset.pattern.permute.xlu0 0
      %4727 = vperm.xlu0 %4726, %v4669
      %v4728 = vpop.permute.xlu0 %4727
      %4731 = vset.pattern.permute.xlu0 0
      %4732 = vperm.xlu0 %4731, %v4670
      %v4733 = vpop.permute.xlu0 %4732
      %4736 = vset.pattern.permute.xlu0 0
      %4737 = vperm.xlu0 %4736, %v4671
      %v4738 = vpop.permute.xlu0 %4737
      %4741 = vset.pattern.permute.xlu0 0
      %4742 = vperm.xlu0 %4741, %v4672
      %v4743 = vpop.permute.xlu0 %4742
      %4746 = vset.pattern.permute.xlu0 0
      %4747 = vperm.xlu0 %4746, %v4673
      %v4748 = vpop.permute.xlu0 %4747
      %4751 = vset.pattern.permute.xlu0 0
      %4752 = vperm.xlu0 %4751, %v4674
      %v4753 = vpop.permute.xlu0 %4752
      %4756 = vset.pattern.permute.xlu0 0
      %4757 = vperm.xlu0 %4756, %v4675
      %v4758 = vpop.permute.xlu0 %4757
      %4761 = vset.pattern.permute.xlu0 0
      %4762 = vperm.xlu0 %4761, %v4676
      %v4763 = vpop.permute.xlu0 %4762
      %4766 = vset.pattern.permute.xlu0 0
      %4767 = vperm.xlu0 %4766, %v4677
      %v4768 = vpop.permute.xlu0 %4767
      %4771 = vset.pattern.permute.xlu0 0
      %4772 = vperm.xlu0 %4771, %v4678
      %v4773 = vpop.permute.xlu0 %4772
      %4776 = vset.pattern.permute.xlu0 0
      %4777 = vperm.xlu0 %4776, %v4679
      %v4778 = vpop.permute.xlu0 %4777
      %4781 = vset.pattern.permute.xlu0 0
      %4782 = vperm.xlu0 %4781, %v4680
      %v4783 = vpop.permute.xlu0 %4782
      %4786 = vset.pattern.permute.xlu0 0
      %4787 = vperm.xlu0 %4786, %v4681
      %v4788 = vpop.permute.xlu0 %4787
      %4791 = vset.pattern.permute.xlu0 0
      %4792 = vperm.xlu0 %4791, %v4682
      %v4793 = vpop.permute.xlu0 %4792
      %4796 = vset.pattern.permute.xlu0 0
      %4797 = vperm.xlu0 %4796, %v4683
      %v4798 = vpop.permute.xlu0 %4797
      %4801 = vset.pattern.permute.xlu0 0
      %4802 = vperm.xlu0 %4801, %v4684
      %v4803 = vpop.permute.xlu0 %4802
      %4806 = vset.pattern.permute.xlu0 0
      %4807 = vperm.xlu0 %4806, %v4685
      %v4808 = vpop.permute.xlu0 %4807
      %4811 = vset.pattern.permute.xlu0 0
      %4812 = vperm.xlu0 %4811, %v4686
      %v4813 = vpop.permute.xlu0 %4812
      %4816 = vset.pattern.permute.xlu0 0
      %4817 = vperm.xlu0 %4816, %v4687
      %v4818 = vpop.permute.xlu0 %4817
      %4821 = vset.pattern.permute.xlu0 0
      %4822 = vperm.xlu0 %4821, %v4688
      %v4823 = vpop.permute.xlu0 %4822
      %4826 = vset.pattern.permute.xlu0 0
      %4827 = vperm.xlu0 %4826, %v4689
      %v4828 = vpop.permute.xlu0 %4827
      %4831 = vset.pattern.permute.xlu0 0
      %4832 = vperm.xlu0 %4831, %v4690
      %v4833 = vpop.permute.xlu0 %4832
      %4836 = vset.pattern.permute.xlu0 0
      %4837 = vperm.xlu0 %4836, %v4691
      %v4838 = vpop.permute.xlu0 %4837
      %4841 = vset.pattern.permute.xlu0 0
      %4842 = vperm.xlu0 %4841, %v4692
      %v4843 = vpop.permute.xlu0 %4842
      %4846 = vset.pattern.permute.xlu0 0
      %4847 = vperm.xlu0 %4846, %v4693
      %v4848 = vpop.permute.xlu0 %4847
      %4851 = vset.pattern.permute.xlu0 0
      %4852 = vperm.xlu0 %4851, %v4694
      %v4853 = vpop.permute.xlu0 %4852
      %4856 = vset.pattern.permute.xlu0 0
      %4857 = vperm.xlu0 %4856, %v4695
      %v4858 = vpop.permute.xlu0 %4857
      %4861 = vset.pattern.permute.xlu0 0
      %4862 = vperm.xlu0 %4861, %v4696
      %v4863 = vpop.permute.xlu0 %4862
      %4866 = vset.pattern.permute.xlu0 0
      %4867 = vperm.xlu0 %4866, %v4697
      %v4868 = vpop.permute.xlu0 %4867
      %4871 = vset.pattern.permute.xlu0 0
      %4872 = vperm.xlu0 %4871, %v4698
      %v4873 = vpop.permute.xlu0 %4872
      %4876 = vset.pattern.permute.xlu0 0
      %4877 = vperm.xlu0 %4876, %v4699
      %v4878 = vpop.permute.xlu0 %4877
      %v4880 = vmul.f32 %v4628, %v4703
      %v4881 = vmul.f32 %v4629, %v4708
      %v4882 = vmul.f32 %v4630, %v4713
      %v4883 = vmul.f32 %v4631, %v4718
      %v4884 = vmul.f32 %v4632, %v4723
      %v4885 = vmul.f32 %v4633, %v4728
      %v4886 = vmul.f32 %v4634, %v4733
      %v4887 = vmul.f32 %v4635, %v4738
      %v4888 = vmul.f32 %v4636, %v4743
      %v4889 = vmul.f32 %v4637, %v4748
      %v4890 = vmul.f32 %v4638, %v4753
      %v4891 = vmul.f32 %v4639, %v4758
      %v4892 = vmul.f32 %v4640, %v4763
      %v4893 = vmul.f32 %v4641, %v4768
      %v4894 = vmul.f32 %v4642, %v4773
      %v4895 = vmul.f32 %v4643, %v4778
      %v4896 = vmul.f32 %v4644, %v4783
      %v4897 = vmul.f32 %v4645, %v4788
      %v4898 = vmul.f32 %v4646, %v4793
      %v4899 = vmul.f32 %v4647, %v4798
      %v4900 = vmul.f32 %v4648, %v4803
      %v4901 = vmul.f32 %v4649, %v4808
      %v4902 = vmul.f32 %v4650, %v4813
      %v4903 = vmul.f32 %v4651, %v4818
      %v4904 = vmul.f32 %v4652, %v4823
      %v4905 = vmul.f32 %v4653, %v4828
      %v4906 = vmul.f32 %v4654, %v4833
      %v4907 = vmul.f32 %v4655, %v4838
      %v4908 = vmul.f32 %v4656, %v4843
      %v4909 = vmul.f32 %v4657, %v4848
      %v4910 = vmul.f32 %v4658, %v4853
      %v4911 = vmul.f32 %v4659, %v4858
      %v4912 = vmul.f32 %v4660, %v4863
      %v4913 = vmul.f32 %v4661, %v4868
      %v4914 = vmul.f32 %v4662, %v4873
      %v4915 = vmul.f32 %v4663, %v4878
      %v4916 = vadd.f32 %v4880, %v4881
      %v4917 = vadd.f32 %v4916, %v4882
      %v4918 = vadd.f32 %v4917, %v4883
      %v4919 = vadd.f32 %v4918, %v4884
      %v4920 = vadd.f32 %v4919, %v4885
      %v4921 = vadd.f32 %v4920, %v4886
      %v4922 = vadd.f32 %v4921, %v4887
      %v4923 = vadd.f32 %v4922, %v4888
      %v4924 = vadd.f32 %v4923, %v4889
      %v4925 = vadd.f32 %v4924, %v4890
      %v4926 = vadd.f32 %v4925, %v4891
      %v4927 = vadd.f32 %v4926, %v4892
      %v4928 = vadd.f32 %v4927, %v4893
      %v4929 = vadd.f32 %v4928, %v4894
      %v4930 = vadd.f32 %v4929, %v4895
      %v4931 = vadd.f32 %v4930, %v4896
      %v4932 = vadd.f32 %v4931, %v4897
      %v4933 = vadd.f32 %v4932, %v4898
      %v4934 = vadd.f32 %v4933, %v4899
      %v4935 = vadd.f32 %v4934, %v4900
      %v4936 = vadd.f32 %v4935, %v4901
      %v4937 = vadd.f32 %v4936, %v4902
      %v4938 = vadd.f32 %v4937, %v4903
      %v4939 = vadd.f32 %v4938, %v4904
      %v4940 = vadd.f32 %v4939, %v4905
      %v4941 = vadd.f32 %v4940, %v4906
      %v4942 = vadd.f32 %v4941, %v4907
      %v4943 = vadd.f32 %v4942, %v4908
      %v4944 = vadd.f32 %v4943, %v4909
      %v4945 = vadd.f32 %v4944, %v4910
      %v4946 = vadd.f32 %v4945, %v4911
      %v4947 = vadd.f32 %v4946, %v4912
      %v4948 = vadd.f32 %v4947, %v4913
      %v4949 = vadd.f32 %v4948, %v4914
      %v4950 = vadd.f32 %v4949, %v4915
      %v4951 = vrot.slane %v4950, 4
      %v4952 = vadd.f32 %v4950, %v4951
      %v4953 = vrot.slane %v4952, 2
      %v4954 = vadd.f32 %v4952, %v4953
      %v4955 = vrot.slane %v4954, 1
      %v4956 = vadd.f32 %v4954, %v4955
      %v4957 = vmul.f32 %v4880, %v4628
      %v4958 = vmul.f32 %v4881, %v4629
      %v4959 = vmul.f32 %v4882, %v4630
      %v4960 = vmul.f32 %v4883, %v4631
      %v4961 = vmul.f32 %v4884, %v4632
      %v4962 = vmul.f32 %v4885, %v4633
      %v4963 = vmul.f32 %v4886, %v4634
      %v4964 = vmul.f32 %v4887, %v4635
      %v4965 = vmul.f32 %v4888, %v4636
      %v4966 = vmul.f32 %v4889, %v4637
      %v4967 = vmul.f32 %v4890, %v4638
      %v4968 = vmul.f32 %v4891, %v4639
      %v4969 = vmul.f32 %v4892, %v4640
      %v4970 = vmul.f32 %v4893, %v4641
      %v4971 = vmul.f32 %v4894, %v4642
      %v4972 = vmul.f32 %v4895, %v4643
      %v4973 = vmul.f32 %v4896, %v4644
      %v4974 = vmul.f32 %v4897, %v4645
      %v4975 = vmul.f32 %v4898, %v4646
      %v4976 = vmul.f32 %v4899, %v4647
      %v4977 = vmul.f32 %v4900, %v4648
      %v4978 = vmul.f32 %v4901, %v4649
      %v4979 = vmul.f32 %v4902, %v4650
      %v4980 = vmul.f32 %v4903, %v4651
      %v4981 = vmul.f32 %v4904, %v4652
      %v4982 = vmul.f32 %v4905, %v4653
      %v4983 = vmul.f32 %v4906, %v4654
      %v4984 = vmul.f32 %v4907, %v4655
      %v4985 = vmul.f32 %v4908, %v4656
      %v4986 = vmul.f32 %v4909, %v4657
      %v4987 = vmul.f32 %v4910, %v4658
      %v4988 = vmul.f32 %v4911, %v4659
      %v4989 = vmul.f32 %v4912, %v4660
      %v4990 = vmul.f32 %v4913, %v4661
      %v4991 = vmul.f32 %v4914, %v4662
      %v4992 = vmul.f32 %v4915, %v4663
      %v4993 = vadd.f32 %v4957, %v4958
      %v4994 = vadd.f32 %v4993, %v4959
      %v4995 = vadd.f32 %v4994, %v4960
      %v4996 = vadd.f32 %v4995, %v4961
      %v4997 = vadd.f32 %v4996, %v4962
      %v4998 = vadd.f32 %v4997, %v4963
      %v4999 = vadd.f32 %v4998, %v4964
      %v5000 = vadd.f32 %v4999, %v4965
      %v5001 = vadd.f32 %v5000, %v4966
      %v5002 = vadd.f32 %v5001, %v4967
      %v5003 = vadd.f32 %v5002, %v4968
      %v5004 = vadd.f32 %v5003, %v4969
      %v5005 = vadd.f32 %v5004, %v4970
      %v5006 = vadd.f32 %v5005, %v4971
      %v5007 = vadd.f32 %v5006, %v4972
      %v5008 = vadd.f32 %v5007, %v4973
      %v5009 = vadd.f32 %v5008, %v4974
      %v5010 = vadd.f32 %v5009, %v4975
      %v5011 = vadd.f32 %v5010, %v4976
      %v5012 = vadd.f32 %v5011, %v4977
      %v5013 = vadd.f32 %v5012, %v4978
      %v5014 = vadd.f32 %v5013, %v4979
      %v5015 = vadd.f32 %v5014, %v4980
      %v5016 = vadd.f32 %v5015, %v4981
      %v5017 = vadd.f32 %v5016, %v4982
      %v5018 = vadd.f32 %v5017, %v4983
      %v5019 = vadd.f32 %v5018, %v4984
      %v5020 = vadd.f32 %v5019, %v4985
      %v5021 = vadd.f32 %v5020, %v4986
      %v5022 = vadd.f32 %v5021, %v4987
      %v5023 = vadd.f32 %v5022, %v4988
      %v5024 = vadd.f32 %v5023, %v4989
      %v5025 = vadd.f32 %v5024, %v4990
      %v5026 = vadd.f32 %v5025, %v4991
      %v5027 = vadd.f32 %v5026, %v4992
      %v5028 = vrot.slane %v5027, 4
      %v5029 = vadd.f32 %v5027, %v5028
      %v5030 = vrot.slane %v5029, 2
      %v5031 = vadd.f32 %v5029, %v5030
      %v5032 = vrot.slane %v5031, 1
      %v5033 = vadd.f32 %v5031, %v5032
      %5034 = vst [vmem:[%s208] sm:$0x1] %v4956
      %5035 = vst [vmem:[%s208 + $0x1] sm:$0x1] %v5033
      %p5036 = scmp.lt.s32.totalorder %s16, 1
      %s5037 = scalar_select %p5036, %s16, 1
      %s5038 = smul.addr %s5037, 36
      %s5039 = smul.addr %s5038, 8
      %s5040 = scalar_lea.vmem %s3, %s5039
      %p5041 = scmp.lt.s32.totalorder %s16, 1
      %s5042 = scalar_select %p5041, %s16, 1
      %s5043 = smul.addr %s5042, 2
      %s5044 = scalar_lea.vmem %s4, %s5043
      // Predicated region
      $region33: #{up_forward.4} parent=31 // pred_check
        %p5045 = pneg %p102
      $region34: #{up_forward.4} parent=31 // pred_check_branch
        %5047 = sbr.rel (%p5045) target = $region36
      $region35: #{up_forward.4} parent=31 // pred_region
        _
      $region36: #{up_forward.4} parent=31 // pred_fallthru
        _
      // Predicated region
      $region37: #{up_forward.4} parent=31 // pred_check
        %p5048 = pneg %p128
      $region38: #{up_forward.4} parent=31 // pred_check_branch
        %5050 = sbr.rel (%p5048) target = $region40
      $region39: #{up_forward.4} parent=31 // pred_region
        _
      $region40: #{up_forward.4} parent=31 // pred_fallthru
        _
    $region32: #{up_forward.4} parent=5 // pred_fallthru
      _
    %p5051 = scmp.le.s32.totalorder 2, %s11
    // Predicated region
    $region41: #{up_forward.4} parent=5 // pred_check
      %p5052 = pneg %p5051
    $region42: #{up_forward.4} parent=5 // pred_check_branch
      %5054 = sbr.rel (%p5052) target = $region44
    $region43: #{up_forward.4} parent=5 // pred_region
      %s5055 = ssub.s32 %s11, 2
      // Predicated region
      $region45: #{up_forward.4} parent=43 // pred_check
        %p5056 = pneg %p108
      $region46: #{up_forward.4} parent=43 // pred_check_branch
        %5058 = sbr.rel (%p5056) target = $region48
      $region47: #{up_forward.4} parent=43 // pred_region
        %p5059 = scmp.lt.s32.totalorder %s17, 1
        %s5060 = scalar_select %p5059, %s17, 1
        %s5061 = smul.addr %s5060, 36
        %s5062 = smul.addr %s5061, 8
        %s5063 = scalar_lea.vmem %s3, %s5062
      $region48: #{up_forward.4} parent=43 // pred_fallthru
        _
      // Predicated region
      $region49: #{up_forward.4} parent=43 // pred_check
        %p5064 = pneg %p134
      $region50: #{up_forward.4} parent=43 // pred_check_branch
        %5066 = sbr.rel (%p5064) target = $region52
      $region51: #{up_forward.4} parent=43 // pred_region
        %p5067 = scmp.lt.s32.totalorder %s17, 1
        %s5068 = scalar_select %p5067, %s17, 1
        %s5069 = smul.addr %s5068, 2
        %s5070 = scalar_lea.vmem %s4, %s5069
      $region52: #{up_forward.4} parent=43 // pred_fallthru
        _
    $region44: #{up_forward.4} parent=5 // pred_fallthru
      _
  $region6: #{up_forward.4} parent=0 // loop_footer
    %s15 = sadd.s32 1, %s11
  $region7: #{up_forward.4} parent=0 // loop_footer_branch
    %10 = sbr.rel target = $region3
  $region8: #{up_forward.4} parent=0 // loop_exit
    _

// kernel: up_forward.6
$region0: #{up_forward.6}
  #allocation0 [shape = 'u32[]', space=smem, size = 0x4, offset = 0x4, fixed_abs, tag = 'smem constant byte address 0x4 - core index']
  #allocation1 [shape = 'u32[144,128]{1,0:T(1,128)}', space=vmem, size = 0x12000, scoped, tag = 'internal scratch']
  %s0 = inlined_call_operand.vmem [shape: f32[2,326,4], index: 0, kind: input, shape index: {}]
  %s1 = inlined_call_operand.vmem [shape: f32[9,4,128], index: 1, kind: input, shape index: {}]
  %s2 = inlined_call_operand.vmem [shape: f32[288,1], index: 2, kind: input, shape index: {}]
  %s3 = inlined_call_operand.vmem [shape: f32[2,288,128], index: 3, kind: output, shape index: {0}]
  %s4 = inlined_call_operand.vmem [shape: f32[2,2,128], index: 4, kind: output, shape index: {1}]
  %5 = xla_tuple %s3, %s4
  %s6 = sld [smem:[#allocation0]]
  $region53: #{up_forward.6} parent=0
    _
  %s8 = ssub.s32 1, %s6
  %s9 = scalar_select 0, %s8, %s6
  loop: start=0, step=1, limit=4
  $region2: #{up_forward.6} parent=0 // loop_pre_header
    _
  $region3: #{up_forward.6} parent=0 // loop_header
    %s11 = sphi 0, %s15
    %p12 = scmp.ge.s32.totalorder %s11, 4
    %s21 = sphi 0, %s23
    %s24 = sphi 0, %s21
    %s25 = sphi 0, %s24
    %s41 = sphi 0, %s25
    %s45 = sphi 0, %s45
    %s47 = sphi 0, %s45
    %s48 = sphi 0, %s47
    %s62 = sphi 0, %s48
    %s66 = sphi 0, %s66
    %s68 = sphi 0, %s66
    %s69 = sphi 0, %s68
    %s83 = sphi 0, %s69
    %s89 = sphi 0, %s91
    %s92 = sphi 0, %s89
    %s93 = sphi 0, %s92
    %s109 = sphi 0, %s93
    %s115 = sphi 0, %s117
    %s118 = sphi 0, %s115
    %s119 = sphi 0, %s118
    %s135 = sphi 0, %s119
  $region4: #{up_forward.6} parent=0 // loop_header_branch
    %14 = sbr.rel (%p12) target = $region8
  $region5: #{up_forward.6} parent=0 // loop_body
    %s16 = ssub.s32 %s11, 1
    %s17 = ssub.s32 %s11, 2
    %s18 = sadd.s32 %s11, 1
    %s19 = ssub.s32 %s11, %s18
    %p20 = scmp.eq.s32.totalorder %s19, 0
    %s22 = sadd.s32 %s21, 1
    %s23 = scalar_select %p20, %s21, %s22
    %p26 = pneg %p20
    %p27 = scmp.eq.s32.totalorder %s11, 1
    %p28 = por %p26, %p27
    %p29 = scmp.ne.s32.totalorder %s21, %s24
    %p30 = scmp.eq.s32.totalorder %s11, 0
    %p31 = por %p29, %p30
    %p32 = scmp.ne.s32.totalorder %s21, %s24
    %p33 = scmp.eq.s32.totalorder %s16, 1
    %p34 = por %p32, %p33
    %p35 = scmp.ne.s32.totalorder %s24, %s25
    %p36 = scmp.eq.s32.totalorder %s16, 0
    %p37 = por %p35, %p36
    %p38 = scmp.ne.s32.totalorder %s24, %s25
    %p39 = scmp.eq.s32.totalorder %s17, 1
    %p40 = por %p38, %p39
    %p42 = scmp.ne.s32.totalorder %s25, %s41
    %p43 = scmp.eq.s32.totalorder %s17, 0
    %p44 = por %p42, %p43
    %s46 = sadd.s32 %s45, 1
    %p49 = scmp.eq.s32.totalorder %s11, 1
    %p50 = scmp.ne.s32.totalorder %s45, %s47
    %p51 = scmp.eq.s32.totalorder %s11, 0
    %p52 = por %p50, %p51
    %p53 = scmp.ne.s32.totalorder %s45, %s47
    %p54 = scmp.eq.s32.totalorder %s16, 1
    %p55 = por %p53, %p54
    %p56 = scmp.ne.s32.totalorder %s47, %s48
    %p57 = scmp.eq.s32.totalorder %s16, 0
    %p58 = por %p56, %p57
    %p59 = scmp.ne.s32.totalorder %s47, %s48
    %p60 = scmp.eq.s32.totalorder %s17, 1
    %p61 = por %p59, %p60
    %p63 = scmp.ne.s32.totalorder %s48, %s62
    %p64 = scmp.eq.s32.totalorder %s17, 0
    %p65 = por %p63, %p64
    %s67 = sadd.s32 %s66, 1
    %p70 = scmp.eq.s32.totalorder %s11, 1
    %p71 = scmp.ne.s32.totalorder %s66, %s68
    %p72 = scmp.eq.s32.totalorder %s11, 0
    %p73 = por %p71, %p72
    %p74 = scmp.ne.s32.totalorder %s66, %s68
    %p75 = scmp.eq.s32.totalorder %s16, 1
    %p76 = por %p74, %p75
    %p77 = scmp.ne.s32.totalorder %s68, %s69
    %p78 = scmp.eq.s32.totalorder %s16, 0
    %p79 = por %p77, %p78
    %p80 = scmp.ne.s32.totalorder %s68, %s69
    %p81 = scmp.eq.s32.totalorder %s17, 1
    %p82 = por %p80, %p81
    %p84 = scmp.ne.s32.totalorder %s69, %s83
    %p85 = scmp.eq.s32.totalorder %s17, 0
    %p86 = por %p84, %p85
    %s87 = ssub.s32 %s11, %s18
    %p88 = scmp.eq.s32.totalorder %s87, 0
    %s90 = sadd.s32 %s89, 1
    %s91 = scalar_select %p88, %s89, %s90
    %p94 = pneg %p88
    %p95 = scmp.eq.s32.totalorder %s11, 1
    %p96 = por %p94, %p95
    %p97 = scmp.ne.s32.totalorder %s89, %s92
    %p98 = scmp.eq.s32.totalorder %s11, 0
    %p99 = por %p97, %p98
    %p100 = scmp.ne.s32.totalorder %s89, %s92
    %p101 = scmp.eq.s32.totalorder %s16, 1
    %p102 = por %p100, %p101
    %p103 = scmp.ne.s32.totalorder %s92, %s93
    %p104 = scmp.eq.s32.totalorder %s16, 0
    %p105 = por %p103, %p104
    %p106 = scmp.ne.s32.totalorder %s92, %s93
    %p107 = scmp.eq.s32.totalorder %s17, 1
    %p108 = por %p106, %p107
    %p110 = scmp.ne.s32.totalorder %s93, %s109
    %p111 = scmp.eq.s32.totalorder %s17, 0
    %p112 = por %p110, %p111
    %s113 = ssub.s32 %s11, %s18
    %p114 = scmp.eq.s32.totalorder %s113, 0
    %s116 = sadd.s32 %s115, 1
    %s117 = scalar_select %p114, %s115, %s116
    %p120 = pneg %p114
    %p121 = scmp.eq.s32.totalorder %s11, 1
    %p122 = por %p120, %p121
    %p123 = scmp.ne.s32.totalorder %s115, %s118
    %p124 = scmp.eq.s32.totalorder %s11, 0
    %p125 = por %p123, %p124
    %p126 = scmp.ne.s32.totalorder %s115, %s118
    %p127 = scmp.eq.s32.totalorder %s16, 1
    %p128 = por %p126, %p127
    %p129 = scmp.ne.s32.totalorder %s118, %s119
    %p130 = scmp.eq.s32.totalorder %s16, 0
    %p131 = por %p129, %p130
    %p132 = scmp.ne.s32.totalorder %s118, %s119
    %p133 = scmp.eq.s32.totalorder %s17, 1
    %p134 = por %p132, %p133
    %p136 = scmp.ne.s32.totalorder %s119, %s135
    %p137 = scmp.eq.s32.totalorder %s17, 0
    %p138 = por %p136, %p137
    %p139 = scmp.le.s32.totalorder 1, %s11
    %p140 = scmp.lt.s32.totalorder %s11, 3
    %p141 = pnand %p139, %p140
    %p142 = pneg %p141
    // Predicated region
    $region9: #{up_forward.6} parent=5 // pred_check
      _
    $region10: #{up_forward.6} parent=5 // pred_check_branch
      %144 = sbr.rel (%p141) target = $region12
    $region11: #{up_forward.6} parent=5 // pred_region
      %s145 = ssub.s32 %s11, 1
      // Predicated region
      $region13: #{up_forward.6} parent=11 // pred_check
        %p146 = pneg %p58
      $region14: #{up_forward.6} parent=11 // pred_check_branch
        %148 = sbr.rel (%p146) target = $region16
      $region15: #{up_forward.6} parent=11 // pred_region
        _
      $region16: #{up_forward.6} parent=11 // pred_fallthru
        _
      // Predicated region
      $region17: #{up_forward.6} parent=11 // pred_check
        %p149 = pneg %p79
      $region18: #{up_forward.6} parent=11 // pred_check_branch
        %151 = sbr.rel (%p149) target = $region20
      $region19: #{up_forward.6} parent=11 // pred_region
        _
      $region20: #{up_forward.6} parent=11 // pred_fallthru
        _
    $region12: #{up_forward.6} parent=5 // pred_fallthru
      _
    %p152 = scmp.lt.s32.totalorder %s11, 2
    // Predicated region
    $region21: #{up_forward.6} parent=5 // pred_check
      %p153 = pneg %p152
    $region22: #{up_forward.6} parent=5 // pred_check_branch
      %155 = sbr.rel (%p153) target = $region24
    $region23: #{up_forward.6} parent=5 // pred_region
      // Predicated region
      $region25: #{up_forward.6} parent=23 // pred_check
        %p156 = pneg %p31
      $region26: #{up_forward.6} parent=23 // pred_check_branch
        %158 = sbr.rel (%p156) target = $region28
      $region27: #{up_forward.6} parent=23 // pred_region
        %p159 = scmp.lt.s32.totalorder %s11, 1
        %s160 = scalar_select %p159, %s11, 1
        %s161 = smul.addr %s160, 41
        %s162 = smul.addr %s161, 8
        %s163 = scalar_lea.vmem %s0, %s162
      $region28: #{up_forward.6} parent=23 // pred_fallthru
        _
    $region24: #{up_forward.6} parent=5 // pred_fallthru
      _
    %p164 = scmp.le.s32.totalorder 1, %s11
    %p165 = scmp.lt.s32.totalorder %s11, 3
    %p166 = pnand %p164, %p165
    %p167 = pneg %p166
    // Predicated region
    $region29: #{up_forward.6} parent=5 // pred_check
      _
    $region30: #{up_forward.6} parent=5 // pred_check_branch
      %169 = sbr.rel (%p166) target = $region32
    $region31: #{up_forward.6} parent=5 // pred_region
      %s170 = ssub.s32 %s11, 1
      %p171 = scmp.lt.s32.totalorder %s16, 1
      %s172 = scalar_select %p171, %s16, 1
      %s173 = smul.addr %s172, 41
      %s174 = smul.addr %s173, 8
      %s175 = scalar_lea.vmem %s0, %s174
      %p176 = pneg %p37
      %p177 = pneg %p34
      %p178 = pneg %p58
      %p179 = pneg %p55
      %p180 = pneg %p79
      %p181 = pneg %p76
      %p182 = pneg %p105
      %p183 = pneg %p102
      %p184 = scmp.lt.s32.totalorder %s16, 1
      %s185 = scalar_select %p184, %s16, 1
      %s186 = smul.addr %s185, 36
      %s187 = smul.addr %s186, 8
      %s188 = scalar_lea.vmem %s3, %s187
      %p189 = pneg %p131
      %p190 = pneg %p128
      %p191 = scmp.lt.s32.totalorder %s16, 1
      %s192 = scalar_select %p191, %s16, 1
      %s193 = smul.addr %s192, 2
      %s194 = scalar_lea.vmem %s4, %s193
      %p195 = scmp.lt.s32.totalorder %s16, 1
      %s196 = scalar_select %p195, %s16, 1
      %s197 = smul.addr %s196, 41
      %s198 = smul.addr %s197, 8
      %s199 = scalar_lea.vmem %s0, %s198
      %p200 = scmp.lt.s32.totalorder %s16, 1
      %s201 = scalar_select %p200, %s16, 1
      %s202 = smul.addr %s201, 36
      %s203 = smul.addr %s202, 8
      %s204 = scalar_lea.vmem %s3, %s203
      %p205 = scmp.lt.s32.totalorder %s16, 1
      %s206 = scalar_select %p205, %s16, 1
      %s207 = smul.addr %s206, 2
      %s208 = scalar_lea.vmem %s4, %s207
      %v209 = vld [vmem:[%s199] sm:$0xff]
      %v210 = vld [vmem:[%s199 + $0x8] sm:$0xff]
      %v211 = vld [vmem:[%s199 + $0x10] sm:$0xff]
      %v212 = vld [vmem:[%s199 + $0x18] sm:$0xff]
      %v213 = vld [vmem:[%s199 + $0x20] sm:$0xff]
      %v214 = vld [vmem:[%s199 + $0x28] sm:$0xff]
      %v215 = vld [vmem:[%s199 + $0x30] sm:$0xff]
      %v216 = vld [vmem:[%s199 + $0x38] sm:$0xff]
      %v217 = vld [vmem:[%s199 + $0x40] sm:$0xff]
      %v218 = vld [vmem:[%s199 + $0x48] sm:$0xff]
      %v219 = vld [vmem:[%s199 + $0x50] sm:$0xff]
      %v220 = vld [vmem:[%s199 + $0x58] sm:$0xff]
      %v221 = vld [vmem:[%s199 + $0x60] sm:$0xff]
      %v222 = vld [vmem:[%s199 + $0x68] sm:$0xff]
      %v223 = vld [vmem:[%s199 + $0x70] sm:$0xff]
      %v224 = vld [vmem:[%s199 + $0x78] sm:$0xff]
      %v225 = vld [vmem:[%s199 + $0x80] sm:$0xff]
      %v226 = vld [vmem:[%s199 + $0x88] sm:$0xff]
      %v227 = vld [vmem:[%s199 + $0x90] sm:$0xff]
      %v228 = vld [vmem:[%s199 + $0x98] sm:$0xff]
      %v229 = vld [vmem:[%s199 + $0xa0] sm:$0xff]
      %v230 = vld [vmem:[%s199 + $0xa8] sm:$0xff]
      %v231 = vld [vmem:[%s199 + $0xb0] sm:$0xff]
      %v232 = vld [vmem:[%s199 + $0xb8] sm:$0xff]
      %v233 = vld [vmem:[%s199 + $0xc0] sm:$0xff]
      %v234 = vld [vmem:[%s199 + $0xc8] sm:$0xff]
      %v235 = vld [vmem:[%s199 + $0xd0] sm:$0xff]
      %v236 = vld [vmem:[%s199 + $0xd8] sm:$0xff]
      %v237 = vld [vmem:[%s199 + $0xe0] sm:$0xff]
      %v238 = vld [vmem:[%s199 + $0xe8] sm:$0xff]
      %v239 = vld [vmem:[%s199 + $0xf0] sm:$0xff]
      %v240 = vld [vmem:[%s199 + $0xf8] sm:$0xff]
      %v241 = vld [vmem:[%s199 + $0x100] sm:$0xff]
      %v242 = vld [vmem:[%s199 + $0x108] sm:$0xff]
      %v243 = vld [vmem:[%s199 + $0x110] sm:$0xff]
      %v244 = vld [vmem:[%s199 + $0x118] sm:$0xff]
      %v245 = vld [vmem:[%s1] sm:$0xf]
      %vm246 = vcmask 31744
      %v248 = vsel %vm246, %v209, 0
      %v251 = vsel %vm246, %v210, 0
      %v254 = vsel %vm246, %v211, 0
      %v257 = vsel %vm246, %v212, 0
      %v260 = vsel %vm246, %v213, 0
      %v263 = vsel %vm246, %v214, 0
      %v266 = vsel %vm246, %v215, 0
      %v269 = vsel %vm246, %v216, 0
      %v272 = vsel %vm246, %v217, 0
      %v275 = vsel %vm246, %v218, 0
      %v278 = vsel %vm246, %v219, 0
      %v281 = vsel %vm246, %v220, 0
      %v284 = vsel %vm246, %v221, 0
      %v287 = vsel %vm246, %v222, 0
      %v290 = vsel %vm246, %v223, 0
      %v293 = vsel %vm246, %v224, 0
      %v296 = vsel %vm246, %v225, 0
      %v299 = vsel %vm246, %v226, 0
      %v302 = vsel %vm246, %v227, 0
      %v305 = vsel %vm246, %v228, 0
      %v308 = vsel %vm246, %v229, 0
      %v311 = vsel %vm246, %v230, 0
      %v314 = vsel %vm246, %v231, 0
      %v317 = vsel %vm246, %v232, 0
      %v320 = vsel %vm246, %v233, 0
      %v323 = vsel %vm246, %v234, 0
      %v326 = vsel %vm246, %v235, 0
      %v329 = vsel %vm246, %v236, 0
      %v332 = vsel %vm246, %v237, 0
      %v335 = vsel %vm246, %v238, 0
      %v338 = vsel %vm246, %v239, 0
      %v341 = vsel %vm246, %v240, 0
      %v344 = vsel %vm246, %v241, 0
      %v347 = vsel %vm246, %v242, 0
      %v350 = vsel %vm246, %v243, 0
      %v353 = vsel %vm246, %v244, 0
      %vm355 = vcmask 1043456
      %v357 = vsel %vm355, %v245, 0
      %359 = vmatprep.subr.mxu0 0.0
      %360 = vmatpush1.msra.mxu0 %v357
      %361 = vmatprep.subr.mxu0 0.0
      %362 = vmatpush1.msra.mxu0 0.0
      %363 = vmatprep.subr.mxu0 0.0
      %364 = vmatpush1.msra.mxu0 0.0
      %365 = vmatprep.subr.mxu0 0.0
      %366 = vmatpush1.msra.mxu0 0.0
      %367 = vmatprep.subr.mxu0 0.0
      %368 = vmatpush1.msra.mxu0 0.0
      %369 = vmatprep.subr.mxu0 0.0
      %370 = vmatpush1.msra.mxu0 0.0
      %371 = vmatprep.subr.mxu0 0.0
      %372 = vmatpush1.msra.mxu0 0.0
      %373 = vmatprep.subr.mxu0 0.0
      %374 = vmatpush1.msra.mxu0 0.0
      %375 = vmatprep.subr.mxu0 0.0
      %376 = vmatpush1.msra.mxu0 0.0
      %377 = vmatprep.subr.mxu0 0.0
      %378 = vmatpush1.msra.mxu0 0.0
      %379 = vmatprep.subr.mxu0 0.0
      %380 = vmatpush1.msra.mxu0 0.0
      %381 = vmatprep.subr.mxu0 0.0
      %382 = vmatpush1.msra.mxu0 0.0
      %383 = vmatprep.subr.mxu0 0.0
      %384 = vmatpush1.msra.mxu0 0.0
      %385 = vmatprep.subr.mxu0 0.0
      %386 = vmatpush1.msra.mxu0 0.0
      %387 = vmatprep.subr.mxu0 0.0
      %388 = vmatpush1.msra.mxu0 0.0
      %389 = vmatprep.subr.mxu0 0.0
      %390 = vmatpush1.msra.mxu0 0.0
      %391 = vmatprep.subr.mxu0 0.0
      %392 = vmatpush1.msra.mxu0 0.0
      %393 = vmatprep.subr.mxu0 0.0
      %394 = vmatpush1.msra.mxu0 0.0
      %395 = vmatprep.subr.mxu0 0.0
      %396 = vmatpush1.msra.mxu0 0.0
      %397 = vmatprep.subr.mxu0 0.0
      %398 = vmatpush1.msra.mxu0 0.0
      %399 = vmatprep.subr.mxu0 0.0
      %400 = vmatpush1.msra.mxu0 0.0
      %401 = vmatprep.subr.mxu0 0.0
      %402 = vmatpush1.msra.mxu0 0.0
      %403 = vmatprep.subr.mxu0 0.0
      %404 = vmatpush1.msra.mxu0 0.0
      %405 = vmatprep.subr.mxu0 0.0
      %406 = vmatpush1.msra.mxu0 0.0
      %407 = vmatprep.subr.mxu0 0.0
      %408 = vmatpush1.msra.mxu0 0.0
      %409 = vmatprep.subr.mxu0 0.0
      %410 = vmatpush1.msra.mxu0 0.0
      %411 = vmatprep.subr.mxu0 0.0
      %412 = vmatpush1.msra.mxu0 0.0
      %413 = vmatprep.subr.mxu0 0.0
      %414 = vmatpush1.msra.mxu0 0.0
      %415 = vmatprep.subr.mxu0 0.0
      %416 = vmatpush1.msra.mxu0 0.0
      %417 = vmatprep.subr.mxu0 0.0
      %418 = vmatpush1.msra.mxu0 0.0
      %419 = vmatprep.subr.mxu0 0.0
      %420 = vmatpush1.msra.mxu0 0.0
      %421 = vmatprep.subr.mxu0 0.0
      %422 = vmatpush1.msra.mxu0 0.0
      %423 = vmatprep.mubr.f32.mxu0 0.0
      %424 = vmatmul.mubr.f32.gmra.mrb[0].mxu0 %v248
      %v425 = vpop.f32.mrb[0].mxu0
      %v426 = vadd.f32 0.0, %v425
      %v427 = vpop.f32.mrb[0].mxu0
      %428 = vmatprep.mubr.f32.mxu0 0.0
      %429 = vmatmul.mubr.f32.gmra.mrb[0].mxu0 %v251
      %v430 = vpop.f32.mrb[0].mxu0
      %v431 = vadd.f32 0.0, %v430
      %v432 = vpop.f32.mrb[0].mxu0
      %433 = vmatprep.mubr.f32.mxu0 0.0
      %434 = vmatmul.mubr.f32.gmra.mrb[0].mxu0 %v254
      %v435 = vpop.f32.mrb[0].mxu0
      %v436 = vadd.f32 0.0, %v435
      %v437 = vpop.f32.mrb[0].mxu0
      %438 = vmatprep.mubr.f32.mxu0 0.0
      %439 = vmatmul.mubr.f32.gmra.mrb[0].mxu0 %v257
      %v440 = vpop.f32.mrb[0].mxu0
      %v441 = vadd.f32 0.0, %v440
      %v442 = vpop.f32.mrb[0].mxu0
      %443 = vmatprep.mubr.f32.mxu0 0.0
      %444 = vmatmul.mubr.f32.gmra.mrb[0].mxu0 %v260
      %v445 = vpop.f32.mrb[0].mxu0
      %v446 = vadd.f32 0.0, %v445
      %v447 = vpop.f32.mrb[0].mxu0
      %448 = vmatprep.mubr.f32.mxu0 0.0
      %449 = vmatmul.mubr.f32.gmra.mrb[0].mxu0 %v263
      %v450 = vpop.f32.mrb[0].mxu0
      %v451 = vadd.f32 0.0, %v450
      %v452 = vpop.f32.mrb[0].mxu0
      %453 = vmatprep.mubr.f32.mxu0 0.0
      %454 = vmatmul.mubr.f32.gmra.mrb[0].mxu0 %v266
      %v455 = vpop.f32.mrb[0].mxu0
      %v456 = vadd.f32 0.0, %v455
      %v457 = vpop.f32.mrb[0].mxu0
      %458 = vmatprep.mubr.f32.mxu0 0.0
      %459 = vmatmul.mubr.f32.gmra.mrb[0].mxu0 %v269
      %v460 = vpop.f32.mrb[0].mxu0
      %v461 = vadd.f32 0.0, %v460
      %v462 = vpop.f32.mrb[0].mxu0
      %463 = vmatprep.mubr.f32.mxu0 0.0
      %464 = vmatmul.mubr.f32.gmra.mrb[0].mxu0 %v272
      %v465 = vpop.f32.mrb[0].mxu0
      %v466 = vadd.f32 0.0, %v465
      %v467 = vpop.f32.mrb[0].mxu0
      %468 = vmatprep.mubr.f32.mxu0 0.0
      %469 = vmatmul.mubr.f32.gmra.mrb[0].mxu0 %v275
      %v470 = vpop.f32.mrb[0].mxu0
      %v471 = vadd.f32 0.0, %v470
      %v472 = vpop.f32.mrb[0].mxu0
      %473 = vmatprep.mubr.f32.mxu0 0.0
      %474 = vmatmul.mubr.f32.gmra.mrb[0].mxu0 %v278
      %v475 = vpop.f32.mrb[0].mxu0
      %v476 = vadd.f32 0.0, %v475
      %v477 = vpop.f32.mrb[0].mxu0
      %478 = vmatprep.mubr.f32.mxu0 0.0
      %479 = vmatmul.mubr.f32.gmra.mrb[0].mxu0 %v281
      %v480 = vpop.f32.mrb[0].mxu0
      %v481 = vadd.f32 0.0, %v480
      %v482 = vpop.f32.mrb[0].mxu0
      %483 = vmatprep.mubr.f32.mxu0 0.0
      %484 = vmatmul.mubr.f32.gmra.mrb[0].mxu0 %v284
      %v485 = vpop.f32.mrb[0].mxu0
      %v486 = vadd.f32 0.0, %v485
      %v487 = vpop.f32.mrb[0].mxu0
      %488 = vmatprep.mubr.f32.mxu0 0.0
      %489 = vmatmul.mubr.f32.gmra.mrb[0].mxu0 %v287
      %v490 = vpop.f32.mrb[0].mxu0
      %v491 = vadd.f32 0.0, %v490
      %v492 = vpop.f32.mrb[0].mxu0
      %493 = vmatprep.mubr.f32.mxu0 0.0
      %494 = vmatmul.mubr.f32.gmra.mrb[0].mxu0 %v290
      %v495 = vpop.f32.mrb[0].mxu0
      %v496 = vadd.f32 0.0, %v495
      %v497 = vpop.f32.mrb[0].mxu0
      %498 = vmatprep.mubr.f32.mxu0 0.0
      %499 = vmatmul.mubr.f32.gmra.mrb[0].mxu0 %v293
      %v500 = vpop.f32.mrb[0].mxu0
      %v501 = vadd.f32 0.0, %v500
      %v502 = vpop.f32.mrb[0].mxu0
      %503 = vmatprep.mubr.f32.mxu0 0.0
      %504 = vmatmul.mubr.f32.gmra.mrb[0].mxu0 %v296
      %v505 = vpop.f32.mrb[0].mxu0
      %v506 = vadd.f32 0.0, %v505
      %v507 = vpop.f32.mrb[0].mxu0
      %508 = vmatprep.mubr.f32.mxu0 0.0
      %509 = vmatmul.mubr.f32.gmra.mrb[0].mxu0 %v299
      %v510 = vpop.f32.mrb[0].mxu0
      %v511 = vadd.f32 0.0, %v510
      %v512 = vpop.f32.mrb[0].mxu0
      %513 = vmatprep.mubr.f32.mxu0 0.0
      %514 = vmatmul.mubr.f32.gmra.mrb[0].mxu0 %v302
      %v515 = vpop.f32.mrb[0].mxu0
      %v516 = vadd.f32 0.0, %v515
      %v517 = vpop.f32.mrb[0].mxu0
      %518 = vmatprep.mubr.f32.mxu0 0.0
      %519 = vmatmul.mubr.f32.gmra.mrb[0].mxu0 %v305
      %v520 = vpop.f32.mrb[0].mxu0
      %v521 = vadd.f32 0.0, %v520
      %v522 = vpop.f32.mrb[0].mxu0
      %523 = vmatprep.mubr.f32.mxu0 0.0
      %524 = vmatmul.mubr.f32.gmra.mrb[0].mxu0 %v308
      %v525 = vpop.f32.mrb[0].mxu0
      %v526 = vadd.f32 0.0, %v525
      %v527 = vpop.f32.mrb[0].mxu0
      %528 = vmatprep.mubr.f32.mxu0 0.0
      %529 = vmatmul.mubr.f32.gmra.mrb[0].mxu0 %v311
      %v530 = vpop.f32.mrb[0].mxu0
      %v531 = vadd.f32 0.0, %v530
      %v532 = vpop.f32.mrb[0].mxu0
      %533 = vmatprep.mubr.f32.mxu0 0.0
      %534 = vmatmul.mubr.f32.gmra.mrb[0].mxu0 %v314
      %v535 = vpop.f32.mrb[0].mxu0
      %v536 = vadd.f32 0.0, %v535
      %v537 = vpop.f32.mrb[0].mxu0
      %538 = vmatprep.mubr.f32.mxu0 0.0
      %539 = vmatmul.mubr.f32.gmra.mrb[0].mxu0 %v317
      %v540 = vpop.f32.mrb[0].mxu0
      %v541 = vadd.f32 0.0, %v540
      %v542 = vpop.f32.mrb[0].mxu0
      %543 = vmatprep.mubr.f32.mxu0 0.0
      %544 = vmatmul.mubr.f32.gmra.mrb[0].mxu0 %v320
      %v545 = vpop.f32.mrb[0].mxu0
      %v546 = vadd.f32 0.0, %v545
      %v547 = vpop.f32.mrb[0].mxu0
      %548 = vmatprep.mubr.f32.mxu0 0.0
      %549 = vmatmul.mubr.f32.gmra.mrb[0].mxu0 %v323
      %v550 = vpop.f32.mrb[0].mxu0
      %v551 = vadd.f32 0.0, %v550
      %v552 = vpop.f32.mrb[0].mxu0
      %553 = vmatprep.mubr.f32.mxu0 0.0
      %554 = vmatmul.mubr.f32.gmra.mrb[0].mxu0 %v326
      %v555 = vpop.f32.mrb[0].mxu0
      %v556 = vadd.f32 0.0, %v555
      %v557 = vpop.f32.mrb[0].mxu0
      %558 = vmatprep.mubr.f32.mxu0 0.0
      %559 = vmatmul.mubr.f32.gmra.mrb[0].mxu0 %v329
      %v560 = vpop.f32.mrb[0].mxu0
      %v561 = vadd.f32 0.0, %v560
      %v562 = vpop.f32.mrb[0].mxu0
      %563 = vmatprep.mubr.f32.mxu0 0.0
      %564 = vmatmul.mubr.f32.gmra.mrb[0].mxu0 %v332
      %v565 = vpop.f32.mrb[0].mxu0
      %v566 = vadd.f32 0.0, %v565
      %v567 = vpop.f32.mrb[0].mxu0
      %568 = vmatprep.mubr.f32.mxu0 0.0
      %569 = vmatmul.mubr.f32.gmra.mrb[0].mxu0 %v335
      %v570 = vpop.f32.mrb[0].mxu0
      %v571 = vadd.f32 0.0, %v570
      %v572 = vpop.f32.mrb[0].mxu0
      %573 = vmatprep.mubr.f32.mxu0 0.0
      %574 = vmatmul.mubr.f32.gmra.mrb[0].mxu0 %v338
      %v575 = vpop.f32.mrb[0].mxu0
      %v576 = vadd.f32 0.0, %v575
      %v577 = vpop.f32.mrb[0].mxu0
      %578 = vmatprep.mubr.f32.mxu0 0.0
      %579 = vmatmul.mubr.f32.gmra.mrb[0].mxu0 %v341
      %v580 = vpop.f32.mrb[0].mxu0
      %v581 = vadd.f32 0.0, %v580
      %v582 = vpop.f32.mrb[0].mxu0
      %583 = vmatprep.mubr.f32.mxu0 0.0
      %584 = vmatmul.mubr.f32.gmra.mrb[0].mxu0 %v344
      %v585 = vpop.f32.mrb[0].mxu0
      %v586 = vadd.f32 0.0, %v585
      %v587 = vpop.f32.mrb[0].mxu0
      %588 = vmatprep.mubr.f32.mxu0 0.0
      %589 = vmatmul.mubr.f32.gmra.mrb[0].mxu0 %v347
      %v590 = vpop.f32.mrb[0].mxu0
      %v591 = vadd.f32 0.0, %v590
      %v592 = vpop.f32.mrb[0].mxu0
      %593 = vmatprep.mubr.f32.mxu0 0.0
      %594 = vmatmul.mubr.f32.gmra.mrb[0].mxu0 %v350
      %v595 = vpop.f32.mrb[0].mxu0
      %v596 = vadd.f32 0.0, %v595
      %v597 = vpop.f32.mrb[0].mxu0
      %598 = vmatprep.mubr.f32.mxu0 0.0
      %599 = vmatmul.mubr.f32.gmra.mrb[0].mxu0 %v353
      %v600 = vpop.f32.mrb[0].mxu0
      %v601 = vadd.f32 0.0, %v600
      %v602 = vpop.f32.mrb[0].mxu0
      %603 = vdwg.mxu0
      %604 = vst [vmem:[%s204] sm:$0xff] %v426
      %605 = vst [vmem:[%s204 + $0x8] sm:$0xff] %v431
      %606 = vst [vmem:[%s204 + $0x10] sm:$0xff] %v436
      %607 = vst [vmem:[%s204 + $0x18] sm:$0xff] %v441
      %608 = vst [vmem:[%s204 + $0x20] sm:$0xff] %v446
      %609 = vst [vmem:[%s204 + $0x28] sm:$0xff] %v451
      %610 = vst [vmem:[%s204 + $0x30] sm:$0xff] %v456
      %611 = vst [vmem:[%s204 + $0x38] sm:$0xff] %v461
      %612 = vst [vmem:[%s204 + $0x40] sm:$0xff] %v466
      %613 = vst [vmem:[%s204 + $0x48] sm:$0xff] %v471
      %614 = vst [vmem:[%s204 + $0x50] sm:$0xff] %v476
      %615 = vst [vmem:[%s204 + $0x58] sm:$0xff] %v481
      %616 = vst [vmem:[%s204 + $0x60] sm:$0xff] %v486
      %617 = vst [vmem:[%s204 + $0x68] sm:$0xff] %v491
      %618 = vst [vmem:[%s204 + $0x70] sm:$0xff] %v496
      %619 = vst [vmem:[%s204 + $0x78] sm:$0xff] %v501
      %620 = vst [vmem:[%s204 + $0x80] sm:$0xff] %v506
      %621 = vst [vmem:[%s204 + $0x88] sm:$0xff] %v511
      %622 = vst [vmem:[%s204 + $0x90] sm:$0xff] %v516
      %623 = vst [vmem:[%s204 + $0x98] sm:$0xff] %v521
      %624 = vst [vmem:[%s204 + $0xa0] sm:$0xff] %v526
      %625 = vst [vmem:[%s204 + $0xa8] sm:$0xff] %v531
      %626 = vst [vmem:[%s204 + $0xb0] sm:$0xff] %v536
      %627 = vst [vmem:[%s204 + $0xb8] sm:$0xff] %v541
      %628 = vst [vmem:[%s204 + $0xc0] sm:$0xff] %v546
      %629 = vst [vmem:[%s204 + $0xc8] sm:$0xff] %v551
      %630 = vst [vmem:[%s204 + $0xd0] sm:$0xff] %v556
      %631 = vst [vmem:[%s204 + $0xd8] sm:$0xff] %v561
      %632 = vst [vmem:[%s204 + $0xe0] sm:$0xff] %v566
      %633 = vst [vmem:[%s204 + $0xe8] sm:$0xff] %v571
      %634 = vst [vmem:[%s204 + $0xf0] sm:$0xff] %v576
      %635 = vst [vmem:[%s204 + $0xf8] sm:$0xff] %v581
      %636 = vst [vmem:[%s204 + $0x100] sm:$0xff] %v586
      %637 = vst [vmem:[%s204 + $0x108] sm:$0xff] %v591
      %638 = vst [vmem:[%s204 + $0x110] sm:$0xff] %v596
      %639 = vst [vmem:[%s204 + $0x118] sm:$0xff] %v601
      %v640 = vld [vmem:[%s204] sm:$0xff]
      %v641 = vld [vmem:[%s204 + $0x8] sm:$0xff]
      %v642 = vld [vmem:[%s204 + $0x10] sm:$0xff]
      %v643 = vld [vmem:[%s204 + $0x18] sm:$0xff]
      %v644 = vld [vmem:[%s204 + $0x20] sm:$0xff]
      %v645 = vld [vmem:[%s204 + $0x28] sm:$0xff]
      %v646 = vld [vmem:[%s204 + $0x30] sm:$0xff]
      %v647 = vld [vmem:[%s204 + $0x38] sm:$0xff]
      %v648 = vld [vmem:[%s204 + $0x40] sm:$0xff]
      %v649 = vld [vmem:[%s204 + $0x48] sm:$0xff]
      %v650 = vld [vmem:[%s204 + $0x50] sm:$0xff]
      %v651 = vld [vmem:[%s204 + $0x58] sm:$0xff]
      %v652 = vld [vmem:[%s204 + $0x60] sm:$0xff]
      %v653 = vld [vmem:[%s204 + $0x68] sm:$0xff]
      %v654 = vld [vmem:[%s204 + $0x70] sm:$0xff]
      %v655 = vld [vmem:[%s204 + $0x78] sm:$0xff]
      %v656 = vld [vmem:[%s204 + $0x80] sm:$0xff]
      %v657 = vld [vmem:[%s204 + $0x88] sm:$0xff]
      %v658 = vld [vmem:[%s204 + $0x90] sm:$0xff]
      %v659 = vld [vmem:[%s204 + $0x98] sm:$0xff]
      %v660 = vld [vmem:[%s204 + $0xa0] sm:$0xff]
      %v661 = vld [vmem:[%s204 + $0xa8] sm:$0xff]
      %v662 = vld [vmem:[%s204 + $0xb0] sm:$0xff]
      %v663 = vld [vmem:[%s204 + $0xb8] sm:$0xff]
      %v664 = vld [vmem:[%s204 + $0xc0] sm:$0xff]
      %v665 = vld [vmem:[%s204 + $0xc8] sm:$0xff]
      %v666 = vld [vmem:[%s204 + $0xd0] sm:$0xff]
      %v667 = vld [vmem:[%s204 + $0xd8] sm:$0xff]
      %v668 = vld [vmem:[%s204 + $0xe0] sm:$0xff]
      %v669 = vld [vmem:[%s204 + $0xe8] sm:$0xff]
      %v670 = vld [vmem:[%s204 + $0xf0] sm:$0xff]
      %v671 = vld [vmem:[%s204 + $0xf8] sm:$0xff]
      %v672 = vld [vmem:[%s204 + $0x100] sm:$0xff]
      %v673 = vld [vmem:[%s204 + $0x108] sm:$0xff]
      %v674 = vld [vmem:[%s204 + $0x110] sm:$0xff]
      %v675 = vld [vmem:[%s204 + $0x118] sm:$0xff]
      %v676 = vld [vmem:[%s199 + $0x1] sm:$0xff]
      %v677 = vld [vmem:[%s199 + $0x9] sm:$0xff]
      %v678 = vld [vmem:[%s199 + $0x11] sm:$0xff]
      %v679 = vld [vmem:[%s199 + $0x19] sm:$0xff]
      %v680 = vld [vmem:[%s199 + $0x21] sm:$0xff]
      %v681 = vld [vmem:[%s199 + $0x29] sm:$0xff]
      %v682 = vld [vmem:[%s199 + $0x31] sm:$0xff]
      %v683 = vld [vmem:[%s199 + $0x39] sm:$0xff]
      %v684 = vld [vmem:[%s199 + $0x41] sm:$0xff]
      %v685 = vld [vmem:[%s199 + $0x49] sm:$0xff]
      %v686 = vld [vmem:[%s199 + $0x51] sm:$0xff]
      %v687 = vld [vmem:[%s199 + $0x59] sm:$0xff]
      %v688 = vld [vmem:[%s199 + $0x61] sm:$0xff]
      %v689 = vld [vmem:[%s199 + $0x69] sm:$0xff]
      %v690 = vld [vmem:[%s199 + $0x71] sm:$0xff]
      %v691 = vld [vmem:[%s199 + $0x79] sm:$0xff]
      %v692 = vld [vmem:[%s199 + $0x81] sm:$0xff]
      %v693 = vld [vmem:[%s199 + $0x89] sm:$0xff]
      %v694 = vld [vmem:[%s199 + $0x91] sm:$0xff]
      %v695 = vld [vmem:[%s199 + $0x99] sm:$0xff]
      %v696 = vld [vmem:[%s199 + $0xa1] sm:$0xff]
      %v697 = vld [vmem:[%s199 + $0xa9] sm:$0xff]
      %v698 = vld [vmem:[%s199 + $0xb1] sm:$0xff]
      %v699 = vld [vmem:[%s199 + $0xb9] sm:$0xff]
      %v700 = vld [vmem:[%s199 + $0xc1] sm:$0xff]
      %v701 = vld [vmem:[%s199 + $0xc9] sm:$0xff]
      %v702 = vld [vmem:[%s199 + $0xd1] sm:$0xff]
      %v703 = vld [vmem:[%s199 + $0xd9] sm:$0xff]
      %v704 = vld [vmem:[%s199 + $0xe1] sm:$0xff]
      %v705 = vld [vmem:[%s199 + $0xe9] sm:$0xff]
      %v706 = vld [vmem:[%s199 + $0xf1] sm:$0xff]
      %v707 = vld [vmem:[%s199 + $0xf9] sm:$0xff]
      %v708 = vld [vmem:[%s199 + $0x101] sm:$0xff]
      %v709 = vld [vmem:[%s199 + $0x109] sm:$0xff]
      %v710 = vld [vmem:[%s199 + $0x111] sm:$0xff]
      %v711 = vld [vmem:[%s199 + $0x119] sm:$0xff]
      %s712 = scalar_lea.vmem %s1, 4
      %v713 = vld [vmem:[%s712] sm:$0xf]
      %v715 = vsel %vm246, %v676, 0
      %v718 = vsel %vm246, %v677, 0
      %v721 = vsel %vm246, %v678, 0
      %v724 = vsel %vm246, %v679, 0
      %v727 = vsel %vm246, %v680, 0
      %v730 = vsel %vm246, %v681, 0
      %v733 = vsel %vm246, %v682, 0
      %v736 = vsel %vm246, %v683, 0
      %v739 = vsel %vm246, %v684, 0
      %v742 = vsel %vm246, %v685, 0
      %v745 = vsel %vm246, %v686, 0
      %v748 = vsel %vm246, %v687, 0
      %v751 = vsel %vm246, %v688, 0
      %v754 = vsel %vm246, %v689, 0
      %v757 = vsel %vm246, %v690, 0
      %v760 = vsel %vm246, %v691, 0
      %v763 = vsel %vm246, %v692, 0
      %v766 = vsel %vm246, %v693, 0
      %v769 = vsel %vm246, %v694, 0
      %v772 = vsel %vm246, %v695, 0
      %v775 = vsel %vm246, %v696, 0
      %v778 = vsel %vm246, %v697, 0
      %v781 = vsel %vm246, %v698, 0
      %v784 = vsel %vm246, %v699, 0
      %v787 = vsel %vm246, %v700, 0
      %v790 = vsel %vm246, %v701, 0
      %v793 = vsel %vm246, %v702, 0
      %v796 = vsel %vm246, %v703, 0
      %v799 = vsel %vm246, %v704, 0
      %v802 = vsel %vm246, %v705, 0
      %v805 = vsel %vm246, %v706, 0
      %v808 = vsel %vm246, %v707, 0
      %v811 = vsel %vm246, %v708, 0
      %v814 = vsel %vm246, %v709, 0
      %v817 = vsel %vm246, %v710, 0
      %v820 = vsel %vm246, %v711, 0
      %v823 = vsel %vm355, %v713, 0
      %825 = vmatprep.subr.mxu0 0.0
      %826 = vmatpush1.msra.mxu0 %v823
      %827 = vmatprep.subr.mxu0 0.0
      %828 = vmatpush1.msra.mxu0 0.0
      %829 = vmatprep.subr.mxu0 0.0
      %830 = vmatpush1.msra.mxu0 0.0
      %831 = vmatprep.subr.mxu0 0.0
      %832 = vmatpush1.msra.mxu0 0.0
      %833 = vmatprep.subr.mxu0 0.0
      %834 = vmatpush1.msra.mxu0 0.0
      %835 = vmatprep.subr.mxu0 0.0
      %836 = vmatpush1.msra.mxu0 0.0
      %837 = vmatprep.subr.mxu0 0.0
      %838 = vmatpush1.msra.mxu0 0.0
      %839 = vmatprep.subr.mxu0 0.0
      %840 = vmatpush1.msra.mxu0 0.0
      %841 = vmatprep.subr.mxu0 0.0
      %842 = vmatpush1.msra.mxu0 0.0
      %843 = vmatprep.subr.mxu0 0.0
      %844 = vmatpush1.msra.mxu0 0.0
      %845 = vmatprep.subr.mxu0 0.0
      %846 = vmatpush1.msra.mxu0 0.0
      %847 = vmatprep.subr.mxu0 0.0
      %848 = vmatpush1.msra.mxu0 0.0
      %849 = vmatprep.subr.mxu0 0.0
      %850 = vmatpush1.msra.mxu0 0.0
      %851 = vmatprep.subr.mxu0 0.0
      %852 = vmatpush1.msra.mxu0 0.0
      %853 = vmatprep.subr.mxu0 0.0
      %854 = vmatpush1.msra.mxu0 0.0
      %855 = vmatprep.subr.mxu0 0.0
      %856 = vmatpush1.msra.mxu0 0.0
      %857 = vmatprep.subr.mxu0 0.0
      %858 = vmatpush1.msra.mxu0 0.0
      %859 = vmatprep.subr.mxu0 0.0
      %860 = vmatpush1.msra.mxu0 0.0
      %861 = vmatprep.subr.mxu0 0.0
      %862 = vmatpush1.msra.mxu0 0.0
      %863 = vmatprep.subr.mxu0 0.0
      %864 = vmatpush1.msra.mxu0 0.0
      %865 = vmatprep.subr.mxu0 0.0
      %866 = vmatpush1.msra.mxu0 0.0
      %867 = vmatprep.subr.mxu0 0.0
      %868 = vmatpush1.msra.mxu0 0.0
      %869 = vmatprep.subr.mxu0 0.0
      %870 = vmatpush1.msra.mxu0 0.0
      %871 = vmatprep.subr.mxu0 0.0
      %872 = vmatpush1.msra.mxu0 0.0
      %873 = vmatprep.subr.mxu0 0.0
      %874 = vmatpush1.msra.mxu0 0.0
      %875 = vmatprep.subr.mxu0 0.0
      %876 = vmatpush1.msra.mxu0 0.0
      %877 = vmatprep.subr.mxu0 0.0
      %878 = vmatpush1.msra.mxu0 0.0
      %879 = vmatprep.subr.mxu0 0.0
      %880 = vmatpush1.msra.mxu0 0.0
      %881 = vmatprep.subr.mxu0 0.0
      %882 = vmatpush1.msra.mxu0 0.0
      %883 = vmatprep.subr.mxu0 0.0
      %884 = vmatpush1.msra.mxu0 0.0
      %885 = vmatprep.subr.mxu0 0.0
      %886 = vmatpush1.msra.mxu0 0.0
      %887 = vmatprep.subr.mxu0 0.0
      %888 = vmatpush1.msra.mxu0 0.0
      %889 = vmatprep.mubr.f32.mxu0 0.0
      %890 = vmatmul.mubr.f32.gmra.mrb[0].mxu0 %v715
      %v891 = vpop.f32.mrb[0].mxu0
      %v892 = vadd.f32 0.0, %v891
      %v893 = vpop.f32.mrb[0].mxu0
      %894 = vmatprep.mubr.f32.mxu0 0.0
      %895 = vmatmul.mubr.f32.gmra.mrb[0].mxu0 %v718
      %v896 = vpop.f32.mrb[0].mxu0
      %v897 = vadd.f32 0.0, %v896
      %v898 = vpop.f32.mrb[0].mxu0
      %899 = vmatprep.mubr.f32.mxu0 0.0
      %900 = vmatmul.mubr.f32.gmra.mrb[0].mxu0 %v721
      %v901 = vpop.f32.mrb[0].mxu0
      %v902 = vadd.f32 0.0, %v901
      %v903 = vpop.f32.mrb[0].mxu0
      %904 = vmatprep.mubr.f32.mxu0 0.0
      %905 = vmatmul.mubr.f32.gmra.mrb[0].mxu0 %v724
      %v906 = vpop.f32.mrb[0].mxu0
      %v907 = vadd.f32 0.0, %v906
      %v908 = vpop.f32.mrb[0].mxu0
      %909 = vmatprep.mubr.f32.mxu0 0.0
      %910 = vmatmul.mubr.f32.gmra.mrb[0].mxu0 %v727
      %v911 = vpop.f32.mrb[0].mxu0
      %v912 = vadd.f32 0.0, %v911
      %v913 = vpop.f32.mrb[0].mxu0
      %914 = vmatprep.mubr.f32.mxu0 0.0
      %915 = vmatmul.mubr.f32.gmra.mrb[0].mxu0 %v730
      %v916 = vpop.f32.mrb[0].mxu0
      %v917 = vadd.f32 0.0, %v916
      %v918 = vpop.f32.mrb[0].mxu0
      %919 = vmatprep.mubr.f32.mxu0 0.0
      %920 = vmatmul.mubr.f32.gmra.mrb[0].mxu0 %v733
      %v921 = vpop.f32.mrb[0].mxu0
      %v922 = vadd.f32 0.0, %v921
      %v923 = vpop.f32.mrb[0].mxu0
      %924 = vmatprep.mubr.f32.mxu0 0.0
      %925 = vmatmul.mubr.f32.gmra.mrb[0].mxu0 %v736
      %v926 = vpop.f32.mrb[0].mxu0
      %v927 = vadd.f32 0.0, %v926
      %v928 = vpop.f32.mrb[0].mxu0
      %929 = vmatprep.mubr.f32.mxu0 0.0
      %930 = vmatmul.mubr.f32.gmra.mrb[0].mxu0 %v739
      %v931 = vpop.f32.mrb[0].mxu0
      %v932 = vadd.f32 0.0, %v931
      %v933 = vpop.f32.mrb[0].mxu0
      %934 = vmatprep.mubr.f32.mxu0 0.0
      %935 = vmatmul.mubr.f32.gmra.mrb[0].mxu0 %v742
      %v936 = vpop.f32.mrb[0].mxu0
      %v937 = vadd.f32 0.0, %v936
      %v938 = vpop.f32.mrb[0].mxu0
      %939 = vmatprep.mubr.f32.mxu0 0.0
      %940 = vmatmul.mubr.f32.gmra.mrb[0].mxu0 %v745
      %v941 = vpop.f32.mrb[0].mxu0
      %v942 = vadd.f32 0.0, %v941
      %v943 = vpop.f32.mrb[0].mxu0
      %944 = vmatprep.mubr.f32.mxu0 0.0
      %945 = vmatmul.mubr.f32.gmra.mrb[0].mxu0 %v748
      %v946 = vpop.f32.mrb[0].mxu0
      %v947 = vadd.f32 0.0, %v946
      %v948 = vpop.f32.mrb[0].mxu0
      %949 = vmatprep.mubr.f32.mxu0 0.0
      %950 = vmatmul.mubr.f32.gmra.mrb[0].mxu0 %v751
      %v951 = vpop.f32.mrb[0].mxu0
      %v952 = vadd.f32 0.0, %v951
      %v953 = vpop.f32.mrb[0].mxu0
      %954 = vmatprep.mubr.f32.mxu0 0.0
      %955 = vmatmul.mubr.f32.gmra.mrb[0].mxu0 %v754
      %v956 = vpop.f32.mrb[0].mxu0
      %v957 = vadd.f32 0.0, %v956
      %v958 = vpop.f32.mrb[0].mxu0
      %959 = vmatprep.mubr.f32.mxu0 0.0
      %960 = vmatmul.mubr.f32.gmra.mrb[0].mxu0 %v757
      %v961 = vpop.f32.mrb[0].mxu0
      %v962 = vadd.f32 0.0, %v961
      %v963 = vpop.f32.mrb[0].mxu0
      %964 = vmatprep.mubr.f32.mxu0 0.0
      %965 = vmatmul.mubr.f32.gmra.mrb[0].mxu0 %v760
      %v966 = vpop.f32.mrb[0].mxu0
      %v967 = vadd.f32 0.0, %v966
      %v968 = vpop.f32.mrb[0].mxu0
      %969 = vmatprep.mubr.f32.mxu0 0.0
      %970 = vmatmul.mubr.f32.gmra.mrb[0].mxu0 %v763
      %v971 = vpop.f32.mrb[0].mxu0
      %v972 = vadd.f32 0.0, %v971
      %v973 = vpop.f32.mrb[0].mxu0
      %974 = vmatprep.mubr.f32.mxu0 0.0
      %975 = vmatmul.mubr.f32.gmra.mrb[0].mxu0 %v766
      %v976 = vpop.f32.mrb[0].mxu0
      %v977 = vadd.f32 0.0, %v976
      %v978 = vpop.f32.mrb[0].mxu0
      %979 = vmatprep.mubr.f32.mxu0 0.0
      %980 = vmatmul.mubr.f32.gmra.mrb[0].mxu0 %v769
      %v981 = vpop.f32.mrb[0].mxu0
      %v982 = vadd.f32 0.0, %v981
      %v983 = vpop.f32.mrb[0].mxu0
      %984 = vmatprep.mubr.f32.mxu0 0.0
      %985 = vmatmul.mubr.f32.gmra.mrb[0].mxu0 %v772
      %v986 = vpop.f32.mrb[0].mxu0
      %v987 = vadd.f32 0.0, %v986
      %v988 = vpop.f32.mrb[0].mxu0
      %989 = vmatprep.mubr.f32.mxu0 0.0
      %990 = vmatmul.mubr.f32.gmra.mrb[0].mxu0 %v775
      %v991 = vpop.f32.mrb[0].mxu0
      %v992 = vadd.f32 0.0, %v991
      %v993 = vpop.f32.mrb[0].mxu0
      %994 = vmatprep.mubr.f32.mxu0 0.0
      %995 = vmatmul.mubr.f32.gmra.mrb[0].mxu0 %v778
      %v996 = vpop.f32.mrb[0].mxu0
      %v997 = vadd.f32 0.0, %v996
      %v998 = vpop.f32.mrb[0].mxu0
      %999 = vmatprep.mubr.f32.mxu0 0.0
      %1000 = vmatmul.mubr.f32.gmra.mrb[0].mxu0 %v781
      %v1001 = vpop.f32.mrb[0].mxu0
      %v1002 = vadd.f32 0.0, %v1001
      %v1003 = vpop.f32.mrb[0].mxu0
      %1004 = vmatprep.mubr.f32.mxu0 0.0
      %1005 = vmatmul.mubr.f32.gmra.mrb[0].mxu0 %v784
      %v1006 = vpop.f32.mrb[0].mxu0
      %v1007 = vadd.f32 0.0, %v1006
      %v1008 = vpop.f32.mrb[0].mxu0
      %1009 = vmatprep.mubr.f32.mxu0 0.0
      %1010 = vmatmul.mubr.f32.gmra.mrb[0].mxu0 %v787
      %v1011 = vpop.f32.mrb[0].mxu0
      %v1012 = vadd.f32 0.0, %v1011
      %v1013 = vpop.f32.mrb[0].mxu0
      %1014 = vmatprep.mubr.f32.mxu0 0.0
      %1015 = vmatmul.mubr.f32.gmra.mrb[0].mxu0 %v790
      %v1016 = vpop.f32.mrb[0].mxu0
      %v1017 = vadd.f32 0.0, %v1016
      %v1018 = vpop.f32.mrb[0].mxu0
      %1019 = vmatprep.mubr.f32.mxu0 0.0
      %1020 = vmatmul.mubr.f32.gmra.mrb[0].mxu0 %v793
      %v1021 = vpop.f32.mrb[0].mxu0
      %v1022 = vadd.f32 0.0, %v1021
      %v1023 = vpop.f32.mrb[0].mxu0
      %1024 = vmatprep.mubr.f32.mxu0 0.0
      %1025 = vmatmul.mubr.f32.gmra.mrb[0].mxu0 %v796
      %v1026 = vpop.f32.mrb[0].mxu0
      %v1027 = vadd.f32 0.0, %v1026
      %v1028 = vpop.f32.mrb[0].mxu0
      %1029 = vmatprep.mubr.f32.mxu0 0.0
      %1030 = vmatmul.mubr.f32.gmra.mrb[0].mxu0 %v799
      %v1031 = vpop.f32.mrb[0].mxu0
      %v1032 = vadd.f32 0.0, %v1031
      %v1033 = vpop.f32.mrb[0].mxu0
      %1034 = vmatprep.mubr.f32.mxu0 0.0
      %1035 = vmatmul.mubr.f32.gmra.mrb[0].mxu0 %v802
      %v1036 = vpop.f32.mrb[0].mxu0
      %v1037 = vadd.f32 0.0, %v1036
      %v1038 = vpop.f32.mrb[0].mxu0
      %1039 = vmatprep.mubr.f32.mxu0 0.0
      %1040 = vmatmul.mubr.f32.gmra.mrb[0].mxu0 %v805
      %v1041 = vpop.f32.mrb[0].mxu0
      %v1042 = vadd.f32 0.0, %v1041
      %v1043 = vpop.f32.mrb[0].mxu0
      %1044 = vmatprep.mubr.f32.mxu0 0.0
      %1045 = vmatmul.mubr.f32.gmra.mrb[0].mxu0 %v808
      %v1046 = vpop.f32.mrb[0].mxu0
      %v1047 = vadd.f32 0.0, %v1046
      %v1048 = vpop.f32.mrb[0].mxu0
      %1049 = vmatprep.mubr.f32.mxu0 0.0
      %1050 = vmatmul.mubr.f32.gmra.mrb[0].mxu0 %v811
      %v1051 = vpop.f32.mrb[0].mxu0
      %v1052 = vadd.f32 0.0, %v1051
      %v1053 = vpop.f32.mrb[0].mxu0
      %1054 = vmatprep.mubr.f32.mxu0 0.0
      %1055 = vmatmul.mubr.f32.gmra.mrb[0].mxu0 %v814
      %v1056 = vpop.f32.mrb[0].mxu0
      %v1057 = vadd.f32 0.0, %v1056
      %v1058 = vpop.f32.mrb[0].mxu0
      %1059 = vmatprep.mubr.f32.mxu0 0.0
      %1060 = vmatmul.mubr.f32.gmra.mrb[0].mxu0 %v817
      %v1061 = vpop.f32.mrb[0].mxu0
      %v1062 = vadd.f32 0.0, %v1061
      %v1063 = vpop.f32.mrb[0].mxu0
      %1064 = vmatprep.mubr.f32.mxu0 0.0
      %1065 = vmatmul.mubr.f32.gmra.mrb[0].mxu0 %v820
      %v1066 = vpop.f32.mrb[0].mxu0
      %v1067 = vadd.f32 0.0, %v1066
      %v1068 = vpop.f32.mrb[0].mxu0
      %1069 = vdwg.mxu0
      %v1070 = vadd.f32 %v640, %v892
      %v1071 = vadd.f32 %v641, %v897
      %v1072 = vadd.f32 %v642, %v902
      %v1073 = vadd.f32 %v643, %v907
      %v1074 = vadd.f32 %v644, %v912
      %v1075 = vadd.f32 %v645, %v917
      %v1076 = vadd.f32 %v646, %v922
      %v1077 = vadd.f32 %v647, %v927
      %v1078 = vadd.f32 %v648, %v932
      %v1079 = vadd.f32 %v649, %v937
      %v1080 = vadd.f32 %v650, %v942
      %v1081 = vadd.f32 %v651, %v947
      %v1082 = vadd.f32 %v652, %v952
      %v1083 = vadd.f32 %v653, %v957
      %v1084 = vadd.f32 %v654, %v962
      %v1085 = vadd.f32 %v655, %v967
      %v1086 = vadd.f32 %v656, %v972
      %v1087 = vadd.f32 %v657, %v977
      %v1088 = vadd.f32 %v658, %v982
      %v1089 = vadd.f32 %v659, %v987
      %v1090 = vadd.f32 %v660, %v992
      %v1091 = vadd.f32 %v661, %v997
      %v1092 = vadd.f32 %v662, %v1002
      %v1093 = vadd.f32 %v663, %v1007
      %v1094 = vadd.f32 %v664, %v1012
      %v1095 = vadd.f32 %v665, %v1017
      %v1096 = vadd.f32 %v666, %v1022
      %v1097 = vadd.f32 %v667, %v1027
      %v1098 = vadd.f32 %v668, %v1032
      %v1099 = vadd.f32 %v669, %v1037
      %v1100 = vadd.f32 %v670, %v1042
      %v1101 = vadd.f32 %v671, %v1047
      %v1102 = vadd.f32 %v672, %v1052
      %v1103 = vadd.f32 %v673, %v1057
      %v1104 = vadd.f32 %v674, %v1062
      %v1105 = vadd.f32 %v675, %v1067
      %1106 = vst [vmem:[%s204] sm:$0xff] %v1070
      %1107 = vst [vmem:[%s204 + $0x8] sm:$0xff] %v1071
      %1108 = vst [vmem:[%s204 + $0x10] sm:$0xff] %v1072
      %1109 = vst [vmem:[%s204 + $0x18] sm:$0xff] %v1073
      %1110 = vst [vmem:[%s204 + $0x20] sm:$0xff] %v1074
      %1111 = vst [vmem:[%s204 + $0x28] sm:$0xff] %v1075
      %1112 = vst [vmem:[%s204 + $0x30] sm:$0xff] %v1076
      %1113 = vst [vmem:[%s204 + $0x38] sm:$0xff] %v1077
      %1114 = vst [vmem:[%s204 + $0x40] sm:$0xff] %v1078
      %1115 = vst [vmem:[%s204 + $0x48] sm:$0xff] %v1079
      %1116 = vst [vmem:[%s204 + $0x50] sm:$0xff] %v1080
      %1117 = vst [vmem:[%s204 + $0x58] sm:$0xff] %v1081
      %1118 = vst [vmem:[%s204 + $0x60] sm:$0xff] %v1082
      %1119 = vst [vmem:[%s204 + $0x68] sm:$0xff] %v1083
      %1120 = vst [vmem:[%s204 + $0x70] sm:$0xff] %v1084
      %1121 = vst [vmem:[%s204 + $0x78] sm:$0xff] %v1085
      %1122 = vst [vmem:[%s204 + $0x80] sm:$0xff] %v1086
      %1123 = vst [vmem:[%s204 + $0x88] sm:$0xff] %v1087
      %1124 = vst [vmem:[%s204 + $0x90] sm:$0xff] %v1088
      %1125 = vst [vmem:[%s204 + $0x98] sm:$0xff] %v1089
      %1126 = vst [vmem:[%s204 + $0xa0] sm:$0xff] %v1090
      %1127 = vst [vmem:[%s204 + $0xa8] sm:$0xff] %v1091
      %1128 = vst [vmem:[%s204 + $0xb0] sm:$0xff] %v1092
      %1129 = vst [vmem:[%s204 + $0xb8] sm:$0xff] %v1093
      %1130 = vst [vmem:[%s204 + $0xc0] sm:$0xff] %v1094
      %1131 = vst [vmem:[%s204 + $0xc8] sm:$0xff] %v1095
      %1132 = vst [vmem:[%s204 + $0xd0] sm:$0xff] %v1096
      %1133 = vst [vmem:[%s204 + $0xd8] sm:$0xff] %v1097
      %1134 = vst [vmem:[%s204 + $0xe0] sm:$0xff] %v1098
      %1135 = vst [vmem:[%s204 + $0xe8] sm:$0xff] %v1099
      %1136 = vst [vmem:[%s204 + $0xf0] sm:$0xff] %v1100
      %1137 = vst [vmem:[%s204 + $0xf8] sm:$0xff] %v1101
      %1138 = vst [vmem:[%s204 + $0x100] sm:$0xff] %v1102
      %1139 = vst [vmem:[%s204 + $0x108] sm:$0xff] %v1103
      %1140 = vst [vmem:[%s204 + $0x110] sm:$0xff] %v1104
      %1141 = vst [vmem:[%s204 + $0x118] sm:$0xff] %v1105
      %v1142 = vld [vmem:[%s204] sm:$0xff]
      %v1143 = vld [vmem:[%s204 + $0x8] sm:$0xff]
      %v1144 = vld [vmem:[%s204 + $0x10] sm:$0xff]
      %v1145 = vld [vmem:[%s204 + $0x18] sm:$0xff]
      %v1146 = vld [vmem:[%s204 + $0x20] sm:$0xff]
      %v1147 = vld [vmem:[%s204 + $0x28] sm:$0xff]
      %v1148 = vld [vmem:[%s204 + $0x30] sm:$0xff]
      %v1149 = vld [vmem:[%s204 + $0x38] sm:$0xff]
      %v1150 = vld [vmem:[%s204 + $0x40] sm:$0xff]
      %v1151 = vld [vmem:[%s204 + $0x48] sm:$0xff]
      %v1152 = vld [vmem:[%s204 + $0x50] sm:$0xff]
      %v1153 = vld [vmem:[%s204 + $0x58] sm:$0xff]
      %v1154 = vld [vmem:[%s204 + $0x60] sm:$0xff]
      %v1155 = vld [vmem:[%s204 + $0x68] sm:$0xff]
      %v1156 = vld [vmem:[%s204 + $0x70] sm:$0xff]
      %v1157 = vld [vmem:[%s204 + $0x78] sm:$0xff]
      %v1158 = vld [vmem:[%s204 + $0x80] sm:$0xff]
      %v1159 = vld [vmem:[%s204 + $0x88] sm:$0xff]
      %v1160 = vld [vmem:[%s204 + $0x90] sm:$0xff]
      %v1161 = vld [vmem:[%s204 + $0x98] sm:$0xff]
      %v1162 = vld [vmem:[%s204 + $0xa0] sm:$0xff]
      %v1163 = vld [vmem:[%s204 + $0xa8] sm:$0xff]
      %v1164 = vld [vmem:[%s204 + $0xb0] sm:$0xff]
      %v1165 = vld [vmem:[%s204 + $0xb8] sm:$0xff]
      %v1166 = vld [vmem:[%s204 + $0xc0] sm:$0xff]
      %v1167 = vld [vmem:[%s204 + $0xc8] sm:$0xff]
      %v1168 = vld [vmem:[%s204 + $0xd0] sm:$0xff]
      %v1169 = vld [vmem:[%s204 + $0xd8] sm:$0xff]
      %v1170 = vld [vmem:[%s204 + $0xe0] sm:$0xff]
      %v1171 = vld [vmem:[%s204 + $0xe8] sm:$0xff]
      %v1172 = vld [vmem:[%s204 + $0xf0] sm:$0xff]
      %v1173 = vld [vmem:[%s204 + $0xf8] sm:$0xff]
      %v1174 = vld [vmem:[%s204 + $0x100] sm:$0xff]
      %v1175 = vld [vmem:[%s204 + $0x108] sm:$0xff]
      %v1176 = vld [vmem:[%s204 + $0x110] sm:$0xff]
      %v1177 = vld [vmem:[%s204 + $0x118] sm:$0xff]
      %v1178 = vld [vmem:[%s199 + $0x2] sm:$0xff]
      %v1179 = vld [vmem:[%s199 + $0xa] sm:$0xff]
      %v1180 = vld [vmem:[%s199 + $0x12] sm:$0xff]
      %v1181 = vld [vmem:[%s199 + $0x1a] sm:$0xff]
      %v1182 = vld [vmem:[%s199 + $0x22] sm:$0xff]
      %v1183 = vld [vmem:[%s199 + $0x2a] sm:$0xff]
      %v1184 = vld [vmem:[%s199 + $0x32] sm:$0xff]
      %v1185 = vld [vmem:[%s199 + $0x3a] sm:$0xff]
      %v1186 = vld [vmem:[%s199 + $0x42] sm:$0xff]
      %v1187 = vld [vmem:[%s199 + $0x4a] sm:$0xff]
      %v1188 = vld [vmem:[%s199 + $0x52] sm:$0xff]
      %v1189 = vld [vmem:[%s199 + $0x5a] sm:$0xff]
      %v1190 = vld [vmem:[%s199 + $0x62] sm:$0xff]
      %v1191 = vld [vmem:[%s199 + $0x6a] sm:$0xff]
      %v1192 = vld [vmem:[%s199 + $0x72] sm:$0xff]
      %v1193 = vld [vmem:[%s199 + $0x7a] sm:$0xff]
      %v1194 = vld [vmem:[%s199 + $0x82] sm:$0xff]
      %v1195 = vld [vmem:[%s199 + $0x8a] sm:$0xff]
      %v1196 = vld [vmem:[%s199 + $0x92] sm:$0xff]
      %v1197 = vld [vmem:[%s199 + $0x9a] sm:$0xff]
      %v1198 = vld [vmem:[%s199 + $0xa2] sm:$0xff]
      %v1199 = vld [vmem:[%s199 + $0xaa] sm:$0xff]
      %v1200 = vld [vmem:[%s199 + $0xb2] sm:$0xff]
      %v1201 = vld [vmem:[%s199 + $0xba] sm:$0xff]
      %v1202 = vld [vmem:[%s199 + $0xc2] sm:$0xff]
      %v1203 = vld [vmem:[%s199 + $0xca] sm:$0xff]
      %v1204 = vld [vmem:[%s199 + $0xd2] sm:$0xff]
      %v1205 = vld [vmem:[%s199 + $0xda] sm:$0xff]
      %v1206 = vld [vmem:[%s199 + $0xe2] sm:$0xff]
      %v1207 = vld [vmem:[%s199 + $0xea] sm:$0xff]
      %v1208 = vld [vmem:[%s199 + $0xf2] sm:$0xff]
      %v1209 = vld [vmem:[%s199 + $0xfa] sm:$0xff]
      %v1210 = vld [vmem:[%s199 + $0x102] sm:$0xff]
      %v1211 = vld [vmem:[%s199 + $0x10a] sm:$0xff]
      %v1212 = vld [vmem:[%s199 + $0x112] sm:$0xff]
      %v1213 = vld [vmem:[%s199 + $0x11a] sm:$0xff]
      %s1214 = scalar_lea.vmem %s1, 8
      %v1215 = vld [vmem:[%s1214] sm:$0xf]
      %v1217 = vsel %vm246, %v1178, 0
      %v1220 = vsel %vm246, %v1179, 0
      %v1223 = vsel %vm246, %v1180, 0
      %v1226 = vsel %vm246, %v1181, 0
      %v1229 = vsel %vm246, %v1182, 0
      %v1232 = vsel %vm246, %v1183, 0
      %v1235 = vsel %vm246, %v1184, 0
      %v1238 = vsel %vm246, %v1185, 0
      %v1241 = vsel %vm246, %v1186, 0
      %v1244 = vsel %vm246, %v1187, 0
      %v1247 = vsel %vm246, %v1188, 0
      %v1250 = vsel %vm246, %v1189, 0
      %v1253 = vsel %vm246, %v1190, 0
      %v1256 = vsel %vm246, %v1191, 0
      %v1259 = vsel %vm246, %v1192, 0
      %v1262 = vsel %vm246, %v1193, 0
      %v1265 = vsel %vm246, %v1194, 0
      %v1268 = vsel %vm246, %v1195, 0
      %v1271 = vsel %vm246, %v1196, 0
      %v1274 = vsel %vm246, %v1197, 0
      %v1277 = vsel %vm246, %v1198, 0
      %v1280 = vsel %vm246, %v1199, 0
      %v1283 = vsel %vm246, %v1200, 0
      %v1286 = vsel %vm246, %v1201, 0
      %v1289 = vsel %vm246, %v1202, 0
      %v1292 = vsel %vm246, %v1203, 0
      %v1295 = vsel %vm246, %v1204, 0
      %v1298 = vsel %vm246, %v1205, 0
      %v1301 = vsel %vm246, %v1206, 0
      %v1304 = vsel %vm246, %v1207, 0
      %v1307 = vsel %vm246, %v1208, 0
      %v1310 = vsel %vm246, %v1209, 0
      %v1313 = vsel %vm246, %v1210, 0
      %v1316 = vsel %vm246, %v1211, 0
      %v1319 = vsel %vm246, %v1212, 0
      %v1322 = vsel %vm246, %v1213, 0
      %v1325 = vsel %vm355, %v1215, 0
      %1327 = vmatprep.subr.mxu0 0.0
      %1328 = vmatpush1.msra.mxu0 %v1325
      %1329 = vmatprep.subr.mxu0 0.0
      %1330 = vmatpush1.msra.mxu0 0.0
      %1331 = vmatprep.subr.mxu0 0.0
      %1332 = vmatpush1.msra.mxu0 0.0
      %1333 = vmatprep.subr.mxu0 0.0
      %1334 = vmatpush1.msra.mxu0 0.0
      %1335 = vmatprep.subr.mxu0 0.0
      %1336 = vmatpush1.msra.mxu0 0.0
      %1337 = vmatprep.subr.mxu0 0.0
      %1338 = vmatpush1.msra.mxu0 0.0
      %1339 = vmatprep.subr.mxu0 0.0
      %1340 = vmatpush1.msra.mxu0 0.0
      %1341 = vmatprep.subr.mxu0 0.0
      %1342 = vmatpush1.msra.mxu0 0.0
      %1343 = vmatprep.subr.mxu0 0.0
      %1344 = vmatpush1.msra.mxu0 0.0
      %1345 = vmatprep.subr.mxu0 0.0
      %1346 = vmatpush1.msra.mxu0 0.0
      %1347 = vmatprep.subr.mxu0 0.0
      %1348 = vmatpush1.msra.mxu0 0.0
      %1349 = vmatprep.subr.mxu0 0.0
      %1350 = vmatpush1.msra.mxu0 0.0
      %1351 = vmatprep.subr.mxu0 0.0
      %1352 = vmatpush1.msra.mxu0 0.0
      %1353 = vmatprep.subr.mxu0 0.0
      %1354 = vmatpush1.msra.mxu0 0.0
      %1355 = vmatprep.subr.mxu0 0.0
      %1356 = vmatpush1.msra.mxu0 0.0
      %1357 = vmatprep.subr.mxu0 0.0
      %1358 = vmatpush1.msra.mxu0 0.0
      %1359 = vmatprep.subr.mxu0 0.0
      %1360 = vmatpush1.msra.mxu0 0.0
      %1361 = vmatprep.subr.mxu0 0.0
      %1362 = vmatpush1.msra.mxu0 0.0
      %1363 = vmatprep.subr.mxu0 0.0
      %1364 = vmatpush1.msra.mxu0 0.0
      %1365 = vmatprep.subr.mxu0 0.0
      %1366 = vmatpush1.msra.mxu0 0.0
      %1367 = vmatprep.subr.mxu0 0.0
      %1368 = vmatpush1.msra.mxu0 0.0
      %1369 = vmatprep.subr.mxu0 0.0
      %1370 = vmatpush1.msra.mxu0 0.0
      %1371 = vmatprep.subr.mxu0 0.0
      %1372 = vmatpush1.msra.mxu0 0.0
      %1373 = vmatprep.subr.mxu0 0.0
      %1374 = vmatpush1.msra.mxu0 0.0
      %1375 = vmatprep.subr.mxu0 0.0
      %1376 = vmatpush1.msra.mxu0 0.0
      %1377 = vmatprep.subr.mxu0 0.0
      %1378 = vmatpush1.msra.mxu0 0.0
      %1379 = vmatprep.subr.mxu0 0.0
      %1380 = vmatpush1.msra.mxu0 0.0
      %1381 = vmatprep.subr.mxu0 0.0
      %1382 = vmatpush1.msra.mxu0 0.0
      %1383 = vmatprep.subr.mxu0 0.0
      %1384 = vmatpush1.msra.mxu0 0.0
      %1385 = vmatprep.subr.mxu0 0.0
      %1386 = vmatpush1.msra.mxu0 0.0
      %1387 = vmatprep.subr.mxu0 0.0
      %1388 = vmatpush1.msra.mxu0 0.0
      %1389 = vmatprep.subr.mxu0 0.0
      %1390 = vmatpush1.msra.mxu0 0.0
      %1391 = vmatprep.mubr.f32.mxu0 0.0
      %1392 = vmatmul.mubr.f32.gmra.mrb[0].mxu0 %v1217
      %v1393 = vpop.f32.mrb[0].mxu0
      %v1394 = vadd.f32 0.0, %v1393
      %v1395 = vpop.f32.mrb[0].mxu0
      %1396 = vmatprep.mubr.f32.mxu0 0.0
      %1397 = vmatmul.mubr.f32.gmra.mrb[0].mxu0 %v1220
      %v1398 = vpop.f32.mrb[0].mxu0
      %v1399 = vadd.f32 0.0, %v1398
      %v1400 = vpop.f32.mrb[0].mxu0
      %1401 = vmatprep.mubr.f32.mxu0 0.0
      %1402 = vmatmul.mubr.f32.gmra.mrb[0].mxu0 %v1223
      %v1403 = vpop.f32.mrb[0].mxu0
      %v1404 = vadd.f32 0.0, %v1403
      %v1405 = vpop.f32.mrb[0].mxu0
      %1406 = vmatprep.mubr.f32.mxu0 0.0
      %1407 = vmatmul.mubr.f32.gmra.mrb[0].mxu0 %v1226
      %v1408 = vpop.f32.mrb[0].mxu0
      %v1409 = vadd.f32 0.0, %v1408
      %v1410 = vpop.f32.mrb[0].mxu0
      %1411 = vmatprep.mubr.f32.mxu0 0.0
      %1412 = vmatmul.mubr.f32.gmra.mrb[0].mxu0 %v1229
      %v1413 = vpop.f32.mrb[0].mxu0
      %v1414 = vadd.f32 0.0, %v1413
      %v1415 = vpop.f32.mrb[0].mxu0
      %1416 = vmatprep.mubr.f32.mxu0 0.0
      %1417 = vmatmul.mubr.f32.gmra.mrb[0].mxu0 %v1232
      %v1418 = vpop.f32.mrb[0].mxu0
      %v1419 = vadd.f32 0.0, %v1418
      %v1420 = vpop.f32.mrb[0].mxu0
      %1421 = vmatprep.mubr.f32.mxu0 0.0
      %1422 = vmatmul.mubr.f32.gmra.mrb[0].mxu0 %v1235
      %v1423 = vpop.f32.mrb[0].mxu0
      %v1424 = vadd.f32 0.0, %v1423
      %v1425 = vpop.f32.mrb[0].mxu0
      %1426 = vmatprep.mubr.f32.mxu0 0.0
      %1427 = vmatmul.mubr.f32.gmra.mrb[0].mxu0 %v1238
      %v1428 = vpop.f32.mrb[0].mxu0
      %v1429 = vadd.f32 0.0, %v1428
      %v1430 = vpop.f32.mrb[0].mxu0
      %1431 = vmatprep.mubr.f32.mxu0 0.0
      %1432 = vmatmul.mubr.f32.gmra.mrb[0].mxu0 %v1241
      %v1433 = vpop.f32.mrb[0].mxu0
      %v1434 = vadd.f32 0.0, %v1433
      %v1435 = vpop.f32.mrb[0].mxu0
      %1436 = vmatprep.mubr.f32.mxu0 0.0
      %1437 = vmatmul.mubr.f32.gmra.mrb[0].mxu0 %v1244
      %v1438 = vpop.f32.mrb[0].mxu0
      %v1439 = vadd.f32 0.0, %v1438
      %v1440 = vpop.f32.mrb[0].mxu0
      %1441 = vmatprep.mubr.f32.mxu0 0.0
      %1442 = vmatmul.mubr.f32.gmra.mrb[0].mxu0 %v1247
      %v1443 = vpop.f32.mrb[0].mxu0
      %v1444 = vadd.f32 0.0, %v1443
      %v1445 = vpop.f32.mrb[0].mxu0
      %1446 = vmatprep.mubr.f32.mxu0 0.0
      %1447 = vmatmul.mubr.f32.gmra.mrb[0].mxu0 %v1250
      %v1448 = vpop.f32.mrb[0].mxu0
      %v1449 = vadd.f32 0.0, %v1448
      %v1450 = vpop.f32.mrb[0].mxu0
      %1451 = vmatprep.mubr.f32.mxu0 0.0
      %1452 = vmatmul.mubr.f32.gmra.mrb[0].mxu0 %v1253
      %v1453 = vpop.f32.mrb[0].mxu0
      %v1454 = vadd.f32 0.0, %v1453
      %v1455 = vpop.f32.mrb[0].mxu0
      %1456 = vmatprep.mubr.f32.mxu0 0.0
      %1457 = vmatmul.mubr.f32.gmra.mrb[0].mxu0 %v1256
      %v1458 = vpop.f32.mrb[0].mxu0
      %v1459 = vadd.f32 0.0, %v1458
      %v1460 = vpop.f32.mrb[0].mxu0
      %1461 = vmatprep.mubr.f32.mxu0 0.0
      %1462 = vmatmul.mubr.f32.gmra.mrb[0].mxu0 %v1259
      %v1463 = vpop.f32.mrb[0].mxu0
      %v1464 = vadd.f32 0.0, %v1463
      %v1465 = vpop.f32.mrb[0].mxu0
      %1466 = vmatprep.mubr.f32.mxu0 0.0
      %1467 = vmatmul.mubr.f32.gmra.mrb[0].mxu0 %v1262
      %v1468 = vpop.f32.mrb[0].mxu0
      %v1469 = vadd.f32 0.0, %v1468
      %v1470 = vpop.f32.mrb[0].mxu0
      %1471 = vmatprep.mubr.f32.mxu0 0.0
      %1472 = vmatmul.mubr.f32.gmra.mrb[0].mxu0 %v1265
      %v1473 = vpop.f32.mrb[0].mxu0
      %v1474 = vadd.f32 0.0, %v1473
      %v1475 = vpop.f32.mrb[0].mxu0
      %1476 = vmatprep.mubr.f32.mxu0 0.0
      %1477 = vmatmul.mubr.f32.gmra.mrb[0].mxu0 %v1268
      %v1478 = vpop.f32.mrb[0].mxu0
      %v1479 = vadd.f32 0.0, %v1478
      %v1480 = vpop.f32.mrb[0].mxu0
      %1481 = vmatprep.mubr.f32.mxu0 0.0
      %1482 = vmatmul.mubr.f32.gmra.mrb[0].mxu0 %v1271
      %v1483 = vpop.f32.mrb[0].mxu0
      %v1484 = vadd.f32 0.0, %v1483
      %v1485 = vpop.f32.mrb[0].mxu0
      %1486 = vmatprep.mubr.f32.mxu0 0.0
      %1487 = vmatmul.mubr.f32.gmra.mrb[0].mxu0 %v1274
      %v1488 = vpop.f32.mrb[0].mxu0
      %v1489 = vadd.f32 0.0, %v1488
      %v1490 = vpop.f32.mrb[0].mxu0
      %1491 = vmatprep.mubr.f32.mxu0 0.0
      %1492 = vmatmul.mubr.f32.gmra.mrb[0].mxu0 %v1277
      %v1493 = vpop.f32.mrb[0].mxu0
      %v1494 = vadd.f32 0.0, %v1493
      %v1495 = vpop.f32.mrb[0].mxu0
      %1496 = vmatprep.mubr.f32.mxu0 0.0
      %1497 = vmatmul.mubr.f32.gmra.mrb[0].mxu0 %v1280
      %v1498 = vpop.f32.mrb[0].mxu0
      %v1499 = vadd.f32 0.0, %v1498
      %v1500 = vpop.f32.mrb[0].mxu0
      %1501 = vmatprep.mubr.f32.mxu0 0.0
      %1502 = vmatmul.mubr.f32.gmra.mrb[0].mxu0 %v1283
      %v1503 = vpop.f32.mrb[0].mxu0
      %v1504 = vadd.f32 0.0, %v1503
      %v1505 = vpop.f32.mrb[0].mxu0
      %1506 = vmatprep.mubr.f32.mxu0 0.0
      %1507 = vmatmul.mubr.f32.gmra.mrb[0].mxu0 %v1286
      %v1508 = vpop.f32.mrb[0].mxu0
      %v1509 = vadd.f32 0.0, %v1508
      %v1510 = vpop.f32.mrb[0].mxu0
      %1511 = vmatprep.mubr.f32.mxu0 0.0
      %1512 = vmatmul.mubr.f32.gmra.mrb[0].mxu0 %v1289
      %v1513 = vpop.f32.mrb[0].mxu0
      %v1514 = vadd.f32 0.0, %v1513
      %v1515 = vpop.f32.mrb[0].mxu0
      %1516 = vmatprep.mubr.f32.mxu0 0.0
      %1517 = vmatmul.mubr.f32.gmra.mrb[0].mxu0 %v1292
      %v1518 = vpop.f32.mrb[0].mxu0
      %v1519 = vadd.f32 0.0, %v1518
      %v1520 = vpop.f32.mrb[0].mxu0
      %1521 = vmatprep.mubr.f32.mxu0 0.0
      %1522 = vmatmul.mubr.f32.gmra.mrb[0].mxu0 %v1295
      %v1523 = vpop.f32.mrb[0].mxu0
      %v1524 = vadd.f32 0.0, %v1523
      %v1525 = vpop.f32.mrb[0].mxu0
      %1526 = vmatprep.mubr.f32.mxu0 0.0
      %1527 = vmatmul.mubr.f32.gmra.mrb[0].mxu0 %v1298
      %v1528 = vpop.f32.mrb[0].mxu0
      %v1529 = vadd.f32 0.0, %v1528
      %v1530 = vpop.f32.mrb[0].mxu0
      %1531 = vmatprep.mubr.f32.mxu0 0.0
      %1532 = vmatmul.mubr.f32.gmra.mrb[0].mxu0 %v1301
      %v1533 = vpop.f32.mrb[0].mxu0
      %v1534 = vadd.f32 0.0, %v1533
      %v1535 = vpop.f32.mrb[0].mxu0
      %1536 = vmatprep.mubr.f32.mxu0 0.0
      %1537 = vmatmul.mubr.f32.gmra.mrb[0].mxu0 %v1304
      %v1538 = vpop.f32.mrb[0].mxu0
      %v1539 = vadd.f32 0.0, %v1538
      %v1540 = vpop.f32.mrb[0].mxu0
      %1541 = vmatprep.mubr.f32.mxu0 0.0
      %1542 = vmatmul.mubr.f32.gmra.mrb[0].mxu0 %v1307
      %v1543 = vpop.f32.mrb[0].mxu0
      %v1544 = vadd.f32 0.0, %v1543
      %v1545 = vpop.f32.mrb[0].mxu0
      %1546 = vmatprep.mubr.f32.mxu0 0.0
      %1547 = vmatmul.mubr.f32.gmra.mrb[0].mxu0 %v1310
      %v1548 = vpop.f32.mrb[0].mxu0
      %v1549 = vadd.f32 0.0, %v1548
      %v1550 = vpop.f32.mrb[0].mxu0
      %1551 = vmatprep.mubr.f32.mxu0 0.0
      %1552 = vmatmul.mubr.f32.gmra.mrb[0].mxu0 %v1313
      %v1553 = vpop.f32.mrb[0].mxu0
      %v1554 = vadd.f32 0.0, %v1553
      %v1555 = vpop.f32.mrb[0].mxu0
      %1556 = vmatprep.mubr.f32.mxu0 0.0
      %1557 = vmatmul.mubr.f32.gmra.mrb[0].mxu0 %v1316
      %v1558 = vpop.f32.mrb[0].mxu0
      %v1559 = vadd.f32 0.0, %v1558
      %v1560 = vpop.f32.mrb[0].mxu0
      %1561 = vmatprep.mubr.f32.mxu0 0.0
      %1562 = vmatmul.mubr.f32.gmra.mrb[0].mxu0 %v1319
      %v1563 = vpop.f32.mrb[0].mxu0
      %v1564 = vadd.f32 0.0, %v1563
      %v1565 = vpop.f32.mrb[0].mxu0
      %1566 = vmatprep.mubr.f32.mxu0 0.0
      %1567 = vmatmul.mubr.f32.gmra.mrb[0].mxu0 %v1322
      %v1568 = vpop.f32.mrb[0].mxu0
      %v1569 = vadd.f32 0.0, %v1568
      %v1570 = vpop.f32.mrb[0].mxu0
      %1571 = vdwg.mxu0
      %v1572 = vadd.f32 %v1142, %v1394
      %v1573 = vadd.f32 %v1143, %v1399
      %v1574 = vadd.f32 %v1144, %v1404
      %v1575 = vadd.f32 %v1145, %v1409
      %v1576 = vadd.f32 %v1146, %v1414
      %v1577 = vadd.f32 %v1147, %v1419
      %v1578 = vadd.f32 %v1148, %v1424
      %v1579 = vadd.f32 %v1149, %v1429
      %v1580 = vadd.f32 %v1150, %v1434
      %v1581 = vadd.f32 %v1151, %v1439
      %v1582 = vadd.f32 %v1152, %v1444
      %v1583 = vadd.f32 %v1153, %v1449
      %v1584 = vadd.f32 %v1154, %v1454
      %v1585 = vadd.f32 %v1155, %v1459
      %v1586 = vadd.f32 %v1156, %v1464
      %v1587 = vadd.f32 %v1157, %v1469
      %v1588 = vadd.f32 %v1158, %v1474
      %v1589 = vadd.f32 %v1159, %v1479
      %v1590 = vadd.f32 %v1160, %v1484
      %v1591 = vadd.f32 %v1161, %v1489
      %v1592 = vadd.f32 %v1162, %v1494
      %v1593 = vadd.f32 %v1163, %v1499
      %v1594 = vadd.f32 %v1164, %v1504
      %v1595 = vadd.f32 %v1165, %v1509
      %v1596 = vadd.f32 %v1166, %v1514
      %v1597 = vadd.f32 %v1167, %v1519
      %v1598 = vadd.f32 %v1168, %v1524
      %v1599 = vadd.f32 %v1169, %v1529
      %v1600 = vadd.f32 %v1170, %v1534
      %v1601 = vadd.f32 %v1171, %v1539
      %v1602 = vadd.f32 %v1172, %v1544
      %v1603 = vadd.f32 %v1173, %v1549
      %v1604 = vadd.f32 %v1174, %v1554
      %v1605 = vadd.f32 %v1175, %v1559
      %v1606 = vadd.f32 %v1176, %v1564
      %v1607 = vadd.f32 %v1177, %v1569
      %1608 = vst [vmem:[%s204] sm:$0xff] %v1572
      %1609 = vst [vmem:[%s204 + $0x8] sm:$0xff] %v1573
      %1610 = vst [vmem:[%s204 + $0x10] sm:$0xff] %v1574
      %1611 = vst [vmem:[%s204 + $0x18] sm:$0xff] %v1575
      %1612 = vst [vmem:[%s204 + $0x20] sm:$0xff] %v1576
      %1613 = vst [vmem:[%s204 + $0x28] sm:$0xff] %v1577
      %1614 = vst [vmem:[%s204 + $0x30] sm:$0xff] %v1578
      %1615 = vst [vmem:[%s204 + $0x38] sm:$0xff] %v1579
      %1616 = vst [vmem:[%s204 + $0x40] sm:$0xff] %v1580
      %1617 = vst [vmem:[%s204 + $0x48] sm:$0xff] %v1581
      %1618 = vst [vmem:[%s204 + $0x50] sm:$0xff] %v1582
      %1619 = vst [vmem:[%s204 + $0x58] sm:$0xff] %v1583
      %1620 = vst [vmem:[%s204 + $0x60] sm:$0xff] %v1584
      %1621 = vst [vmem:[%s204 + $0x68] sm:$0xff] %v1585
      %1622 = vst [vmem:[%s204 + $0x70] sm:$0xff] %v1586
      %1623 = vst [vmem:[%s204 + $0x78] sm:$0xff] %v1587
      %1624 = vst [vmem:[%s204 + $0x80] sm:$0xff] %v1588
      %1625 = vst [vmem:[%s204 + $0x88] sm:$0xff] %v1589
      %1626 = vst [vmem:[%s204 + $0x90] sm:$0xff] %v1590
      %1627 = vst [vmem:[%s204 + $0x98] sm:$0xff] %v1591
      %1628 = vst [vmem:[%s204 + $0xa0] sm:$0xff] %v1592
      %1629 = vst [vmem:[%s204 + $0xa8] sm:$0xff] %v1593
      %1630 = vst [vmem:[%s204 + $0xb0] sm:$0xff] %v1594
      %1631 = vst [vmem:[%s204 + $0xb8] sm:$0xff] %v1595
      %1632 = vst [vmem:[%s204 + $0xc0] sm:$0xff] %v1596
      %1633 = vst [vmem:[%s204 + $0xc8] sm:$0xff] %v1597
      %1634 = vst [vmem:[%s204 + $0xd0] sm:$0xff] %v1598
      %1635 = vst [vmem:[%s204 + $0xd8] sm:$0xff] %v1599
      %1636 = vst [vmem:[%s204 + $0xe0] sm:$0xff] %v1600
      %1637 = vst [vmem:[%s204 + $0xe8] sm:$0xff] %v1601
      %1638 = vst [vmem:[%s204 + $0xf0] sm:$0xff] %v1602
      %1639 = vst [vmem:[%s204 + $0xf8] sm:$0xff] %v1603
      %1640 = vst [vmem:[%s204 + $0x100] sm:$0xff] %v1604
      %1641 = vst [vmem:[%s204 + $0x108] sm:$0xff] %v1605
      %1642 = vst [vmem:[%s204 + $0x110] sm:$0xff] %v1606
      %1643 = vst [vmem:[%s204 + $0x118] sm:$0xff] %v1607
      %v1644 = vld [vmem:[%s204] sm:$0xff]
      %v1645 = vld [vmem:[%s204 + $0x8] sm:$0xff]
      %v1646 = vld [vmem:[%s204 + $0x10] sm:$0xff]
      %v1647 = vld [vmem:[%s204 + $0x18] sm:$0xff]
      %v1648 = vld [vmem:[%s204 + $0x20] sm:$0xff]
      %v1649 = vld [vmem:[%s204 + $0x28] sm:$0xff]
      %v1650 = vld [vmem:[%s204 + $0x30] sm:$0xff]
      %v1651 = vld [vmem:[%s204 + $0x38] sm:$0xff]
      %v1652 = vld [vmem:[%s204 + $0x40] sm:$0xff]
      %v1653 = vld [vmem:[%s204 + $0x48] sm:$0xff]
      %v1654 = vld [vmem:[%s204 + $0x50] sm:$0xff]
      %v1655 = vld [vmem:[%s204 + $0x58] sm:$0xff]
      %v1656 = vld [vmem:[%s204 + $0x60] sm:$0xff]
      %v1657 = vld [vmem:[%s204 + $0x68] sm:$0xff]
      %v1658 = vld [vmem:[%s204 + $0x70] sm:$0xff]
      %v1659 = vld [vmem:[%s204 + $0x78] sm:$0xff]
      %v1660 = vld [vmem:[%s204 + $0x80] sm:$0xff]
      %v1661 = vld [vmem:[%s204 + $0x88] sm:$0xff]
      %v1662 = vld [vmem:[%s204 + $0x90] sm:$0xff]
      %v1663 = vld [vmem:[%s204 + $0x98] sm:$0xff]
      %v1664 = vld [vmem:[%s204 + $0xa0] sm:$0xff]
      %v1665 = vld [vmem:[%s204 + $0xa8] sm:$0xff]
      %v1666 = vld [vmem:[%s204 + $0xb0] sm:$0xff]
      %v1667 = vld [vmem:[%s204 + $0xb8] sm:$0xff]
      %v1668 = vld [vmem:[%s204 + $0xc0] sm:$0xff]
      %v1669 = vld [vmem:[%s204 + $0xc8] sm:$0xff]
      %v1670 = vld [vmem:[%s204 + $0xd0] sm:$0xff]
      %v1671 = vld [vmem:[%s204 + $0xd8] sm:$0xff]
      %v1672 = vld [vmem:[%s204 + $0xe0] sm:$0xff]
      %v1673 = vld [vmem:[%s204 + $0xe8] sm:$0xff]
      %v1674 = vld [vmem:[%s204 + $0xf0] sm:$0xff]
      %v1675 = vld [vmem:[%s204 + $0xf8] sm:$0xff]
      %v1676 = vld [vmem:[%s204 + $0x100] sm:$0xff]
      %v1677 = vld [vmem:[%s204 + $0x108] sm:$0xff]
      %v1678 = vld [vmem:[%s204 + $0x110] sm:$0xff]
      %v1679 = vld [vmem:[%s204 + $0x118] sm:$0xff]
      %v1680 = vld [vmem:[%s199 + $0x12] sm:$0xff]
      %v1681 = vld [vmem:[%s199 + $0x1a] sm:$0xff]
      %v1682 = vld [vmem:[%s199 + $0x22] sm:$0xff]
      %v1683 = vld [vmem:[%s199 + $0x2a] sm:$0xff]
      %v1684 = vld [vmem:[%s199 + $0x32] sm:$0xff]
      %v1685 = vld [vmem:[%s199 + $0x3a] sm:$0xff]
      %v1686 = vld [vmem:[%s199 + $0x42] sm:$0xff]
      %v1687 = vld [vmem:[%s199 + $0x4a] sm:$0xff]
      %v1688 = vld [vmem:[%s199 + $0x52] sm:$0xff]
      %v1689 = vld [vmem:[%s199 + $0x5a] sm:$0xff]
      %v1690 = vld [vmem:[%s199 + $0x62] sm:$0xff]
      %v1691 = vld [vmem:[%s199 + $0x6a] sm:$0xff]
      %v1692 = vld [vmem:[%s199 + $0x72] sm:$0xff]
      %v1693 = vld [vmem:[%s199 + $0x7a] sm:$0xff]
      %v1694 = vld [vmem:[%s199 + $0x82] sm:$0xff]
      %v1695 = vld [vmem:[%s199 + $0x8a] sm:$0xff]
      %v1696 = vld [vmem:[%s199 + $0x92] sm:$0xff]
      %v1697 = vld [vmem:[%s199 + $0x9a] sm:$0xff]
      %v1698 = vld [vmem:[%s199 + $0xa2] sm:$0xff]
      %v1699 = vld [vmem:[%s199 + $0xaa] sm:$0xff]
      %v1700 = vld [vmem:[%s199 + $0xb2] sm:$0xff]
      %v1701 = vld [vmem:[%s199 + $0xba] sm:$0xff]
      %v1702 = vld [vmem:[%s199 + $0xc2] sm:$0xff]
      %v1703 = vld [vmem:[%s199 + $0xca] sm:$0xff]
      %v1704 = vld [vmem:[%s199 + $0xd2] sm:$0xff]
      %v1705 = vld [vmem:[%s199 + $0xda] sm:$0xff]
      %v1706 = vld [vmem:[%s199 + $0xe2] sm:$0xff]
      %v1707 = vld [vmem:[%s199 + $0xea] sm:$0xff]
      %v1708 = vld [vmem:[%s199 + $0xf2] sm:$0xff]
      %v1709 = vld [vmem:[%s199 + $0xfa] sm:$0xff]
      %v1710 = vld [vmem:[%s199 + $0x102] sm:$0xff]
      %v1711 = vld [vmem:[%s199 + $0x10a] sm:$0xff]
      %v1712 = vld [vmem:[%s199 + $0x112] sm:$0xff]
      %v1713 = vld [vmem:[%s199 + $0x11a] sm:$0xff]
      %v1714 = vld [vmem:[%s199 + $0x122] sm:$0xff]
      %v1715 = vld [vmem:[%s199 + $0x12a] sm:$0xff]
      %s1716 = scalar_lea.vmem %s1, 12
      %v1717 = vld [vmem:[%s1716] sm:$0xf]
      %v1719 = vsel %vm246, %v1680, 0
      %v1722 = vsel %vm246, %v1681, 0
      %v1725 = vsel %vm246, %v1682, 0
      %v1728 = vsel %vm246, %v1683, 0
      %v1731 = vsel %vm246, %v1684, 0
      %v1734 = vsel %vm246, %v1685, 0
      %v1737 = vsel %vm246, %v1686, 0
      %v1740 = vsel %vm246, %v1687, 0
      %v1743 = vsel %vm246, %v1688, 0
      %v1746 = vsel %vm246, %v1689, 0
      %v1749 = vsel %vm246, %v1690, 0
      %v1752 = vsel %vm246, %v1691, 0
      %v1755 = vsel %vm246, %v1692, 0
      %v1758 = vsel %vm246, %v1693, 0
      %v1761 = vsel %vm246, %v1694, 0
      %v1764 = vsel %vm246, %v1695, 0
      %v1767 = vsel %vm246, %v1696, 0
      %v1770 = vsel %vm246, %v1697, 0
      %v1773 = vsel %vm246, %v1698, 0
      %v1776 = vsel %vm246, %v1699, 0
      %v1779 = vsel %vm246, %v1700, 0
      %v1782 = vsel %vm246, %v1701, 0
      %v1785 = vsel %vm246, %v1702, 0
      %v1788 = vsel %vm246, %v1703, 0
      %v1791 = vsel %vm246, %v1704, 0
      %v1794 = vsel %vm246, %v1705, 0
      %v1797 = vsel %vm246, %v1706, 0
      %v1800 = vsel %vm246, %v1707, 0
      %v1803 = vsel %vm246, %v1708, 0
      %v1806 = vsel %vm246, %v1709, 0
      %v1809 = vsel %vm246, %v1710, 0
      %v1812 = vsel %vm246, %v1711, 0
      %v1815 = vsel %vm246, %v1712, 0
      %v1818 = vsel %vm246, %v1713, 0
      %v1821 = vsel %vm246, %v1714, 0
      %v1824 = vsel %vm246, %v1715, 0
      %v1827 = vsel %vm355, %v1717, 0
      %1829 = vmatprep.subr.mxu0 0.0
      %1830 = vmatpush1.msra.mxu0 %v1827
      %1831 = vmatprep.subr.mxu0 0.0
      %1832 = vmatpush1.msra.mxu0 0.0
      %1833 = vmatprep.subr.mxu0 0.0
      %1834 = vmatpush1.msra.mxu0 0.0
      %1835 = vmatprep.subr.mxu0 0.0
      %1836 = vmatpush1.msra.mxu0 0.0
      %1837 = vmatprep.subr.mxu0 0.0
      %1838 = vmatpush1.msra.mxu0 0.0
      %1839 = vmatprep.subr.mxu0 0.0
      %1840 = vmatpush1.msra.mxu0 0.0
      %1841 = vmatprep.subr.mxu0 0.0
      %1842 = vmatpush1.msra.mxu0 0.0
      %1843 = vmatprep.subr.mxu0 0.0
      %1844 = vmatpush1.msra.mxu0 0.0
      %1845 = vmatprep.subr.mxu0 0.0
      %1846 = vmatpush1.msra.mxu0 0.0
      %1847 = vmatprep.subr.mxu0 0.0
      %1848 = vmatpush1.msra.mxu0 0.0
      %1849 = vmatprep.subr.mxu0 0.0
      %1850 = vmatpush1.msra.mxu0 0.0
      %1851 = vmatprep.subr.mxu0 0.0
      %1852 = vmatpush1.msra.mxu0 0.0
      %1853 = vmatprep.subr.mxu0 0.0
      %1854 = vmatpush1.msra.mxu0 0.0
      %1855 = vmatprep.subr.mxu0 0.0
      %1856 = vmatpush1.msra.mxu0 0.0
      %1857 = vmatprep.subr.mxu0 0.0
      %1858 = vmatpush1.msra.mxu0 0.0
      %1859 = vmatprep.subr.mxu0 0.0
      %1860 = vmatpush1.msra.mxu0 0.0
      %1861 = vmatprep.subr.mxu0 0.0
      %1862 = vmatpush1.msra.mxu0 0.0
      %1863 = vmatprep.subr.mxu0 0.0
      %1864 = vmatpush1.msra.mxu0 0.0
      %1865 = vmatprep.subr.mxu0 0.0
      %1866 = vmatpush1.msra.mxu0 0.0
      %1867 = vmatprep.subr.mxu0 0.0
      %1868 = vmatpush1.msra.mxu0 0.0
      %1869 = vmatprep.subr.mxu0 0.0
      %1870 = vmatpush1.msra.mxu0 0.0
      %1871 = vmatprep.subr.mxu0 0.0
      %1872 = vmatpush1.msra.mxu0 0.0
      %1873 = vmatprep.subr.mxu0 0.0
      %1874 = vmatpush1.msra.mxu0 0.0
      %1875 = vmatprep.subr.mxu0 0.0
      %1876 = vmatpush1.msra.mxu0 0.0
      %1877 = vmatprep.subr.mxu0 0.0
      %1878 = vmatpush1.msra.mxu0 0.0
      %1879 = vmatprep.subr.mxu0 0.0
      %1880 = vmatpush1.msra.mxu0 0.0
      %1881 = vmatprep.subr.mxu0 0.0
      %1882 = vmatpush1.msra.mxu0 0.0
      %1883 = vmatprep.subr.mxu0 0.0
      %1884 = vmatpush1.msra.mxu0 0.0
      %1885 = vmatprep.subr.mxu0 0.0
      %1886 = vmatpush1.msra.mxu0 0.0
      %1887 = vmatprep.subr.mxu0 0.0
      %1888 = vmatpush1.msra.mxu0 0.0
      %1889 = vmatprep.subr.mxu0 0.0
      %1890 = vmatpush1.msra.mxu0 0.0
      %1891 = vmatprep.subr.mxu0 0.0
      %1892 = vmatpush1.msra.mxu0 0.0
      %1893 = vmatprep.mubr.f32.mxu0 0.0
      %1894 = vmatmul.mubr.f32.gmra.mrb[0].mxu0 %v1719
      %v1895 = vpop.f32.mrb[0].mxu0
      %v1896 = vadd.f32 0.0, %v1895
      %v1897 = vpop.f32.mrb[0].mxu0
      %1898 = vmatprep.mubr.f32.mxu0 0.0
      %1899 = vmatmul.mubr.f32.gmra.mrb[0].mxu0 %v1722
      %v1900 = vpop.f32.mrb[0].mxu0
      %v1901 = vadd.f32 0.0, %v1900
      %v1902 = vpop.f32.mrb[0].mxu0
      %1903 = vmatprep.mubr.f32.mxu0 0.0
      %1904 = vmatmul.mubr.f32.gmra.mrb[0].mxu0 %v1725
      %v1905 = vpop.f32.mrb[0].mxu0
      %v1906 = vadd.f32 0.0, %v1905
      %v1907 = vpop.f32.mrb[0].mxu0
      %1908 = vmatprep.mubr.f32.mxu0 0.0
      %1909 = vmatmul.mubr.f32.gmra.mrb[0].mxu0 %v1728
      %v1910 = vpop.f32.mrb[0].mxu0
      %v1911 = vadd.f32 0.0, %v1910
      %v1912 = vpop.f32.mrb[0].mxu0
      %1913 = vmatprep.mubr.f32.mxu0 0.0
      %1914 = vmatmul.mubr.f32.gmra.mrb[0].mxu0 %v1731
      %v1915 = vpop.f32.mrb[0].mxu0
      %v1916 = vadd.f32 0.0, %v1915
      %v1917 = vpop.f32.mrb[0].mxu0
      %1918 = vmatprep.mubr.f32.mxu0 0.0
      %1919 = vmatmul.mubr.f32.gmra.mrb[0].mxu0 %v1734
      %v1920 = vpop.f32.mrb[0].mxu0
      %v1921 = vadd.f32 0.0, %v1920
      %v1922 = vpop.f32.mrb[0].mxu0
      %1923 = vmatprep.mubr.f32.mxu0 0.0
      %1924 = vmatmul.mubr.f32.gmra.mrb[0].mxu0 %v1737
      %v1925 = vpop.f32.mrb[0].mxu0
      %v1926 = vadd.f32 0.0, %v1925
      %v1927 = vpop.f32.mrb[0].mxu0
      %1928 = vmatprep.mubr.f32.mxu0 0.0
      %1929 = vmatmul.mubr.f32.gmra.mrb[0].mxu0 %v1740
      %v1930 = vpop.f32.mrb[0].mxu0
      %v1931 = vadd.f32 0.0, %v1930
      %v1932 = vpop.f32.mrb[0].mxu0
      %1933 = vmatprep.mubr.f32.mxu0 0.0
      %1934 = vmatmul.mubr.f32.gmra.mrb[0].mxu0 %v1743
      %v1935 = vpop.f32.mrb[0].mxu0
      %v1936 = vadd.f32 0.0, %v1935
      %v1937 = vpop.f32.mrb[0].mxu0
      %1938 = vmatprep.mubr.f32.mxu0 0.0
      %1939 = vmatmul.mubr.f32.gmra.mrb[0].mxu0 %v1746
      %v1940 = vpop.f32.mrb[0].mxu0
      %v1941 = vadd.f32 0.0, %v1940
      %v1942 = vpop.f32.mrb[0].mxu0
      %1943 = vmatprep.mubr.f32.mxu0 0.0
      %1944 = vmatmul.mubr.f32.gmra.mrb[0].mxu0 %v1749
      %v1945 = vpop.f32.mrb[0].mxu0
      %v1946 = vadd.f32 0.0, %v1945
      %v1947 = vpop.f32.mrb[0].mxu0
      %1948 = vmatprep.mubr.f32.mxu0 0.0
      %1949 = vmatmul.mubr.f32.gmra.mrb[0].mxu0 %v1752
      %v1950 = vpop.f32.mrb[0].mxu0
      %v1951 = vadd.f32 0.0, %v1950
      %v1952 = vpop.f32.mrb[0].mxu0
      %1953 = vmatprep.mubr.f32.mxu0 0.0
      %1954 = vmatmul.mubr.f32.gmra.mrb[0].mxu0 %v1755
      %v1955 = vpop.f32.mrb[0].mxu0
      %v1956 = vadd.f32 0.0, %v1955
      %v1957 = vpop.f32.mrb[0].mxu0
      %1958 = vmatprep.mubr.f32.mxu0 0.0
      %1959 = vmatmul.mubr.f32.gmra.mrb[0].mxu0 %v1758
      %v1960 = vpop.f32.mrb[0].mxu0
      %v1961 = vadd.f32 0.0, %v1960
      %v1962 = vpop.f32.mrb[0].mxu0
      %1963 = vmatprep.mubr.f32.mxu0 0.0
      %1964 = vmatmul.mubr.f32.gmra.mrb[0].mxu0 %v1761
      %v1965 = vpop.f32.mrb[0].mxu0
      %v1966 = vadd.f32 0.0, %v1965
      %v1967 = vpop.f32.mrb[0].mxu0
      %1968 = vmatprep.mubr.f32.mxu0 0.0
      %1969 = vmatmul.mubr.f32.gmra.mrb[0].mxu0 %v1764
      %v1970 = vpop.f32.mrb[0].mxu0
      %v1971 = vadd.f32 0.0, %v1970
      %v1972 = vpop.f32.mrb[0].mxu0
      %1973 = vmatprep.mubr.f32.mxu0 0.0
      %1974 = vmatmul.mubr.f32.gmra.mrb[0].mxu0 %v1767
      %v1975 = vpop.f32.mrb[0].mxu0
      %v1976 = vadd.f32 0.0, %v1975
      %v1977 = vpop.f32.mrb[0].mxu0
      %1978 = vmatprep.mubr.f32.mxu0 0.0
      %1979 = vmatmul.mubr.f32.gmra.mrb[0].mxu0 %v1770
      %v1980 = vpop.f32.mrb[0].mxu0
      %v1981 = vadd.f32 0.0, %v1980
      %v1982 = vpop.f32.mrb[0].mxu0
      %1983 = vmatprep.mubr.f32.mxu0 0.0
      %1984 = vmatmul.mubr.f32.gmra.mrb[0].mxu0 %v1773
      %v1985 = vpop.f32.mrb[0].mxu0
      %v1986 = vadd.f32 0.0, %v1985
      %v1987 = vpop.f32.mrb[0].mxu0
      %1988 = vmatprep.mubr.f32.mxu0 0.0
      %1989 = vmatmul.mubr.f32.gmra.mrb[0].mxu0 %v1776
      %v1990 = vpop.f32.mrb[0].mxu0
      %v1991 = vadd.f32 0.0, %v1990
      %v1992 = vpop.f32.mrb[0].mxu0
      %1993 = vmatprep.mubr.f32.mxu0 0.0
      %1994 = vmatmul.mubr.f32.gmra.mrb[0].mxu0 %v1779
      %v1995 = vpop.f32.mrb[0].mxu0
      %v1996 = vadd.f32 0.0, %v1995
      %v1997 = vpop.f32.mrb[0].mxu0
      %1998 = vmatprep.mubr.f32.mxu0 0.0
      %1999 = vmatmul.mubr.f32.gmra.mrb[0].mxu0 %v1782
      %v2000 = vpop.f32.mrb[0].mxu0
      %v2001 = vadd.f32 0.0, %v2000
      %v2002 = vpop.f32.mrb[0].mxu0
      %2003 = vmatprep.mubr.f32.mxu0 0.0
      %2004 = vmatmul.mubr.f32.gmra.mrb[0].mxu0 %v1785
      %v2005 = vpop.f32.mrb[0].mxu0
      %v2006 = vadd.f32 0.0, %v2005
      %v2007 = vpop.f32.mrb[0].mxu0
      %2008 = vmatprep.mubr.f32.mxu0 0.0
      %2009 = vmatmul.mubr.f32.gmra.mrb[0].mxu0 %v1788
      %v2010 = vpop.f32.mrb[0].mxu0
      %v2011 = vadd.f32 0.0, %v2010
      %v2012 = vpop.f32.mrb[0].mxu0
      %2013 = vmatprep.mubr.f32.mxu0 0.0
      %2014 = vmatmul.mubr.f32.gmra.mrb[0].mxu0 %v1791
      %v2015 = vpop.f32.mrb[0].mxu0
      %v2016 = vadd.f32 0.0, %v2015
      %v2017 = vpop.f32.mrb[0].mxu0
      %2018 = vmatprep.mubr.f32.mxu0 0.0
      %2019 = vmatmul.mubr.f32.gmra.mrb[0].mxu0 %v1794
      %v2020 = vpop.f32.mrb[0].mxu0
      %v2021 = vadd.f32 0.0, %v2020
      %v2022 = vpop.f32.mrb[0].mxu0
      %2023 = vmatprep.mubr.f32.mxu0 0.0
      %2024 = vmatmul.mubr.f32.gmra.mrb[0].mxu0 %v1797
      %v2025 = vpop.f32.mrb[0].mxu0
      %v2026 = vadd.f32 0.0, %v2025
      %v2027 = vpop.f32.mrb[0].mxu0
      %2028 = vmatprep.mubr.f32.mxu0 0.0
      %2029 = vmatmul.mubr.f32.gmra.mrb[0].mxu0 %v1800
      %v2030 = vpop.f32.mrb[0].mxu0
      %v2031 = vadd.f32 0.0, %v2030
      %v2032 = vpop.f32.mrb[0].mxu0
      %2033 = vmatprep.mubr.f32.mxu0 0.0
      %2034 = vmatmul.mubr.f32.gmra.mrb[0].mxu0 %v1803
      %v2035 = vpop.f32.mrb[0].mxu0
      %v2036 = vadd.f32 0.0, %v2035
      %v2037 = vpop.f32.mrb[0].mxu0
      %2038 = vmatprep.mubr.f32.mxu0 0.0
      %2039 = vmatmul.mubr.f32.gmra.mrb[0].mxu0 %v1806
      %v2040 = vpop.f32.mrb[0].mxu0
      %v2041 = vadd.f32 0.0, %v2040
      %v2042 = vpop.f32.mrb[0].mxu0
      %2043 = vmatprep.mubr.f32.mxu0 0.0
      %2044 = vmatmul.mubr.f32.gmra.mrb[0].mxu0 %v1809
      %v2045 = vpop.f32.mrb[0].mxu0
      %v2046 = vadd.f32 0.0, %v2045
      %v2047 = vpop.f32.mrb[0].mxu0
      %2048 = vmatprep.mubr.f32.mxu0 0.0
      %2049 = vmatmul.mubr.f32.gmra.mrb[0].mxu0 %v1812
      %v2050 = vpop.f32.mrb[0].mxu0
      %v2051 = vadd.f32 0.0, %v2050
      %v2052 = vpop.f32.mrb[0].mxu0
      %2053 = vmatprep.mubr.f32.mxu0 0.0
      %2054 = vmatmul.mubr.f32.gmra.mrb[0].mxu0 %v1815
      %v2055 = vpop.f32.mrb[0].mxu0
      %v2056 = vadd.f32 0.0, %v2055
      %v2057 = vpop.f32.mrb[0].mxu0
      %2058 = vmatprep.mubr.f32.mxu0 0.0
      %2059 = vmatmul.mubr.f32.gmra.mrb[0].mxu0 %v1818
      %v2060 = vpop.f32.mrb[0].mxu0
      %v2061 = vadd.f32 0.0, %v2060
      %v2062 = vpop.f32.mrb[0].mxu0
      %2063 = vmatprep.mubr.f32.mxu0 0.0
      %2064 = vmatmul.mubr.f32.gmra.mrb[0].mxu0 %v1821
      %v2065 = vpop.f32.mrb[0].mxu0
      %v2066 = vadd.f32 0.0, %v2065
      %v2067 = vpop.f32.mrb[0].mxu0
      %2068 = vmatprep.mubr.f32.mxu0 0.0
      %2069 = vmatmul.mubr.f32.gmra.mrb[0].mxu0 %v1824
      %v2070 = vpop.f32.mrb[0].mxu0
      %v2071 = vadd.f32 0.0, %v2070
      %v2072 = vpop.f32.mrb[0].mxu0
      %2073 = vdwg.mxu0
      %v2074 = vadd.f32 %v1644, %v1896
      %v2075 = vadd.f32 %v1645, %v1901
      %v2076 = vadd.f32 %v1646, %v1906
      %v2077 = vadd.f32 %v1647, %v1911
      %v2078 = vadd.f32 %v1648, %v1916
      %v2079 = vadd.f32 %v1649, %v1921
      %v2080 = vadd.f32 %v1650, %v1926
      %v2081 = vadd.f32 %v1651, %v1931
      %v2082 = vadd.f32 %v1652, %v1936
      %v2083 = vadd.f32 %v1653, %v1941
      %v2084 = vadd.f32 %v1654, %v1946
      %v2085 = vadd.f32 %v1655, %v1951
      %v2086 = vadd.f32 %v1656, %v1956
      %v2087 = vadd.f32 %v1657, %v1961
      %v2088 = vadd.f32 %v1658, %v1966
      %v2089 = vadd.f32 %v1659, %v1971
      %v2090 = vadd.f32 %v1660, %v1976
      %v2091 = vadd.f32 %v1661, %v1981
      %v2092 = vadd.f32 %v1662, %v1986
      %v2093 = vadd.f32 %v1663, %v1991
      %v2094 = vadd.f32 %v1664, %v1996
      %v2095 = vadd.f32 %v1665, %v2001
      %v2096 = vadd.f32 %v1666, %v2006
      %v2097 = vadd.f32 %v1667, %v2011
      %v2098 = vadd.f32 %v1668, %v2016
      %v2099 = vadd.f32 %v1669, %v2021
      %v2100 = vadd.f32 %v1670, %v2026
      %v2101 = vadd.f32 %v1671, %v2031
      %v2102 = vadd.f32 %v1672, %v2036
      %v2103 = vadd.f32 %v1673, %v2041
      %v2104 = vadd.f32 %v1674, %v2046
      %v2105 = vadd.f32 %v1675, %v2051
      %v2106 = vadd.f32 %v1676, %v2056
      %v2107 = vadd.f32 %v1677, %v2061
      %v2108 = vadd.f32 %v1678, %v2066
      %v2109 = vadd.f32 %v1679, %v2071
      %2110 = vst [vmem:[%s204] sm:$0xff] %v2074
      %2111 = vst [vmem:[%s204 + $0x8] sm:$0xff] %v2075
      %2112 = vst [vmem:[%s204 + $0x10] sm:$0xff] %v2076
      %2113 = vst [vmem:[%s204 + $0x18] sm:$0xff] %v2077
      %2114 = vst [vmem:[%s204 + $0x20] sm:$0xff] %v2078
      %2115 = vst [vmem:[%s204 + $0x28] sm:$0xff] %v2079
      %2116 = vst [vmem:[%s204 + $0x30] sm:$0xff] %v2080
      %2117 = vst [vmem:[%s204 + $0x38] sm:$0xff] %v2081
      %2118 = vst [vmem:[%s204 + $0x40] sm:$0xff] %v2082
      %2119 = vst [vmem:[%s204 + $0x48] sm:$0xff] %v2083
      %2120 = vst [vmem:[%s204 + $0x50] sm:$0xff] %v2084
      %2121 = vst [vmem:[%s204 + $0x58] sm:$0xff] %v2085
      %2122 = vst [vmem:[%s204 + $0x60] sm:$0xff] %v2086
      %2123 = vst [vmem:[%s204 + $0x68] sm:$0xff] %v2087
      %2124 = vst [vmem:[%s204 + $0x70] sm:$0xff] %v2088
      %2125 = vst [vmem:[%s204 + $0x78] sm:$0xff] %v2089
      %2126 = vst [vmem:[%s204 + $0x80] sm:$0xff] %v2090
      %2127 = vst [vmem:[%s204 + $0x88] sm:$0xff] %v2091
      %2128 = vst [vmem:[%s204 + $0x90] sm:$0xff] %v2092
      %2129 = vst [vmem:[%s204 + $0x98] sm:$0xff] %v2093
      %2130 = vst [vmem:[%s204 + $0xa0] sm:$0xff] %v2094
      %2131 = vst [vmem:[%s204 + $0xa8] sm:$0xff] %v2095
      %2132 = vst [vmem:[%s204 + $0xb0] sm:$0xff] %v2096
      %2133 = vst [vmem:[%s204 + $0xb8] sm:$0xff] %v2097
      %2134 = vst [vmem:[%s204 + $0xc0] sm:$0xff] %v2098
      %2135 = vst [vmem:[%s204 + $0xc8] sm:$0xff] %v2099
      %2136 = vst [vmem:[%s204 + $0xd0] sm:$0xff] %v2100
      %2137 = vst [vmem:[%s204 + $0xd8] sm:$0xff] %v2101
      %2138 = vst [vmem:[%s204 + $0xe0] sm:$0xff] %v2102
      %2139 = vst [vmem:[%s204 + $0xe8] sm:$0xff] %v2103
      %2140 = vst [vmem:[%s204 + $0xf0] sm:$0xff] %v2104
      %2141 = vst [vmem:[%s204 + $0xf8] sm:$0xff] %v2105
      %2142 = vst [vmem:[%s204 + $0x100] sm:$0xff] %v2106
      %2143 = vst [vmem:[%s204 + $0x108] sm:$0xff] %v2107
      %2144 = vst [vmem:[%s204 + $0x110] sm:$0xff] %v2108
      %2145 = vst [vmem:[%s204 + $0x118] sm:$0xff] %v2109
      %v2146 = vld [vmem:[%s204] sm:$0xff]
      %v2147 = vld [vmem:[%s204 + $0x8] sm:$0xff]
      %v2148 = vld [vmem:[%s204 + $0x10] sm:$0xff]
      %v2149 = vld [vmem:[%s204 + $0x18] sm:$0xff]
      %v2150 = vld [vmem:[%s204 + $0x20] sm:$0xff]
      %v2151 = vld [vmem:[%s204 + $0x28] sm:$0xff]
      %v2152 = vld [vmem:[%s204 + $0x30] sm:$0xff]
      %v2153 = vld [vmem:[%s204 + $0x38] sm:$0xff]
      %v2154 = vld [vmem:[%s204 + $0x40] sm:$0xff]
      %v2155 = vld [vmem:[%s204 + $0x48] sm:$0xff]
      %v2156 = vld [vmem:[%s204 + $0x50] sm:$0xff]
      %v2157 = vld [vmem:[%s204 + $0x58] sm:$0xff]
      %v2158 = vld [vmem:[%s204 + $0x60] sm:$0xff]
      %v2159 = vld [vmem:[%s204 + $0x68] sm:$0xff]
      %v2160 = vld [vmem:[%s204 + $0x70] sm:$0xff]
      %v2161 = vld [vmem:[%s204 + $0x78] sm:$0xff]
      %v2162 = vld [vmem:[%s204 + $0x80] sm:$0xff]
      %v2163 = vld [vmem:[%s204 + $0x88] sm:$0xff]
      %v2164 = vld [vmem:[%s204 + $0x90] sm:$0xff]
      %v2165 = vld [vmem:[%s204 + $0x98] sm:$0xff]
      %v2166 = vld [vmem:[%s204 + $0xa0] sm:$0xff]
      %v2167 = vld [vmem:[%s204 + $0xa8] sm:$0xff]
      %v2168 = vld [vmem:[%s204 + $0xb0] sm:$0xff]
      %v2169 = vld [vmem:[%s204 + $0xb8] sm:$0xff]
      %v2170 = vld [vmem:[%s204 + $0xc0] sm:$0xff]
      %v2171 = vld [vmem:[%s204 + $0xc8] sm:$0xff]
      %v2172 = vld [vmem:[%s204 + $0xd0] sm:$0xff]
      %v2173 = vld [vmem:[%s204 + $0xd8] sm:$0xff]
      %v2174 = vld [vmem:[%s204 + $0xe0] sm:$0xff]
      %v2175 = vld [vmem:[%s204 + $0xe8] sm:$0xff]
      %v2176 = vld [vmem:[%s204 + $0xf0] sm:$0xff]
      %v2177 = vld [vmem:[%s204 + $0xf8] sm:$0xff]
      %v2178 = vld [vmem:[%s204 + $0x100] sm:$0xff]
      %v2179 = vld [vmem:[%s204 + $0x108] sm:$0xff]
      %v2180 = vld [vmem:[%s204 + $0x110] sm:$0xff]
      %v2181 = vld [vmem:[%s204 + $0x118] sm:$0xff]
      %v2182 = vld [vmem:[%s199 + $0x13] sm:$0xff]
      %v2183 = vld [vmem:[%s199 + $0x1b] sm:$0xff]
      %v2184 = vld [vmem:[%s199 + $0x23] sm:$0xff]
      %v2185 = vld [vmem:[%s199 + $0x2b] sm:$0xff]
      %v2186 = vld [vmem:[%s199 + $0x33] sm:$0xff]
      %v2187 = vld [vmem:[%s199 + $0x3b] sm:$0xff]
      %v2188 = vld [vmem:[%s199 + $0x43] sm:$0xff]
      %v2189 = vld [vmem:[%s199 + $0x4b] sm:$0xff]
      %v2190 = vld [vmem:[%s199 + $0x53] sm:$0xff]
      %v2191 = vld [vmem:[%s199 + $0x5b] sm:$0xff]
      %v2192 = vld [vmem:[%s199 + $0x63] sm:$0xff]
      %v2193 = vld [vmem:[%s199 + $0x6b] sm:$0xff]
      %v2194 = vld [vmem:[%s199 + $0x73] sm:$0xff]
      %v2195 = vld [vmem:[%s199 + $0x7b] sm:$0xff]
      %v2196 = vld [vmem:[%s199 + $0x83] sm:$0xff]
      %v2197 = vld [vmem:[%s199 + $0x8b] sm:$0xff]
      %v2198 = vld [vmem:[%s199 + $0x93] sm:$0xff]
      %v2199 = vld [vmem:[%s199 + $0x9b] sm:$0xff]
      %v2200 = vld [vmem:[%s199 + $0xa3] sm:$0xff]
      %v2201 = vld [vmem:[%s199 + $0xab] sm:$0xff]
      %v2202 = vld [vmem:[%s199 + $0xb3] sm:$0xff]
      %v2203 = vld [vmem:[%s199 + $0xbb] sm:$0xff]
      %v2204 = vld [vmem:[%s199 + $0xc3] sm:$0xff]
      %v2205 = vld [vmem:[%s199 + $0xcb] sm:$0xff]
      %v2206 = vld [vmem:[%s199 + $0xd3] sm:$0xff]
      %v2207 = vld [vmem:[%s199 + $0xdb] sm:$0xff]
      %v2208 = vld [vmem:[%s199 + $0xe3] sm:$0xff]
      %v2209 = vld [vmem:[%s199 + $0xeb] sm:$0xff]
      %v2210 = vld [vmem:[%s199 + $0xf3] sm:$0xff]
      %v2211 = vld [vmem:[%s199 + $0xfb] sm:$0xff]
      %v2212 = vld [vmem:[%s199 + $0x103] sm:$0xff]
      %v2213 = vld [vmem:[%s199 + $0x10b] sm:$0xff]
      %v2214 = vld [vmem:[%s199 + $0x113] sm:$0xff]
      %v2215 = vld [vmem:[%s199 + $0x11b] sm:$0xff]
      %v2216 = vld [vmem:[%s199 + $0x123] sm:$0xff]
      %v2217 = vld [vmem:[%s199 + $0x12b] sm:$0xff]
      %s2218 = scalar_lea.vmem %s1, 16
      %v2219 = vld [vmem:[%s2218] sm:$0xf]
      %v2221 = vsel %vm246, %v2182, 0
      %v2224 = vsel %vm246, %v2183, 0
      %v2227 = vsel %vm246, %v2184, 0
      %v2230 = vsel %vm246, %v2185, 0
      %v2233 = vsel %vm246, %v2186, 0
      %v2236 = vsel %vm246, %v2187, 0
      %v2239 = vsel %vm246, %v2188, 0
      %v2242 = vsel %vm246, %v2189, 0
      %v2245 = vsel %vm246, %v2190, 0
      %v2248 = vsel %vm246, %v2191, 0
      %v2251 = vsel %vm246, %v2192, 0
      %v2254 = vsel %vm246, %v2193, 0
      %v2257 = vsel %vm246, %v2194, 0
      %v2260 = vsel %vm246, %v2195, 0
      %v2263 = vsel %vm246, %v2196, 0
      %v2266 = vsel %vm246, %v2197, 0
      %v2269 = vsel %vm246, %v2198, 0
      %v2272 = vsel %vm246, %v2199, 0
      %v2275 = vsel %vm246, %v2200, 0
      %v2278 = vsel %vm246, %v2201, 0
      %v2281 = vsel %vm246, %v2202, 0
      %v2284 = vsel %vm246, %v2203, 0
      %v2287 = vsel %vm246, %v2204, 0
      %v2290 = vsel %vm246, %v2205, 0
      %v2293 = vsel %vm246, %v2206, 0
      %v2296 = vsel %vm246, %v2207, 0
      %v2299 = vsel %vm246, %v2208, 0
      %v2302 = vsel %vm246, %v2209, 0
      %v2305 = vsel %vm246, %v2210, 0
      %v2308 = vsel %vm246, %v2211, 0
      %v2311 = vsel %vm246, %v2212, 0
      %v2314 = vsel %vm246, %v2213, 0
      %v2317 = vsel %vm246, %v2214, 0
      %v2320 = vsel %vm246, %v2215, 0
      %v2323 = vsel %vm246, %v2216, 0
      %v2326 = vsel %vm246, %v2217, 0
      %v2329 = vsel %vm355, %v2219, 0
      %2331 = vmatprep.subr.mxu0 0.0
      %2332 = vmatpush1.msra.mxu0 %v2329
      %2333 = vmatprep.subr.mxu0 0.0
      %2334 = vmatpush1.msra.mxu0 0.0
      %2335 = vmatprep.subr.mxu0 0.0
      %2336 = vmatpush1.msra.mxu0 0.0
      %2337 = vmatprep.subr.mxu0 0.0
      %2338 = vmatpush1.msra.mxu0 0.0
      %2339 = vmatprep.subr.mxu0 0.0
      %2340 = vmatpush1.msra.mxu0 0.0
      %2341 = vmatprep.subr.mxu0 0.0
      %2342 = vmatpush1.msra.mxu0 0.0
      %2343 = vmatprep.subr.mxu0 0.0
      %2344 = vmatpush1.msra.mxu0 0.0
      %2345 = vmatprep.subr.mxu0 0.0
      %2346 = vmatpush1.msra.mxu0 0.0
      %2347 = vmatprep.subr.mxu0 0.0
      %2348 = vmatpush1.msra.mxu0 0.0
      %2349 = vmatprep.subr.mxu0 0.0
      %2350 = vmatpush1.msra.mxu0 0.0
      %2351 = vmatprep.subr.mxu0 0.0
      %2352 = vmatpush1.msra.mxu0 0.0
      %2353 = vmatprep.subr.mxu0 0.0
      %2354 = vmatpush1.msra.mxu0 0.0
      %2355 = vmatprep.subr.mxu0 0.0
      %2356 = vmatpush1.msra.mxu0 0.0
      %2357 = vmatprep.subr.mxu0 0.0
      %2358 = vmatpush1.msra.mxu0 0.0
      %2359 = vmatprep.subr.mxu0 0.0
      %2360 = vmatpush1.msra.mxu0 0.0
      %2361 = vmatprep.subr.mxu0 0.0
      %2362 = vmatpush1.msra.mxu0 0.0
      %2363 = vmatprep.subr.mxu0 0.0
      %2364 = vmatpush1.msra.mxu0 0.0
      %2365 = vmatprep.subr.mxu0 0.0
      %2366 = vmatpush1.msra.mxu0 0.0
      %2367 = vmatprep.subr.mxu0 0.0
      %2368 = vmatpush1.msra.mxu0 0.0
      %2369 = vmatprep.subr.mxu0 0.0
      %2370 = vmatpush1.msra.mxu0 0.0
      %2371 = vmatprep.subr.mxu0 0.0
      %2372 = vmatpush1.msra.mxu0 0.0
      %2373 = vmatprep.subr.mxu0 0.0
      %2374 = vmatpush1.msra.mxu0 0.0
      %2375 = vmatprep.subr.mxu0 0.0
      %2376 = vmatpush1.msra.mxu0 0.0
      %2377 = vmatprep.subr.mxu0 0.0
      %2378 = vmatpush1.msra.mxu0 0.0
      %2379 = vmatprep.subr.mxu0 0.0
      %2380 = vmatpush1.msra.mxu0 0.0
      %2381 = vmatprep.subr.mxu0 0.0
      %2382 = vmatpush1.msra.mxu0 0.0
      %2383 = vmatprep.subr.mxu0 0.0
      %2384 = vmatpush1.msra.mxu0 0.0
      %2385 = vmatprep.subr.mxu0 0.0
      %2386 = vmatpush1.msra.mxu0 0.0
      %2387 = vmatprep.subr.mxu0 0.0
      %2388 = vmatpush1.msra.mxu0 0.0
      %2389 = vmatprep.subr.mxu0 0.0
      %2390 = vmatpush1.msra.mxu0 0.0
      %2391 = vmatprep.subr.mxu0 0.0
      %2392 = vmatpush1.msra.mxu0 0.0
      %2393 = vmatprep.subr.mxu0 0.0
      %2394 = vmatpush1.msra.mxu0 0.0
      %2395 = vmatprep.mubr.f32.mxu0 0.0
      %2396 = vmatmul.mubr.f32.gmra.mrb[0].mxu0 %v2221
      %v2397 = vpop.f32.mrb[0].mxu0
      %v2398 = vadd.f32 0.0, %v2397
      %v2399 = vpop.f32.mrb[0].mxu0
      %2400 = vmatprep.mubr.f32.mxu0 0.0
      %2401 = vmatmul.mubr.f32.gmra.mrb[0].mxu0 %v2224
      %v2402 = vpop.f32.mrb[0].mxu0
      %v2403 = vadd.f32 0.0, %v2402
      %v2404 = vpop.f32.mrb[0].mxu0
      %2405 = vmatprep.mubr.f32.mxu0 0.0
      %2406 = vmatmul.mubr.f32.gmra.mrb[0].mxu0 %v2227
      %v2407 = vpop.f32.mrb[0].mxu0
      %v2408 = vadd.f32 0.0, %v2407
      %v2409 = vpop.f32.mrb[0].mxu0
      %2410 = vmatprep.mubr.f32.mxu0 0.0
      %2411 = vmatmul.mubr.f32.gmra.mrb[0].mxu0 %v2230
      %v2412 = vpop.f32.mrb[0].mxu0
      %v2413 = vadd.f32 0.0, %v2412
      %v2414 = vpop.f32.mrb[0].mxu0
      %2415 = vmatprep.mubr.f32.mxu0 0.0
      %2416 = vmatmul.mubr.f32.gmra.mrb[0].mxu0 %v2233
      %v2417 = vpop.f32.mrb[0].mxu0
      %v2418 = vadd.f32 0.0, %v2417
      %v2419 = vpop.f32.mrb[0].mxu0
      %2420 = vmatprep.mubr.f32.mxu0 0.0
      %2421 = vmatmul.mubr.f32.gmra.mrb[0].mxu0 %v2236
      %v2422 = vpop.f32.mrb[0].mxu0
      %v2423 = vadd.f32 0.0, %v2422
      %v2424 = vpop.f32.mrb[0].mxu0
      %2425 = vmatprep.mubr.f32.mxu0 0.0
      %2426 = vmatmul.mubr.f32.gmra.mrb[0].mxu0 %v2239
      %v2427 = vpop.f32.mrb[0].mxu0
      %v2428 = vadd.f32 0.0, %v2427
      %v2429 = vpop.f32.mrb[0].mxu0
      %2430 = vmatprep.mubr.f32.mxu0 0.0
      %2431 = vmatmul.mubr.f32.gmra.mrb[0].mxu0 %v2242
      %v2432 = vpop.f32.mrb[0].mxu0
      %v2433 = vadd.f32 0.0, %v2432
      %v2434 = vpop.f32.mrb[0].mxu0
      %2435 = vmatprep.mubr.f32.mxu0 0.0
      %2436 = vmatmul.mubr.f32.gmra.mrb[0].mxu0 %v2245
      %v2437 = vpop.f32.mrb[0].mxu0
      %v2438 = vadd.f32 0.0, %v2437
      %v2439 = vpop.f32.mrb[0].mxu0
      %2440 = vmatprep.mubr.f32.mxu0 0.0
      %2441 = vmatmul.mubr.f32.gmra.mrb[0].mxu0 %v2248
      %v2442 = vpop.f32.mrb[0].mxu0
      %v2443 = vadd.f32 0.0, %v2442
      %v2444 = vpop.f32.mrb[0].mxu0
      %2445 = vmatprep.mubr.f32.mxu0 0.0
      %2446 = vmatmul.mubr.f32.gmra.mrb[0].mxu0 %v2251
      %v2447 = vpop.f32.mrb[0].mxu0
      %v2448 = vadd.f32 0.0, %v2447
      %v2449 = vpop.f32.mrb[0].mxu0
      %2450 = vmatprep.mubr.f32.mxu0 0.0
      %2451 = vmatmul.mubr.f32.gmra.mrb[0].mxu0 %v2254
      %v2452 = vpop.f32.mrb[0].mxu0
      %v2453 = vadd.f32 0.0, %v2452
      %v2454 = vpop.f32.mrb[0].mxu0
      %2455 = vmatprep.mubr.f32.mxu0 0.0
      %2456 = vmatmul.mubr.f32.gmra.mrb[0].mxu0 %v2257
      %v2457 = vpop.f32.mrb[0].mxu0
      %v2458 = vadd.f32 0.0, %v2457
      %v2459 = vpop.f32.mrb[0].mxu0
      %2460 = vmatprep.mubr.f32.mxu0 0.0
      %2461 = vmatmul.mubr.f32.gmra.mrb[0].mxu0 %v2260
      %v2462 = vpop.f32.mrb[0].mxu0
      %v2463 = vadd.f32 0.0, %v2462
      %v2464 = vpop.f32.mrb[0].mxu0
      %2465 = vmatprep.mubr.f32.mxu0 0.0
      %2466 = vmatmul.mubr.f32.gmra.mrb[0].mxu0 %v2263
      %v2467 = vpop.f32.mrb[0].mxu0
      %v2468 = vadd.f32 0.0, %v2467
      %v2469 = vpop.f32.mrb[0].mxu0
      %2470 = vmatprep.mubr.f32.mxu0 0.0
      %2471 = vmatmul.mubr.f32.gmra.mrb[0].mxu0 %v2266
      %v2472 = vpop.f32.mrb[0].mxu0
      %v2473 = vadd.f32 0.0, %v2472
      %v2474 = vpop.f32.mrb[0].mxu0
      %2475 = vmatprep.mubr.f32.mxu0 0.0
      %2476 = vmatmul.mubr.f32.gmra.mrb[0].mxu0 %v2269
      %v2477 = vpop.f32.mrb[0].mxu0
      %v2478 = vadd.f32 0.0, %v2477
      %v2479 = vpop.f32.mrb[0].mxu0
      %2480 = vmatprep.mubr.f32.mxu0 0.0
      %2481 = vmatmul.mubr.f32.gmra.mrb[0].mxu0 %v2272
      %v2482 = vpop.f32.mrb[0].mxu0
      %v2483 = vadd.f32 0.0, %v2482
      %v2484 = vpop.f32.mrb[0].mxu0
      %2485 = vmatprep.mubr.f32.mxu0 0.0
      %2486 = vmatmul.mubr.f32.gmra.mrb[0].mxu0 %v2275
      %v2487 = vpop.f32.mrb[0].mxu0
      %v2488 = vadd.f32 0.0, %v2487
      %v2489 = vpop.f32.mrb[0].mxu0
      %2490 = vmatprep.mubr.f32.mxu0 0.0
      %2491 = vmatmul.mubr.f32.gmra.mrb[0].mxu0 %v2278
      %v2492 = vpop.f32.mrb[0].mxu0
      %v2493 = vadd.f32 0.0, %v2492
      %v2494 = vpop.f32.mrb[0].mxu0
      %2495 = vmatprep.mubr.f32.mxu0 0.0
      %2496 = vmatmul.mubr.f32.gmra.mrb[0].mxu0 %v2281
      %v2497 = vpop.f32.mrb[0].mxu0
      %v2498 = vadd.f32 0.0, %v2497
      %v2499 = vpop.f32.mrb[0].mxu0
      %2500 = vmatprep.mubr.f32.mxu0 0.0
      %2501 = vmatmul.mubr.f32.gmra.mrb[0].mxu0 %v2284
      %v2502 = vpop.f32.mrb[0].mxu0
      %v2503 = vadd.f32 0.0, %v2502
      %v2504 = vpop.f32.mrb[0].mxu0
      %2505 = vmatprep.mubr.f32.mxu0 0.0
      %2506 = vmatmul.mubr.f32.gmra.mrb[0].mxu0 %v2287
      %v2507 = vpop.f32.mrb[0].mxu0
      %v2508 = vadd.f32 0.0, %v2507
      %v2509 = vpop.f32.mrb[0].mxu0
      %2510 = vmatprep.mubr.f32.mxu0 0.0
      %2511 = vmatmul.mubr.f32.gmra.mrb[0].mxu0 %v2290
      %v2512 = vpop.f32.mrb[0].mxu0
      %v2513 = vadd.f32 0.0, %v2512
      %v2514 = vpop.f32.mrb[0].mxu0
      %2515 = vmatprep.mubr.f32.mxu0 0.0
      %2516 = vmatmul.mubr.f32.gmra.mrb[0].mxu0 %v2293
      %v2517 = vpop.f32.mrb[0].mxu0
      %v2518 = vadd.f32 0.0, %v2517
      %v2519 = vpop.f32.mrb[0].mxu0
      %2520 = vmatprep.mubr.f32.mxu0 0.0
      %2521 = vmatmul.mubr.f32.gmra.mrb[0].mxu0 %v2296
      %v2522 = vpop.f32.mrb[0].mxu0
      %v2523 = vadd.f32 0.0, %v2522
      %v2524 = vpop.f32.mrb[0].mxu0
      %2525 = vmatprep.mubr.f32.mxu0 0.0
      %2526 = vmatmul.mubr.f32.gmra.mrb[0].mxu0 %v2299
      %v2527 = vpop.f32.mrb[0].mxu0
      %v2528 = vadd.f32 0.0, %v2527
      %v2529 = vpop.f32.mrb[0].mxu0
      %2530 = vmatprep.mubr.f32.mxu0 0.0
      %2531 = vmatmul.mubr.f32.gmra.mrb[0].mxu0 %v2302
      %v2532 = vpop.f32.mrb[0].mxu0
      %v2533 = vadd.f32 0.0, %v2532
      %v2534 = vpop.f32.mrb[0].mxu0
      %2535 = vmatprep.mubr.f32.mxu0 0.0
      %2536 = vmatmul.mubr.f32.gmra.mrb[0].mxu0 %v2305
      %v2537 = vpop.f32.mrb[0].mxu0
      %v2538 = vadd.f32 0.0, %v2537
      %v2539 = vpop.f32.mrb[0].mxu0
      %2540 = vmatprep.mubr.f32.mxu0 0.0
      %2541 = vmatmul.mubr.f32.gmra.mrb[0].mxu0 %v2308
      %v2542 = vpop.f32.mrb[0].mxu0
      %v2543 = vadd.f32 0.0, %v2542
      %v2544 = vpop.f32.mrb[0].mxu0
      %2545 = vmatprep.mubr.f32.mxu0 0.0
      %2546 = vmatmul.mubr.f32.gmra.mrb[0].mxu0 %v2311
      %v2547 = vpop.f32.mrb[0].mxu0
      %v2548 = vadd.f32 0.0, %v2547
      %v2549 = vpop.f32.mrb[0].mxu0
      %2550 = vmatprep.mubr.f32.mxu0 0.0
      %2551 = vmatmul.mubr.f32.gmra.mrb[0].mxu0 %v2314
      %v2552 = vpop.f32.mrb[0].mxu0
      %v2553 = vadd.f32 0.0, %v2552
      %v2554 = vpop.f32.mrb[0].mxu0
      %2555 = vmatprep.mubr.f32.mxu0 0.0
      %2556 = vmatmul.mubr.f32.gmra.mrb[0].mxu0 %v2317
      %v2557 = vpop.f32.mrb[0].mxu0
      %v2558 = vadd.f32 0.0, %v2557
      %v2559 = vpop.f32.mrb[0].mxu0
      %2560 = vmatprep.mubr.f32.mxu0 0.0
      %2561 = vmatmul.mubr.f32.gmra.mrb[0].mxu0 %v2320
      %v2562 = vpop.f32.mrb[0].mxu0
      %v2563 = vadd.f32 0.0, %v2562
      %v2564 = vpop.f32.mrb[0].mxu0
      %2565 = vmatprep.mubr.f32.mxu0 0.0
      %2566 = vmatmul.mubr.f32.gmra.mrb[0].mxu0 %v2323
      %v2567 = vpop.f32.mrb[0].mxu0
      %v2568 = vadd.f32 0.0, %v2567
      %v2569 = vpop.f32.mrb[0].mxu0
      %2570 = vmatprep.mubr.f32.mxu0 0.0
      %2571 = vmatmul.mubr.f32.gmra.mrb[0].mxu0 %v2326
      %v2572 = vpop.f32.mrb[0].mxu0
      %v2573 = vadd.f32 0.0, %v2572
      %v2574 = vpop.f32.mrb[0].mxu0
      %2575 = vdwg.mxu0
      %v2576 = vadd.f32 %v2146, %v2398
      %v2577 = vadd.f32 %v2147, %v2403
      %v2578 = vadd.f32 %v2148, %v2408
      %v2579 = vadd.f32 %v2149, %v2413
      %v2580 = vadd.f32 %v2150, %v2418
      %v2581 = vadd.f32 %v2151, %v2423
      %v2582 = vadd.f32 %v2152, %v2428
      %v2583 = vadd.f32 %v2153, %v2433
      %v2584 = vadd.f32 %v2154, %v2438
      %v2585 = vadd.f32 %v2155, %v2443
      %v2586 = vadd.f32 %v2156, %v2448
      %v2587 = vadd.f32 %v2157, %v2453
      %v2588 = vadd.f32 %v2158, %v2458
      %v2589 = vadd.f32 %v2159, %v2463
      %v2590 = vadd.f32 %v2160, %v2468
      %v2591 = vadd.f32 %v2161, %v2473
      %v2592 = vadd.f32 %v2162, %v2478
      %v2593 = vadd.f32 %v2163, %v2483
      %v2594 = vadd.f32 %v2164, %v2488
      %v2595 = vadd.f32 %v2165, %v2493
      %v2596 = vadd.f32 %v2166, %v2498
      %v2597 = vadd.f32 %v2167, %v2503
      %v2598 = vadd.f32 %v2168, %v2508
      %v2599 = vadd.f32 %v2169, %v2513
      %v2600 = vadd.f32 %v2170, %v2518
      %v2601 = vadd.f32 %v2171, %v2523
      %v2602 = vadd.f32 %v2172, %v2528
      %v2603 = vadd.f32 %v2173, %v2533
      %v2604 = vadd.f32 %v2174, %v2538
      %v2605 = vadd.f32 %v2175, %v2543
      %v2606 = vadd.f32 %v2176, %v2548
      %v2607 = vadd.f32 %v2177, %v2553
      %v2608 = vadd.f32 %v2178, %v2558
      %v2609 = vadd.f32 %v2179, %v2563
      %v2610 = vadd.f32 %v2180, %v2568
      %v2611 = vadd.f32 %v2181, %v2573
      %2612 = vst [vmem:[%s204] sm:$0xff] %v2576
      %2613 = vst [vmem:[%s204 + $0x8] sm:$0xff] %v2577
      %2614 = vst [vmem:[%s204 + $0x10] sm:$0xff] %v2578
      %2615 = vst [vmem:[%s204 + $0x18] sm:$0xff] %v2579
      %2616 = vst [vmem:[%s204 + $0x20] sm:$0xff] %v2580
      %2617 = vst [vmem:[%s204 + $0x28] sm:$0xff] %v2581
      %2618 = vst [vmem:[%s204 + $0x30] sm:$0xff] %v2582
      %2619 = vst [vmem:[%s204 + $0x38] sm:$0xff] %v2583
      %2620 = vst [vmem:[%s204 + $0x40] sm:$0xff] %v2584
      %2621 = vst [vmem:[%s204 + $0x48] sm:$0xff] %v2585
      %2622 = vst [vmem:[%s204 + $0x50] sm:$0xff] %v2586
      %2623 = vst [vmem:[%s204 + $0x58] sm:$0xff] %v2587
      %2624 = vst [vmem:[%s204 + $0x60] sm:$0xff] %v2588
      %2625 = vst [vmem:[%s204 + $0x68] sm:$0xff] %v2589
      %2626 = vst [vmem:[%s204 + $0x70] sm:$0xff] %v2590
      %2627 = vst [vmem:[%s204 + $0x78] sm:$0xff] %v2591
      %2628 = vst [vmem:[%s204 + $0x80] sm:$0xff] %v2592
      %2629 = vst [vmem:[%s204 + $0x88] sm:$0xff] %v2593
      %2630 = vst [vmem:[%s204 + $0x90] sm:$0xff] %v2594
      %2631 = vst [vmem:[%s204 + $0x98] sm:$0xff] %v2595
      %2632 = vst [vmem:[%s204 + $0xa0] sm:$0xff] %v2596
      %2633 = vst [vmem:[%s204 + $0xa8] sm:$0xff] %v2597
      %2634 = vst [vmem:[%s204 + $0xb0] sm:$0xff] %v2598
      %2635 = vst [vmem:[%s204 + $0xb8] sm:$0xff] %v2599
      %2636 = vst [vmem:[%s204 + $0xc0] sm:$0xff] %v2600
      %2637 = vst [vmem:[%s204 + $0xc8] sm:$0xff] %v2601
      %2638 = vst [vmem:[%s204 + $0xd0] sm:$0xff] %v2602
      %2639 = vst [vmem:[%s204 + $0xd8] sm:$0xff] %v2603
      %2640 = vst [vmem:[%s204 + $0xe0] sm:$0xff] %v2604
      %2641 = vst [vmem:[%s204 + $0xe8] sm:$0xff] %v2605
      %2642 = vst [vmem:[%s204 + $0xf0] sm:$0xff] %v2606
      %2643 = vst [vmem:[%s204 + $0xf8] sm:$0xff] %v2607
      %2644 = vst [vmem:[%s204 + $0x100] sm:$0xff] %v2608
      %2645 = vst [vmem:[%s204 + $0x108] sm:$0xff] %v2609
      %2646 = vst [vmem:[%s204 + $0x110] sm:$0xff] %v2610
      %2647 = vst [vmem:[%s204 + $0x118] sm:$0xff] %v2611
      %v2648 = vld [vmem:[%s204] sm:$0xff]
      %v2649 = vld [vmem:[%s204 + $0x8] sm:$0xff]
      %v2650 = vld [vmem:[%s204 + $0x10] sm:$0xff]
      %v2651 = vld [vmem:[%s204 + $0x18] sm:$0xff]
      %v2652 = vld [vmem:[%s204 + $0x20] sm:$0xff]
      %v2653 = vld [vmem:[%s204 + $0x28] sm:$0xff]
      %v2654 = vld [vmem:[%s204 + $0x30] sm:$0xff]
      %v2655 = vld [vmem:[%s204 + $0x38] sm:$0xff]
      %v2656 = vld [vmem:[%s204 + $0x40] sm:$0xff]
      %v2657 = vld [vmem:[%s204 + $0x48] sm:$0xff]
      %v2658 = vld [vmem:[%s204 + $0x50] sm:$0xff]
      %v2659 = vld [vmem:[%s204 + $0x58] sm:$0xff]
      %v2660 = vld [vmem:[%s204 + $0x60] sm:$0xff]
      %v2661 = vld [vmem:[%s204 + $0x68] sm:$0xff]
      %v2662 = vld [vmem:[%s204 + $0x70] sm:$0xff]
      %v2663 = vld [vmem:[%s204 + $0x78] sm:$0xff]
      %v2664 = vld [vmem:[%s204 + $0x80] sm:$0xff]
      %v2665 = vld [vmem:[%s204 + $0x88] sm:$0xff]
      %v2666 = vld [vmem:[%s204 + $0x90] sm:$0xff]
      %v2667 = vld [vmem:[%s204 + $0x98] sm:$0xff]
      %v2668 = vld [vmem:[%s204 + $0xa0] sm:$0xff]
      %v2669 = vld [vmem:[%s204 + $0xa8] sm:$0xff]
      %v2670 = vld [vmem:[%s204 + $0xb0] sm:$0xff]
      %v2671 = vld [vmem:[%s204 + $0xb8] sm:$0xff]
      %v2672 = vld [vmem:[%s204 + $0xc0] sm:$0xff]
      %v2673 = vld [vmem:[%s204 + $0xc8] sm:$0xff]
      %v2674 = vld [vmem:[%s204 + $0xd0] sm:$0xff]
      %v2675 = vld [vmem:[%s204 + $0xd8] sm:$0xff]
      %v2676 = vld [vmem:[%s204 + $0xe0] sm:$0xff]
      %v2677 = vld [vmem:[%s204 + $0xe8] sm:$0xff]
      %v2678 = vld [vmem:[%s204 + $0xf0] sm:$0xff]
      %v2679 = vld [vmem:[%s204 + $0xf8] sm:$0xff]
      %v2680 = vld [vmem:[%s204 + $0x100] sm:$0xff]
      %v2681 = vld [vmem:[%s204 + $0x108] sm:$0xff]
      %v2682 = vld [vmem:[%s204 + $0x110] sm:$0xff]
      %v2683 = vld [vmem:[%s204 + $0x118] sm:$0xff]
      %v2684 = vld [vmem:[%s199 + $0x14] sm:$0xff]
      %v2685 = vld [vmem:[%s199 + $0x1c] sm:$0xff]
      %v2686 = vld [vmem:[%s199 + $0x24] sm:$0xff]
      %v2687 = vld [vmem:[%s199 + $0x2c] sm:$0xff]
      %v2688 = vld [vmem:[%s199 + $0x34] sm:$0xff]
      %v2689 = vld [vmem:[%s199 + $0x3c] sm:$0xff]
      %v2690 = vld [vmem:[%s199 + $0x44] sm:$0xff]
      %v2691 = vld [vmem:[%s199 + $0x4c] sm:$0xff]
      %v2692 = vld [vmem:[%s199 + $0x54] sm:$0xff]
      %v2693 = vld [vmem:[%s199 + $0x5c] sm:$0xff]
      %v2694 = vld [vmem:[%s199 + $0x64] sm:$0xff]
      %v2695 = vld [vmem:[%s199 + $0x6c] sm:$0xff]
      %v2696 = vld [vmem:[%s199 + $0x74] sm:$0xff]
      %v2697 = vld [vmem:[%s199 + $0x7c] sm:$0xff]
      %v2698 = vld [vmem:[%s199 + $0x84] sm:$0xff]
      %v2699 = vld [vmem:[%s199 + $0x8c] sm:$0xff]
      %v2700 = vld [vmem:[%s199 + $0x94] sm:$0xff]
      %v2701 = vld [vmem:[%s199 + $0x9c] sm:$0xff]
      %v2702 = vld [vmem:[%s199 + $0xa4] sm:$0xff]
      %v2703 = vld [vmem:[%s199 + $0xac] sm:$0xff]
      %v2704 = vld [vmem:[%s199 + $0xb4] sm:$0xff]
      %v2705 = vld [vmem:[%s199 + $0xbc] sm:$0xff]
      %v2706 = vld [vmem:[%s199 + $0xc4] sm:$0xff]
      %v2707 = vld [vmem:[%s199 + $0xcc] sm:$0xff]
      %v2708 = vld [vmem:[%s199 + $0xd4] sm:$0xff]
      %v2709 = vld [vmem:[%s199 + $0xdc] sm:$0xff]
      %v2710 = vld [vmem:[%s199 + $0xe4] sm:$0xff]
      %v2711 = vld [vmem:[%s199 + $0xec] sm:$0xff]
      %v2712 = vld [vmem:[%s199 + $0xf4] sm:$0xff]
      %v2713 = vld [vmem:[%s199 + $0xfc] sm:$0xff]
      %v2714 = vld [vmem:[%s199 + $0x104] sm:$0xff]
      %v2715 = vld [vmem:[%s199 + $0x10c] sm:$0xff]
      %v2716 = vld [vmem:[%s199 + $0x114] sm:$0xff]
      %v2717 = vld [vmem:[%s199 + $0x11c] sm:$0xff]
      %v2718 = vld [vmem:[%s199 + $0x124] sm:$0xff]
      %v2719 = vld [vmem:[%s199 + $0x12c] sm:$0xff]
      %s2720 = scalar_lea.vmem %s1, 20
      %v2721 = vld [vmem:[%s2720] sm:$0xf]
      %v2723 = vsel %vm246, %v2684, 0
      %v2726 = vsel %vm246, %v2685, 0
      %v2729 = vsel %vm246, %v2686, 0
      %v2732 = vsel %vm246, %v2687, 0
      %v2735 = vsel %vm246, %v2688, 0
      %v2738 = vsel %vm246, %v2689, 0
      %v2741 = vsel %vm246, %v2690, 0
      %v2744 = vsel %vm246, %v2691, 0
      %v2747 = vsel %vm246, %v2692, 0
      %v2750 = vsel %vm246, %v2693, 0
      %v2753 = vsel %vm246, %v2694, 0
      %v2756 = vsel %vm246, %v2695, 0
      %v2759 = vsel %vm246, %v2696, 0
      %v2762 = vsel %vm246, %v2697, 0
      %v2765 = vsel %vm246, %v2698, 0
      %v2768 = vsel %vm246, %v2699, 0
      %v2771 = vsel %vm246, %v2700, 0
      %v2774 = vsel %vm246, %v2701, 0
      %v2777 = vsel %vm246, %v2702, 0
      %v2780 = vsel %vm246, %v2703, 0
      %v2783 = vsel %vm246, %v2704, 0
      %v2786 = vsel %vm246, %v2705, 0
      %v2789 = vsel %vm246, %v2706, 0
      %v2792 = vsel %vm246, %v2707, 0
      %v2795 = vsel %vm246, %v2708, 0
      %v2798 = vsel %vm246, %v2709, 0
      %v2801 = vsel %vm246, %v2710, 0
      %v2804 = vsel %vm246, %v2711, 0
      %v2807 = vsel %vm246, %v2712, 0
      %v2810 = vsel %vm246, %v2713, 0
      %v2813 = vsel %vm246, %v2714, 0
      %v2816 = vsel %vm246, %v2715, 0
      %v2819 = vsel %vm246, %v2716, 0
      %v2822 = vsel %vm246, %v2717, 0
      %v2825 = vsel %vm246, %v2718, 0
      %v2828 = vsel %vm246, %v2719, 0
      %v2831 = vsel %vm355, %v2721, 0
      %2833 = vmatprep.subr.mxu0 0.0
      %2834 = vmatpush1.msra.mxu0 %v2831
      %2835 = vmatprep.subr.mxu0 0.0
      %2836 = vmatpush1.msra.mxu0 0.0
      %2837 = vmatprep.subr.mxu0 0.0
      %2838 = vmatpush1.msra.mxu0 0.0
      %2839 = vmatprep.subr.mxu0 0.0
      %2840 = vmatpush1.msra.mxu0 0.0
      %2841 = vmatprep.subr.mxu0 0.0
      %2842 = vmatpush1.msra.mxu0 0.0
      %2843 = vmatprep.subr.mxu0 0.0
      %2844 = vmatpush1.msra.mxu0 0.0
      %2845 = vmatprep.subr.mxu0 0.0
      %2846 = vmatpush1.msra.mxu0 0.0
      %2847 = vmatprep.subr.mxu0 0.0
      %2848 = vmatpush1.msra.mxu0 0.0
      %2849 = vmatprep.subr.mxu0 0.0
      %2850 = vmatpush1.msra.mxu0 0.0
      %2851 = vmatprep.subr.mxu0 0.0
      %2852 = vmatpush1.msra.mxu0 0.0
      %2853 = vmatprep.subr.mxu0 0.0
      %2854 = vmatpush1.msra.mxu0 0.0
      %2855 = vmatprep.subr.mxu0 0.0
      %2856 = vmatpush1.msra.mxu0 0.0
      %2857 = vmatprep.subr.mxu0 0.0
      %2858 = vmatpush1.msra.mxu0 0.0
      %2859 = vmatprep.subr.mxu0 0.0
      %2860 = vmatpush1.msra.mxu0 0.0
      %2861 = vmatprep.subr.mxu0 0.0
      %2862 = vmatpush1.msra.mxu0 0.0
      %2863 = vmatprep.subr.mxu0 0.0
      %2864 = vmatpush1.msra.mxu0 0.0
      %2865 = vmatprep.subr.mxu0 0.0
      %2866 = vmatpush1.msra.mxu0 0.0
      %2867 = vmatprep.subr.mxu0 0.0
      %2868 = vmatpush1.msra.mxu0 0.0
      %2869 = vmatprep.subr.mxu0 0.0
      %2870 = vmatpush1.msra.mxu0 0.0
      %2871 = vmatprep.subr.mxu0 0.0
      %2872 = vmatpush1.msra.mxu0 0.0
      %2873 = vmatprep.subr.mxu0 0.0
      %2874 = vmatpush1.msra.mxu0 0.0
      %2875 = vmatprep.subr.mxu0 0.0
      %2876 = vmatpush1.msra.mxu0 0.0
      %2877 = vmatprep.subr.mxu0 0.0
      %2878 = vmatpush1.msra.mxu0 0.0
      %2879 = vmatprep.subr.mxu0 0.0
      %2880 = vmatpush1.msra.mxu0 0.0
      %2881 = vmatprep.subr.mxu0 0.0
      %2882 = vmatpush1.msra.mxu0 0.0
      %2883 = vmatprep.subr.mxu0 0.0
      %2884 = vmatpush1.msra.mxu0 0.0
      %2885 = vmatprep.subr.mxu0 0.0
      %2886 = vmatpush1.msra.mxu0 0.0
      %2887 = vmatprep.subr.mxu0 0.0
      %2888 = vmatpush1.msra.mxu0 0.0
      %2889 = vmatprep.subr.mxu0 0.0
      %2890 = vmatpush1.msra.mxu0 0.0
      %2891 = vmatprep.subr.mxu0 0.0
      %2892 = vmatpush1.msra.mxu0 0.0
      %2893 = vmatprep.subr.mxu0 0.0
      %2894 = vmatpush1.msra.mxu0 0.0
      %2895 = vmatprep.subr.mxu0 0.0
      %2896 = vmatpush1.msra.mxu0 0.0
      %2897 = vmatprep.mubr.f32.mxu0 0.0
      %2898 = vmatmul.mubr.f32.gmra.mrb[0].mxu0 %v2723
      %v2899 = vpop.f32.mrb[0].mxu0
      %v2900 = vadd.f32 0.0, %v2899
      %v2901 = vpop.f32.mrb[0].mxu0
      %2902 = vmatprep.mubr.f32.mxu0 0.0
      %2903 = vmatmul.mubr.f32.gmra.mrb[0].mxu0 %v2726
      %v2904 = vpop.f32.mrb[0].mxu0
      %v2905 = vadd.f32 0.0, %v2904
      %v2906 = vpop.f32.mrb[0].mxu0
      %2907 = vmatprep.mubr.f32.mxu0 0.0
      %2908 = vmatmul.mubr.f32.gmra.mrb[0].mxu0 %v2729
      %v2909 = vpop.f32.mrb[0].mxu0
      %v2910 = vadd.f32 0.0, %v2909
      %v2911 = vpop.f32.mrb[0].mxu0
      %2912 = vmatprep.mubr.f32.mxu0 0.0
      %2913 = vmatmul.mubr.f32.gmra.mrb[0].mxu0 %v2732
      %v2914 = vpop.f32.mrb[0].mxu0
      %v2915 = vadd.f32 0.0, %v2914
      %v2916 = vpop.f32.mrb[0].mxu0
      %2917 = vmatprep.mubr.f32.mxu0 0.0
      %2918 = vmatmul.mubr.f32.gmra.mrb[0].mxu0 %v2735
      %v2919 = vpop.f32.mrb[0].mxu0
      %v2920 = vadd.f32 0.0, %v2919
      %v2921 = vpop.f32.mrb[0].mxu0
      %2922 = vmatprep.mubr.f32.mxu0 0.0
      %2923 = vmatmul.mubr.f32.gmra.mrb[0].mxu0 %v2738
      %v2924 = vpop.f32.mrb[0].mxu0
      %v2925 = vadd.f32 0.0, %v2924
      %v2926 = vpop.f32.mrb[0].mxu0
      %2927 = vmatprep.mubr.f32.mxu0 0.0
      %2928 = vmatmul.mubr.f32.gmra.mrb[0].mxu0 %v2741
      %v2929 = vpop.f32.mrb[0].mxu0
      %v2930 = vadd.f32 0.0, %v2929
      %v2931 = vpop.f32.mrb[0].mxu0
      %2932 = vmatprep.mubr.f32.mxu0 0.0
      %2933 = vmatmul.mubr.f32.gmra.mrb[0].mxu0 %v2744
      %v2934 = vpop.f32.mrb[0].mxu0
      %v2935 = vadd.f32 0.0, %v2934
      %v2936 = vpop.f32.mrb[0].mxu0
      %2937 = vmatprep.mubr.f32.mxu0 0.0
      %2938 = vmatmul.mubr.f32.gmra.mrb[0].mxu0 %v2747
      %v2939 = vpop.f32.mrb[0].mxu0
      %v2940 = vadd.f32 0.0, %v2939
      %v2941 = vpop.f32.mrb[0].mxu0
      %2942 = vmatprep.mubr.f32.mxu0 0.0
      %2943 = vmatmul.mubr.f32.gmra.mrb[0].mxu0 %v2750
      %v2944 = vpop.f32.mrb[0].mxu0
      %v2945 = vadd.f32 0.0, %v2944
      %v2946 = vpop.f32.mrb[0].mxu0
      %2947 = vmatprep.mubr.f32.mxu0 0.0
      %2948 = vmatmul.mubr.f32.gmra.mrb[0].mxu0 %v2753
      %v2949 = vpop.f32.mrb[0].mxu0
      %v2950 = vadd.f32 0.0, %v2949
      %v2951 = vpop.f32.mrb[0].mxu0
      %2952 = vmatprep.mubr.f32.mxu0 0.0
      %2953 = vmatmul.mubr.f32.gmra.mrb[0].mxu0 %v2756
      %v2954 = vpop.f32.mrb[0].mxu0
      %v2955 = vadd.f32 0.0, %v2954
      %v2956 = vpop.f32.mrb[0].mxu0
      %2957 = vmatprep.mubr.f32.mxu0 0.0
      %2958 = vmatmul.mubr.f32.gmra.mrb[0].mxu0 %v2759
      %v2959 = vpop.f32.mrb[0].mxu0
      %v2960 = vadd.f32 0.0, %v2959
      %v2961 = vpop.f32.mrb[0].mxu0
      %2962 = vmatprep.mubr.f32.mxu0 0.0
      %2963 = vmatmul.mubr.f32.gmra.mrb[0].mxu0 %v2762
      %v2964 = vpop.f32.mrb[0].mxu0
      %v2965 = vadd.f32 0.0, %v2964
      %v2966 = vpop.f32.mrb[0].mxu0
      %2967 = vmatprep.mubr.f32.mxu0 0.0
      %2968 = vmatmul.mubr.f32.gmra.mrb[0].mxu0 %v2765
      %v2969 = vpop.f32.mrb[0].mxu0
      %v2970 = vadd.f32 0.0, %v2969
      %v2971 = vpop.f32.mrb[0].mxu0
      %2972 = vmatprep.mubr.f32.mxu0 0.0
      %2973 = vmatmul.mubr.f32.gmra.mrb[0].mxu0 %v2768
      %v2974 = vpop.f32.mrb[0].mxu0
      %v2975 = vadd.f32 0.0, %v2974
      %v2976 = vpop.f32.mrb[0].mxu0
      %2977 = vmatprep.mubr.f32.mxu0 0.0
      %2978 = vmatmul.mubr.f32.gmra.mrb[0].mxu0 %v2771
      %v2979 = vpop.f32.mrb[0].mxu0
      %v2980 = vadd.f32 0.0, %v2979
      %v2981 = vpop.f32.mrb[0].mxu0
      %2982 = vmatprep.mubr.f32.mxu0 0.0
      %2983 = vmatmul.mubr.f32.gmra.mrb[0].mxu0 %v2774
      %v2984 = vpop.f32.mrb[0].mxu0
      %v2985 = vadd.f32 0.0, %v2984
      %v2986 = vpop.f32.mrb[0].mxu0
      %2987 = vmatprep.mubr.f32.mxu0 0.0
      %2988 = vmatmul.mubr.f32.gmra.mrb[0].mxu0 %v2777
      %v2989 = vpop.f32.mrb[0].mxu0
      %v2990 = vadd.f32 0.0, %v2989
      %v2991 = vpop.f32.mrb[0].mxu0
      %2992 = vmatprep.mubr.f32.mxu0 0.0
      %2993 = vmatmul.mubr.f32.gmra.mrb[0].mxu0 %v2780
      %v2994 = vpop.f32.mrb[0].mxu0
      %v2995 = vadd.f32 0.0, %v2994
      %v2996 = vpop.f32.mrb[0].mxu0
      %2997 = vmatprep.mubr.f32.mxu0 0.0
      %2998 = vmatmul.mubr.f32.gmra.mrb[0].mxu0 %v2783
      %v2999 = vpop.f32.mrb[0].mxu0
      %v3000 = vadd.f32 0.0, %v2999
      %v3001 = vpop.f32.mrb[0].mxu0
      %3002 = vmatprep.mubr.f32.mxu0 0.0
      %3003 = vmatmul.mubr.f32.gmra.mrb[0].mxu0 %v2786
      %v3004 = vpop.f32.mrb[0].mxu0
      %v3005 = vadd.f32 0.0, %v3004
      %v3006 = vpop.f32.mrb[0].mxu0
      %3007 = vmatprep.mubr.f32.mxu0 0.0
      %3008 = vmatmul.mubr.f32.gmra.mrb[0].mxu0 %v2789
      %v3009 = vpop.f32.mrb[0].mxu0
      %v3010 = vadd.f32 0.0, %v3009
      %v3011 = vpop.f32.mrb[0].mxu0
      %3012 = vmatprep.mubr.f32.mxu0 0.0
      %3013 = vmatmul.mubr.f32.gmra.mrb[0].mxu0 %v2792
      %v3014 = vpop.f32.mrb[0].mxu0
      %v3015 = vadd.f32 0.0, %v3014
      %v3016 = vpop.f32.mrb[0].mxu0
      %3017 = vmatprep.mubr.f32.mxu0 0.0
      %3018 = vmatmul.mubr.f32.gmra.mrb[0].mxu0 %v2795
      %v3019 = vpop.f32.mrb[0].mxu0
      %v3020 = vadd.f32 0.0, %v3019
      %v3021 = vpop.f32.mrb[0].mxu0
      %3022 = vmatprep.mubr.f32.mxu0 0.0
      %3023 = vmatmul.mubr.f32.gmra.mrb[0].mxu0 %v2798
      %v3024 = vpop.f32.mrb[0].mxu0
      %v3025 = vadd.f32 0.0, %v3024
      %v3026 = vpop.f32.mrb[0].mxu0
      %3027 = vmatprep.mubr.f32.mxu0 0.0
      %3028 = vmatmul.mubr.f32.gmra.mrb[0].mxu0 %v2801
      %v3029 = vpop.f32.mrb[0].mxu0
      %v3030 = vadd.f32 0.0, %v3029
      %v3031 = vpop.f32.mrb[0].mxu0
      %3032 = vmatprep.mubr.f32.mxu0 0.0
      %3033 = vmatmul.mubr.f32.gmra.mrb[0].mxu0 %v2804
      %v3034 = vpop.f32.mrb[0].mxu0
      %v3035 = vadd.f32 0.0, %v3034
      %v3036 = vpop.f32.mrb[0].mxu0
      %3037 = vmatprep.mubr.f32.mxu0 0.0
      %3038 = vmatmul.mubr.f32.gmra.mrb[0].mxu0 %v2807
      %v3039 = vpop.f32.mrb[0].mxu0
      %v3040 = vadd.f32 0.0, %v3039
      %v3041 = vpop.f32.mrb[0].mxu0
      %3042 = vmatprep.mubr.f32.mxu0 0.0
      %3043 = vmatmul.mubr.f32.gmra.mrb[0].mxu0 %v2810
      %v3044 = vpop.f32.mrb[0].mxu0
      %v3045 = vadd.f32 0.0, %v3044
      %v3046 = vpop.f32.mrb[0].mxu0
      %3047 = vmatprep.mubr.f32.mxu0 0.0
      %3048 = vmatmul.mubr.f32.gmra.mrb[0].mxu0 %v2813
      %v3049 = vpop.f32.mrb[0].mxu0
      %v3050 = vadd.f32 0.0, %v3049
      %v3051 = vpop.f32.mrb[0].mxu0
      %3052 = vmatprep.mubr.f32.mxu0 0.0
      %3053 = vmatmul.mubr.f32.gmra.mrb[0].mxu0 %v2816
      %v3054 = vpop.f32.mrb[0].mxu0
      %v3055 = vadd.f32 0.0, %v3054
      %v3056 = vpop.f32.mrb[0].mxu0
      %3057 = vmatprep.mubr.f32.mxu0 0.0
      %3058 = vmatmul.mubr.f32.gmra.mrb[0].mxu0 %v2819
      %v3059 = vpop.f32.mrb[0].mxu0
      %v3060 = vadd.f32 0.0, %v3059
      %v3061 = vpop.f32.mrb[0].mxu0
      %3062 = vmatprep.mubr.f32.mxu0 0.0
      %3063 = vmatmul.mubr.f32.gmra.mrb[0].mxu0 %v2822
      %v3064 = vpop.f32.mrb[0].mxu0
      %v3065 = vadd.f32 0.0, %v3064
      %v3066 = vpop.f32.mrb[0].mxu0
      %3067 = vmatprep.mubr.f32.mxu0 0.0
      %3068 = vmatmul.mubr.f32.gmra.mrb[0].mxu0 %v2825
      %v3069 = vpop.f32.mrb[0].mxu0
      %v3070 = vadd.f32 0.0, %v3069
      %v3071 = vpop.f32.mrb[0].mxu0
      %3072 = vmatprep.mubr.f32.mxu0 0.0
      %3073 = vmatmul.mubr.f32.gmra.mrb[0].mxu0 %v2828
      %v3074 = vpop.f32.mrb[0].mxu0
      %v3075 = vadd.f32 0.0, %v3074
      %v3076 = vpop.f32.mrb[0].mxu0
      %3077 = vdwg.mxu0
      %v3078 = vadd.f32 %v2648, %v2900
      %v3079 = vadd.f32 %v2649, %v2905
      %v3080 = vadd.f32 %v2650, %v2910
      %v3081 = vadd.f32 %v2651, %v2915
      %v3082 = vadd.f32 %v2652, %v2920
      %v3083 = vadd.f32 %v2653, %v2925
      %v3084 = vadd.f32 %v2654, %v2930
      %v3085 = vadd.f32 %v2655, %v2935
      %v3086 = vadd.f32 %v2656, %v2940
      %v3087 = vadd.f32 %v2657, %v2945
      %v3088 = vadd.f32 %v2658, %v2950
      %v3089 = vadd.f32 %v2659, %v2955
      %v3090 = vadd.f32 %v2660, %v2960
      %v3091 = vadd.f32 %v2661, %v2965
      %v3092 = vadd.f32 %v2662, %v2970
      %v3093 = vadd.f32 %v2663, %v2975
      %v3094 = vadd.f32 %v2664, %v2980
      %v3095 = vadd.f32 %v2665, %v2985
      %v3096 = vadd.f32 %v2666, %v2990
      %v3097 = vadd.f32 %v2667, %v2995
      %v3098 = vadd.f32 %v2668, %v3000
      %v3099 = vadd.f32 %v2669, %v3005
      %v3100 = vadd.f32 %v2670, %v3010
      %v3101 = vadd.f32 %v2671, %v3015
      %v3102 = vadd.f32 %v2672, %v3020
      %v3103 = vadd.f32 %v2673, %v3025
      %v3104 = vadd.f32 %v2674, %v3030
      %v3105 = vadd.f32 %v2675, %v3035
      %v3106 = vadd.f32 %v2676, %v3040
      %v3107 = vadd.f32 %v2677, %v3045
      %v3108 = vadd.f32 %v2678, %v3050
      %v3109 = vadd.f32 %v2679, %v3055
      %v3110 = vadd.f32 %v2680, %v3060
      %v3111 = vadd.f32 %v2681, %v3065
      %v3112 = vadd.f32 %v2682, %v3070
      %v3113 = vadd.f32 %v2683, %v3075
      %3114 = vst [vmem:[%s204] sm:$0xff] %v3078
      %3115 = vst [vmem:[%s204 + $0x8] sm:$0xff] %v3079
      %3116 = vst [vmem:[%s204 + $0x10] sm:$0xff] %v3080
      %3117 = vst [vmem:[%s204 + $0x18] sm:$0xff] %v3081
      %3118 = vst [vmem:[%s204 + $0x20] sm:$0xff] %v3082
      %3119 = vst [vmem:[%s204 + $0x28] sm:$0xff] %v3083
      %3120 = vst [vmem:[%s204 + $0x30] sm:$0xff] %v3084
      %3121 = vst [vmem:[%s204 + $0x38] sm:$0xff] %v3085
      %3122 = vst [vmem:[%s204 + $0x40] sm:$0xff] %v3086
      %3123 = vst [vmem:[%s204 + $0x48] sm:$0xff] %v3087
      %3124 = vst [vmem:[%s204 + $0x50] sm:$0xff] %v3088
      %3125 = vst [vmem:[%s204 + $0x58] sm:$0xff] %v3089
      %3126 = vst [vmem:[%s204 + $0x60] sm:$0xff] %v3090
      %3127 = vst [vmem:[%s204 + $0x68] sm:$0xff] %v3091
      %3128 = vst [vmem:[%s204 + $0x70] sm:$0xff] %v3092
      %3129 = vst [vmem:[%s204 + $0x78] sm:$0xff] %v3093
      %3130 = vst [vmem:[%s204 + $0x80] sm:$0xff] %v3094
      %3131 = vst [vmem:[%s204 + $0x88] sm:$0xff] %v3095
      %3132 = vst [vmem:[%s204 + $0x90] sm:$0xff] %v3096
      %3133 = vst [vmem:[%s204 + $0x98] sm:$0xff] %v3097
      %3134 = vst [vmem:[%s204 + $0xa0] sm:$0xff] %v3098
      %3135 = vst [vmem:[%s204 + $0xa8] sm:$0xff] %v3099
      %3136 = vst [vmem:[%s204 + $0xb0] sm:$0xff] %v3100
      %3137 = vst [vmem:[%s204 + $0xb8] sm:$0xff] %v3101
      %3138 = vst [vmem:[%s204 + $0xc0] sm:$0xff] %v3102
      %3139 = vst [vmem:[%s204 + $0xc8] sm:$0xff] %v3103
      %3140 = vst [vmem:[%s204 + $0xd0] sm:$0xff] %v3104
      %3141 = vst [vmem:[%s204 + $0xd8] sm:$0xff] %v3105
      %3142 = vst [vmem:[%s204 + $0xe0] sm:$0xff] %v3106
      %3143 = vst [vmem:[%s204 + $0xe8] sm:$0xff] %v3107
      %3144 = vst [vmem:[%s204 + $0xf0] sm:$0xff] %v3108
      %3145 = vst [vmem:[%s204 + $0xf8] sm:$0xff] %v3109
      %3146 = vst [vmem:[%s204 + $0x100] sm:$0xff] %v3110
      %3147 = vst [vmem:[%s204 + $0x108] sm:$0xff] %v3111
      %3148 = vst [vmem:[%s204 + $0x110] sm:$0xff] %v3112
      %3149 = vst [vmem:[%s204 + $0x118] sm:$0xff] %v3113
      %v3150 = vld [vmem:[%s204] sm:$0xff]
      %v3151 = vld [vmem:[%s204 + $0x8] sm:$0xff]
      %v3152 = vld [vmem:[%s204 + $0x10] sm:$0xff]
      %v3153 = vld [vmem:[%s204 + $0x18] sm:$0xff]
      %v3154 = vld [vmem:[%s204 + $0x20] sm:$0xff]
      %v3155 = vld [vmem:[%s204 + $0x28] sm:$0xff]
      %v3156 = vld [vmem:[%s204 + $0x30] sm:$0xff]
      %v3157 = vld [vmem:[%s204 + $0x38] sm:$0xff]
      %v3158 = vld [vmem:[%s204 + $0x40] sm:$0xff]
      %v3159 = vld [vmem:[%s204 + $0x48] sm:$0xff]
      %v3160 = vld [vmem:[%s204 + $0x50] sm:$0xff]
      %v3161 = vld [vmem:[%s204 + $0x58] sm:$0xff]
      %v3162 = vld [vmem:[%s204 + $0x60] sm:$0xff]
      %v3163 = vld [vmem:[%s204 + $0x68] sm:$0xff]
      %v3164 = vld [vmem:[%s204 + $0x70] sm:$0xff]
      %v3165 = vld [vmem:[%s204 + $0x78] sm:$0xff]
      %v3166 = vld [vmem:[%s204 + $0x80] sm:$0xff]
      %v3167 = vld [vmem:[%s204 + $0x88] sm:$0xff]
      %v3168 = vld [vmem:[%s204 + $0x90] sm:$0xff]
      %v3169 = vld [vmem:[%s204 + $0x98] sm:$0xff]
      %v3170 = vld [vmem:[%s204 + $0xa0] sm:$0xff]
      %v3171 = vld [vmem:[%s204 + $0xa8] sm:$0xff]
      %v3172 = vld [vmem:[%s204 + $0xb0] sm:$0xff]
      %v3173 = vld [vmem:[%s204 + $0xb8] sm:$0xff]
      %v3174 = vld [vmem:[%s204 + $0xc0] sm:$0xff]
      %v3175 = vld [vmem:[%s204 + $0xc8] sm:$0xff]
      %v3176 = vld [vmem:[%s204 + $0xd0] sm:$0xff]
      %v3177 = vld [vmem:[%s204 + $0xd8] sm:$0xff]
      %v3178 = vld [vmem:[%s204 + $0xe0] sm:$0xff]
      %v3179 = vld [vmem:[%s204 + $0xe8] sm:$0xff]
      %v3180 = vld [vmem:[%s204 + $0xf0] sm:$0xff]
      %v3181 = vld [vmem:[%s204 + $0xf8] sm:$0xff]
      %v3182 = vld [vmem:[%s204 + $0x100] sm:$0xff]
      %v3183 = vld [vmem:[%s204 + $0x108] sm:$0xff]
      %v3184 = vld [vmem:[%s204 + $0x110] sm:$0xff]
      %v3185 = vld [vmem:[%s204 + $0x118] sm:$0xff]
      %v3186 = vld [vmem:[%s199 + $0x24] sm:$0xff]
      %v3187 = vld [vmem:[%s199 + $0x2c] sm:$0xff]
      %v3188 = vld [vmem:[%s199 + $0x34] sm:$0xff]
      %v3189 = vld [vmem:[%s199 + $0x3c] sm:$0xff]
      %v3190 = vld [vmem:[%s199 + $0x44] sm:$0xff]
      %v3191 = vld [vmem:[%s199 + $0x4c] sm:$0xff]
      %v3192 = vld [vmem:[%s199 + $0x54] sm:$0xff]
      %v3193 = vld [vmem:[%s199 + $0x5c] sm:$0xff]
      %v3194 = vld [vmem:[%s199 + $0x64] sm:$0xff]
      %v3195 = vld [vmem:[%s199 + $0x6c] sm:$0xff]
      %v3196 = vld [vmem:[%s199 + $0x74] sm:$0xff]
      %v3197 = vld [vmem:[%s199 + $0x7c] sm:$0xff]
      %v3198 = vld [vmem:[%s199 + $0x84] sm:$0xff]
      %v3199 = vld [vmem:[%s199 + $0x8c] sm:$0xff]
      %v3200 = vld [vmem:[%s199 + $0x94] sm:$0xff]
      %v3201 = vld [vmem:[%s199 + $0x9c] sm:$0xff]
      %v3202 = vld [vmem:[%s199 + $0xa4] sm:$0xff]
      %v3203 = vld [vmem:[%s199 + $0xac] sm:$0xff]
      %v3204 = vld [vmem:[%s199 + $0xb4] sm:$0xff]
      %v3205 = vld [vmem:[%s199 + $0xbc] sm:$0xff]
      %v3206 = vld [vmem:[%s199 + $0xc4] sm:$0xff]
      %v3207 = vld [vmem:[%s199 + $0xcc] sm:$0xff]
      %v3208 = vld [vmem:[%s199 + $0xd4] sm:$0xff]
      %v3209 = vld [vmem:[%s199 + $0xdc] sm:$0xff]
      %v3210 = vld [vmem:[%s199 + $0xe4] sm:$0xff]
      %v3211 = vld [vmem:[%s199 + $0xec] sm:$0xff]
      %v3212 = vld [vmem:[%s199 + $0xf4] sm:$0xff]
      %v3213 = vld [vmem:[%s199 + $0xfc] sm:$0xff]
      %v3214 = vld [vmem:[%s199 + $0x104] sm:$0xff]
      %v3215 = vld [vmem:[%s199 + $0x10c] sm:$0xff]
      %v3216 = vld [vmem:[%s199 + $0x114] sm:$0xff]
      %v3217 = vld [vmem:[%s199 + $0x11c] sm:$0xff]
      %v3218 = vld [vmem:[%s199 + $0x124] sm:$0xff]
      %v3219 = vld [vmem:[%s199 + $0x12c] sm:$0xff]
      %v3220 = vld [vmem:[%s199 + $0x134] sm:$0xff]
      %v3221 = vld [vmem:[%s199 + $0x13c] sm:$0xff]
      %s3222 = scalar_lea.vmem %s1, 24
      %v3223 = vld [vmem:[%s3222] sm:$0xf]
      %v3225 = vsel %vm246, %v3186, 0
      %v3228 = vsel %vm246, %v3187, 0
      %v3231 = vsel %vm246, %v3188, 0
      %v3234 = vsel %vm246, %v3189, 0
      %v3237 = vsel %vm246, %v3190, 0
      %v3240 = vsel %vm246, %v3191, 0
      %v3243 = vsel %vm246, %v3192, 0
      %v3246 = vsel %vm246, %v3193, 0
      %v3249 = vsel %vm246, %v3194, 0
      %v3252 = vsel %vm246, %v3195, 0
      %v3255 = vsel %vm246, %v3196, 0
      %v3258 = vsel %vm246, %v3197, 0
      %v3261 = vsel %vm246, %v3198, 0
      %v3264 = vsel %vm246, %v3199, 0
      %v3267 = vsel %vm246, %v3200, 0
      %v3270 = vsel %vm246, %v3201, 0
      %v3273 = vsel %vm246, %v3202, 0
      %v3276 = vsel %vm246, %v3203, 0
      %v3279 = vsel %vm246, %v3204, 0
      %v3282 = vsel %vm246, %v3205, 0
      %v3285 = vsel %vm246, %v3206, 0
      %v3288 = vsel %vm246, %v3207, 0
      %v3291 = vsel %vm246, %v3208, 0
      %v3294 = vsel %vm246, %v3209, 0
      %v3297 = vsel %vm246, %v3210, 0
      %v3300 = vsel %vm246, %v3211, 0
      %v3303 = vsel %vm246, %v3212, 0
      %v3306 = vsel %vm246, %v3213, 0
      %v3309 = vsel %vm246, %v3214, 0
      %v3312 = vsel %vm246, %v3215, 0
      %v3315 = vsel %vm246, %v3216, 0
      %v3318 = vsel %vm246, %v3217, 0
      %v3321 = vsel %vm246, %v3218, 0
      %v3324 = vsel %vm246, %v3219, 0
      %v3327 = vsel %vm246, %v3220, 0
      %v3330 = vsel %vm246, %v3221, 0
      %v3333 = vsel %vm355, %v3223, 0
      %3335 = vmatprep.subr.mxu0 0.0
      %3336 = vmatpush1.msra.mxu0 %v3333
      %3337 = vmatprep.subr.mxu0 0.0
      %3338 = vmatpush1.msra.mxu0 0.0
      %3339 = vmatprep.subr.mxu0 0.0
      %3340 = vmatpush1.msra.mxu0 0.0
      %3341 = vmatprep.subr.mxu0 0.0
      %3342 = vmatpush1.msra.mxu0 0.0
      %3343 = vmatprep.subr.mxu0 0.0
      %3344 = vmatpush1.msra.mxu0 0.0
      %3345 = vmatprep.subr.mxu0 0.0
      %3346 = vmatpush1.msra.mxu0 0.0
      %3347 = vmatprep.subr.mxu0 0.0
      %3348 = vmatpush1.msra.mxu0 0.0
      %3349 = vmatprep.subr.mxu0 0.0
      %3350 = vmatpush1.msra.mxu0 0.0
      %3351 = vmatprep.subr.mxu0 0.0
      %3352 = vmatpush1.msra.mxu0 0.0
      %3353 = vmatprep.subr.mxu0 0.0
      %3354 = vmatpush1.msra.mxu0 0.0
      %3355 = vmatprep.subr.mxu0 0.0
      %3356 = vmatpush1.msra.mxu0 0.0
      %3357 = vmatprep.subr.mxu0 0.0
      %3358 = vmatpush1.msra.mxu0 0.0
      %3359 = vmatprep.subr.mxu0 0.0
      %3360 = vmatpush1.msra.mxu0 0.0
      %3361 = vmatprep.subr.mxu0 0.0
      %3362 = vmatpush1.msra.mxu0 0.0
      %3363 = vmatprep.subr.mxu0 0.0
      %3364 = vmatpush1.msra.mxu0 0.0
      %3365 = vmatprep.subr.mxu0 0.0
      %3366 = vmatpush1.msra.mxu0 0.0
      %3367 = vmatprep.subr.mxu0 0.0
      %3368 = vmatpush1.msra.mxu0 0.0
      %3369 = vmatprep.subr.mxu0 0.0
      %3370 = vmatpush1.msra.mxu0 0.0
      %3371 = vmatprep.subr.mxu0 0.0
      %3372 = vmatpush1.msra.mxu0 0.0
      %3373 = vmatprep.subr.mxu0 0.0
      %3374 = vmatpush1.msra.mxu0 0.0
      %3375 = vmatprep.subr.mxu0 0.0
      %3376 = vmatpush1.msra.mxu0 0.0
      %3377 = vmatprep.subr.mxu0 0.0
      %3378 = vmatpush1.msra.mxu0 0.0
      %3379 = vmatprep.subr.mxu0 0.0
      %3380 = vmatpush1.msra.mxu0 0.0
      %3381 = vmatprep.subr.mxu0 0.0
      %3382 = vmatpush1.msra.mxu0 0.0
      %3383 = vmatprep.subr.mxu0 0.0
      %3384 = vmatpush1.msra.mxu0 0.0
      %3385 = vmatprep.subr.mxu0 0.0
      %3386 = vmatpush1.msra.mxu0 0.0
      %3387 = vmatprep.subr.mxu0 0.0
      %3388 = vmatpush1.msra.mxu0 0.0
      %3389 = vmatprep.subr.mxu0 0.0
      %3390 = vmatpush1.msra.mxu0 0.0
      %3391 = vmatprep.subr.mxu0 0.0
      %3392 = vmatpush1.msra.mxu0 0.0
      %3393 = vmatprep.subr.mxu0 0.0
      %3394 = vmatpush1.msra.mxu0 0.0
      %3395 = vmatprep.subr.mxu0 0.0
      %3396 = vmatpush1.msra.mxu0 0.0
      %3397 = vmatprep.subr.mxu0 0.0
      %3398 = vmatpush1.msra.mxu0 0.0
      %3399 = vmatprep.mubr.f32.mxu0 0.0
      %3400 = vmatmul.mubr.f32.gmra.mrb[0].mxu0 %v3225
      %v3401 = vpop.f32.mrb[0].mxu0
      %v3402 = vadd.f32 0.0, %v3401
      %v3403 = vpop.f32.mrb[0].mxu0
      %3404 = vmatprep.mubr.f32.mxu0 0.0
      %3405 = vmatmul.mubr.f32.gmra.mrb[0].mxu0 %v3228
      %v3406 = vpop.f32.mrb[0].mxu0
      %v3407 = vadd.f32 0.0, %v3406
      %v3408 = vpop.f32.mrb[0].mxu0
      %3409 = vmatprep.mubr.f32.mxu0 0.0
      %3410 = vmatmul.mubr.f32.gmra.mrb[0].mxu0 %v3231
      %v3411 = vpop.f32.mrb[0].mxu0
      %v3412 = vadd.f32 0.0, %v3411
      %v3413 = vpop.f32.mrb[0].mxu0
      %3414 = vmatprep.mubr.f32.mxu0 0.0
      %3415 = vmatmul.mubr.f32.gmra.mrb[0].mxu0 %v3234
      %v3416 = vpop.f32.mrb[0].mxu0
      %v3417 = vadd.f32 0.0, %v3416
      %v3418 = vpop.f32.mrb[0].mxu0
      %3419 = vmatprep.mubr.f32.mxu0 0.0
      %3420 = vmatmul.mubr.f32.gmra.mrb[0].mxu0 %v3237
      %v3421 = vpop.f32.mrb[0].mxu0
      %v3422 = vadd.f32 0.0, %v3421
      %v3423 = vpop.f32.mrb[0].mxu0
      %3424 = vmatprep.mubr.f32.mxu0 0.0
      %3425 = vmatmul.mubr.f32.gmra.mrb[0].mxu0 %v3240
      %v3426 = vpop.f32.mrb[0].mxu0
      %v3427 = vadd.f32 0.0, %v3426
      %v3428 = vpop.f32.mrb[0].mxu0
      %3429 = vmatprep.mubr.f32.mxu0 0.0
      %3430 = vmatmul.mubr.f32.gmra.mrb[0].mxu0 %v3243
      %v3431 = vpop.f32.mrb[0].mxu0
      %v3432 = vadd.f32 0.0, %v3431
      %v3433 = vpop.f32.mrb[0].mxu0
      %3434 = vmatprep.mubr.f32.mxu0 0.0
      %3435 = vmatmul.mubr.f32.gmra.mrb[0].mxu0 %v3246
      %v3436 = vpop.f32.mrb[0].mxu0
      %v3437 = vadd.f32 0.0, %v3436
      %v3438 = vpop.f32.mrb[0].mxu0
      %3439 = vmatprep.mubr.f32.mxu0 0.0
      %3440 = vmatmul.mubr.f32.gmra.mrb[0].mxu0 %v3249
      %v3441 = vpop.f32.mrb[0].mxu0
      %v3442 = vadd.f32 0.0, %v3441
      %v3443 = vpop.f32.mrb[0].mxu0
      %3444 = vmatprep.mubr.f32.mxu0 0.0
      %3445 = vmatmul.mubr.f32.gmra.mrb[0].mxu0 %v3252
      %v3446 = vpop.f32.mrb[0].mxu0
      %v3447 = vadd.f32 0.0, %v3446
      %v3448 = vpop.f32.mrb[0].mxu0
      %3449 = vmatprep.mubr.f32.mxu0 0.0
      %3450 = vmatmul.mubr.f32.gmra.mrb[0].mxu0 %v3255
      %v3451 = vpop.f32.mrb[0].mxu0
      %v3452 = vadd.f32 0.0, %v3451
      %v3453 = vpop.f32.mrb[0].mxu0
      %3454 = vmatprep.mubr.f32.mxu0 0.0
      %3455 = vmatmul.mubr.f32.gmra.mrb[0].mxu0 %v3258
      %v3456 = vpop.f32.mrb[0].mxu0
      %v3457 = vadd.f32 0.0, %v3456
      %v3458 = vpop.f32.mrb[0].mxu0
      %3459 = vmatprep.mubr.f32.mxu0 0.0
      %3460 = vmatmul.mubr.f32.gmra.mrb[0].mxu0 %v3261
      %v3461 = vpop.f32.mrb[0].mxu0
      %v3462 = vadd.f32 0.0, %v3461
      %v3463 = vpop.f32.mrb[0].mxu0
      %3464 = vmatprep.mubr.f32.mxu0 0.0
      %3465 = vmatmul.mubr.f32.gmra.mrb[0].mxu0 %v3264
      %v3466 = vpop.f32.mrb[0].mxu0
      %v3467 = vadd.f32 0.0, %v3466
      %v3468 = vpop.f32.mrb[0].mxu0
      %3469 = vmatprep.mubr.f32.mxu0 0.0
      %3470 = vmatmul.mubr.f32.gmra.mrb[0].mxu0 %v3267
      %v3471 = vpop.f32.mrb[0].mxu0
      %v3472 = vadd.f32 0.0, %v3471
      %v3473 = vpop.f32.mrb[0].mxu0
      %3474 = vmatprep.mubr.f32.mxu0 0.0
      %3475 = vmatmul.mubr.f32.gmra.mrb[0].mxu0 %v3270
      %v3476 = vpop.f32.mrb[0].mxu0
      %v3477 = vadd.f32 0.0, %v3476
      %v3478 = vpop.f32.mrb[0].mxu0
      %3479 = vmatprep.mubr.f32.mxu0 0.0
      %3480 = vmatmul.mubr.f32.gmra.mrb[0].mxu0 %v3273
      %v3481 = vpop.f32.mrb[0].mxu0
      %v3482 = vadd.f32 0.0, %v3481
      %v3483 = vpop.f32.mrb[0].mxu0
      %3484 = vmatprep.mubr.f32.mxu0 0.0
      %3485 = vmatmul.mubr.f32.gmra.mrb[0].mxu0 %v3276
      %v3486 = vpop.f32.mrb[0].mxu0
      %v3487 = vadd.f32 0.0, %v3486
      %v3488 = vpop.f32.mrb[0].mxu0
      %3489 = vmatprep.mubr.f32.mxu0 0.0
      %3490 = vmatmul.mubr.f32.gmra.mrb[0].mxu0 %v3279
      %v3491 = vpop.f32.mrb[0].mxu0
      %v3492 = vadd.f32 0.0, %v3491
      %v3493 = vpop.f32.mrb[0].mxu0
      %3494 = vmatprep.mubr.f32.mxu0 0.0
      %3495 = vmatmul.mubr.f32.gmra.mrb[0].mxu0 %v3282
      %v3496 = vpop.f32.mrb[0].mxu0
      %v3497 = vadd.f32 0.0, %v3496
      %v3498 = vpop.f32.mrb[0].mxu0
      %3499 = vmatprep.mubr.f32.mxu0 0.0
      %3500 = vmatmul.mubr.f32.gmra.mrb[0].mxu0 %v3285
      %v3501 = vpop.f32.mrb[0].mxu0
      %v3502 = vadd.f32 0.0, %v3501
      %v3503 = vpop.f32.mrb[0].mxu0
      %3504 = vmatprep.mubr.f32.mxu0 0.0
      %3505 = vmatmul.mubr.f32.gmra.mrb[0].mxu0 %v3288
      %v3506 = vpop.f32.mrb[0].mxu0
      %v3507 = vadd.f32 0.0, %v3506
      %v3508 = vpop.f32.mrb[0].mxu0
      %3509 = vmatprep.mubr.f32.mxu0 0.0
      %3510 = vmatmul.mubr.f32.gmra.mrb[0].mxu0 %v3291
      %v3511 = vpop.f32.mrb[0].mxu0
      %v3512 = vadd.f32 0.0, %v3511
      %v3513 = vpop.f32.mrb[0].mxu0
      %3514 = vmatprep.mubr.f32.mxu0 0.0
      %3515 = vmatmul.mubr.f32.gmra.mrb[0].mxu0 %v3294
      %v3516 = vpop.f32.mrb[0].mxu0
      %v3517 = vadd.f32 0.0, %v3516
      %v3518 = vpop.f32.mrb[0].mxu0
      %3519 = vmatprep.mubr.f32.mxu0 0.0
      %3520 = vmatmul.mubr.f32.gmra.mrb[0].mxu0 %v3297
      %v3521 = vpop.f32.mrb[0].mxu0
      %v3522 = vadd.f32 0.0, %v3521
      %v3523 = vpop.f32.mrb[0].mxu0
      %3524 = vmatprep.mubr.f32.mxu0 0.0
      %3525 = vmatmul.mubr.f32.gmra.mrb[0].mxu0 %v3300
      %v3526 = vpop.f32.mrb[0].mxu0
      %v3527 = vadd.f32 0.0, %v3526
      %v3528 = vpop.f32.mrb[0].mxu0
      %3529 = vmatprep.mubr.f32.mxu0 0.0
      %3530 = vmatmul.mubr.f32.gmra.mrb[0].mxu0 %v3303
      %v3531 = vpop.f32.mrb[0].mxu0
      %v3532 = vadd.f32 0.0, %v3531
      %v3533 = vpop.f32.mrb[0].mxu0
      %3534 = vmatprep.mubr.f32.mxu0 0.0
      %3535 = vmatmul.mubr.f32.gmra.mrb[0].mxu0 %v3306
      %v3536 = vpop.f32.mrb[0].mxu0
      %v3537 = vadd.f32 0.0, %v3536
      %v3538 = vpop.f32.mrb[0].mxu0
      %3539 = vmatprep.mubr.f32.mxu0 0.0
      %3540 = vmatmul.mubr.f32.gmra.mrb[0].mxu0 %v3309
      %v3541 = vpop.f32.mrb[0].mxu0
      %v3542 = vadd.f32 0.0, %v3541
      %v3543 = vpop.f32.mrb[0].mxu0
      %3544 = vmatprep.mubr.f32.mxu0 0.0
      %3545 = vmatmul.mubr.f32.gmra.mrb[0].mxu0 %v3312
      %v3546 = vpop.f32.mrb[0].mxu0
      %v3547 = vadd.f32 0.0, %v3546
      %v3548 = vpop.f32.mrb[0].mxu0
      %3549 = vmatprep.mubr.f32.mxu0 0.0
      %3550 = vmatmul.mubr.f32.gmra.mrb[0].mxu0 %v3315
      %v3551 = vpop.f32.mrb[0].mxu0
      %v3552 = vadd.f32 0.0, %v3551
      %v3553 = vpop.f32.mrb[0].mxu0
      %3554 = vmatprep.mubr.f32.mxu0 0.0
      %3555 = vmatmul.mubr.f32.gmra.mrb[0].mxu0 %v3318
      %v3556 = vpop.f32.mrb[0].mxu0
      %v3557 = vadd.f32 0.0, %v3556
      %v3558 = vpop.f32.mrb[0].mxu0
      %3559 = vmatprep.mubr.f32.mxu0 0.0
      %3560 = vmatmul.mubr.f32.gmra.mrb[0].mxu0 %v3321
      %v3561 = vpop.f32.mrb[0].mxu0
      %v3562 = vadd.f32 0.0, %v3561
      %v3563 = vpop.f32.mrb[0].mxu0
      %3564 = vmatprep.mubr.f32.mxu0 0.0
      %3565 = vmatmul.mubr.f32.gmra.mrb[0].mxu0 %v3324
      %v3566 = vpop.f32.mrb[0].mxu0
      %v3567 = vadd.f32 0.0, %v3566
      %v3568 = vpop.f32.mrb[0].mxu0
      %3569 = vmatprep.mubr.f32.mxu0 0.0
      %3570 = vmatmul.mubr.f32.gmra.mrb[0].mxu0 %v3327
      %v3571 = vpop.f32.mrb[0].mxu0
      %v3572 = vadd.f32 0.0, %v3571
      %v3573 = vpop.f32.mrb[0].mxu0
      %3574 = vmatprep.mubr.f32.mxu0 0.0
      %3575 = vmatmul.mubr.f32.gmra.mrb[0].mxu0 %v3330
      %v3576 = vpop.f32.mrb[0].mxu0
      %v3577 = vadd.f32 0.0, %v3576
      %v3578 = vpop.f32.mrb[0].mxu0
      %3579 = vdwg.mxu0
      %v3580 = vadd.f32 %v3150, %v3402
      %v3581 = vadd.f32 %v3151, %v3407
      %v3582 = vadd.f32 %v3152, %v3412
      %v3583 = vadd.f32 %v3153, %v3417
      %v3584 = vadd.f32 %v3154, %v3422
      %v3585 = vadd.f32 %v3155, %v3427
      %v3586 = vadd.f32 %v3156, %v3432
      %v3587 = vadd.f32 %v3157, %v3437
      %v3588 = vadd.f32 %v3158, %v3442
      %v3589 = vadd.f32 %v3159, %v3447
      %v3590 = vadd.f32 %v3160, %v3452
      %v3591 = vadd.f32 %v3161, %v3457
      %v3592 = vadd.f32 %v3162, %v3462
      %v3593 = vadd.f32 %v3163, %v3467
      %v3594 = vadd.f32 %v3164, %v3472
      %v3595 = vadd.f32 %v3165, %v3477
      %v3596 = vadd.f32 %v3166, %v3482
      %v3597 = vadd.f32 %v3167, %v3487
      %v3598 = vadd.f32 %v3168, %v3492
      %v3599 = vadd.f32 %v3169, %v3497
      %v3600 = vadd.f32 %v3170, %v3502
      %v3601 = vadd.f32 %v3171, %v3507
      %v3602 = vadd.f32 %v3172, %v3512
      %v3603 = vadd.f32 %v3173, %v3517
      %v3604 = vadd.f32 %v3174, %v3522
      %v3605 = vadd.f32 %v3175, %v3527
      %v3606 = vadd.f32 %v3176, %v3532
      %v3607 = vadd.f32 %v3177, %v3537
      %v3608 = vadd.f32 %v3178, %v3542
      %v3609 = vadd.f32 %v3179, %v3547
      %v3610 = vadd.f32 %v3180, %v3552
      %v3611 = vadd.f32 %v3181, %v3557
      %v3612 = vadd.f32 %v3182, %v3562
      %v3613 = vadd.f32 %v3183, %v3567
      %v3614 = vadd.f32 %v3184, %v3572
      %v3615 = vadd.f32 %v3185, %v3577
      %3616 = vst [vmem:[%s204] sm:$0xff] %v3580
      %3617 = vst [vmem:[%s204 + $0x8] sm:$0xff] %v3581
      %3618 = vst [vmem:[%s204 + $0x10] sm:$0xff] %v3582
      %3619 = vst [vmem:[%s204 + $0x18] sm:$0xff] %v3583
      %3620 = vst [vmem:[%s204 + $0x20] sm:$0xff] %v3584
      %3621 = vst [vmem:[%s204 + $0x28] sm:$0xff] %v3585
      %3622 = vst [vmem:[%s204 + $0x30] sm:$0xff] %v3586
      %3623 = vst [vmem:[%s204 + $0x38] sm:$0xff] %v3587
      %3624 = vst [vmem:[%s204 + $0x40] sm:$0xff] %v3588
      %3625 = vst [vmem:[%s204 + $0x48] sm:$0xff] %v3589
      %3626 = vst [vmem:[%s204 + $0x50] sm:$0xff] %v3590
      %3627 = vst [vmem:[%s204 + $0x58] sm:$0xff] %v3591
      %3628 = vst [vmem:[%s204 + $0x60] sm:$0xff] %v3592
      %3629 = vst [vmem:[%s204 + $0x68] sm:$0xff] %v3593
      %3630 = vst [vmem:[%s204 + $0x70] sm:$0xff] %v3594
      %3631 = vst [vmem:[%s204 + $0x78] sm:$0xff] %v3595
      %3632 = vst [vmem:[%s204 + $0x80] sm:$0xff] %v3596
      %3633 = vst [vmem:[%s204 + $0x88] sm:$0xff] %v3597
      %3634 = vst [vmem:[%s204 + $0x90] sm:$0xff] %v3598
      %3635 = vst [vmem:[%s204 + $0x98] sm:$0xff] %v3599
      %3636 = vst [vmem:[%s204 + $0xa0] sm:$0xff] %v3600
      %3637 = vst [vmem:[%s204 + $0xa8] sm:$0xff] %v3601
      %3638 = vst [vmem:[%s204 + $0xb0] sm:$0xff] %v3602
      %3639 = vst [vmem:[%s204 + $0xb8] sm:$0xff] %v3603
      %3640 = vst [vmem:[%s204 + $0xc0] sm:$0xff] %v3604
      %3641 = vst [vmem:[%s204 + $0xc8] sm:$0xff] %v3605
      %3642 = vst [vmem:[%s204 + $0xd0] sm:$0xff] %v3606
      %3643 = vst [vmem:[%s204 + $0xd8] sm:$0xff] %v3607
      %3644 = vst [vmem:[%s204 + $0xe0] sm:$0xff] %v3608
      %3645 = vst [vmem:[%s204 + $0xe8] sm:$0xff] %v3609
      %3646 = vst [vmem:[%s204 + $0xf0] sm:$0xff] %v3610
      %3647 = vst [vmem:[%s204 + $0xf8] sm:$0xff] %v3611
      %3648 = vst [vmem:[%s204 + $0x100] sm:$0xff] %v3612
      %3649 = vst [vmem:[%s204 + $0x108] sm:$0xff] %v3613
      %3650 = vst [vmem:[%s204 + $0x110] sm:$0xff] %v3614
      %3651 = vst [vmem:[%s204 + $0x118] sm:$0xff] %v3615
      %v3652 = vld [vmem:[%s204] sm:$0xff]
      %v3653 = vld [vmem:[%s204 + $0x8] sm:$0xff]
      %v3654 = vld [vmem:[%s204 + $0x10] sm:$0xff]
      %v3655 = vld [vmem:[%s204 + $0x18] sm:$0xff]
      %v3656 = vld [vmem:[%s204 + $0x20] sm:$0xff]
      %v3657 = vld [vmem:[%s204 + $0x28] sm:$0xff]
      %v3658 = vld [vmem:[%s204 + $0x30] sm:$0xff]
      %v3659 = vld [vmem:[%s204 + $0x38] sm:$0xff]
      %v3660 = vld [vmem:[%s204 + $0x40] sm:$0xff]
      %v3661 = vld [vmem:[%s204 + $0x48] sm:$0xff]
      %v3662 = vld [vmem:[%s204 + $0x50] sm:$0xff]
      %v3663 = vld [vmem:[%s204 + $0x58] sm:$0xff]
      %v3664 = vld [vmem:[%s204 + $0x60] sm:$0xff]
      %v3665 = vld [vmem:[%s204 + $0x68] sm:$0xff]
      %v3666 = vld [vmem:[%s204 + $0x70] sm:$0xff]
      %v3667 = vld [vmem:[%s204 + $0x78] sm:$0xff]
      %v3668 = vld [vmem:[%s204 + $0x80] sm:$0xff]
      %v3669 = vld [vmem:[%s204 + $0x88] sm:$0xff]
      %v3670 = vld [vmem:[%s204 + $0x90] sm:$0xff]
      %v3671 = vld [vmem:[%s204 + $0x98] sm:$0xff]
      %v3672 = vld [vmem:[%s204 + $0xa0] sm:$0xff]
      %v3673 = vld [vmem:[%s204 + $0xa8] sm:$0xff]
      %v3674 = vld [vmem:[%s204 + $0xb0] sm:$0xff]
      %v3675 = vld [vmem:[%s204 + $0xb8] sm:$0xff]
      %v3676 = vld [vmem:[%s204 + $0xc0] sm:$0xff]
      %v3677 = vld [vmem:[%s204 + $0xc8] sm:$0xff]
      %v3678 = vld [vmem:[%s204 + $0xd0] sm:$0xff]
      %v3679 = vld [vmem:[%s204 + $0xd8] sm:$0xff]
      %v3680 = vld [vmem:[%s204 + $0xe0] sm:$0xff]
      %v3681 = vld [vmem:[%s204 + $0xe8] sm:$0xff]
      %v3682 = vld [vmem:[%s204 + $0xf0] sm:$0xff]
      %v3683 = vld [vmem:[%s204 + $0xf8] sm:$0xff]
      %v3684 = vld [vmem:[%s204 + $0x100] sm:$0xff]
      %v3685 = vld [vmem:[%s204 + $0x108] sm:$0xff]
      %v3686 = vld [vmem:[%s204 + $0x110] sm:$0xff]
      %v3687 = vld [vmem:[%s204 + $0x118] sm:$0xff]
      %v3688 = vld [vmem:[%s199 + $0x25] sm:$0xff]
      %v3689 = vld [vmem:[%s199 + $0x2d] sm:$0xff]
      %v3690 = vld [vmem:[%s199 + $0x35] sm:$0xff]
      %v3691 = vld [vmem:[%s199 + $0x3d] sm:$0xff]
      %v3692 = vld [vmem:[%s199 + $0x45] sm:$0xff]
      %v3693 = vld [vmem:[%s199 + $0x4d] sm:$0xff]
      %v3694 = vld [vmem:[%s199 + $0x55] sm:$0xff]
      %v3695 = vld [vmem:[%s199 + $0x5d] sm:$0xff]
      %v3696 = vld [vmem:[%s199 + $0x65] sm:$0xff]
      %v3697 = vld [vmem:[%s199 + $0x6d] sm:$0xff]
      %v3698 = vld [vmem:[%s199 + $0x75] sm:$0xff]
      %v3699 = vld [vmem:[%s199 + $0x7d] sm:$0xff]
      %v3700 = vld [vmem:[%s199 + $0x85] sm:$0xff]
      %v3701 = vld [vmem:[%s199 + $0x8d] sm:$0xff]
      %v3702 = vld [vmem:[%s199 + $0x95] sm:$0xff]
      %v3703 = vld [vmem:[%s199 + $0x9d] sm:$0xff]
      %v3704 = vld [vmem:[%s199 + $0xa5] sm:$0xff]
      %v3705 = vld [vmem:[%s199 + $0xad] sm:$0xff]
      %v3706 = vld [vmem:[%s199 + $0xb5] sm:$0xff]
      %v3707 = vld [vmem:[%s199 + $0xbd] sm:$0xff]
      %v3708 = vld [vmem:[%s199 + $0xc5] sm:$0xff]
      %v3709 = vld [vmem:[%s199 + $0xcd] sm:$0xff]
      %v3710 = vld [vmem:[%s199 + $0xd5] sm:$0xff]
      %v3711 = vld [vmem:[%s199 + $0xdd] sm:$0xff]
      %v3712 = vld [vmem:[%s199 + $0xe5] sm:$0xff]
      %v3713 = vld [vmem:[%s199 + $0xed] sm:$0xff]
      %v3714 = vld [vmem:[%s199 + $0xf5] sm:$0xff]
      %v3715 = vld [vmem:[%s199 + $0xfd] sm:$0xff]
      %v3716 = vld [vmem:[%s199 + $0x105] sm:$0xff]
      %v3717 = vld [vmem:[%s199 + $0x10d] sm:$0xff]
      %v3718 = vld [vmem:[%s199 + $0x115] sm:$0xff]
      %v3719 = vld [vmem:[%s199 + $0x11d] sm:$0xff]
      %v3720 = vld [vmem:[%s199 + $0x125] sm:$0xff]
      %v3721 = vld [vmem:[%s199 + $0x12d] sm:$0xff]
      %v3722 = vld [vmem:[%s199 + $0x135] sm:$0xff]
      %v3723 = vld [vmem:[%s199 + $0x13d] sm:$0xff]
      %s3724 = scalar_lea.vmem %s1, 28
      %v3725 = vld [vmem:[%s3724] sm:$0xf]
      %v3727 = vsel %vm246, %v3688, 0
      %v3730 = vsel %vm246, %v3689, 0
      %v3733 = vsel %vm246, %v3690, 0
      %v3736 = vsel %vm246, %v3691, 0
      %v3739 = vsel %vm246, %v3692, 0
      %v3742 = vsel %vm246, %v3693, 0
      %v3745 = vsel %vm246, %v3694, 0
      %v3748 = vsel %vm246, %v3695, 0
      %v3751 = vsel %vm246, %v3696, 0
      %v3754 = vsel %vm246, %v3697, 0
      %v3757 = vsel %vm246, %v3698, 0
      %v3760 = vsel %vm246, %v3699, 0
      %v3763 = vsel %vm246, %v3700, 0
      %v3766 = vsel %vm246, %v3701, 0
      %v3769 = vsel %vm246, %v3702, 0
      %v3772 = vsel %vm246, %v3703, 0
      %v3775 = vsel %vm246, %v3704, 0
      %v3778 = vsel %vm246, %v3705, 0
      %v3781 = vsel %vm246, %v3706, 0
      %v3784 = vsel %vm246, %v3707, 0
      %v3787 = vsel %vm246, %v3708, 0
      %v3790 = vsel %vm246, %v3709, 0
      %v3793 = vsel %vm246, %v3710, 0
      %v3796 = vsel %vm246, %v3711, 0
      %v3799 = vsel %vm246, %v3712, 0
      %v3802 = vsel %vm246, %v3713, 0
      %v3805 = vsel %vm246, %v3714, 0
      %v3808 = vsel %vm246, %v3715, 0
      %v3811 = vsel %vm246, %v3716, 0
      %v3814 = vsel %vm246, %v3717, 0
      %v3817 = vsel %vm246, %v3718, 0
      %v3820 = vsel %vm246, %v3719, 0
      %v3823 = vsel %vm246, %v3720, 0
      %v3826 = vsel %vm246, %v3721, 0
      %v3829 = vsel %vm246, %v3722, 0
      %v3832 = vsel %vm246, %v3723, 0
      %v3835 = vsel %vm355, %v3725, 0
      %3837 = vmatprep.subr.mxu0 0.0
      %3838 = vmatpush1.msra.mxu0 %v3835
      %3839 = vmatprep.subr.mxu0 0.0
      %3840 = vmatpush1.msra.mxu0 0.0
      %3841 = vmatprep.subr.mxu0 0.0
      %3842 = vmatpush1.msra.mxu0 0.0
      %3843 = vmatprep.subr.mxu0 0.0
      %3844 = vmatpush1.msra.mxu0 0.0
      %3845 = vmatprep.subr.mxu0 0.0
      %3846 = vmatpush1.msra.mxu0 0.0
      %3847 = vmatprep.subr.mxu0 0.0
      %3848 = vmatpush1.msra.mxu0 0.0
      %3849 = vmatprep.subr.mxu0 0.0
      %3850 = vmatpush1.msra.mxu0 0.0
      %3851 = vmatprep.subr.mxu0 0.0
      %3852 = vmatpush1.msra.mxu0 0.0
      %3853 = vmatprep.subr.mxu0 0.0
      %3854 = vmatpush1.msra.mxu0 0.0
      %3855 = vmatprep.subr.mxu0 0.0
      %3856 = vmatpush1.msra.mxu0 0.0
      %3857 = vmatprep.subr.mxu0 0.0
      %3858 = vmatpush1.msra.mxu0 0.0
      %3859 = vmatprep.subr.mxu0 0.0
      %3860 = vmatpush1.msra.mxu0 0.0
      %3861 = vmatprep.subr.mxu0 0.0
      %3862 = vmatpush1.msra.mxu0 0.0
      %3863 = vmatprep.subr.mxu0 0.0
      %3864 = vmatpush1.msra.mxu0 0.0
      %3865 = vmatprep.subr.mxu0 0.0
      %3866 = vmatpush1.msra.mxu0 0.0
      %3867 = vmatprep.subr.mxu0 0.0
      %3868 = vmatpush1.msra.mxu0 0.0
      %3869 = vmatprep.subr.mxu0 0.0
      %3870 = vmatpush1.msra.mxu0 0.0
      %3871 = vmatprep.subr.mxu0 0.0
      %3872 = vmatpush1.msra.mxu0 0.0
      %3873 = vmatprep.subr.mxu0 0.0
      %3874 = vmatpush1.msra.mxu0 0.0
      %3875 = vmatprep.subr.mxu0 0.0
      %3876 = vmatpush1.msra.mxu0 0.0
      %3877 = vmatprep.subr.mxu0 0.0
      %3878 = vmatpush1.msra.mxu0 0.0
      %3879 = vmatprep.subr.mxu0 0.0
      %3880 = vmatpush1.msra.mxu0 0.0
      %3881 = vmatprep.subr.mxu0 0.0
      %3882 = vmatpush1.msra.mxu0 0.0
      %3883 = vmatprep.subr.mxu0 0.0
      %3884 = vmatpush1.msra.mxu0 0.0
      %3885 = vmatprep.subr.mxu0 0.0
      %3886 = vmatpush1.msra.mxu0 0.0
      %3887 = vmatprep.subr.mxu0 0.0
      %3888 = vmatpush1.msra.mxu0 0.0
      %3889 = vmatprep.subr.mxu0 0.0
      %3890 = vmatpush1.msra.mxu0 0.0
      %3891 = vmatprep.subr.mxu0 0.0
      %3892 = vmatpush1.msra.mxu0 0.0
      %3893 = vmatprep.subr.mxu0 0.0
      %3894 = vmatpush1.msra.mxu0 0.0
      %3895 = vmatprep.subr.mxu0 0.0
      %3896 = vmatpush1.msra.mxu0 0.0
      %3897 = vmatprep.subr.mxu0 0.0
      %3898 = vmatpush1.msra.mxu0 0.0
      %3899 = vmatprep.subr.mxu0 0.0
      %3900 = vmatpush1.msra.mxu0 0.0
      %3901 = vmatprep.mubr.f32.mxu0 0.0
      %3902 = vmatmul.mubr.f32.gmra.mrb[0].mxu0 %v3727
      %v3903 = vpop.f32.mrb[0].mxu0
      %v3904 = vadd.f32 0.0, %v3903
      %v3905 = vpop.f32.mrb[0].mxu0
      %3906 = vmatprep.mubr.f32.mxu0 0.0
      %3907 = vmatmul.mubr.f32.gmra.mrb[0].mxu0 %v3730
      %v3908 = vpop.f32.mrb[0].mxu0
      %v3909 = vadd.f32 0.0, %v3908
      %v3910 = vpop.f32.mrb[0].mxu0
      %3911 = vmatprep.mubr.f32.mxu0 0.0
      %3912 = vmatmul.mubr.f32.gmra.mrb[0].mxu0 %v3733
      %v3913 = vpop.f32.mrb[0].mxu0
      %v3914 = vadd.f32 0.0, %v3913
      %v3915 = vpop.f32.mrb[0].mxu0
      %3916 = vmatprep.mubr.f32.mxu0 0.0
      %3917 = vmatmul.mubr.f32.gmra.mrb[0].mxu0 %v3736
      %v3918 = vpop.f32.mrb[0].mxu0
      %v3919 = vadd.f32 0.0, %v3918
      %v3920 = vpop.f32.mrb[0].mxu0
      %3921 = vmatprep.mubr.f32.mxu0 0.0
      %3922 = vmatmul.mubr.f32.gmra.mrb[0].mxu0 %v3739
      %v3923 = vpop.f32.mrb[0].mxu0
      %v3924 = vadd.f32 0.0, %v3923
      %v3925 = vpop.f32.mrb[0].mxu0
      %3926 = vmatprep.mubr.f32.mxu0 0.0
      %3927 = vmatmul.mubr.f32.gmra.mrb[0].mxu0 %v3742
      %v3928 = vpop.f32.mrb[0].mxu0
      %v3929 = vadd.f32 0.0, %v3928
      %v3930 = vpop.f32.mrb[0].mxu0
      %3931 = vmatprep.mubr.f32.mxu0 0.0
      %3932 = vmatmul.mubr.f32.gmra.mrb[0].mxu0 %v3745
      %v3933 = vpop.f32.mrb[0].mxu0
      %v3934 = vadd.f32 0.0, %v3933
      %v3935 = vpop.f32.mrb[0].mxu0
      %3936 = vmatprep.mubr.f32.mxu0 0.0
      %3937 = vmatmul.mubr.f32.gmra.mrb[0].mxu0 %v3748
      %v3938 = vpop.f32.mrb[0].mxu0
      %v3939 = vadd.f32 0.0, %v3938
      %v3940 = vpop.f32.mrb[0].mxu0
      %3941 = vmatprep.mubr.f32.mxu0 0.0
      %3942 = vmatmul.mubr.f32.gmra.mrb[0].mxu0 %v3751
      %v3943 = vpop.f32.mrb[0].mxu0
      %v3944 = vadd.f32 0.0, %v3943
      %v3945 = vpop.f32.mrb[0].mxu0
      %3946 = vmatprep.mubr.f32.mxu0 0.0
      %3947 = vmatmul.mubr.f32.gmra.mrb[0].mxu0 %v3754
      %v3948 = vpop.f32.mrb[0].mxu0
      %v3949 = vadd.f32 0.0, %v3948
      %v3950 = vpop.f32.mrb[0].mxu0
      %3951 = vmatprep.mubr.f32.mxu0 0.0
      %3952 = vmatmul.mubr.f32.gmra.mrb[0].mxu0 %v3757
      %v3953 = vpop.f32.mrb[0].mxu0
      %v3954 = vadd.f32 0.0, %v3953
      %v3955 = vpop.f32.mrb[0].mxu0
      %3956 = vmatprep.mubr.f32.mxu0 0.0
      %3957 = vmatmul.mubr.f32.gmra.mrb[0].mxu0 %v3760
      %v3958 = vpop.f32.mrb[0].mxu0
      %v3959 = vadd.f32 0.0, %v3958
      %v3960 = vpop.f32.mrb[0].mxu0
      %3961 = vmatprep.mubr.f32.mxu0 0.0
      %3962 = vmatmul.mubr.f32.gmra.mrb[0].mxu0 %v3763
      %v3963 = vpop.f32.mrb[0].mxu0
      %v3964 = vadd.f32 0.0, %v3963
      %v3965 = vpop.f32.mrb[0].mxu0
      %3966 = vmatprep.mubr.f32.mxu0 0.0
      %3967 = vmatmul.mubr.f32.gmra.mrb[0].mxu0 %v3766
      %v3968 = vpop.f32.mrb[0].mxu0
      %v3969 = vadd.f32 0.0, %v3968
      %v3970 = vpop.f32.mrb[0].mxu0
      %3971 = vmatprep.mubr.f32.mxu0 0.0
      %3972 = vmatmul.mubr.f32.gmra.mrb[0].mxu0 %v3769
      %v3973 = vpop.f32.mrb[0].mxu0
      %v3974 = vadd.f32 0.0, %v3973
      %v3975 = vpop.f32.mrb[0].mxu0
      %3976 = vmatprep.mubr.f32.mxu0 0.0
      %3977 = vmatmul.mubr.f32.gmra.mrb[0].mxu0 %v3772
      %v3978 = vpop.f32.mrb[0].mxu0
      %v3979 = vadd.f32 0.0, %v3978
      %v3980 = vpop.f32.mrb[0].mxu0
      %3981 = vmatprep.mubr.f32.mxu0 0.0
      %3982 = vmatmul.mubr.f32.gmra.mrb[0].mxu0 %v3775
      %v3983 = vpop.f32.mrb[0].mxu0
      %v3984 = vadd.f32 0.0, %v3983
      %v3985 = vpop.f32.mrb[0].mxu0
      %3986 = vmatprep.mubr.f32.mxu0 0.0
      %3987 = vmatmul.mubr.f32.gmra.mrb[0].mxu0 %v3778
      %v3988 = vpop.f32.mrb[0].mxu0
      %v3989 = vadd.f32 0.0, %v3988
      %v3990 = vpop.f32.mrb[0].mxu0
      %3991 = vmatprep.mubr.f32.mxu0 0.0
      %3992 = vmatmul.mubr.f32.gmra.mrb[0].mxu0 %v3781
      %v3993 = vpop.f32.mrb[0].mxu0
      %v3994 = vadd.f32 0.0, %v3993
      %v3995 = vpop.f32.mrb[0].mxu0
      %3996 = vmatprep.mubr.f32.mxu0 0.0
      %3997 = vmatmul.mubr.f32.gmra.mrb[0].mxu0 %v3784
      %v3998 = vpop.f32.mrb[0].mxu0
      %v3999 = vadd.f32 0.0, %v3998
      %v4000 = vpop.f32.mrb[0].mxu0
      %4001 = vmatprep.mubr.f32.mxu0 0.0
      %4002 = vmatmul.mubr.f32.gmra.mrb[0].mxu0 %v3787
      %v4003 = vpop.f32.mrb[0].mxu0
      %v4004 = vadd.f32 0.0, %v4003
      %v4005 = vpop.f32.mrb[0].mxu0
      %4006 = vmatprep.mubr.f32.mxu0 0.0
      %4007 = vmatmul.mubr.f32.gmra.mrb[0].mxu0 %v3790
      %v4008 = vpop.f32.mrb[0].mxu0
      %v4009 = vadd.f32 0.0, %v4008
      %v4010 = vpop.f32.mrb[0].mxu0
      %4011 = vmatprep.mubr.f32.mxu0 0.0
      %4012 = vmatmul.mubr.f32.gmra.mrb[0].mxu0 %v3793
      %v4013 = vpop.f32.mrb[0].mxu0
      %v4014 = vadd.f32 0.0, %v4013
      %v4015 = vpop.f32.mrb[0].mxu0
      %4016 = vmatprep.mubr.f32.mxu0 0.0
      %4017 = vmatmul.mubr.f32.gmra.mrb[0].mxu0 %v3796
      %v4018 = vpop.f32.mrb[0].mxu0
      %v4019 = vadd.f32 0.0, %v4018
      %v4020 = vpop.f32.mrb[0].mxu0
      %4021 = vmatprep.mubr.f32.mxu0 0.0
      %4022 = vmatmul.mubr.f32.gmra.mrb[0].mxu0 %v3799
      %v4023 = vpop.f32.mrb[0].mxu0
      %v4024 = vadd.f32 0.0, %v4023
      %v4025 = vpop.f32.mrb[0].mxu0
      %4026 = vmatprep.mubr.f32.mxu0 0.0
      %4027 = vmatmul.mubr.f32.gmra.mrb[0].mxu0 %v3802
      %v4028 = vpop.f32.mrb[0].mxu0
      %v4029 = vadd.f32 0.0, %v4028
      %v4030 = vpop.f32.mrb[0].mxu0
      %4031 = vmatprep.mubr.f32.mxu0 0.0
      %4032 = vmatmul.mubr.f32.gmra.mrb[0].mxu0 %v3805
      %v4033 = vpop.f32.mrb[0].mxu0
      %v4034 = vadd.f32 0.0, %v4033
      %v4035 = vpop.f32.mrb[0].mxu0
      %4036 = vmatprep.mubr.f32.mxu0 0.0
      %4037 = vmatmul.mubr.f32.gmra.mrb[0].mxu0 %v3808
      %v4038 = vpop.f32.mrb[0].mxu0
      %v4039 = vadd.f32 0.0, %v4038
      %v4040 = vpop.f32.mrb[0].mxu0
      %4041 = vmatprep.mubr.f32.mxu0 0.0
      %4042 = vmatmul.mubr.f32.gmra.mrb[0].mxu0 %v3811
      %v4043 = vpop.f32.mrb[0].mxu0
      %v4044 = vadd.f32 0.0, %v4043
      %v4045 = vpop.f32.mrb[0].mxu0
      %4046 = vmatprep.mubr.f32.mxu0 0.0
      %4047 = vmatmul.mubr.f32.gmra.mrb[0].mxu0 %v3814
      %v4048 = vpop.f32.mrb[0].mxu0
      %v4049 = vadd.f32 0.0, %v4048
      %v4050 = vpop.f32.mrb[0].mxu0
      %4051 = vmatprep.mubr.f32.mxu0 0.0
      %4052 = vmatmul.mubr.f32.gmra.mrb[0].mxu0 %v3817
      %v4053 = vpop.f32.mrb[0].mxu0
      %v4054 = vadd.f32 0.0, %v4053
      %v4055 = vpop.f32.mrb[0].mxu0
      %4056 = vmatprep.mubr.f32.mxu0 0.0
      %4057 = vmatmul.mubr.f32.gmra.mrb[0].mxu0 %v3820
      %v4058 = vpop.f32.mrb[0].mxu0
      %v4059 = vadd.f32 0.0, %v4058
      %v4060 = vpop.f32.mrb[0].mxu0
      %4061 = vmatprep.mubr.f32.mxu0 0.0
      %4062 = vmatmul.mubr.f32.gmra.mrb[0].mxu0 %v3823
      %v4063 = vpop.f32.mrb[0].mxu0
      %v4064 = vadd.f32 0.0, %v4063
      %v4065 = vpop.f32.mrb[0].mxu0
      %4066 = vmatprep.mubr.f32.mxu0 0.0
      %4067 = vmatmul.mubr.f32.gmra.mrb[0].mxu0 %v3826
      %v4068 = vpop.f32.mrb[0].mxu0
      %v4069 = vadd.f32 0.0, %v4068
      %v4070 = vpop.f32.mrb[0].mxu0
      %4071 = vmatprep.mubr.f32.mxu0 0.0
      %4072 = vmatmul.mubr.f32.gmra.mrb[0].mxu0 %v3829
      %v4073 = vpop.f32.mrb[0].mxu0
      %v4074 = vadd.f32 0.0, %v4073
      %v4075 = vpop.f32.mrb[0].mxu0
      %4076 = vmatprep.mubr.f32.mxu0 0.0
      %4077 = vmatmul.mubr.f32.gmra.mrb[0].mxu0 %v3832
      %v4078 = vpop.f32.mrb[0].mxu0
      %v4079 = vadd.f32 0.0, %v4078
      %v4080 = vpop.f32.mrb[0].mxu0
      %4081 = vdwg.mxu0
      %v4082 = vadd.f32 %v3652, %v3904
      %v4083 = vadd.f32 %v3653, %v3909
      %v4084 = vadd.f32 %v3654, %v3914
      %v4085 = vadd.f32 %v3655, %v3919
      %v4086 = vadd.f32 %v3656, %v3924
      %v4087 = vadd.f32 %v3657, %v3929
      %v4088 = vadd.f32 %v3658, %v3934
      %v4089 = vadd.f32 %v3659, %v3939
      %v4090 = vadd.f32 %v3660, %v3944
      %v4091 = vadd.f32 %v3661, %v3949
      %v4092 = vadd.f32 %v3662, %v3954
      %v4093 = vadd.f32 %v3663, %v3959
      %v4094 = vadd.f32 %v3664, %v3964
      %v4095 = vadd.f32 %v3665, %v3969
      %v4096 = vadd.f32 %v3666, %v3974
      %v4097 = vadd.f32 %v3667, %v3979
      %v4098 = vadd.f32 %v3668, %v3984
      %v4099 = vadd.f32 %v3669, %v3989
      %v4100 = vadd.f32 %v3670, %v3994
      %v4101 = vadd.f32 %v3671, %v3999
      %v4102 = vadd.f32 %v3672, %v4004
      %v4103 = vadd.f32 %v3673, %v4009
      %v4104 = vadd.f32 %v3674, %v4014
      %v4105 = vadd.f32 %v3675, %v4019
      %v4106 = vadd.f32 %v3676, %v4024
      %v4107 = vadd.f32 %v3677, %v4029
      %v4108 = vadd.f32 %v3678, %v4034
      %v4109 = vadd.f32 %v3679, %v4039
      %v4110 = vadd.f32 %v3680, %v4044
      %v4111 = vadd.f32 %v3681, %v4049
      %v4112 = vadd.f32 %v3682, %v4054
      %v4113 = vadd.f32 %v3683, %v4059
      %v4114 = vadd.f32 %v3684, %v4064
      %v4115 = vadd.f32 %v3685, %v4069
      %v4116 = vadd.f32 %v3686, %v4074
      %v4117 = vadd.f32 %v3687, %v4079
      %4118 = vst [vmem:[%s204] sm:$0xff] %v4082
      %4119 = vst [vmem:[%s204 + $0x8] sm:$0xff] %v4083
      %4120 = vst [vmem:[%s204 + $0x10] sm:$0xff] %v4084
      %4121 = vst [vmem:[%s204 + $0x18] sm:$0xff] %v4085
      %4122 = vst [vmem:[%s204 + $0x20] sm:$0xff] %v4086
      %4123 = vst [vmem:[%s204 + $0x28] sm:$0xff] %v4087
      %4124 = vst [vmem:[%s204 + $0x30] sm:$0xff] %v4088
      %4125 = vst [vmem:[%s204 + $0x38] sm:$0xff] %v4089
      %4126 = vst [vmem:[%s204 + $0x40] sm:$0xff] %v4090
      %4127 = vst [vmem:[%s204 + $0x48] sm:$0xff] %v4091
      %4128 = vst [vmem:[%s204 + $0x50] sm:$0xff] %v4092
      %4129 = vst [vmem:[%s204 + $0x58] sm:$0xff] %v4093
      %4130 = vst [vmem:[%s204 + $0x60] sm:$0xff] %v4094
      %4131 = vst [vmem:[%s204 + $0x68] sm:$0xff] %v4095
      %4132 = vst [vmem:[%s204 + $0x70] sm:$0xff] %v4096
      %4133 = vst [vmem:[%s204 + $0x78] sm:$0xff] %v4097
      %4134 = vst [vmem:[%s204 + $0x80] sm:$0xff] %v4098
      %4135 = vst [vmem:[%s204 + $0x88] sm:$0xff] %v4099
      %4136 = vst [vmem:[%s204 + $0x90] sm:$0xff] %v4100
      %4137 = vst [vmem:[%s204 + $0x98] sm:$0xff] %v4101
      %4138 = vst [vmem:[%s204 + $0xa0] sm:$0xff] %v4102
      %4139 = vst [vmem:[%s204 + $0xa8] sm:$0xff] %v4103
      %4140 = vst [vmem:[%s204 + $0xb0] sm:$0xff] %v4104
      %4141 = vst [vmem:[%s204 + $0xb8] sm:$0xff] %v4105
      %4142 = vst [vmem:[%s204 + $0xc0] sm:$0xff] %v4106
      %4143 = vst [vmem:[%s204 + $0xc8] sm:$0xff] %v4107
      %4144 = vst [vmem:[%s204 + $0xd0] sm:$0xff] %v4108
      %4145 = vst [vmem:[%s204 + $0xd8] sm:$0xff] %v4109
      %4146 = vst [vmem:[%s204 + $0xe0] sm:$0xff] %v4110
      %4147 = vst [vmem:[%s204 + $0xe8] sm:$0xff] %v4111
      %4148 = vst [vmem:[%s204 + $0xf0] sm:$0xff] %v4112
      %4149 = vst [vmem:[%s204 + $0xf8] sm:$0xff] %v4113
      %4150 = vst [vmem:[%s204 + $0x100] sm:$0xff] %v4114
      %4151 = vst [vmem:[%s204 + $0x108] sm:$0xff] %v4115
      %4152 = vst [vmem:[%s204 + $0x110] sm:$0xff] %v4116
      %4153 = vst [vmem:[%s204 + $0x118] sm:$0xff] %v4117
      %v4154 = vld [vmem:[%s204] sm:$0xff]
      %v4155 = vld [vmem:[%s204 + $0x8] sm:$0xff]
      %v4156 = vld [vmem:[%s204 + $0x10] sm:$0xff]
      %v4157 = vld [vmem:[%s204 + $0x18] sm:$0xff]
      %v4158 = vld [vmem:[%s204 + $0x20] sm:$0xff]
      %v4159 = vld [vmem:[%s204 + $0x28] sm:$0xff]
      %v4160 = vld [vmem:[%s204 + $0x30] sm:$0xff]
      %v4161 = vld [vmem:[%s204 + $0x38] sm:$0xff]
      %v4162 = vld [vmem:[%s204 + $0x40] sm:$0xff]
      %v4163 = vld [vmem:[%s204 + $0x48] sm:$0xff]
      %v4164 = vld [vmem:[%s204 + $0x50] sm:$0xff]
      %v4165 = vld [vmem:[%s204 + $0x58] sm:$0xff]
      %v4166 = vld [vmem:[%s204 + $0x60] sm:$0xff]
      %v4167 = vld [vmem:[%s204 + $0x68] sm:$0xff]
      %v4168 = vld [vmem:[%s204 + $0x70] sm:$0xff]
      %v4169 = vld [vmem:[%s204 + $0x78] sm:$0xff]
      %v4170 = vld [vmem:[%s204 + $0x80] sm:$0xff]
      %v4171 = vld [vmem:[%s204 + $0x88] sm:$0xff]
      %v4172 = vld [vmem:[%s204 + $0x90] sm:$0xff]
      %v4173 = vld [vmem:[%s204 + $0x98] sm:$0xff]
      %v4174 = vld [vmem:[%s204 + $0xa0] sm:$0xff]
      %v4175 = vld [vmem:[%s204 + $0xa8] sm:$0xff]
      %v4176 = vld [vmem:[%s204 + $0xb0] sm:$0xff]
      %v4177 = vld [vmem:[%s204 + $0xb8] sm:$0xff]
      %v4178 = vld [vmem:[%s204 + $0xc0] sm:$0xff]
      %v4179 = vld [vmem:[%s204 + $0xc8] sm:$0xff]
      %v4180 = vld [vmem:[%s204 + $0xd0] sm:$0xff]
      %v4181 = vld [vmem:[%s204 + $0xd8] sm:$0xff]
      %v4182 = vld [vmem:[%s204 + $0xe0] sm:$0xff]
      %v4183 = vld [vmem:[%s204 + $0xe8] sm:$0xff]
      %v4184 = vld [vmem:[%s204 + $0xf0] sm:$0xff]
      %v4185 = vld [vmem:[%s204 + $0xf8] sm:$0xff]
      %v4186 = vld [vmem:[%s204 + $0x100] sm:$0xff]
      %v4187 = vld [vmem:[%s204 + $0x108] sm:$0xff]
      %v4188 = vld [vmem:[%s204 + $0x110] sm:$0xff]
      %v4189 = vld [vmem:[%s204 + $0x118] sm:$0xff]
      %v4190 = vld [vmem:[%s199 + $0x26] sm:$0xff]
      %v4191 = vld [vmem:[%s199 + $0x2e] sm:$0xff]
      %v4192 = vld [vmem:[%s199 + $0x36] sm:$0xff]
      %v4193 = vld [vmem:[%s199 + $0x3e] sm:$0xff]
      %v4194 = vld [vmem:[%s199 + $0x46] sm:$0xff]
      %v4195 = vld [vmem:[%s199 + $0x4e] sm:$0xff]
      %v4196 = vld [vmem:[%s199 + $0x56] sm:$0xff]
      %v4197 = vld [vmem:[%s199 + $0x5e] sm:$0xff]
      %v4198 = vld [vmem:[%s199 + $0x66] sm:$0xff]
      %v4199 = vld [vmem:[%s199 + $0x6e] sm:$0xff]
      %v4200 = vld [vmem:[%s199 + $0x76] sm:$0xff]
      %v4201 = vld [vmem:[%s199 + $0x7e] sm:$0xff]
      %v4202 = vld [vmem:[%s199 + $0x86] sm:$0xff]
      %v4203 = vld [vmem:[%s199 + $0x8e] sm:$0xff]
      %v4204 = vld [vmem:[%s199 + $0x96] sm:$0xff]
      %v4205 = vld [vmem:[%s199 + $0x9e] sm:$0xff]
      %v4206 = vld [vmem:[%s199 + $0xa6] sm:$0xff]
      %v4207 = vld [vmem:[%s199 + $0xae] sm:$0xff]
      %v4208 = vld [vmem:[%s199 + $0xb6] sm:$0xff]
      %v4209 = vld [vmem:[%s199 + $0xbe] sm:$0xff]
      %v4210 = vld [vmem:[%s199 + $0xc6] sm:$0xff]
      %v4211 = vld [vmem:[%s199 + $0xce] sm:$0xff]
      %v4212 = vld [vmem:[%s199 + $0xd6] sm:$0xff]
      %v4213 = vld [vmem:[%s199 + $0xde] sm:$0xff]
      %v4214 = vld [vmem:[%s199 + $0xe6] sm:$0xff]
      %v4215 = vld [vmem:[%s199 + $0xee] sm:$0xff]
      %v4216 = vld [vmem:[%s199 + $0xf6] sm:$0xff]
      %v4217 = vld [vmem:[%s199 + $0xfe] sm:$0xff]
      %v4218 = vld [vmem:[%s199 + $0x106] sm:$0xff]
      %v4219 = vld [vmem:[%s199 + $0x10e] sm:$0xff]
      %v4220 = vld [vmem:[%s199 + $0x116] sm:$0xff]
      %v4221 = vld [vmem:[%s199 + $0x11e] sm:$0xff]
      %v4222 = vld [vmem:[%s199 + $0x126] sm:$0xff]
      %v4223 = vld [vmem:[%s199 + $0x12e] sm:$0xff]
      %v4224 = vld [vmem:[%s199 + $0x136] sm:$0xff]
      %v4225 = vld [vmem:[%s199 + $0x13e] sm:$0xff]
      %s4226 = scalar_lea.vmem %s1, 32
      %v4227 = vld [vmem:[%s4226] sm:$0xf]
      %v4229 = vsel %vm246, %v4190, 0
      %v4232 = vsel %vm246, %v4191, 0
      %v4235 = vsel %vm246, %v4192, 0
      %v4238 = vsel %vm246, %v4193, 0
      %v4241 = vsel %vm246, %v4194, 0
      %v4244 = vsel %vm246, %v4195, 0
      %v4247 = vsel %vm246, %v4196, 0
      %v4250 = vsel %vm246, %v4197, 0
      %v4253 = vsel %vm246, %v4198, 0
      %v4256 = vsel %vm246, %v4199, 0
      %v4259 = vsel %vm246, %v4200, 0
      %v4262 = vsel %vm246, %v4201, 0
      %v4265 = vsel %vm246, %v4202, 0
      %v4268 = vsel %vm246, %v4203, 0
      %v4271 = vsel %vm246, %v4204, 0
      %v4274 = vsel %vm246, %v4205, 0
      %v4277 = vsel %vm246, %v4206, 0
      %v4280 = vsel %vm246, %v4207, 0
      %v4283 = vsel %vm246, %v4208, 0
      %v4286 = vsel %vm246, %v4209, 0
      %v4289 = vsel %vm246, %v4210, 0
      %v4292 = vsel %vm246, %v4211, 0
      %v4295 = vsel %vm246, %v4212, 0
      %v4298 = vsel %vm246, %v4213, 0
      %v4301 = vsel %vm246, %v4214, 0
      %v4304 = vsel %vm246, %v4215, 0
      %v4307 = vsel %vm246, %v4216, 0
      %v4310 = vsel %vm246, %v4217, 0
      %v4313 = vsel %vm246, %v4218, 0
      %v4316 = vsel %vm246, %v4219, 0
      %v4319 = vsel %vm246, %v4220, 0
      %v4322 = vsel %vm246, %v4221, 0
      %v4325 = vsel %vm246, %v4222, 0
      %v4328 = vsel %vm246, %v4223, 0
      %v4331 = vsel %vm246, %v4224, 0
      %v4334 = vsel %vm246, %v4225, 0
      %v4337 = vsel %vm355, %v4227, 0
      %4339 = vmatprep.subr.mxu0 0.0
      %4340 = vmatpush1.msra.mxu0 %v4337
      %4341 = vmatprep.subr.mxu0 0.0
      %4342 = vmatpush1.msra.mxu0 0.0
      %4343 = vmatprep.subr.mxu0 0.0
      %4344 = vmatpush1.msra.mxu0 0.0
      %4345 = vmatprep.subr.mxu0 0.0
      %4346 = vmatpush1.msra.mxu0 0.0
      %4347 = vmatprep.subr.mxu0 0.0
      %4348 = vmatpush1.msra.mxu0 0.0
      %4349 = vmatprep.subr.mxu0 0.0
      %4350 = vmatpush1.msra.mxu0 0.0
      %4351 = vmatprep.subr.mxu0 0.0
      %4352 = vmatpush1.msra.mxu0 0.0
      %4353 = vmatprep.subr.mxu0 0.0
      %4354 = vmatpush1.msra.mxu0 0.0
      %4355 = vmatprep.subr.mxu0 0.0
      %4356 = vmatpush1.msra.mxu0 0.0
      %4357 = vmatprep.subr.mxu0 0.0
      %4358 = vmatpush1.msra.mxu0 0.0
      %4359 = vmatprep.subr.mxu0 0.0
      %4360 = vmatpush1.msra.mxu0 0.0
      %4361 = vmatprep.subr.mxu0 0.0
      %4362 = vmatpush1.msra.mxu0 0.0
      %4363 = vmatprep.subr.mxu0 0.0
      %4364 = vmatpush1.msra.mxu0 0.0
      %4365 = vmatprep.subr.mxu0 0.0
      %4366 = vmatpush1.msra.mxu0 0.0
      %4367 = vmatprep.subr.mxu0 0.0
      %4368 = vmatpush1.msra.mxu0 0.0
      %4369 = vmatprep.subr.mxu0 0.0
      %4370 = vmatpush1.msra.mxu0 0.0
      %4371 = vmatprep.subr.mxu0 0.0
      %4372 = vmatpush1.msra.mxu0 0.0
      %4373 = vmatprep.subr.mxu0 0.0
      %4374 = vmatpush1.msra.mxu0 0.0
      %4375 = vmatprep.subr.mxu0 0.0
      %4376 = vmatpush1.msra.mxu0 0.0
      %4377 = vmatprep.subr.mxu0 0.0
      %4378 = vmatpush1.msra.mxu0 0.0
      %4379 = vmatprep.subr.mxu0 0.0
      %4380 = vmatpush1.msra.mxu0 0.0
      %4381 = vmatprep.subr.mxu0 0.0
      %4382 = vmatpush1.msra.mxu0 0.0
      %4383 = vmatprep.subr.mxu0 0.0
      %4384 = vmatpush1.msra.mxu0 0.0
      %4385 = vmatprep.subr.mxu0 0.0
      %4386 = vmatpush1.msra.mxu0 0.0
      %4387 = vmatprep.subr.mxu0 0.0
      %4388 = vmatpush1.msra.mxu0 0.0
      %4389 = vmatprep.subr.mxu0 0.0
      %4390 = vmatpush1.msra.mxu0 0.0
      %4391 = vmatprep.subr.mxu0 0.0
      %4392 = vmatpush1.msra.mxu0 0.0
      %4393 = vmatprep.subr.mxu0 0.0
      %4394 = vmatpush1.msra.mxu0 0.0
      %4395 = vmatprep.subr.mxu0 0.0
      %4396 = vmatpush1.msra.mxu0 0.0
      %4397 = vmatprep.subr.mxu0 0.0
      %4398 = vmatpush1.msra.mxu0 0.0
      %4399 = vmatprep.subr.mxu0 0.0
      %4400 = vmatpush1.msra.mxu0 0.0
      %4401 = vmatprep.subr.mxu0 0.0
      %4402 = vmatpush1.msra.mxu0 0.0
      %4403 = vmatprep.mubr.f32.mxu0 0.0
      %4404 = vmatmul.mubr.f32.gmra.mrb[0].mxu0 %v4229
      %v4405 = vpop.f32.mrb[0].mxu0
      %v4406 = vadd.f32 0.0, %v4405
      %v4407 = vpop.f32.mrb[0].mxu0
      %4408 = vmatprep.mubr.f32.mxu0 0.0
      %4409 = vmatmul.mubr.f32.gmra.mrb[0].mxu0 %v4232
      %v4410 = vpop.f32.mrb[0].mxu0
      %v4411 = vadd.f32 0.0, %v4410
      %v4412 = vpop.f32.mrb[0].mxu0
      %4413 = vmatprep.mubr.f32.mxu0 0.0
      %4414 = vmatmul.mubr.f32.gmra.mrb[0].mxu0 %v4235
      %v4415 = vpop.f32.mrb[0].mxu0
      %v4416 = vadd.f32 0.0, %v4415
      %v4417 = vpop.f32.mrb[0].mxu0
      %4418 = vmatprep.mubr.f32.mxu0 0.0
      %4419 = vmatmul.mubr.f32.gmra.mrb[0].mxu0 %v4238
      %v4420 = vpop.f32.mrb[0].mxu0
      %v4421 = vadd.f32 0.0, %v4420
      %v4422 = vpop.f32.mrb[0].mxu0
      %4423 = vmatprep.mubr.f32.mxu0 0.0
      %4424 = vmatmul.mubr.f32.gmra.mrb[0].mxu0 %v4241
      %v4425 = vpop.f32.mrb[0].mxu0
      %v4426 = vadd.f32 0.0, %v4425
      %v4427 = vpop.f32.mrb[0].mxu0
      %4428 = vmatprep.mubr.f32.mxu0 0.0
      %4429 = vmatmul.mubr.f32.gmra.mrb[0].mxu0 %v4244
      %v4430 = vpop.f32.mrb[0].mxu0
      %v4431 = vadd.f32 0.0, %v4430
      %v4432 = vpop.f32.mrb[0].mxu0
      %4433 = vmatprep.mubr.f32.mxu0 0.0
      %4434 = vmatmul.mubr.f32.gmra.mrb[0].mxu0 %v4247
      %v4435 = vpop.f32.mrb[0].mxu0
      %v4436 = vadd.f32 0.0, %v4435
      %v4437 = vpop.f32.mrb[0].mxu0
      %4438 = vmatprep.mubr.f32.mxu0 0.0
      %4439 = vmatmul.mubr.f32.gmra.mrb[0].mxu0 %v4250
      %v4440 = vpop.f32.mrb[0].mxu0
      %v4441 = vadd.f32 0.0, %v4440
      %v4442 = vpop.f32.mrb[0].mxu0
      %4443 = vmatprep.mubr.f32.mxu0 0.0
      %4444 = vmatmul.mubr.f32.gmra.mrb[0].mxu0 %v4253
      %v4445 = vpop.f32.mrb[0].mxu0
      %v4446 = vadd.f32 0.0, %v4445
      %v4447 = vpop.f32.mrb[0].mxu0
      %4448 = vmatprep.mubr.f32.mxu0 0.0
      %4449 = vmatmul.mubr.f32.gmra.mrb[0].mxu0 %v4256
      %v4450 = vpop.f32.mrb[0].mxu0
      %v4451 = vadd.f32 0.0, %v4450
      %v4452 = vpop.f32.mrb[0].mxu0
      %4453 = vmatprep.mubr.f32.mxu0 0.0
      %4454 = vmatmul.mubr.f32.gmra.mrb[0].mxu0 %v4259
      %v4455 = vpop.f32.mrb[0].mxu0
      %v4456 = vadd.f32 0.0, %v4455
      %v4457 = vpop.f32.mrb[0].mxu0
      %4458 = vmatprep.mubr.f32.mxu0 0.0
      %4459 = vmatmul.mubr.f32.gmra.mrb[0].mxu0 %v4262
      %v4460 = vpop.f32.mrb[0].mxu0
      %v4461 = vadd.f32 0.0, %v4460
      %v4462 = vpop.f32.mrb[0].mxu0
      %4463 = vmatprep.mubr.f32.mxu0 0.0
      %4464 = vmatmul.mubr.f32.gmra.mrb[0].mxu0 %v4265
      %v4465 = vpop.f32.mrb[0].mxu0
      %v4466 = vadd.f32 0.0, %v4465
      %v4467 = vpop.f32.mrb[0].mxu0
      %4468 = vmatprep.mubr.f32.mxu0 0.0
      %4469 = vmatmul.mubr.f32.gmra.mrb[0].mxu0 %v4268
      %v4470 = vpop.f32.mrb[0].mxu0
      %v4471 = vadd.f32 0.0, %v4470
      %v4472 = vpop.f32.mrb[0].mxu0
      %4473 = vmatprep.mubr.f32.mxu0 0.0
      %4474 = vmatmul.mubr.f32.gmra.mrb[0].mxu0 %v4271
      %v4475 = vpop.f32.mrb[0].mxu0
      %v4476 = vadd.f32 0.0, %v4475
      %v4477 = vpop.f32.mrb[0].mxu0
      %4478 = vmatprep.mubr.f32.mxu0 0.0
      %4479 = vmatmul.mubr.f32.gmra.mrb[0].mxu0 %v4274
      %v4480 = vpop.f32.mrb[0].mxu0
      %v4481 = vadd.f32 0.0, %v4480
      %v4482 = vpop.f32.mrb[0].mxu0
      %4483 = vmatprep.mubr.f32.mxu0 0.0
      %4484 = vmatmul.mubr.f32.gmra.mrb[0].mxu0 %v4277
      %v4485 = vpop.f32.mrb[0].mxu0
      %v4486 = vadd.f32 0.0, %v4485
      %v4487 = vpop.f32.mrb[0].mxu0
      %4488 = vmatprep.mubr.f32.mxu0 0.0
      %4489 = vmatmul.mubr.f32.gmra.mrb[0].mxu0 %v4280
      %v4490 = vpop.f32.mrb[0].mxu0
      %v4491 = vadd.f32 0.0, %v4490
      %v4492 = vpop.f32.mrb[0].mxu0
      %4493 = vmatprep.mubr.f32.mxu0 0.0
      %4494 = vmatmul.mubr.f32.gmra.mrb[0].mxu0 %v4283
      %v4495 = vpop.f32.mrb[0].mxu0
      %v4496 = vadd.f32 0.0, %v4495
      %v4497 = vpop.f32.mrb[0].mxu0
      %4498 = vmatprep.mubr.f32.mxu0 0.0
      %4499 = vmatmul.mubr.f32.gmra.mrb[0].mxu0 %v4286
      %v4500 = vpop.f32.mrb[0].mxu0
      %v4501 = vadd.f32 0.0, %v4500
      %v4502 = vpop.f32.mrb[0].mxu0
      %4503 = vmatprep.mubr.f32.mxu0 0.0
      %4504 = vmatmul.mubr.f32.gmra.mrb[0].mxu0 %v4289
      %v4505 = vpop.f32.mrb[0].mxu0
      %v4506 = vadd.f32 0.0, %v4505
      %v4507 = vpop.f32.mrb[0].mxu0
      %4508 = vmatprep.mubr.f32.mxu0 0.0
      %4509 = vmatmul.mubr.f32.gmra.mrb[0].mxu0 %v4292
      %v4510 = vpop.f32.mrb[0].mxu0
      %v4511 = vadd.f32 0.0, %v4510
      %v4512 = vpop.f32.mrb[0].mxu0
      %4513 = vmatprep.mubr.f32.mxu0 0.0
      %4514 = vmatmul.mubr.f32.gmra.mrb[0].mxu0 %v4295
      %v4515 = vpop.f32.mrb[0].mxu0
      %v4516 = vadd.f32 0.0, %v4515
      %v4517 = vpop.f32.mrb[0].mxu0
      %4518 = vmatprep.mubr.f32.mxu0 0.0
      %4519 = vmatmul.mubr.f32.gmra.mrb[0].mxu0 %v4298
      %v4520 = vpop.f32.mrb[0].mxu0
      %v4521 = vadd.f32 0.0, %v4520
      %v4522 = vpop.f32.mrb[0].mxu0
      %4523 = vmatprep.mubr.f32.mxu0 0.0
      %4524 = vmatmul.mubr.f32.gmra.mrb[0].mxu0 %v4301
      %v4525 = vpop.f32.mrb[0].mxu0
      %v4526 = vadd.f32 0.0, %v4525
      %v4527 = vpop.f32.mrb[0].mxu0
      %4528 = vmatprep.mubr.f32.mxu0 0.0
      %4529 = vmatmul.mubr.f32.gmra.mrb[0].mxu0 %v4304
      %v4530 = vpop.f32.mrb[0].mxu0
      %v4531 = vadd.f32 0.0, %v4530
      %v4532 = vpop.f32.mrb[0].mxu0
      %4533 = vmatprep.mubr.f32.mxu0 0.0
      %4534 = vmatmul.mubr.f32.gmra.mrb[0].mxu0 %v4307
      %v4535 = vpop.f32.mrb[0].mxu0
      %v4536 = vadd.f32 0.0, %v4535
      %v4537 = vpop.f32.mrb[0].mxu0
      %4538 = vmatprep.mubr.f32.mxu0 0.0
      %4539 = vmatmul.mubr.f32.gmra.mrb[0].mxu0 %v4310
      %v4540 = vpop.f32.mrb[0].mxu0
      %v4541 = vadd.f32 0.0, %v4540
      %v4542 = vpop.f32.mrb[0].mxu0
      %4543 = vmatprep.mubr.f32.mxu0 0.0
      %4544 = vmatmul.mubr.f32.gmra.mrb[0].mxu0 %v4313
      %v4545 = vpop.f32.mrb[0].mxu0
      %v4546 = vadd.f32 0.0, %v4545
      %v4547 = vpop.f32.mrb[0].mxu0
      %4548 = vmatprep.mubr.f32.mxu0 0.0
      %4549 = vmatmul.mubr.f32.gmra.mrb[0].mxu0 %v4316
      %v4550 = vpop.f32.mrb[0].mxu0
      %v4551 = vadd.f32 0.0, %v4550
      %v4552 = vpop.f32.mrb[0].mxu0
      %4553 = vmatprep.mubr.f32.mxu0 0.0
      %4554 = vmatmul.mubr.f32.gmra.mrb[0].mxu0 %v4319
      %v4555 = vpop.f32.mrb[0].mxu0
      %v4556 = vadd.f32 0.0, %v4555
      %v4557 = vpop.f32.mrb[0].mxu0
      %4558 = vmatprep.mubr.f32.mxu0 0.0
      %4559 = vmatmul.mubr.f32.gmra.mrb[0].mxu0 %v4322
      %v4560 = vpop.f32.mrb[0].mxu0
      %v4561 = vadd.f32 0.0, %v4560
      %v4562 = vpop.f32.mrb[0].mxu0
      %4563 = vmatprep.mubr.f32.mxu0 0.0
      %4564 = vmatmul.mubr.f32.gmra.mrb[0].mxu0 %v4325
      %v4565 = vpop.f32.mrb[0].mxu0
      %v4566 = vadd.f32 0.0, %v4565
      %v4567 = vpop.f32.mrb[0].mxu0
      %4568 = vmatprep.mubr.f32.mxu0 0.0
      %4569 = vmatmul.mubr.f32.gmra.mrb[0].mxu0 %v4328
      %v4570 = vpop.f32.mrb[0].mxu0
      %v4571 = vadd.f32 0.0, %v4570
      %v4572 = vpop.f32.mrb[0].mxu0
      %4573 = vmatprep.mubr.f32.mxu0 0.0
      %4574 = vmatmul.mubr.f32.gmra.mrb[0].mxu0 %v4331
      %v4575 = vpop.f32.mrb[0].mxu0
      %v4576 = vadd.f32 0.0, %v4575
      %v4577 = vpop.f32.mrb[0].mxu0
      %4578 = vmatprep.mubr.f32.mxu0 0.0
      %4579 = vmatmul.mubr.f32.gmra.mrb[0].mxu0 %v4334
      %v4580 = vpop.f32.mrb[0].mxu0
      %v4581 = vadd.f32 0.0, %v4580
      %v4582 = vpop.f32.mrb[0].mxu0
      %4583 = vdwg.mxu0
      %v4584 = vadd.f32 %v4154, %v4406
      %v4585 = vadd.f32 %v4155, %v4411
      %v4586 = vadd.f32 %v4156, %v4416
      %v4587 = vadd.f32 %v4157, %v4421
      %v4588 = vadd.f32 %v4158, %v4426
      %v4589 = vadd.f32 %v4159, %v4431
      %v4590 = vadd.f32 %v4160, %v4436
      %v4591 = vadd.f32 %v4161, %v4441
      %v4592 = vadd.f32 %v4162, %v4446
      %v4593 = vadd.f32 %v4163, %v4451
      %v4594 = vadd.f32 %v4164, %v4456
      %v4595 = vadd.f32 %v4165, %v4461
      %v4596 = vadd.f32 %v4166, %v4466
      %v4597 = vadd.f32 %v4167, %v4471
      %v4598 = vadd.f32 %v4168, %v4476
      %v4599 = vadd.f32 %v4169, %v4481
      %v4600 = vadd.f32 %v4170, %v4486
      %v4601 = vadd.f32 %v4171, %v4491
      %v4602 = vadd.f32 %v4172, %v4496
      %v4603 = vadd.f32 %v4173, %v4501
      %v4604 = vadd.f32 %v4174, %v4506
      %v4605 = vadd.f32 %v4175, %v4511
      %v4606 = vadd.f32 %v4176, %v4516
      %v4607 = vadd.f32 %v4177, %v4521
      %v4608 = vadd.f32 %v4178, %v4526
      %v4609 = vadd.f32 %v4179, %v4531
      %v4610 = vadd.f32 %v4180, %v4536
      %v4611 = vadd.f32 %v4181, %v4541
      %v4612 = vadd.f32 %v4182, %v4546
      %v4613 = vadd.f32 %v4183, %v4551
      %v4614 = vadd.f32 %v4184, %v4556
      %v4615 = vadd.f32 %v4185, %v4561
      %v4616 = vadd.f32 %v4186, %v4566
      %v4617 = vadd.f32 %v4187, %v4571
      %v4618 = vadd.f32 %v4188, %v4576
      %v4619 = vadd.f32 %v4189, %v4581
      %4620 = vst [vmem:[%s204] sm:$0xff] %v4584
      %4621 = vst [vmem:[%s204 + $0x8] sm:$0xff] %v4585
      %4622 = vst [vmem:[%s204 + $0x10] sm:$0xff] %v4586
      %4623 = vst [vmem:[%s204 + $0x18] sm:$0xff] %v4587
      %4624 = vst [vmem:[%s204 + $0x20] sm:$0xff] %v4588
      %4625 = vst [vmem:[%s204 + $0x28] sm:$0xff] %v4589
      %4626 = vst [vmem:[%s204 + $0x30] sm:$0xff] %v4590
      %4627 = vst [vmem:[%s204 + $0x38] sm:$0xff] %v4591
      %4628 = vst [vmem:[%s204 + $0x40] sm:$0xff] %v4592
      %4629 = vst [vmem:[%s204 + $0x48] sm:$0xff] %v4593
      %4630 = vst [vmem:[%s204 + $0x50] sm:$0xff] %v4594
      %4631 = vst [vmem:[%s204 + $0x58] sm:$0xff] %v4595
      %4632 = vst [vmem:[%s204 + $0x60] sm:$0xff] %v4596
      %4633 = vst [vmem:[%s204 + $0x68] sm:$0xff] %v4597
      %4634 = vst [vmem:[%s204 + $0x70] sm:$0xff] %v4598
      %4635 = vst [vmem:[%s204 + $0x78] sm:$0xff] %v4599
      %4636 = vst [vmem:[%s204 + $0x80] sm:$0xff] %v4600
      %4637 = vst [vmem:[%s204 + $0x88] sm:$0xff] %v4601
      %4638 = vst [vmem:[%s204 + $0x90] sm:$0xff] %v4602
      %4639 = vst [vmem:[%s204 + $0x98] sm:$0xff] %v4603
      %4640 = vst [vmem:[%s204 + $0xa0] sm:$0xff] %v4604
      %4641 = vst [vmem:[%s204 + $0xa8] sm:$0xff] %v4605
      %4642 = vst [vmem:[%s204 + $0xb0] sm:$0xff] %v4606
      %4643 = vst [vmem:[%s204 + $0xb8] sm:$0xff] %v4607
      %4644 = vst [vmem:[%s204 + $0xc0] sm:$0xff] %v4608
      %4645 = vst [vmem:[%s204 + $0xc8] sm:$0xff] %v4609
      %4646 = vst [vmem:[%s204 + $0xd0] sm:$0xff] %v4610
      %4647 = vst [vmem:[%s204 + $0xd8] sm:$0xff] %v4611
      %4648 = vst [vmem:[%s204 + $0xe0] sm:$0xff] %v4612
      %4649 = vst [vmem:[%s204 + $0xe8] sm:$0xff] %v4613
      %4650 = vst [vmem:[%s204 + $0xf0] sm:$0xff] %v4614
      %4651 = vst [vmem:[%s204 + $0xf8] sm:$0xff] %v4615
      %4652 = vst [vmem:[%s204 + $0x100] sm:$0xff] %v4616
      %4653 = vst [vmem:[%s204 + $0x108] sm:$0xff] %v4617
      %4654 = vst [vmem:[%s204 + $0x110] sm:$0xff] %v4618
      %4655 = vst [vmem:[%s204 + $0x118] sm:$0xff] %v4619
      %v4656 = vld [vmem:[%s204] sm:$0xff]
      %v4657 = vld [vmem:[%s204 + $0x8] sm:$0xff]
      %v4658 = vld [vmem:[%s204 + $0x10] sm:$0xff]
      %v4659 = vld [vmem:[%s204 + $0x18] sm:$0xff]
      %v4660 = vld [vmem:[%s204 + $0x20] sm:$0xff]
      %v4661 = vld [vmem:[%s204 + $0x28] sm:$0xff]
      %v4662 = vld [vmem:[%s204 + $0x30] sm:$0xff]
      %v4663 = vld [vmem:[%s204 + $0x38] sm:$0xff]
      %v4664 = vld [vmem:[%s204 + $0x40] sm:$0xff]
      %v4665 = vld [vmem:[%s204 + $0x48] sm:$0xff]
      %v4666 = vld [vmem:[%s204 + $0x50] sm:$0xff]
      %v4667 = vld [vmem:[%s204 + $0x58] sm:$0xff]
      %v4668 = vld [vmem:[%s204 + $0x60] sm:$0xff]
      %v4669 = vld [vmem:[%s204 + $0x68] sm:$0xff]
      %v4670 = vld [vmem:[%s204 + $0x70] sm:$0xff]
      %v4671 = vld [vmem:[%s204 + $0x78] sm:$0xff]
      %v4672 = vld [vmem:[%s204 + $0x80] sm:$0xff]
      %v4673 = vld [vmem:[%s204 + $0x88] sm:$0xff]
      %v4674 = vld [vmem:[%s204 + $0x90] sm:$0xff]
      %v4675 = vld [vmem:[%s204 + $0x98] sm:$0xff]
      %v4676 = vld [vmem:[%s204 + $0xa0] sm:$0xff]
      %v4677 = vld [vmem:[%s204 + $0xa8] sm:$0xff]
      %v4678 = vld [vmem:[%s204 + $0xb0] sm:$0xff]
      %v4679 = vld [vmem:[%s204 + $0xb8] sm:$0xff]
      %v4680 = vld [vmem:[%s204 + $0xc0] sm:$0xff]
      %v4681 = vld [vmem:[%s204 + $0xc8] sm:$0xff]
      %v4682 = vld [vmem:[%s204 + $0xd0] sm:$0xff]
      %v4683 = vld [vmem:[%s204 + $0xd8] sm:$0xff]
      %v4684 = vld [vmem:[%s204 + $0xe0] sm:$0xff]
      %v4685 = vld [vmem:[%s204 + $0xe8] sm:$0xff]
      %v4686 = vld [vmem:[%s204 + $0xf0] sm:$0xff]
      %v4687 = vld [vmem:[%s204 + $0xf8] sm:$0xff]
      %v4688 = vld [vmem:[%s204 + $0x100] sm:$0xff]
      %v4689 = vld [vmem:[%s204 + $0x108] sm:$0xff]
      %v4690 = vld [vmem:[%s204 + $0x110] sm:$0xff]
      %v4691 = vld [vmem:[%s204 + $0x118] sm:$0xff]
      %v4692 = vld [vmem:[%s2] sm:$0xff]
      %v4693 = vld [vmem:[%s2 + $0x8] sm:$0xff]
      %v4694 = vld [vmem:[%s2 + $0x10] sm:$0xff]
      %v4695 = vld [vmem:[%s2 + $0x18] sm:$0xff]
      %v4696 = vld [vmem:[%s2 + $0x20] sm:$0xff]
      %v4697 = vld [vmem:[%s2 + $0x28] sm:$0xff]
      %v4698 = vld [vmem:[%s2 + $0x30] sm:$0xff]
      %v4699 = vld [vmem:[%s2 + $0x38] sm:$0xff]
      %v4700 = vld [vmem:[%s2 + $0x40] sm:$0xff]
      %v4701 = vld [vmem:[%s2 + $0x48] sm:$0xff]
      %v4702 = vld [vmem:[%s2 + $0x50] sm:$0xff]
      %v4703 = vld [vmem:[%s2 + $0x58] sm:$0xff]
      %v4704 = vld [vmem:[%s2 + $0x60] sm:$0xff]
      %v4705 = vld [vmem:[%s2 + $0x68] sm:$0xff]
      %v4706 = vld [vmem:[%s2 + $0x70] sm:$0xff]
      %v4707 = vld [vmem:[%s2 + $0x78] sm:$0xff]
      %v4708 = vld [vmem:[%s2 + $0x80] sm:$0xff]
      %v4709 = vld [vmem:[%s2 + $0x88] sm:$0xff]
      %v4710 = vld [vmem:[%s2 + $0x90] sm:$0xff]
      %v4711 = vld [vmem:[%s2 + $0x98] sm:$0xff]
      %v4712 = vld [vmem:[%s2 + $0xa0] sm:$0xff]
      %v4713 = vld [vmem:[%s2 + $0xa8] sm:$0xff]
      %v4714 = vld [vmem:[%s2 + $0xb0] sm:$0xff]
      %v4715 = vld [vmem:[%s2 + $0xb8] sm:$0xff]
      %v4716 = vld [vmem:[%s2 + $0xc0] sm:$0xff]
      %v4717 = vld [vmem:[%s2 + $0xc8] sm:$0xff]
      %v4718 = vld [vmem:[%s2 + $0xd0] sm:$0xff]
      %v4719 = vld [vmem:[%s2 + $0xd8] sm:$0xff]
      %v4720 = vld [vmem:[%s2 + $0xe0] sm:$0xff]
      %v4721 = vld [vmem:[%s2 + $0xe8] sm:$0xff]
      %v4722 = vld [vmem:[%s2 + $0xf0] sm:$0xff]
      %v4723 = vld [vmem:[%s2 + $0xf8] sm:$0xff]
      %v4724 = vld [vmem:[%s2 + $0x100] sm:$0xff]
      %v4725 = vld [vmem:[%s2 + $0x108] sm:$0xff]
      %v4726 = vld [vmem:[%s2 + $0x110] sm:$0xff]
      %v4727 = vld [vmem:[%s2 + $0x118] sm:$0xff]
      %4729 = vset.pattern.permute.xlu0 0
      %4730 = vperm.xlu0 %4729, %v4692
      %v4731 = vpop.permute.xlu0 %4730
      %4734 = vset.pattern.permute.xlu0 0
      %4735 = vperm.xlu0 %4734, %v4693
      %v4736 = vpop.permute.xlu0 %4735
      %4739 = vset.pattern.permute.xlu0 0
      %4740 = vperm.xlu0 %4739, %v4694
      %v4741 = vpop.permute.xlu0 %4740
      %4744 = vset.pattern.permute.xlu0 0
      %4745 = vperm.xlu0 %4744, %v4695
      %v4746 = vpop.permute.xlu0 %4745
      %4749 = vset.pattern.permute.xlu0 0
      %4750 = vperm.xlu0 %4749, %v4696
      %v4751 = vpop.permute.xlu0 %4750
      %4754 = vset.pattern.permute.xlu0 0
      %4755 = vperm.xlu0 %4754, %v4697
      %v4756 = vpop.permute.xlu0 %4755
      %4759 = vset.pattern.permute.xlu0 0
      %4760 = vperm.xlu0 %4759, %v4698
      %v4761 = vpop.permute.xlu0 %4760
      %4764 = vset.pattern.permute.xlu0 0
      %4765 = vperm.xlu0 %4764, %v4699
      %v4766 = vpop.permute.xlu0 %4765
      %4769 = vset.pattern.permute.xlu0 0
      %4770 = vperm.xlu0 %4769, %v4700
      %v4771 = vpop.permute.xlu0 %4770
      %4774 = vset.pattern.permute.xlu0 0
      %4775 = vperm.xlu0 %4774, %v4701
      %v4776 = vpop.permute.xlu0 %4775
      %4779 = vset.pattern.permute.xlu0 0
      %4780 = vperm.xlu0 %4779, %v4702
      %v4781 = vpop.permute.xlu0 %4780
      %4784 = vset.pattern.permute.xlu0 0
      %4785 = vperm.xlu0 %4784, %v4703
      %v4786 = vpop.permute.xlu0 %4785
      %4789 = vset.pattern.permute.xlu0 0
      %4790 = vperm.xlu0 %4789, %v4704
      %v4791 = vpop.permute.xlu0 %4790
      %4794 = vset.pattern.permute.xlu0 0
      %4795 = vperm.xlu0 %4794, %v4705
      %v4796 = vpop.permute.xlu0 %4795
      %4799 = vset.pattern.permute.xlu0 0
      %4800 = vperm.xlu0 %4799, %v4706
      %v4801 = vpop.permute.xlu0 %4800
      %4804 = vset.pattern.permute.xlu0 0
      %4805 = vperm.xlu0 %4804, %v4707
      %v4806 = vpop.permute.xlu0 %4805
      %4809 = vset.pattern.permute.xlu0 0
      %4810 = vperm.xlu0 %4809, %v4708
      %v4811 = vpop.permute.xlu0 %4810
      %4814 = vset.pattern.permute.xlu0 0
      %4815 = vperm.xlu0 %4814, %v4709
      %v4816 = vpop.permute.xlu0 %4815
      %4819 = vset.pattern.permute.xlu0 0
      %4820 = vperm.xlu0 %4819, %v4710
      %v4821 = vpop.permute.xlu0 %4820
      %4824 = vset.pattern.permute.xlu0 0
      %4825 = vperm.xlu0 %4824, %v4711
      %v4826 = vpop.permute.xlu0 %4825
      %4829 = vset.pattern.permute.xlu0 0
      %4830 = vperm.xlu0 %4829, %v4712
      %v4831 = vpop.permute.xlu0 %4830
      %4834 = vset.pattern.permute.xlu0 0
      %4835 = vperm.xlu0 %4834, %v4713
      %v4836 = vpop.permute.xlu0 %4835
      %4839 = vset.pattern.permute.xlu0 0
      %4840 = vperm.xlu0 %4839, %v4714
      %v4841 = vpop.permute.xlu0 %4840
      %4844 = vset.pattern.permute.xlu0 0
      %4845 = vperm.xlu0 %4844, %v4715
      %v4846 = vpop.permute.xlu0 %4845
      %4849 = vset.pattern.permute.xlu0 0
      %4850 = vperm.xlu0 %4849, %v4716
      %v4851 = vpop.permute.xlu0 %4850
      %4854 = vset.pattern.permute.xlu0 0
      %4855 = vperm.xlu0 %4854, %v4717
      %v4856 = vpop.permute.xlu0 %4855
      %4859 = vset.pattern.permute.xlu0 0
      %4860 = vperm.xlu0 %4859, %v4718
      %v4861 = vpop.permute.xlu0 %4860
      %4864 = vset.pattern.permute.xlu0 0
      %4865 = vperm.xlu0 %4864, %v4719
      %v4866 = vpop.permute.xlu0 %4865
      %4869 = vset.pattern.permute.xlu0 0
      %4870 = vperm.xlu0 %4869, %v4720
      %v4871 = vpop.permute.xlu0 %4870
      %4874 = vset.pattern.permute.xlu0 0
      %4875 = vperm.xlu0 %4874, %v4721
      %v4876 = vpop.permute.xlu0 %4875
      %4879 = vset.pattern.permute.xlu0 0
      %4880 = vperm.xlu0 %4879, %v4722
      %v4881 = vpop.permute.xlu0 %4880
      %4884 = vset.pattern.permute.xlu0 0
      %4885 = vperm.xlu0 %4884, %v4723
      %v4886 = vpop.permute.xlu0 %4885
      %4889 = vset.pattern.permute.xlu0 0
      %4890 = vperm.xlu0 %4889, %v4724
      %v4891 = vpop.permute.xlu0 %4890
      %4894 = vset.pattern.permute.xlu0 0
      %4895 = vperm.xlu0 %4894, %v4725
      %v4896 = vpop.permute.xlu0 %4895
      %4899 = vset.pattern.permute.xlu0 0
      %4900 = vperm.xlu0 %4899, %v4726
      %v4901 = vpop.permute.xlu0 %4900
      %4904 = vset.pattern.permute.xlu0 0
      %4905 = vperm.xlu0 %4904, %v4727
      %v4906 = vpop.permute.xlu0 %4905
      %v4908 = vmul.f32 %v4656, %v4731
      %v4909 = vmul.f32 %v4657, %v4736
      %v4910 = vmul.f32 %v4658, %v4741
      %v4911 = vmul.f32 %v4659, %v4746
      %v4912 = vmul.f32 %v4660, %v4751
      %v4913 = vmul.f32 %v4661, %v4756
      %v4914 = vmul.f32 %v4662, %v4761
      %v4915 = vmul.f32 %v4663, %v4766
      %v4916 = vmul.f32 %v4664, %v4771
      %v4917 = vmul.f32 %v4665, %v4776
      %v4918 = vmul.f32 %v4666, %v4781
      %v4919 = vmul.f32 %v4667, %v4786
      %v4920 = vmul.f32 %v4668, %v4791
      %v4921 = vmul.f32 %v4669, %v4796
      %v4922 = vmul.f32 %v4670, %v4801
      %v4923 = vmul.f32 %v4671, %v4806
      %v4924 = vmul.f32 %v4672, %v4811
      %v4925 = vmul.f32 %v4673, %v4816
      %v4926 = vmul.f32 %v4674, %v4821
      %v4927 = vmul.f32 %v4675, %v4826
      %v4928 = vmul.f32 %v4676, %v4831
      %v4929 = vmul.f32 %v4677, %v4836
      %v4930 = vmul.f32 %v4678, %v4841
      %v4931 = vmul.f32 %v4679, %v4846
      %v4932 = vmul.f32 %v4680, %v4851
      %v4933 = vmul.f32 %v4681, %v4856
      %v4934 = vmul.f32 %v4682, %v4861
      %v4935 = vmul.f32 %v4683, %v4866
      %v4936 = vmul.f32 %v4684, %v4871
      %v4937 = vmul.f32 %v4685, %v4876
      %v4938 = vmul.f32 %v4686, %v4881
      %v4939 = vmul.f32 %v4687, %v4886
      %v4940 = vmul.f32 %v4688, %v4891
      %v4941 = vmul.f32 %v4689, %v4896
      %v4942 = vmul.f32 %v4690, %v4901
      %v4943 = vmul.f32 %v4691, %v4906
      %v4944 = vadd.f32 %v4908, %v4909
      %v4945 = vadd.f32 %v4944, %v4910
      %v4946 = vadd.f32 %v4945, %v4911
      %v4947 = vadd.f32 %v4946, %v4912
      %v4948 = vadd.f32 %v4947, %v4913
      %v4949 = vadd.f32 %v4948, %v4914
      %v4950 = vadd.f32 %v4949, %v4915
      %v4951 = vadd.f32 %v4950, %v4916
      %v4952 = vadd.f32 %v4951, %v4917
      %v4953 = vadd.f32 %v4952, %v4918
      %v4954 = vadd.f32 %v4953, %v4919
      %v4955 = vadd.f32 %v4954, %v4920
      %v4956 = vadd.f32 %v4955, %v4921
      %v4957 = vadd.f32 %v4956, %v4922
      %v4958 = vadd.f32 %v4957, %v4923
      %v4959 = vadd.f32 %v4958, %v4924
      %v4960 = vadd.f32 %v4959, %v4925
      %v4961 = vadd.f32 %v4960, %v4926
      %v4962 = vadd.f32 %v4961, %v4927
      %v4963 = vadd.f32 %v4962, %v4928
      %v4964 = vadd.f32 %v4963, %v4929
      %v4965 = vadd.f32 %v4964, %v4930
      %v4966 = vadd.f32 %v4965, %v4931
      %v4967 = vadd.f32 %v4966, %v4932
      %v4968 = vadd.f32 %v4967, %v4933
      %v4969 = vadd.f32 %v4968, %v4934
      %v4970 = vadd.f32 %v4969, %v4935
      %v4971 = vadd.f32 %v4970, %v4936
      %v4972 = vadd.f32 %v4971, %v4937
      %v4973 = vadd.f32 %v4972, %v4938
      %v4974 = vadd.f32 %v4973, %v4939
      %v4975 = vadd.f32 %v4974, %v4940
      %v4976 = vadd.f32 %v4975, %v4941
      %v4977 = vadd.f32 %v4976, %v4942
      %v4978 = vadd.f32 %v4977, %v4943
      %v4979 = vrot.slane %v4978, 4
      %v4980 = vadd.f32 %v4978, %v4979
      %v4981 = vrot.slane %v4980, 2
      %v4982 = vadd.f32 %v4980, %v4981
      %v4983 = vrot.slane %v4982, 1
      %v4984 = vadd.f32 %v4982, %v4983
      %v4985 = vmul.f32 %v4908, %v4656
      %v4986 = vmul.f32 %v4909, %v4657
      %v4987 = vmul.f32 %v4910, %v4658
      %v4988 = vmul.f32 %v4911, %v4659
      %v4989 = vmul.f32 %v4912, %v4660
      %v4990 = vmul.f32 %v4913, %v4661
      %v4991 = vmul.f32 %v4914, %v4662
      %v4992 = vmul.f32 %v4915, %v4663
      %v4993 = vmul.f32 %v4916, %v4664
      %v4994 = vmul.f32 %v4917, %v4665
      %v4995 = vmul.f32 %v4918, %v4666
      %v4996 = vmul.f32 %v4919, %v4667
      %v4997 = vmul.f32 %v4920, %v4668
      %v4998 = vmul.f32 %v4921, %v4669
      %v4999 = vmul.f32 %v4922, %v4670
      %v5000 = vmul.f32 %v4923, %v4671
      %v5001 = vmul.f32 %v4924, %v4672
      %v5002 = vmul.f32 %v4925, %v4673
      %v5003 = vmul.f32 %v4926, %v4674
      %v5004 = vmul.f32 %v4927, %v4675
      %v5005 = vmul.f32 %v4928, %v4676
      %v5006 = vmul.f32 %v4929, %v4677
      %v5007 = vmul.f32 %v4930, %v4678
      %v5008 = vmul.f32 %v4931, %v4679
      %v5009 = vmul.f32 %v4932, %v4680
      %v5010 = vmul.f32 %v4933, %v4681
      %v5011 = vmul.f32 %v4934, %v4682
      %v5012 = vmul.f32 %v4935, %v4683
      %v5013 = vmul.f32 %v4936, %v4684
      %v5014 = vmul.f32 %v4937, %v4685
      %v5015 = vmul.f32 %v4938, %v4686
      %v5016 = vmul.f32 %v4939, %v4687
      %v5017 = vmul.f32 %v4940, %v4688
      %v5018 = vmul.f32 %v4941, %v4689
      %v5019 = vmul.f32 %v4942, %v4690
      %v5020 = vmul.f32 %v4943, %v4691
      %v5021 = vadd.f32 %v4985, %v4986
      %v5022 = vadd.f32 %v5021, %v4987
      %v5023 = vadd.f32 %v5022, %v4988
      %v5024 = vadd.f32 %v5023, %v4989
      %v5025 = vadd.f32 %v5024, %v4990
      %v5026 = vadd.f32 %v5025, %v4991
      %v5027 = vadd.f32 %v5026, %v4992
      %v5028 = vadd.f32 %v5027, %v4993
      %v5029 = vadd.f32 %v5028, %v4994
      %v5030 = vadd.f32 %v5029, %v4995
      %v5031 = vadd.f32 %v5030, %v4996
      %v5032 = vadd.f32 %v5031, %v4997
      %v5033 = vadd.f32 %v5032, %v4998
      %v5034 = vadd.f32 %v5033, %v4999
      %v5035 = vadd.f32 %v5034, %v5000
      %v5036 = vadd.f32 %v5035, %v5001
      %v5037 = vadd.f32 %v5036, %v5002
      %v5038 = vadd.f32 %v5037, %v5003
      %v5039 = vadd.f32 %v5038, %v5004
      %v5040 = vadd.f32 %v5039, %v5005
      %v5041 = vadd.f32 %v5040, %v5006
      %v5042 = vadd.f32 %v5041, %v5007
      %v5043 = vadd.f32 %v5042, %v5008
      %v5044 = vadd.f32 %v5043, %v5009
      %v5045 = vadd.f32 %v5044, %v5010
      %v5046 = vadd.f32 %v5045, %v5011
      %v5047 = vadd.f32 %v5046, %v5012
      %v5048 = vadd.f32 %v5047, %v5013
      %v5049 = vadd.f32 %v5048, %v5014
      %v5050 = vadd.f32 %v5049, %v5015
      %v5051 = vadd.f32 %v5050, %v5016
      %v5052 = vadd.f32 %v5051, %v5017
      %v5053 = vadd.f32 %v5052, %v5018
      %v5054 = vadd.f32 %v5053, %v5019
      %v5055 = vadd.f32 %v5054, %v5020
      %v5056 = vrot.slane %v5055, 4
      %v5057 = vadd.f32 %v5055, %v5056
      %v5058 = vrot.slane %v5057, 2
      %v5059 = vadd.f32 %v5057, %v5058
      %v5060 = vrot.slane %v5059, 1
      %v5061 = vadd.f32 %v5059, %v5060
      %5062 = vst [vmem:[%s208] sm:$0x1] %v4984
      %5063 = vst [vmem:[%s208 + $0x1] sm:$0x1] %v5061
      %p5064 = scmp.lt.s32.totalorder %s16, 1
      %s5065 = scalar_select %p5064, %s16, 1
      %s5066 = smul.addr %s5065, 36
      %s5067 = smul.addr %s5066, 8
      %s5068 = scalar_lea.vmem %s3, %s5067
      %p5069 = scmp.lt.s32.totalorder %s16, 1
      %s5070 = scalar_select %p5069, %s16, 1
      %s5071 = smul.addr %s5070, 2
      %s5072 = scalar_lea.vmem %s4, %s5071
      // Predicated region
      $region33: #{up_forward.6} parent=31 // pred_check
        %p5073 = pneg %p102
      $region34: #{up_forward.6} parent=31 // pred_check_branch
        %5075 = sbr.rel (%p5073) target = $region36
      $region35: #{up_forward.6} parent=31 // pred_region
        _
      $region36: #{up_forward.6} parent=31 // pred_fallthru
        _
      // Predicated region
      $region37: #{up_forward.6} parent=31 // pred_check
        %p5076 = pneg %p128
      $region38: #{up_forward.6} parent=31 // pred_check_branch
        %5078 = sbr.rel (%p5076) target = $region40
      $region39: #{up_forward.6} parent=31 // pred_region
        _
      $region40: #{up_forward.6} parent=31 // pred_fallthru
        _
    $region32: #{up_forward.6} parent=5 // pred_fallthru
      _
    %p5079 = scmp.le.s32.totalorder 2, %s11
    // Predicated region
    $region41: #{up_forward.6} parent=5 // pred_check
      %p5080 = pneg %p5079
    $region42: #{up_forward.6} parent=5 // pred_check_branch
      %5082 = sbr.rel (%p5080) target = $region44
    $region43: #{up_forward.6} parent=5 // pred_region
      %s5083 = ssub.s32 %s11, 2
      // Predicated region
      $region45: #{up_forward.6} parent=43 // pred_check
        %p5084 = pneg %p108
      $region46: #{up_forward.6} parent=43 // pred_check_branch
        %5086 = sbr.rel (%p5084) target = $region48
      $region47: #{up_forward.6} parent=43 // pred_region
        %p5087 = scmp.lt.s32.totalorder %s17, 1
        %s5088 = scalar_select %p5087, %s17, 1
        %s5089 = smul.addr %s5088, 36
        %s5090 = smul.addr %s5089, 8
        %s5091 = scalar_lea.vmem %s3, %s5090
      $region48: #{up_forward.6} parent=43 // pred_fallthru
        _
      // Predicated region
      $region49: #{up_forward.6} parent=43 // pred_check
        %p5092 = pneg %p134
      $region50: #{up_forward.6} parent=43 // pred_check_branch
        %5094 = sbr.rel (%p5092) target = $region52
      $region51: #{up_forward.6} parent=43 // pred_region
        %p5095 = scmp.lt.s32.totalorder %s17, 1
        %s5096 = scalar_select %p5095, %s17, 1
        %s5097 = smul.addr %s5096, 2
        %s5098 = scalar_lea.vmem %s4, %s5097
      $region52: #{up_forward.6} parent=43 // pred_fallthru
        _
    $region44: #{up_forward.6} parent=5 // pred_fallthru
      _
  $region6: #{up_forward.6} parent=0 // loop_footer
    %s15 = sadd.s32 1, %s11
  $region7: #{up_forward.6} parent=0 // loop_footer_branch
    %10 = sbr.rel target = $region3
  $region8: #{up_forward.6} parent=0 // loop_exit
    _

</llo_original>
